<compile_context>
chip_gen: v5e
topology: v5e:2x2
jax: 0.10.0
libtpu: 0.0.40
codegen_flags: <defaults>
</compile_context>

<pallas_src>
import functools
import math

import jax
import jax.numpy as jnp
from jax import lax
from jax.experimental import pallas as pl
from jax.experimental.pallas import tpu as pltpu

F32 = jnp.float32
BF16 = jnp.bfloat16
HIGHEST = lax.Precision.HIGHEST
LN_EPS = 1e-5

# Row layout (per decoder layer) inside the packed bias/LN operand.
_BIAS_ROWS_PER_LAYER = 9
(_ROW_RED_B, _ROW_QKV_B, _ROW_O_B, _ROW_FC1_B, _ROW_FC2_B,
 _ROW_LN1_G, _ROW_LN1_B, _ROW_LN2_G, _ROW_LN2_B) = range(_BIAS_ROWS_PER_LAYER)


def _round_up(x, m):
    return ((x + m - 1) // m) * m


# ------------------------------ fused kernel --------------------------------

def _fused_decoder_kernel(hs_ref, film_ref, red_w_ref, qkv_w_ref, o_w_ref,
                          fc1_w_ref, fc2_w_ref, dec_w_ref, bias_ref,
                          o_ref, attn_sc,
                          *, depth, num_heads, cond_layer, tb, r_dim, i_dim,
                          n_pad):
    R = r_dim
    dh = R // num_heads

    def bias(row, width):
        # Static row / static width slice of the packed bias operand.
        return bias_ref[row:row + 1, 0:width]                    # (1, width)

    def mm(x, w, b=None):
        # bf16 MXU inputs, f32 accumulation; bias added in f32.
        y = jnp.dot(x.astype(BF16), w, preferred_element_type=F32)
        if b is not None:
            y = y + b
        return y

    def layer_norm(x, g, b):
        mean = jnp.mean(x, axis=-1, keepdims=True)
        var = jnp.mean(jnp.square(x - mean), axis=-1, keepdims=True)
        return (x - mean) * lax.rsqrt(var + LN_EPS) * g + b

    def decoder_layer(x, i):
        # Post-norm CLIPSeg decoder layer (relu MLP).  x: (S, R) f32.
        b0 = i * _BIAS_ROWS_PER_LAYER
        qkv = mm(x, qkv_w_ref[i], bias(b0 + _ROW_QKV_B, 3 * R))  # (S, 3R)
        for h in range(num_heads):
            lo = h * dh
            q = qkv[:, lo:lo + dh]               # scale pre-folded into W_q
            k = qkv[:, R + lo:R + lo + dh]
            v = qkv[:, 2 * R + lo:2 * R + lo + dh]
            # q @ k^T: contract last dims, no materialized transpose.
            s = lax.dot_general(q.astype(BF16), k.astype(BF16),
                                (((1,), (1,)), ((), ())),
                                preferred_element_type=F32)      # (S, S)
            s = s - jnp.max(s, axis=-1, keepdims=True)           # f32 softmax
            e = jnp.exp(s)
            p = e * pl.reciprocal(jnp.sum(e, axis=-1, keepdims=True),
                                  approx=True)
            o = jnp.dot(p.astype(BF16), v.astype(BF16),
                        preferred_element_type=F32)              # (S, dh)
            attn_sc[:, lo:lo + dh] = o           # concat heads in VMEM scratch
        # Single K=R out-projection over the concatenated heads.
        attn = mm(attn_sc[...], o_w_ref[i], bias(b0 + _ROW_O_B, R))
        h1 = layer_norm(x + attn, bias(b0 + _ROW_LN1_G, R),
                        bias(b0 + _ROW_LN1_B, R))
        m = jnp.maximum(mm(h1, fc1_w_ref[i], bias(b0 + _ROW_FC1_B, i_dim)), 0.0)
        m = mm(m, fc2_w_ref[i], bias(b0 + _ROW_FC2_B, R))
        return layer_norm(h1 + m, bias(b0 + _ROW_LN2_G, R),
                          bias(b0 + _ROW_LN2_B, R))

    dec_w = dec_w_ref[...]                                       # (R, n_pad)
    dec_b = bias(depth * _BIAS_ROWS_PER_LAYER, n_pad)            # (1, n_pad)

    for t in range(tb):                          # TB batch elements per step
        out = None
        for i in range(depth):
            x = hs_ref[i, t]                                     # (S, H) bf16
            red = mm(x, red_w_ref[i],
                     bias(i * _BIAS_ROWS_PER_LAYER + _ROW_RED_B, R))
            out = red if out is None else out + red
            if i == cond_layer:
                # FiLM mul/add precomputed in the wrapper: (1, R) each.
                out = out * film_ref[t, 0:1, :] + film_ref[t, 1:2, :]
            out = decoder_layer(out, i)
        # ConvTranspose2d(R, 3, P, stride=P) == per-token matmul; columns are
        # 128-lane padded so the single HBM store is lane-dense.
        o_ref[t] = mm(out, dec_w, dec_b).astype(o_ref.dtype)


# -------------------------- operand preparation ------------------------------

def _prep_kernel_operands(params, cond, cfg):
    depth = cfg["depth"]
    R = cfg["reduce_dim"]
    I = cfg["decoder_intermediate_size"]
    P = cfg["patch_size"]
    num_heads = cfg["decoder_num_heads"]
    dh = R // num_heads
    scale = dh ** -0.5

    n_out = 3 * P * P
    n_pad = _round_up(n_out, 128)
    width = _round_up(max(3 * R, I, R, n_pad), 128)

    def bf(w):
        return jnp.asarray(w, BF16)

    def row(v):
        v = jnp.asarray(v, F32).reshape(-1)
        return jnp.pad(v, (0, width - v.shape[0]))

    red_w = jnp.stack([bf(r["w"]) for r in params["reduces"]])    # (d, H, R)

    qkv_ws, o_ws, fc1_ws, fc2_ws, bias_rows = [], [], [], [], []
    for i, lp in enumerate(params["layers"]):
        # Fold the dh**-0.5 attention scale into the q projection.
        qw = jnp.asarray(lp["q"]["w"], F32) * scale
        qb = jnp.asarray(lp["q"]["b"], F32) * scale
        qkv_ws.append(bf(jnp.concatenate([qw, lp["k"]["w"], lp["v"]["w"]],
                                         axis=1)))
        o_ws.append(bf(lp["o"]["w"]))
        fc1_ws.append(bf(lp["fc1"]["w"]))
        fc2_ws.append(bf(lp["fc2"]["w"]))
        bias_rows += [
            row(params["reduces"][i]["b"]),
            row(jnp.concatenate([qb, lp["k"]["b"], lp["v"]["b"]], axis=0)),
            row(lp["o"]["b"]),
            row(lp["fc1"]["b"]),
            row(lp["fc2"]["b"]),
            row(lp["ln1_g"]), row(lp["ln1_b"]),
            row(lp["ln2_g"]), row(lp["ln2_b"]),
        ]
    bias_rows.append(row(params["deconv"]["b_full"]))
    biases = jnp.stack(bias_rows)                                 # (rows, W)

    dec_w = bf(jnp.pad(jnp.asarray(params["deconv"]["w"], F32),
                       ((0, 0), (0, n_pad - n_out))))             # (R, n_pad)

    # FiLM conditioning precomputed in XLA (bf16 in / f32 accumulate, matching
    # the in-kernel matmul numerics): (B, 2, R) with rows [mul, add].
    def film(p):
        return jnp.dot(cond.astype(BF16), jnp.asarray(p["w"], BF16),
                       preferred_element_type=F32) + jnp.asarray(p["b"], F32)
    film_ma = jnp.stack([film(params["film_mul"]), film(params["film_add"])],
                        axis=1)

    weights = dict(red_w=red_w, qkv_w=jnp.stack(qkv_ws), o_w=jnp.stack(o_ws),
                   fc1_w=jnp.stack(fc1_ws), fc2_w=jnp.stack(fc2_ws),
                   dec_w=dec_w, biases=biases)
    return weights, film_ma, n_pad


# ------------------------------ public wrapper -------------------------------

def clipseg_decoder_pallas(hidden_states, cond, params, cfg, batch_block=None):
    depth = cfg["depth"]
    num_heads = cfg["decoder_num_heads"]
    P = cfg["patch_size"]
    R = cfg["reduce_dim"]
    I = cfg["decoder_intermediate_size"]

    activations = hidden_states[::-1]
    B, S, H = activations[0].shape
    size = math.isqrt(S - 1)
    assert size * size == S - 1, "CLIPSegDecoder needs a square patch grid"

    # Batch elements per grid step: amortize per-step overhead and weight
    # re-reads while keeping grid length >= 2 (both v7x TensorCores busy).
    if batch_block is None:
        batch_block = 1
        for cand in (8, 4, 2):
            if B % cand == 0 and B // cand >= 2:
                batch_block = cand
                break
    tb = batch_block
    assert B % tb == 0

    weights, film_ma, n_pad = _prep_kernel_operands(params, cond, cfg)

    # Stream activations in bf16 (halves DMA + VMEM for the dominant operand).
    hs = jnp.stack([a.astype(BF16) for a in activations], axis=0)  # (d,B,S,H)

    kernel = functools.partial(
        _fused_decoder_kernel, depth=depth, num_heads=num_heads,
        cond_layer=cfg["conditional_layer"], tb=tb, r_dim=R, i_dim=I,
        n_pad=n_pad)

    def const_spec(arr):
        nd = arr.ndim
        return pl.BlockSpec(arr.shape, lambda b, _nd=nd: (0,) * _nd)

    w_order = ("red_w", "qkv_w", "o_w", "fc1_w", "fc2_w", "dec_w", "biases")
    w_arrays = [weights[k] for k in w_order]

    in_specs = (
        [pl.BlockSpec((depth, tb, S, H), lambda b: (0, b, 0, 0)),
         pl.BlockSpec((tb, 2, R), lambda b: (b, 0, 0))]
        + [const_spec(w) for w in w_arrays])

    y = pl.pallas_call(
        kernel,
        out_shape=jax.ShapeDtypeStruct((B, S, n_pad), F32),
        grid=(B // tb,),
        in_specs=in_specs,
        out_specs=pl.BlockSpec((tb, S, n_pad), lambda b: (b, 0, 0)),
        scratch_shapes=[pltpu.VMEM((S, R), F32)],
        compiler_params=pltpu.CompilerParams(
            dimension_semantics=("parallel",),
            vmem_limit_bytes=32 * 1024 * 1024),
    )(hs, film_ma, *w_arrays)

    n_out = 3 * P * P
    y = y[:, 1:, :n_out]                       # drop CLS token + lane padding
    # TODO(synk): if downstream accepts NHWC, return the pure reshape instead
    # of this NCHW 6-D transpose (saves one extra HBM pass over the logits).
    logits = y.reshape(B, size, size, 3, P, P).transpose(0, 3, 1, 4, 2, 5)
    return logits.reshape(B, 3, size * P, size * P)


# ----------------------------- pure-JAX references ---------------------------

def _ref_mm(x, w, b=None, use_bf16=True):
    if use_bf16:
        y = jnp.dot(x.astype(BF16), w.astype(BF16), preferred_element_type=F32)
    else:
        y = jnp.dot(x, w, precision=HIGHEST)
    return y if b is None else y + b


def _ln_ref(x, g, b, eps=LN_EPS):
    mean = jnp.mean(x, axis=-1, keepdims=True)
    var = jnp.mean(jnp.square(x - mean), axis=-1, keepdims=True)
    return (x - mean) * lax.rsqrt(var + eps) * g + b


def _decoder_layer_ref(x, p, num_heads, use_bf16):
    B, S, R = x.shape
    dh = R // num_heads
    scale = dh ** -0.5

    q = _ref_mm(x, p["q"]["w"], p["q"]["b"], use_bf16) * scale
    k = _ref_mm(x, p["k"]["w"], p["k"]["b"], use_bf16)
    v = _ref_mm(x, p["v"]["w"], p["v"]["b"], use_bf16)

    def split(t):
        return t.reshape(B, S, num_heads, dh).transpose(0, 2, 1, 3)

    q, k, v = split(q), split(k), split(v)
    if use_bf16:
        s = jnp.einsum("bhqd,bhkd->bhqk", q.astype(BF16), k.astype(BF16),
                       preferred_element_type=F32)
    else:
        s = jnp.einsum("bhqd,bhkd->bhqk", q, k, precision=HIGHEST)
    a = jax.nn.softmax(s, axis=-1)
    if use_bf16:
        o = jnp.einsum("bhqk,bhkd->bhqd", a.astype(BF16), v.astype(BF16),
                       preferred_element_type=F32)
    else:
        o = jnp.einsum("bhqk,bhkd->bhqd", a, v, precision=HIGHEST)
    o = o.transpose(0, 2, 1, 3).reshape(B, S, R)
    o = _ref_mm(o, p["o"]["w"], p["o"]["b"], use_bf16)
    h = _ln_ref(x + o, p["ln1_g"], p["ln1_b"])
    m = jnp.maximum(_ref_mm(h, p["fc1"]["w"], p["fc1"]["b"], use_bf16), 0.0)
    m = _ref_mm(m, p["fc2"]["w"], p["fc2"]["b"], use_bf16)
    return _ln_ref(h + m, p["ln2_g"], p["ln2_b"])


def clipseg_decoder_ref(hidden_states, cond, params, cfg, use_bf16=False):
    activations = hidden_states[::-1]
    B = cond.shape[0]
    output = None
    for i, act in enumerate(activations):
        red = _ref_mm(act, params["reduces"][i]["w"],
                      params["reduces"][i]["b"], use_bf16)
        output = red if output is None else red + output
        if i == cfg["conditional_layer"]:
            mul = _ref_mm(cond, params["film_mul"]["w"],
                          params["film_mul"]["b"], use_bf16)
            add = _ref_mm(cond, params["film_add"]["w"],
                          params["film_add"]["b"], use_bf16)
            output = mul[:, None, :] * output + add[:, None, :]
        output = _decoder_layer_ref(output, params["layers"][i],
                                    cfg["decoder_num_heads"], use_bf16)
    R = output.shape[-1]
    out = output[:, 1:, :]
    size = int(math.sqrt(out.shape[1]))
    P = cfg["patch_size"]
    y = _ref_mm(out.reshape(-1, R), params["deconv"]["w"],
                params["deconv"]["b_full"], use_bf16)
    logits = y.reshape(B, size, size, 3, P, P).transpose(0, 3, 1, 4, 2, 5)
    return logits.reshape(B, 3, size * P, size * P)


# --------------------------------- param init --------------------------------

def init_params(key, cfg):
    H = cfg["hidden_size"]
    R = cfg["reduce_dim"]
    Pd = cfg["projection_dim"]
    I = cfg["decoder_intermediate_size"]
    P = cfg["patch_size"]
    depth = cfg["depth"]

    keys = iter(jax.random.split(key, 128))

    def lin(kin, kout):
        return {"w": jax.random.normal(next(keys), (kin, kout), F32) * 0.02,
                "b": jax.random.normal(next(keys), (kout,), F32) * 0.01}

    params = {
        "film_mul": lin(Pd, R),
        "film_add": lin(Pd, R),
        "reduces": [lin(H, R) for _ in range(depth)],
        "layers": [],
    }
    for _ in range(depth):
        params["layers"].append({
            "q": lin(R, R), "k": lin(R, R), "v": lin(R, R), "o": lin(R, R),
            "fc1": lin(R, I), "fc2": lin(I, R),
            "ln1_g": jnp.ones((R,), F32), "ln1_b": jnp.zeros((R,), F32),
            "ln2_g": jnp.ones((R,), F32), "ln2_b": jnp.zeros((R,), F32),
        })
    # ConvTranspose2d weight (in=R, out=3, P, P) flattened for the matmul form.
    w_ct = jax.random.normal(next(keys), (R, 3, P, P), F32) * 0.02
    b_ct = jax.random.normal(next(keys), (3,), F32) * 0.01
    params["deconv"] = {
        "w": w_ct.reshape(R, 3 * P * P),
        "b_full": jnp.broadcast_to(b_ct[:, None, None], (3, P, P)).reshape(-1),
    }
    return params


# ------------------------------------ main -----------------------------------

if __name__ == "__main__":
    cfg = dict(
        hidden_size=32,                # vision_config.hidden_size
        reduce_dim=32,                 # config.reduce_dim
        projection_dim=16,             # config.projection_dim
        decoder_intermediate_size=64,  # config.decoder_intermediate_size
        decoder_num_heads=4,           # config.decoder_num_attention_heads
        patch_size=4,                  # vision_config.patch_size
        conditional_layer=0,           # config.conditional_layer
        depth=3,                       # len(config.extract_layers)
    )

    key = jax.random.PRNGKey(0)
    k_param, k_hs, k_cond = jax.random.split(key, 3)
    params = init_params(k_param, cfg)

    B = 4
    grid = 4                           # image_size // patch_size
    S = 1 + grid * grid                # CLS token + patches
    hkeys = jax.random.split(k_hs, cfg["depth"])
    hidden_states = tuple(
        jax.random.normal(hkeys[i], (B, S, cfg["hidden_size"]), F32)
        for i in range(cfg["depth"])
    )
    cond = jax.random.normal(k_cond, (B, cfg["projection_dim"]), F32)

    logits = clipseg_decoder_pallas(hidden_states, cond, params, cfg)
    logits = jax.block_until_ready(logits)

    # Reference 1: same numerics as the kernel (bf16 inputs / f32 accumulate).
    ref_matched = clipseg_decoder_ref(hidden_states, cond, params, cfg,
                                      use_bf16=True)
    # Reference 2: full-f32 HIGHEST reference of the original module semantics.
    ref_f32 = clipseg_decoder_ref(hidden_states, cond, params, cfg,
                                  use_bf16=False)

    expected_shape = (B, 3, grid * cfg["patch_size"], grid * cfg["patch_size"])
    assert logits.shape == expected_shape, (logits.shape, expected_shape)
    assert bool(jnp.all(jnp.isfinite(logits)))

    err_matched = float(jnp.max(jnp.abs(logits - ref_matched)))
    err_f32 = float(jnp.max(jnp.abs(logits - ref_f32)))
    assert err_matched < 2e-2, f"max abs error vs matched-numerics ref: {err_matched}"
    assert err_f32 < 5e-2, f"max abs error vs f32 HIGHEST ref: {err_f32}"

    print("KERNEL_OK")
</pallas_src>

<mosaic_0001>
module attributes {stable_mosaic.version = 11 : i64} {
  func.func @_fused_decoder_kernel(%arg0: i32, %arg1: memref<3x2x17x32xbf16, #tpu.memory_space<vmem>>, %arg2: memref<2x2x32xf32, #tpu.memory_space<vmem>>, %arg3: memref<3x32x32xbf16, #tpu.memory_space<vmem>>, %arg4: memref<3x32x96xbf16, #tpu.memory_space<vmem>>, %arg5: memref<3x32x32xbf16, #tpu.memory_space<vmem>>, %arg6: memref<3x32x64xbf16, #tpu.memory_space<vmem>>, %arg7: memref<3x64x32xbf16, #tpu.memory_space<vmem>>, %arg8: memref<32x128xbf16, #tpu.memory_space<vmem>>, %arg9: memref<28x128xf32, #tpu.memory_space<vmem>>, %arg10: memref<2x17x128xf32, #tpu.memory_space<vmem>>, %arg11: memref<17x32xf32, #tpu.memory_space<vmem>>) attributes {dimension_semantics = [#tpu.dimension_semantics<parallel>], iteration_bounds = array<i64: 2>, scalar_prefetch = 0 : i64, scratch_operands = 1 : i64, tpu.core_type = #tpu.core_type<tc>, window_params = [{transform_indices = @transform_0, window_bounds = array<i64: 3, 2, 17, 32>}, {transform_indices = @transform_1, window_bounds = array<i64: 2, 2, 32>}, {pipeline_mode = #tpu.pipeline_mode<synchronous>, transform_indices = @transform_2, window_bounds = array<i64: 3, 32, 32>}, {pipeline_mode = #tpu.pipeline_mode<synchronous>, transform_indices = @transform_3, window_bounds = array<i64: 3, 32, 96>}, {pipeline_mode = #tpu.pipeline_mode<synchronous>, transform_indices = @transform_4, window_bounds = array<i64: 3, 32, 32>}, {pipeline_mode = #tpu.pipeline_mode<synchronous>, transform_indices = @transform_5, window_bounds = array<i64: 3, 32, 64>}, {pipeline_mode = #tpu.pipeline_mode<synchronous>, transform_indices = @transform_6, window_bounds = array<i64: 3, 64, 32>}, {pipeline_mode = #tpu.pipeline_mode<synchronous>, transform_indices = @transform_7, window_bounds = array<i64: 32, 128>}, {pipeline_mode = #tpu.pipeline_mode<synchronous>, transform_indices = @transform_8, window_bounds = array<i64: 28, 128>}, {transform_indices = @transform_9, window_bounds = array<i64: 2, 17, 128>}]} {
    %c0 = arith.constant 0 : index
    %c0_0 = arith.constant 0 : index
    %0 = vector.load %arg8[%c0, %c0_0] : memref<32x128xbf16, #tpu.memory_space<vmem>>, vector<32x128xbf16>
    %c27 = arith.constant 27 : index
    %c0_1 = arith.constant 0 : index
    %1 = vector.load %arg9[%c27, %c0_1] : memref<28x128xf32, #tpu.memory_space<vmem>>, vector<1x128xf32>
    %c0_2 = arith.constant 0 : index
    %c0_3 = arith.constant 0 : index
    %c0_4 = arith.constant 0 : index
    %c0_5 = arith.constant 0 : index
    %2 = vector.load %arg1[%c0_2, %c0_3, %c0_4, %c0_5] : memref<3x2x17x32xbf16, #tpu.memory_space<vmem>>, vector<1x1x17x32xbf16>
    %3 = vector.shape_cast %2 : vector<1x1x17x32xbf16> to vector<17x32xbf16>
    %c0_6 = arith.constant 0 : index
    %c0_7 = arith.constant 0 : index
    %c0_8 = arith.constant 0 : index
    %4 = vector.load %arg3[%c0_6, %c0_7, %c0_8] : memref<3x32x32xbf16, #tpu.memory_space<vmem>>, vector<1x32x32xbf16>
    %5 = vector.shape_cast %4 : vector<1x32x32xbf16> to vector<32x32xbf16>
    %c0_9 = arith.constant 0 : index
    %c0_10 = arith.constant 0 : index
    %6 = vector.load %arg9[%c0_9, %c0_10] : memref<28x128xf32, #tpu.memory_space<vmem>>, vector<1x32xf32>
    %cst = arith.constant dense<0.000000e+00> : vector<17x32xf32>
    %7 = tpu.matmul %3, %5, %cst {dimension_numbers = #tpu.dot_dimension_numbers<[1], [0], [0], [1], [0, 0, 1, 1], [], []>} : vector<17x32xbf16>, vector<32x32xbf16>, vector<17x32xf32> -> vector<17x32xf32>
    %8 = vector.broadcast %6 : vector<1x32xf32> to vector<17x32xf32>
    %9 = arith.addf %7, %8 : vector<17x32xf32>
    %c0_11 = arith.constant 0 : index
    %c0_12 = arith.constant 0 : index
    %c0_13 = arith.constant 0 : index
    %10 = vector.load %arg2[%c0_11, %c0_12, %c0_13] : memref<2x2x32xf32, #tpu.memory_space<vmem>>, vector<1x1x32xf32>
    %11 = vector.shape_cast %10 : vector<1x1x32xf32> to vector<1x32xf32>
    %12 = vector.broadcast %11 : vector<1x32xf32> to vector<17x32xf32>
    %13 = arith.mulf %9, %12 : vector<17x32xf32>
    %c0_14 = arith.constant 0 : index
    %c1 = arith.constant 1 : index
    %c0_15 = arith.constant 0 : index
    %14 = vector.load %arg2[%c0_14, %c1, %c0_15] : memref<2x2x32xf32, #tpu.memory_space<vmem>>, vector<1x1x32xf32>
    %15 = vector.shape_cast %14 : vector<1x1x32xf32> to vector<1x32xf32>
    %16 = vector.broadcast %15 : vector<1x32xf32> to vector<17x32xf32>
    %17 = arith.addf %13, %16 : vector<17x32xf32>
    %c0_16 = arith.constant 0 : index
    %c0_17 = arith.constant 0 : index
    %c0_18 = arith.constant 0 : index
    %18 = vector.load %arg4[%c0_16, %c0_17, %c0_18] : memref<3x32x96xbf16, #tpu.memory_space<vmem>>, vector<1x32x96xbf16>
    %19 = vector.shape_cast %18 : vector<1x32x96xbf16> to vector<32x96xbf16>
    %c1_19 = arith.constant 1 : index
    %c0_20 = arith.constant 0 : index
    %20 = vector.load %arg9[%c1_19, %c0_20] : memref<28x128xf32, #tpu.memory_space<vmem>>, vector<1x96xf32>
    %21 = arith.truncf %17 : vector<17x32xf32> to vector<17x32xbf16>
    %cst_21 = arith.constant dense<0.000000e+00> : vector<17x96xf32>
    %22 = tpu.matmul %21, %19, %cst_21 {dimension_numbers = #tpu.dot_dimension_numbers<[1], [0], [0], [1], [0, 0, 1, 1], [], []>} : vector<17x32xbf16>, vector<32x96xbf16>, vector<17x96xf32> -> vector<17x96xf32>
    %23 = vector.broadcast %20 : vector<1x96xf32> to vector<17x96xf32>
    %24 = arith.addf %22, %23 : vector<17x96xf32>
    %25 = vector.extract_strided_slice %24 {offsets = [0, 0], sizes = [17, 8], strides = [1, 1]} : vector<17x96xf32> to vector<17x8xf32>
    %26 = vector.extract_strided_slice %24 {offsets = [0, 32], sizes = [17, 8], strides = [1, 1]} : vector<17x96xf32> to vector<17x8xf32>
    %27 = vector.extract_strided_slice %24 {offsets = [0, 64], sizes = [17, 8], strides = [1, 1]} : vector<17x96xf32> to vector<17x8xf32>
    %28 = arith.truncf %25 : vector<17x8xf32> to vector<17x8xbf16>
    %29 = arith.truncf %26 : vector<17x8xf32> to vector<17x8xbf16>
    %cst_22 = arith.constant dense<0.000000e+00> : vector<17x17xf32>
    %30 = tpu.matmul %28, %29, %cst_22 {dimension_numbers = #tpu.dot_dimension_numbers<[1], [1], [0], [0], [0, 0, 1, 0], [], []>} : vector<17x8xbf16>, vector<17x8xbf16>, vector<17x17xf32> -> vector<17x17xf32>
    %cst_23 = arith.constant dense<0xFF800000> : vector<17xf32>
    %31 = vector.multi_reduction <maximumf>, %30, %cst_23 [1] : vector<17x17xf32> to vector<17xf32>
    %32 = vector.shape_cast %31 : vector<17xf32> to vector<17x1xf32>
    %33 = vector.broadcast %32 : vector<17x1xf32> to vector<17x17xf32>
    %34 = arith.subf %30, %33 : vector<17x17xf32>
    %35 = math.exp %34 : vector<17x17xf32>
    %cst_24 = arith.constant dense<0.000000e+00> : vector<17xf32>
    %36 = vector.multi_reduction <add>, %35, %cst_24 [1] : vector<17x17xf32> to vector<17xf32>
    %37 = vector.shape_cast %36 : vector<17xf32> to vector<17x1xf32>
    %38 = tpu.reciprocal %37 {approx = true} : vector<17x1xf32> -> vector<17x1xf32>
    %39 = vector.broadcast %38 : vector<17x1xf32> to vector<17x17xf32>
    %40 = arith.mulf %35, %39 : vector<17x17xf32>
    %41 = arith.truncf %40 : vector<17x17xf32> to vector<17x17xbf16>
    %42 = arith.truncf %27 : vector<17x8xf32> to vector<17x8xbf16>
    %cst_25 = arith.constant dense<0.000000e+00> : vector<17x8xf32>
    %43 = tpu.matmul %41, %42, %cst_25 {dimension_numbers = #tpu.dot_dimension_numbers<[1], [0], [0], [1], [0, 0, 1, 1], [], []>} : vector<17x17xbf16>, vector<17x8xbf16>, vector<17x8xf32> -> vector<17x8xf32>
    %c0_26 = arith.constant 0 : index
    %c0_27 = arith.constant 0 : index
    %44 = vector.load %arg11[%c0_26, %c0_27] : memref<17x32xf32, #tpu.memory_space<vmem>>, vector<17x8xf32>
    tpu.vector_store %arg11[%c0_26, %c0_27], %43 {strides = array<i32>} : memref<17x32xf32, #tpu.memory_space<vmem>>, vector<17x8xf32>,
    %45 = vector.extract_strided_slice %24 {offsets = [0, 8], sizes = [17, 8], strides = [1, 1]} : vector<17x96xf32> to vector<17x8xf32>
    %46 = vector.extract_strided_slice %24 {offsets = [0, 40], sizes = [17, 8], strides = [1, 1]} : vector<17x96xf32> to vector<17x8xf32>
    %47 = vector.extract_strided_slice %24 {offsets = [0, 72], sizes = [17, 8], strides = [1, 1]} : vector<17x96xf32> to vector<17x8xf32>
    %48 = arith.truncf %45 : vector<17x8xf32> to vector<17x8xbf16>
    %49 = arith.truncf %46 : vector<17x8xf32> to vector<17x8xbf16>
    %cst_28 = arith.constant dense<0.000000e+00> : vector<17x17xf32>
    %50 = tpu.matmul %48, %49, %cst_28 {dimension_numbers = #tpu.dot_dimension_numbers<[1], [1], [0], [0], [0, 0, 1, 0], [], []>} : vector<17x8xbf16>, vector<17x8xbf16>, vector<17x17xf32> -> vector<17x17xf32>
    %cst_29 = arith.constant dense<0xFF800000> : vector<17xf32>
    %51 = vector.multi_reduction <maximumf>, %50, %cst_29 [1] : vector<17x17xf32> to vector<17xf32>
    %52 = vector.shape_cast %51 : vector<17xf32> to vector<17x1xf32>
    %53 = vector.broadcast %52 : vector<17x1xf32> to vector<17x17xf32>
    %54 = arith.subf %50, %53 : vector<17x17xf32>
    %55 = math.exp %54 : vector<17x17xf32>
    %cst_30 = arith.constant dense<0.000000e+00> : vector<17xf32>
    %56 = vector.multi_reduction <add>, %55, %cst_30 [1] : vector<17x17xf32> to vector<17xf32>
    %57 = vector.shape_cast %56 : vector<17xf32> to vector<17x1xf32>
    %58 = tpu.reciprocal %57 {approx = true} : vector<17x1xf32> -> vector<17x1xf32>
    %59 = vector.broadcast %58 : vector<17x1xf32> to vector<17x17xf32>
    %60 = arith.mulf %55, %59 : vector<17x17xf32>
    %61 = arith.truncf %60 : vector<17x17xf32> to vector<17x17xbf16>
    %62 = arith.truncf %47 : vector<17x8xf32> to vector<17x8xbf16>
    %cst_31 = arith.constant dense<0.000000e+00> : vector<17x8xf32>
    %63 = tpu.matmul %61, %62, %cst_31 {dimension_numbers = #tpu.dot_dimension_numbers<[1], [0], [0], [1], [0, 0, 1, 1], [], []>} : vector<17x17xbf16>, vector<17x8xbf16>, vector<17x8xf32> -> vector<17x8xf32>
    %c0_32 = arith.constant 0 : index
    %c8 = arith.constant 8 : index
    %64 = vector.load %arg11[%c0_32, %c8] : memref<17x32xf32, #tpu.memory_space<vmem>>, vector<17x8xf32>
    tpu.vector_store %arg11[%c0_32, %c8], %63 {strides = array<i32>} : memref<17x32xf32, #tpu.memory_space<vmem>>, vector<17x8xf32>,
    %65 = vector.extract_strided_slice %24 {offsets = [0, 16], sizes = [17, 8], strides = [1, 1]} : vector<17x96xf32> to vector<17x8xf32>
    %66 = vector.extract_strided_slice %24 {offsets = [0, 48], sizes = [17, 8], strides = [1, 1]} : vector<17x96xf32> to vector<17x8xf32>
    %67 = vector.extract_strided_slice %24 {offsets = [0, 80], sizes = [17, 8], strides = [1, 1]} : vector<17x96xf32> to vector<17x8xf32>
    %68 = arith.truncf %65 : vector<17x8xf32> to vector<17x8xbf16>
    %69 = arith.truncf %66 : vector<17x8xf32> to vector<17x8xbf16>
    %cst_33 = arith.constant dense<0.000000e+00> : vector<17x17xf32>
    %70 = tpu.matmul %68, %69, %cst_33 {dimension_numbers = #tpu.dot_dimension_numbers<[1], [1], [0], [0], [0, 0, 1, 0], [], []>} : vector<17x8xbf16>, vector<17x8xbf16>, vector<17x17xf32> -> vector<17x17xf32>
    %cst_34 = arith.constant dense<0xFF800000> : vector<17xf32>
    %71 = vector.multi_reduction <maximumf>, %70, %cst_34 [1] : vector<17x17xf32> to vector<17xf32>
    %72 = vector.shape_cast %71 : vector<17xf32> to vector<17x1xf32>
    %73 = vector.broadcast %72 : vector<17x1xf32> to vector<17x17xf32>
    %74 = arith.subf %70, %73 : vector<17x17xf32>
    %75 = math.exp %74 : vector<17x17xf32>
    %cst_35 = arith.constant dense<0.000000e+00> : vector<17xf32>
    %76 = vector.multi_reduction <add>, %75, %cst_35 [1] : vector<17x17xf32> to vector<17xf32>
    %77 = vector.shape_cast %76 : vector<17xf32> to vector<17x1xf32>
    %78 = tpu.reciprocal %77 {approx = true} : vector<17x1xf32> -> vector<17x1xf32>
    %79 = vector.broadcast %78 : vector<17x1xf32> to vector<17x17xf32>
    %80 = arith.mulf %75, %79 : vector<17x17xf32>
    %81 = arith.truncf %80 : vector<17x17xf32> to vector<17x17xbf16>
    %82 = arith.truncf %67 : vector<17x8xf32> to vector<17x8xbf16>
    %cst_36 = arith.constant dense<0.000000e+00> : vector<17x8xf32>
    %83 = tpu.matmul %81, %82, %cst_36 {dimension_numbers = #tpu.dot_dimension_numbers<[1], [0], [0], [1], [0, 0, 1, 1], [], []>} : vector<17x17xbf16>, vector<17x8xbf16>, vector<17x8xf32> -> vector<17x8xf32>
    %c0_37 = arith.constant 0 : index
    %c16 = arith.constant 16 : index
    %84 = vector.load %arg11[%c0_37, %c16] : memref<17x32xf32, #tpu.memory_space<vmem>>, vector<17x8xf32>
    tpu.vector_store %arg11[%c0_37, %c16], %83 {strides = array<i32>} : memref<17x32xf32, #tpu.memory_space<vmem>>, vector<17x8xf32>,
    %85 = vector.extract_strided_slice %24 {offsets = [0, 24], sizes = [17, 8], strides = [1, 1]} : vector<17x96xf32> to vector<17x8xf32>
    %86 = vector.extract_strided_slice %24 {offsets = [0, 56], sizes = [17, 8], strides = [1, 1]} : vector<17x96xf32> to vector<17x8xf32>
    %87 = vector.extract_strided_slice %24 {offsets = [0, 88], sizes = [17, 8], strides = [1, 1]} : vector<17x96xf32> to vector<17x8xf32>
    %88 = arith.truncf %85 : vector<17x8xf32> to vector<17x8xbf16>
    %89 = arith.truncf %86 : vector<17x8xf32> to vector<17x8xbf16>
    %cst_38 = arith.constant dense<0.000000e+00> : vector<17x17xf32>
    %90 = tpu.matmul %88, %89, %cst_38 {dimension_numbers = #tpu.dot_dimension_numbers<[1], [1], [0], [0], [0, 0, 1, 0], [], []>} : vector<17x8xbf16>, vector<17x8xbf16>, vector<17x17xf32> -> vector<17x17xf32>
    %cst_39 = arith.constant dense<0xFF800000> : vector<17xf32>
    %91 = vector.multi_reduction <maximumf>, %90, %cst_39 [1] : vector<17x17xf32> to vector<17xf32>
    %92 = vector.shape_cast %91 : vector<17xf32> to vector<17x1xf32>
    %93 = vector.broadcast %92 : vector<17x1xf32> to vector<17x17xf32>
    %94 = arith.subf %90, %93 : vector<17x17xf32>
    %95 = math.exp %94 : vector<17x17xf32>
    %cst_40 = arith.constant dense<0.000000e+00> : vector<17xf32>
    %96 = vector.multi_reduction <add>, %95, %cst_40 [1] : vector<17x17xf32> to vector<17xf32>
    %97 = vector.shape_cast %96 : vector<17xf32> to vector<17x1xf32>
    %98 = tpu.reciprocal %97 {approx = true} : vector<17x1xf32> -> vector<17x1xf32>
    %99 = vector.broadcast %98 : vector<17x1xf32> to vector<17x17xf32>
    %100 = arith.mulf %95, %99 : vector<17x17xf32>
    %101 = arith.truncf %100 : vector<17x17xf32> to vector<17x17xbf16>
    %102 = arith.truncf %87 : vector<17x8xf32> to vector<17x8xbf16>
    %cst_41 = arith.constant dense<0.000000e+00> : vector<17x8xf32>
    %103 = tpu.matmul %101, %102, %cst_41 {dimension_numbers = #tpu.dot_dimension_numbers<[1], [0], [0], [1], [0, 0, 1, 1], [], []>} : vector<17x17xbf16>, vector<17x8xbf16>, vector<17x8xf32> -> vector<17x8xf32>
    %c0_42 = arith.constant 0 : index
    %c24 = arith.constant 24 : index
    %104 = vector.load %arg11[%c0_42, %c24] : memref<17x32xf32, #tpu.memory_space<vmem>>, vector<17x8xf32>
    tpu.vector_store %arg11[%c0_42, %c24], %103 {strides = array<i32>} : memref<17x32xf32, #tpu.memory_space<vmem>>, vector<17x8xf32>,
    %c0_43 = arith.constant 0 : index
    %c0_44 = arith.constant 0 : index
    %105 = vector.load %arg11[%c0_43, %c0_44] : memref<17x32xf32, #tpu.memory_space<vmem>>, vector<17x32xf32>
    %c0_45 = arith.constant 0 : index
    %c0_46 = arith.constant 0 : index
    %c0_47 = arith.constant 0 : index
    %106 = vector.load %arg5[%c0_45, %c0_46, %c0_47] : memref<3x32x32xbf16, #tpu.memory_space<vmem>>, vector<1x32x32xbf16>
    %107 = vector.shape_cast %106 : vector<1x32x32xbf16> to vector<32x32xbf16>
    %c2 = arith.constant 2 : index
    %c0_48 = arith.constant 0 : index
    %108 = vector.load %arg9[%c2, %c0_48] : memref<28x128xf32, #tpu.memory_space<vmem>>, vector<1x32xf32>
    %109 = arith.truncf %105 : vector<17x32xf32> to vector<17x32xbf16>
    %cst_49 = arith.constant dense<0.000000e+00> : vector<17x32xf32>
    %110 = tpu.matmul %109, %107, %cst_49 {dimension_numbers = #tpu.dot_dimension_numbers<[1], [0], [0], [1], [0, 0, 1, 1], [], []>} : vector<17x32xbf16>, vector<32x32xbf16>, vector<17x32xf32> -> vector<17x32xf32>
    %111 = vector.broadcast %108 : vector<1x32xf32> to vector<17x32xf32>
    %112 = arith.addf %110, %111 : vector<17x32xf32>
    %113 = arith.addf %17, %112 : vector<17x32xf32>
    %c5 = arith.constant 5 : index
    %c0_50 = arith.constant 0 : index
    %114 = vector.load %arg9[%c5, %c0_50] : memref<28x128xf32, #tpu.memory_space<vmem>>, vector<1x32xf32>
    %c6 = arith.constant 6 : index
    %c0_51 = arith.constant 0 : index
    %115 = vector.load %arg9[%c6, %c0_51] : memref<28x128xf32, #tpu.memory_space<vmem>>, vector<1x32xf32>
    %cst_52 = arith.constant dense<0.000000e+00> : vector<17xf32>
    %116 = vector.multi_reduction <add>, %113, %cst_52 [1] : vector<17x32xf32> to vector<17xf32>
    %117 = vector.shape_cast %116 : vector<17xf32> to vector<17x1xf32>
    %cst_53 = arith.constant 3.200000e+01 : f32
    %118 = vector.broadcast %cst_53 : f32 to vector<17x1xf32>
    %119 = arith.divf %117, %118 : vector<17x1xf32>
    %120 = vector.broadcast %119 : vector<17x1xf32> to vector<17x32xf32>
    %121 = arith.subf %113, %120 : vector<17x32xf32>
    %122 = arith.mulf %121, %121 : vector<17x32xf32>
    %cst_54 = arith.constant dense<0.000000e+00> : vector<17xf32>
    %123 = vector.multi_reduction <add>, %122, %cst_54 [1] : vector<17x32xf32> to vector<17xf32>
    %124 = vector.shape_cast %123 : vector<17xf32> to vector<17x1xf32>
    %cst_55 = arith.constant 3.200000e+01 : f32
    %125 = vector.broadcast %cst_55 : f32 to vector<17x1xf32>
    %126 = arith.divf %124, %125 : vector<17x1xf32>
    %127 = vector.broadcast %119 : vector<17x1xf32> to vector<17x32xf32>
    %128 = arith.subf %113, %127 : vector<17x32xf32>
    %cst_56 = arith.constant 9.99999974E-6 : f32
    %129 = vector.broadcast %cst_56 : f32 to vector<17x1xf32>
    %130 = arith.addf %126, %129 : vector<17x1xf32>
    %131 = math.rsqrt %130 : vector<17x1xf32>
    %132 = vector.broadcast %131 : vector<17x1xf32> to vector<17x32xf32>
    %133 = arith.mulf %128, %132 : vector<17x32xf32>
    %134 = vector.broadcast %114 : vector<1x32xf32> to vector<17x32xf32>
    %135 = arith.mulf %133, %134 : vector<17x32xf32>
    %136 = vector.broadcast %115 : vector<1x32xf32> to vector<17x32xf32>
    %137 = arith.addf %135, %136 : vector<17x32xf32>
    %c0_57 = arith.constant 0 : index
    %c0_58 = arith.constant 0 : index
    %c0_59 = arith.constant 0 : index
    %138 = vector.load %arg6[%c0_57, %c0_58, %c0_59] : memref<3x32x64xbf16, #tpu.memory_space<vmem>>, vector<1x32x64xbf16>
    %139 = vector.shape_cast %138 : vector<1x32x64xbf16> to vector<32x64xbf16>
    %c3 = arith.constant 3 : index
    %c0_60 = arith.constant 0 : index
    %140 = vector.load %arg9[%c3, %c0_60] : memref<28x128xf32, #tpu.memory_space<vmem>>, vector<1x64xf32>
    %141 = arith.truncf %137 : vector<17x32xf32> to vector<17x32xbf16>
    %cst_61 = arith.constant dense<0.000000e+00> : vector<17x64xf32>
    %142 = tpu.matmul %141, %139, %cst_61 {dimension_numbers = #tpu.dot_dimension_numbers<[1], [0], [0], [1], [0, 0, 1, 1], [], []>} : vector<17x32xbf16>, vector<32x64xbf16>, vector<17x64xf32> -> vector<17x64xf32>
    %143 = vector.broadcast %140 : vector<1x64xf32> to vector<17x64xf32>
    %144 = arith.addf %142, %143 : vector<17x64xf32>
    %cst_62 = arith.constant 0.000000e+00 : f32
    %145 = vector.broadcast %cst_62 : f32 to vector<17x64xf32>
    %146 = arith.maximumf %144, %145 : vector<17x64xf32>
    %c0_63 = arith.constant 0 : index
    %c0_64 = arith.constant 0 : index
    %c0_65 = arith.constant 0 : index
    %147 = vector.load %arg7[%c0_63, %c0_64, %c0_65] : memref<3x64x32xbf16, #tpu.memory_space<vmem>>, vector<1x64x32xbf16>
    %148 = vector.shape_cast %147 : vector<1x64x32xbf16> to vector<64x32xbf16>
    %c4 = arith.constant 4 : index
    %c0_66 = arith.constant 0 : index
    %149 = vector.load %arg9[%c4, %c0_66] : memref<28x128xf32, #tpu.memory_space<vmem>>, vector<1x32xf32>
    %150 = arith.truncf %146 : vector<17x64xf32> to vector<17x64xbf16>
    %cst_67 = arith.constant dense<0.000000e+00> : vector<17x32xf32>
    %151 = tpu.matmul %150, %148, %cst_67 {dimension_numbers = #tpu.dot_dimension_numbers<[1], [0], [0], [1], [0, 0, 1, 1], [], []>} : vector<17x64xbf16>, vector<64x32xbf16>, vector<17x32xf32> -> vector<17x32xf32>
    %152 = vector.broadcast %149 : vector<1x32xf32> to vector<17x32xf32>
    %153 = arith.addf %151, %152 : vector<17x32xf32>
    %154 = arith.addf %137, %153 : vector<17x32xf32>
    %c7 = arith.constant 7 : index
    %c0_68 = arith.constant 0 : index
    %155 = vector.load %arg9[%c7, %c0_68] : memref<28x128xf32, #tpu.memory_space<vmem>>, vector<1x32xf32>
    %c8_69 = arith.constant 8 : index
    %c0_70 = arith.constant 0 : index
    %156 = vector.load %arg9[%c8_69, %c0_70] : memref<28x128xf32, #tpu.memory_space<vmem>>, vector<1x32xf32>
    %cst_71 = arith.constant dense<0.000000e+00> : vector<17xf32>
    %157 = vector.multi_reduction <add>, %154, %cst_71 [1] : vector<17x32xf32> to vector<17xf32>
    %158 = vector.shape_cast %157 : vector<17xf32> to vector<17x1xf32>
    %cst_72 = arith.constant 3.200000e+01 : f32
    %159 = vector.broadcast %cst_72 : f32 to vector<17x1xf32>
    %160 = arith.divf %158, %159 : vector<17x1xf32>
    %161 = vector.broadcast %160 : vector<17x1xf32> to vector<17x32xf32>
    %162 = arith.subf %154, %161 : vector<17x32xf32>
    %163 = arith.mulf %162, %162 : vector<17x32xf32>
    %cst_73 = arith.constant dense<0.000000e+00> : vector<17xf32>
    %164 = vector.multi_reduction <add>, %163, %cst_73 [1] : vector<17x32xf32> to vector<17xf32>
    %165 = vector.shape_cast %164 : vector<17xf32> to vector<17x1xf32>
    %cst_74 = arith.constant 3.200000e+01 : f32
    %166 = vector.broadcast %cst_74 : f32 to vector<17x1xf32>
    %167 = arith.divf %165, %166 : vector<17x1xf32>
    %168 = vector.broadcast %160 : vector<17x1xf32> to vector<17x32xf32>
    %169 = arith.subf %154, %168 : vector<17x32xf32>
    %cst_75 = arith.constant 9.99999974E-6 : f32
    %170 = vector.broadcast %cst_75 : f32 to vector<17x1xf32>
    %171 = arith.addf %167, %170 : vector<17x1xf32>
    %172 = math.rsqrt %171 : vector<17x1xf32>
    %173 = vector.broadcast %172 : vector<17x1xf32> to vector<17x32xf32>
    %174 = arith.mulf %169, %173 : vector<17x32xf32>
    %175 = vector.broadcast %155 : vector<1x32xf32> to vector<17x32xf32>
    %176 = arith.mulf %174, %175 : vector<17x32xf32>
    %177 = vector.broadcast %156 : vector<1x32xf32> to vector<17x32xf32>
    %178 = arith.addf %176, %177 : vector<17x32xf32>
    %c1_76 = arith.constant 1 : index
    %c0_77 = arith.constant 0 : index
    %c0_78 = arith.constant 0 : index
    %c0_79 = arith.constant 0 : index
    %179 = vector.load %arg1[%c1_76, %c0_77, %c0_78, %c0_79] : memref<3x2x17x32xbf16, #tpu.memory_space<vmem>>, vector<1x1x17x32xbf16>
    %180 = vector.shape_cast %179 : vector<1x1x17x32xbf16> to vector<17x32xbf16>
    %c1_80 = arith.constant 1 : index
    %c0_81 = arith.constant 0 : index
    %c0_82 = arith.constant 0 : index
    %181 = vector.load %arg3[%c1_80, %c0_81, %c0_82] : memref<3x32x32xbf16, #tpu.memory_space<vmem>>, vector<1x32x32xbf16>
    %182 = vector.shape_cast %181 : vector<1x32x32xbf16> to vector<32x32xbf16>
    %c9 = arith.constant 9 : index
    %c0_83 = arith.constant 0 : index
    %183 = vector.load %arg9[%c9, %c0_83] : memref<28x128xf32, #tpu.memory_space<vmem>>, vector<1x32xf32>
    %cst_84 = arith.constant dense<0.000000e+00> : vector<17x32xf32>
    %184 = tpu.matmul %180, %182, %cst_84 {dimension_numbers = #tpu.dot_dimension_numbers<[1], [0], [0], [1], [0, 0, 1, 1], [], []>} : vector<17x32xbf16>, vector<32x32xbf16>, vector<17x32xf32> -> vector<17x32xf32>
    %185 = vector.broadcast %183 : vector<1x32xf32> to vector<17x32xf32>
    %186 = arith.addf %184, %185 : vector<17x32xf32>
    %187 = arith.addf %178, %186 : vector<17x32xf32>
    %c1_85 = arith.constant 1 : index
    %c0_86 = arith.constant 0 : index
    %c0_87 = arith.constant 0 : index
    %188 = vector.load %arg4[%c1_85, %c0_86, %c0_87] : memref<3x32x96xbf16, #tpu.memory_space<vmem>>, vector<1x32x96xbf16>
    %189 = vector.shape_cast %188 : vector<1x32x96xbf16> to vector<32x96xbf16>
    %c10 = arith.constant 10 : index
    %c0_88 = arith.constant 0 : index
    %190 = vector.load %arg9[%c10, %c0_88] : memref<28x128xf32, #tpu.memory_space<vmem>>, vector<1x96xf32>
    %191 = arith.truncf %187 : vector<17x32xf32> to vector<17x32xbf16>
    %cst_89 = arith.constant dense<0.000000e+00> : vector<17x96xf32>
    %192 = tpu.matmul %191, %189, %cst_89 {dimension_numbers = #tpu.dot_dimension_numbers<[1], [0], [0], [1], [0, 0, 1, 1], [], []>} : vector<17x32xbf16>, vector<32x96xbf16>, vector<17x96xf32> -> vector<17x96xf32>
    %193 = vector.broadcast %190 : vector<1x96xf32> to vector<17x96xf32>
    %194 = arith.addf %192, %193 : vector<17x96xf32>
    %195 = vector.extract_strided_slice %194 {offsets = [0, 0], sizes = [17, 8], strides = [1, 1]} : vector<17x96xf32> to vector<17x8xf32>
    %196 = vector.extract_strided_slice %194 {offsets = [0, 32], sizes = [17, 8], strides = [1, 1]} : vector<17x96xf32> to vector<17x8xf32>
    %197 = vector.extract_strided_slice %194 {offsets = [0, 64], sizes = [17, 8], strides = [1, 1]} : vector<17x96xf32> to vector<17x8xf32>
    %198 = arith.truncf %195 : vector<17x8xf32> to vector<17x8xbf16>
    %199 = arith.truncf %196 : vector<17x8xf32> to vector<17x8xbf16>
    %cst_90 = arith.constant dense<0.000000e+00> : vector<17x17xf32>
    %200 = tpu.matmul %198, %199, %cst_90 {dimension_numbers = #tpu.dot_dimension_numbers<[1], [1], [0], [0], [0, 0, 1, 0], [], []>} : vector<17x8xbf16>, vector<17x8xbf16>, vector<17x17xf32> -> vector<17x17xf32>
    %cst_91 = arith.constant dense<0xFF800000> : vector<17xf32>
    %201 = vector.multi_reduction <maximumf>, %200, %cst_91 [1] : vector<17x17xf32> to vector<17xf32>
    %202 = vector.shape_cast %201 : vector<17xf32> to vector<17x1xf32>
    %203 = vector.broadcast %202 : vector<17x1xf32> to vector<17x17xf32>
    %204 = arith.subf %200, %203 : vector<17x17xf32>
    %205 = math.exp %204 : vector<17x17xf32>
    %cst_92 = arith.constant dense<0.000000e+00> : vector<17xf32>
    %206 = vector.multi_reduction <add>, %205, %cst_92 [1] : vector<17x17xf32> to vector<17xf32>
    %207 = vector.shape_cast %206 : vector<17xf32> to vector<17x1xf32>
    %208 = tpu.reciprocal %207 {approx = true} : vector<17x1xf32> -> vector<17x1xf32>
    %209 = vector.broadcast %208 : vector<17x1xf32> to vector<17x17xf32>
    %210 = arith.mulf %205, %209 : vector<17x17xf32>
    %211 = arith.truncf %210 : vector<17x17xf32> to vector<17x17xbf16>
    %212 = arith.truncf %197 : vector<17x8xf32> to vector<17x8xbf16>
    %cst_93 = arith.constant dense<0.000000e+00> : vector<17x8xf32>
    %213 = tpu.matmul %211, %212, %cst_93 {dimension_numbers = #tpu.dot_dimension_numbers<[1], [0], [0], [1], [0, 0, 1, 1], [], []>} : vector<17x17xbf16>, vector<17x8xbf16>, vector<17x8xf32> -> vector<17x8xf32>
    %c0_94 = arith.constant 0 : index
    %c0_95 = arith.constant 0 : index
    %214 = vector.load %arg11[%c0_94, %c0_95] : memref<17x32xf32, #tpu.memory_space<vmem>>, vector<17x8xf32>
    tpu.vector_store %arg11[%c0_94, %c0_95], %213 {strides = array<i32>} : memref<17x32xf32, #tpu.memory_space<vmem>>, vector<17x8xf32>,
    %215 = vector.extract_strided_slice %194 {offsets = [0, 8], sizes = [17, 8], strides = [1, 1]} : vector<17x96xf32> to vector<17x8xf32>
    %216 = vector.extract_strided_slice %194 {offsets = [0, 40], sizes = [17, 8], strides = [1, 1]} : vector<17x96xf32> to vector<17x8xf32>
    %217 = vector.extract_strided_slice %194 {offsets = [0, 72], sizes = [17, 8], strides = [1, 1]} : vector<17x96xf32> to vector<17x8xf32>
    %218 = arith.truncf %215 : vector<17x8xf32> to vector<17x8xbf16>
    %219 = arith.truncf %216 : vector<17x8xf32> to vector<17x8xbf16>
    %cst_96 = arith.constant dense<0.000000e+00> : vector<17x17xf32>
    %220 = tpu.matmul %218, %219, %cst_96 {dimension_numbers = #tpu.dot_dimension_numbers<[1], [1], [0], [0], [0, 0, 1, 0], [], []>} : vector<17x8xbf16>, vector<17x8xbf16>, vector<17x17xf32> -> vector<17x17xf32>
    %cst_97 = arith.constant dense<0xFF800000> : vector<17xf32>
    %221 = vector.multi_reduction <maximumf>, %220, %cst_97 [1] : vector<17x17xf32> to vector<17xf32>
    %222 = vector.shape_cast %221 : vector<17xf32> to vector<17x1xf32>
    %223 = vector.broadcast %222 : vector<17x1xf32> to vector<17x17xf32>
    %224 = arith.subf %220, %223 : vector<17x17xf32>
    %225 = math.exp %224 : vector<17x17xf32>
    %cst_98 = arith.constant dense<0.000000e+00> : vector<17xf32>
    %226 = vector.multi_reduction <add>, %225, %cst_98 [1] : vector<17x17xf32> to vector<17xf32>
    %227 = vector.shape_cast %226 : vector<17xf32> to vector<17x1xf32>
    %228 = tpu.reciprocal %227 {approx = true} : vector<17x1xf32> -> vector<17x1xf32>
    %229 = vector.broadcast %228 : vector<17x1xf32> to vector<17x17xf32>
    %230 = arith.mulf %225, %229 : vector<17x17xf32>
    %231 = arith.truncf %230 : vector<17x17xf32> to vector<17x17xbf16>
    %232 = arith.truncf %217 : vector<17x8xf32> to vector<17x8xbf16>
    %cst_99 = arith.constant dense<0.000000e+00> : vector<17x8xf32>
    %233 = tpu.matmul %231, %232, %cst_99 {dimension_numbers = #tpu.dot_dimension_numbers<[1], [0], [0], [1], [0, 0, 1, 1], [], []>} : vector<17x17xbf16>, vector<17x8xbf16>, vector<17x8xf32> -> vector<17x8xf32>
    %c0_100 = arith.constant 0 : index
    %c8_101 = arith.constant 8 : index
    %234 = vector.load %arg11[%c0_100, %c8_101] : memref<17x32xf32, #tpu.memory_space<vmem>>, vector<17x8xf32>
    tpu.vector_store %arg11[%c0_100, %c8_101], %233 {strides = array<i32>} : memref<17x32xf32, #tpu.memory_space<vmem>>, vector<17x8xf32>,
    %235 = vector.extract_strided_slice %194 {offsets = [0, 16], sizes = [17, 8], strides = [1, 1]} : vector<17x96xf32> to vector<17x8xf32>
    %236 = vector.extract_strided_slice %194 {offsets = [0, 48], sizes = [17, 8], strides = [1, 1]} : vector<17x96xf32> to vector<17x8xf32>
    %237 = vector.extract_strided_slice %194 {offsets = [0, 80], sizes = [17, 8], strides = [1, 1]} : vector<17x96xf32> to vector<17x8xf32>
    %238 = arith.truncf %235 : vector<17x8xf32> to vector<17x8xbf16>
    %239 = arith.truncf %236 : vector<17x8xf32> to vector<17x8xbf16>
    %cst_102 = arith.constant dense<0.000000e+00> : vector<17x17xf32>
    %240 = tpu.matmul %238, %239, %cst_102 {dimension_numbers = #tpu.dot_dimension_numbers<[1], [1], [0], [0], [0, 0, 1, 0], [], []>} : vector<17x8xbf16>, vector<17x8xbf16>, vector<17x17xf32> -> vector<17x17xf32>
    %cst_103 = arith.constant dense<0xFF800000> : vector<17xf32>
    %241 = vector.multi_reduction <maximumf>, %240, %cst_103 [1] : vector<17x17xf32> to vector<17xf32>
    %242 = vector.shape_cast %241 : vector<17xf32> to vector<17x1xf32>
    %243 = vector.broadcast %242 : vector<17x1xf32> to vector<17x17xf32>
    %244 = arith.subf %240, %243 : vector<17x17xf32>
    %245 = math.exp %244 : vector<17x17xf32>
    %cst_104 = arith.constant dense<0.000000e+00> : vector<17xf32>
    %246 = vector.multi_reduction <add>, %245, %cst_104 [1] : vector<17x17xf32> to vector<17xf32>
    %247 = vector.shape_cast %246 : vector<17xf32> to vector<17x1xf32>
    %248 = tpu.reciprocal %247 {approx = true} : vector<17x1xf32> -> vector<17x1xf32>
    %249 = vector.broadcast %248 : vector<17x1xf32> to vector<17x17xf32>
    %250 = arith.mulf %245, %249 : vector<17x17xf32>
    %251 = arith.truncf %250 : vector<17x17xf32> to vector<17x17xbf16>
    %252 = arith.truncf %237 : vector<17x8xf32> to vector<17x8xbf16>
    %cst_105 = arith.constant dense<0.000000e+00> : vector<17x8xf32>
    %253 = tpu.matmul %251, %252, %cst_105 {dimension_numbers = #tpu.dot_dimension_numbers<[1], [0], [0], [1], [0, 0, 1, 1], [], []>} : vector<17x17xbf16>, vector<17x8xbf16>, vector<17x8xf32> -> vector<17x8xf32>
    %c0_106 = arith.constant 0 : index
    %c16_107 = arith.constant 16 : index
    %254 = vector.load %arg11[%c0_106, %c16_107] : memref<17x32xf32, #tpu.memory_space<vmem>>, vector<17x8xf32>
    tpu.vector_store %arg11[%c0_106, %c16_107], %253 {strides = array<i32>} : memref<17x32xf32, #tpu.memory_space<vmem>>, vector<17x8xf32>,
    %255 = vector.extract_strided_slice %194 {offsets = [0, 24], sizes = [17, 8], strides = [1, 1]} : vector<17x96xf32> to vector<17x8xf32>
    %256 = vector.extract_strided_slice %194 {offsets = [0, 56], sizes = [17, 8], strides = [1, 1]} : vector<17x96xf32> to vector<17x8xf32>
    %257 = vector.extract_strided_slice %194 {offsets = [0, 88], sizes = [17, 8], strides = [1, 1]} : vector<17x96xf32> to vector<17x8xf32>
    %258 = arith.truncf %255 : vector<17x8xf32> to vector<17x8xbf16>
    %259 = arith.truncf %256 : vector<17x8xf32> to vector<17x8xbf16>
    %cst_108 = arith.constant dense<0.000000e+00> : vector<17x17xf32>
    %260 = tpu.matmul %258, %259, %cst_108 {dimension_numbers = #tpu.dot_dimension_numbers<[1], [1], [0], [0], [0, 0, 1, 0], [], []>} : vector<17x8xbf16>, vector<17x8xbf16>, vector<17x17xf32> -> vector<17x17xf32>
    %cst_109 = arith.constant dense<0xFF800000> : vector<17xf32>
    %261 = vector.multi_reduction <maximumf>, %260, %cst_109 [1] : vector<17x17xf32> to vector<17xf32>
    %262 = vector.shape_cast %261 : vector<17xf32> to vector<17x1xf32>
    %263 = vector.broadcast %262 : vector<17x1xf32> to vector<17x17xf32>
    %264 = arith.subf %260, %263 : vector<17x17xf32>
    %265 = math.exp %264 : vector<17x17xf32>
    %cst_110 = arith.constant dense<0.000000e+00> : vector<17xf32>
    %266 = vector.multi_reduction <add>, %265, %cst_110 [1] : vector<17x17xf32> to vector<17xf32>
    %267 = vector.shape_cast %266 : vector<17xf32> to vector<17x1xf32>
    %268 = tpu.reciprocal %267 {approx = true} : vector<17x1xf32> -> vector<17x1xf32>
    %269 = vector.broadcast %268 : vector<17x1xf32> to vector<17x17xf32>
    %270 = arith.mulf %265, %269 : vector<17x17xf32>
    %271 = arith.truncf %270 : vector<17x17xf32> to vector<17x17xbf16>
    %272 = arith.truncf %257 : vector<17x8xf32> to vector<17x8xbf16>
    %cst_111 = arith.constant dense<0.000000e+00> : vector<17x8xf32>
    %273 = tpu.matmul %271, %272, %cst_111 {dimension_numbers = #tpu.dot_dimension_numbers<[1], [0], [0], [1], [0, 0, 1, 1], [], []>} : vector<17x17xbf16>, vector<17x8xbf16>, vector<17x8xf32> -> vector<17x8xf32>
    %c0_112 = arith.constant 0 : index
    %c24_113 = arith.constant 24 : index
    %274 = vector.load %arg11[%c0_112, %c24_113] : memref<17x32xf32, #tpu.memory_space<vmem>>, vector<17x8xf32>
    tpu.vector_store %arg11[%c0_112, %c24_113], %273 {strides = array<i32>} : memref<17x32xf32, #tpu.memory_space<vmem>>, vector<17x8xf32>,
    %c0_114 = arith.constant 0 : index
    %c0_115 = arith.constant 0 : index
    %275 = vector.load %arg11[%c0_114, %c0_115] : memref<17x32xf32, #tpu.memory_space<vmem>>, vector<17x32xf32>
    %c1_116 = arith.constant 1 : index
    %c0_117 = arith.constant 0 : index
    %c0_118 = arith.constant 0 : index
    %276 = vector.load %arg5[%c1_116, %c0_117, %c0_118] : memref<3x32x32xbf16, #tpu.memory_space<vmem>>, vector<1x32x32xbf16>
    %277 = vector.shape_cast %276 : vector<1x32x32xbf16> to vector<32x32xbf16>
    %c11 = arith.constant 11 : index
    %c0_119 = arith.constant 0 : index
    %278 = vector.load %arg9[%c11, %c0_119] : memref<28x128xf32, #tpu.memory_space<vmem>>, vector<1x32xf32>
    %279 = arith.truncf %275 : vector<17x32xf32> to vector<17x32xbf16>
    %cst_120 = arith.constant dense<0.000000e+00> : vector<17x32xf32>
    %280 = tpu.matmul %279, %277, %cst_120 {dimension_numbers = #tpu.dot_dimension_numbers<[1], [0], [0], [1], [0, 0, 1, 1], [], []>} : vector<17x32xbf16>, vector<32x32xbf16>, vector<17x32xf32> -> vector<17x32xf32>
    %281 = vector.broadcast %278 : vector<1x32xf32> to vector<17x32xf32>
    %282 = arith.addf %280, %281 : vector<17x32xf32>
    %283 = arith.addf %187, %282 : vector<17x32xf32>
    %c14 = arith.constant 14 : index
    %c0_121 = arith.constant 0 : index
    %284 = vector.load %arg9[%c14, %c0_121] : memref<28x128xf32, #tpu.memory_space<vmem>>, vector<1x32xf32>
    %c15 = arith.constant 15 : index
    %c0_122 = arith.constant 0 : index
    %285 = vector.load %arg9[%c15, %c0_122] : memref<28x128xf32, #tpu.memory_space<vmem>>, vector<1x32xf32>
    %cst_123 = arith.constant dense<0.000000e+00> : vector<17xf32>
    %286 = vector.multi_reduction <add>, %283, %cst_123 [1] : vector<17x32xf32> to vector<17xf32>
    %287 = vector.shape_cast %286 : vector<17xf32> to vector<17x1xf32>
    %cst_124 = arith.constant 3.200000e+01 : f32
    %288 = vector.broadcast %cst_124 : f32 to vector<17x1xf32>
    %289 = arith.divf %287, %288 : vector<17x1xf32>
    %290 = vector.broadcast %289 : vector<17x1xf32> to vector<17x32xf32>
    %291 = arith.subf %283, %290 : vector<17x32xf32>
    %292 = arith.mulf %291, %291 : vector<17x32xf32>
    %cst_125 = arith.constant dense<0.000000e+00> : vector<17xf32>
    %293 = vector.multi_reduction <add>, %292, %cst_125 [1] : vector<17x32xf32> to vector<17xf32>
    %294 = vector.shape_cast %293 : vector<17xf32> to vector<17x1xf32>
    %cst_126 = arith.constant 3.200000e+01 : f32
    %295 = vector.broadcast %cst_126 : f32 to vector<17x1xf32>
    %296 = arith.divf %294, %295 : vector<17x1xf32>
    %297 = vector.broadcast %289 : vector<17x1xf32> to vector<17x32xf32>
    %298 = arith.subf %283, %297 : vector<17x32xf32>
    %cst_127 = arith.constant 9.99999974E-6 : f32
    %299 = vector.broadcast %cst_127 : f32 to vector<17x1xf32>
    %300 = arith.addf %296, %299 : vector<17x1xf32>
    %301 = math.rsqrt %300 : vector<17x1xf32>
    %302 = vector.broadcast %301 : vector<17x1xf32> to vector<17x32xf32>
    %303 = arith.mulf %298, %302 : vector<17x32xf32>
    %304 = vector.broadcast %284 : vector<1x32xf32> to vector<17x32xf32>
    %305 = arith.mulf %303, %304 : vector<17x32xf32>
    %306 = vector.broadcast %285 : vector<1x32xf32> to vector<17x32xf32>
    %307 = arith.addf %305, %306 : vector<17x32xf32>
    %c1_128 = arith.constant 1 : index
    %c0_129 = arith.constant 0 : index
    %c0_130 = arith.constant 0 : index
    %308 = vector.load %arg6[%c1_128, %c0_129, %c0_130] : memref<3x32x64xbf16, #tpu.memory_space<vmem>>, vector<1x32x64xbf16>
    %309 = vector.shape_cast %308 : vector<1x32x64xbf16> to vector<32x64xbf16>
    %c12 = arith.constant 12 : index
    %c0_131 = arith.constant 0 : index
    %310 = vector.load %arg9[%c12, %c0_131] : memref<28x128xf32, #tpu.memory_space<vmem>>, vector<1x64xf32>
    %311 = arith.truncf %307 : vector<17x32xf32> to vector<17x32xbf16>
    %cst_132 = arith.constant dense<0.000000e+00> : vector<17x64xf32>
    %312 = tpu.matmul %311, %309, %cst_132 {dimension_numbers = #tpu.dot_dimension_numbers<[1], [0], [0], [1], [0, 0, 1, 1], [], []>} : vector<17x32xbf16>, vector<32x64xbf16>, vector<17x64xf32> -> vector<17x64xf32>
    %313 = vector.broadcast %310 : vector<1x64xf32> to vector<17x64xf32>
    %314 = arith.addf %312, %313 : vector<17x64xf32>
    %cst_133 = arith.constant 0.000000e+00 : f32
    %315 = vector.broadcast %cst_133 : f32 to vector<17x64xf32>
    %316 = arith.maximumf %314, %315 : vector<17x64xf32>
    %c1_134 = arith.constant 1 : index
    %c0_135 = arith.constant 0 : index
    %c0_136 = arith.constant 0 : index
    %317 = vector.load %arg7[%c1_134, %c0_135, %c0_136] : memref<3x64x32xbf16, #tpu.memory_space<vmem>>, vector<1x64x32xbf16>
    %318 = vector.shape_cast %317 : vector<1x64x32xbf16> to vector<64x32xbf16>
    %c13 = arith.constant 13 : index
    %c0_137 = arith.constant 0 : index
    %319 = vector.load %arg9[%c13, %c0_137] : memref<28x128xf32, #tpu.memory_space<vmem>>, vector<1x32xf32>
    %320 = arith.truncf %316 : vector<17x64xf32> to vector<17x64xbf16>
    %cst_138 = arith.constant dense<0.000000e+00> : vector<17x32xf32>
    %321 = tpu.matmul %320, %318, %cst_138 {dimension_numbers = #tpu.dot_dimension_numbers<[1], [0], [0], [1], [0, 0, 1, 1], [], []>} : vector<17x64xbf16>, vector<64x32xbf16>, vector<17x32xf32> -> vector<17x32xf32>
    %322 = vector.broadcast %319 : vector<1x32xf32> to vector<17x32xf32>
    %323 = arith.addf %321, %322 : vector<17x32xf32>
    %324 = arith.addf %307, %323 : vector<17x32xf32>
    %c16_139 = arith.constant 16 : index
    %c0_140 = arith.constant 0 : index
    %325 = vector.load %arg9[%c16_139, %c0_140] : memref<28x128xf32, #tpu.memory_space<vmem>>, vector<1x32xf32>
    %c17 = arith.constant 17 : index
    %c0_141 = arith.constant 0 : index
    %326 = vector.load %arg9[%c17, %c0_141] : memref<28x128xf32, #tpu.memory_space<vmem>>, vector<1x32xf32>
    %cst_142 = arith.constant dense<0.000000e+00> : vector<17xf32>
    %327 = vector.multi_reduction <add>, %324, %cst_142 [1] : vector<17x32xf32> to vector<17xf32>
    %328 = vector.shape_cast %327 : vector<17xf32> to vector<17x1xf32>
    %cst_143 = arith.constant 3.200000e+01 : f32
    %329 = vector.broadcast %cst_143 : f32 to vector<17x1xf32>
    %330 = arith.divf %328, %329 : vector<17x1xf32>
    %331 = vector.broadcast %330 : vector<17x1xf32> to vector<17x32xf32>
    %332 = arith.subf %324, %331 : vector<17x32xf32>
    %333 = arith.mulf %332, %332 : vector<17x32xf32>
    %cst_144 = arith.constant dense<0.000000e+00> : vector<17xf32>
    %334 = vector.multi_reduction <add>, %333, %cst_144 [1] : vector<17x32xf32> to vector<17xf32>
    %335 = vector.shape_cast %334 : vector<17xf32> to vector<17x1xf32>
    %cst_145 = arith.constant 3.200000e+01 : f32
    %336 = vector.broadcast %cst_145 : f32 to vector<17x1xf32>
    %337 = arith.divf %335, %336 : vector<17x1xf32>
    %338 = vector.broadcast %330 : vector<17x1xf32> to vector<17x32xf32>
    %339 = arith.subf %324, %338 : vector<17x32xf32>
    %cst_146 = arith.constant 9.99999974E-6 : f32
    %340 = vector.broadcast %cst_146 : f32 to vector<17x1xf32>
    %341 = arith.addf %337, %340 : vector<17x1xf32>
    %342 = math.rsqrt %341 : vector<17x1xf32>
    %343 = vector.broadcast %342 : vector<17x1xf32> to vector<17x32xf32>
    %344 = arith.mulf %339, %343 : vector<17x32xf32>
    %345 = vector.broadcast %325 : vector<1x32xf32> to vector<17x32xf32>
    %346 = arith.mulf %344, %345 : vector<17x32xf32>
    %347 = vector.broadcast %326 : vector<1x32xf32> to vector<17x32xf32>
    %348 = arith.addf %346, %347 : vector<17x32xf32>
    %c2_147 = arith.constant 2 : index
    %c0_148 = arith.constant 0 : index
    %c0_149 = arith.constant 0 : index
    %c0_150 = arith.constant 0 : index
    %349 = vector.load %arg1[%c2_147, %c0_148, %c0_149, %c0_150] : memref<3x2x17x32xbf16, #tpu.memory_space<vmem>>, vector<1x1x17x32xbf16>
    %350 = vector.shape_cast %349 : vector<1x1x17x32xbf16> to vector<17x32xbf16>
    %c2_151 = arith.constant 2 : index
    %c0_152 = arith.constant 0 : index
    %c0_153 = arith.constant 0 : index
    %351 = vector.load %arg3[%c2_151, %c0_152, %c0_153] : memref<3x32x32xbf16, #tpu.memory_space<vmem>>, vector<1x32x32xbf16>
    %352 = vector.shape_cast %351 : vector<1x32x32xbf16> to vector<32x32xbf16>
    %c18 = arith.constant 18 : index
    %c0_154 = arith.constant 0 : index
    %353 = vector.load %arg9[%c18, %c0_154] : memref<28x128xf32, #tpu.memory_space<vmem>>, vector<1x32xf32>
    %cst_155 = arith.constant dense<0.000000e+00> : vector<17x32xf32>
    %354 = tpu.matmul %350, %352, %cst_155 {dimension_numbers = #tpu.dot_dimension_numbers<[1], [0], [0], [1], [0, 0, 1, 1], [], []>} : vector<17x32xbf16>, vector<32x32xbf16>, vector<17x32xf32> -> vector<17x32xf32>
    %355 = vector.broadcast %353 : vector<1x32xf32> to vector<17x32xf32>
    %356 = arith.addf %354, %355 : vector<17x32xf32>
    %357 = arith.addf %348, %356 : vector<17x32xf32>
    %c2_156 = arith.constant 2 : index
    %c0_157 = arith.constant 0 : index
    %c0_158 = arith.constant 0 : index
    %358 = vector.load %arg4[%c2_156, %c0_157, %c0_158] : memref<3x32x96xbf16, #tpu.memory_space<vmem>>, vector<1x32x96xbf16>
    %359 = vector.shape_cast %358 : vector<1x32x96xbf16> to vector<32x96xbf16>
    %c19 = arith.constant 19 : index
    %c0_159 = arith.constant 0 : index
    %360 = vector.load %arg9[%c19, %c0_159] : memref<28x128xf32, #tpu.memory_space<vmem>>, vector<1x96xf32>
    %361 = arith.truncf %357 : vector<17x32xf32> to vector<17x32xbf16>
    %cst_160 = arith.constant dense<0.000000e+00> : vector<17x96xf32>
    %362 = tpu.matmul %361, %359, %cst_160 {dimension_numbers = #tpu.dot_dimension_numbers<[1], [0], [0], [1], [0, 0, 1, 1], [], []>} : vector<17x32xbf16>, vector<32x96xbf16>, vector<17x96xf32> -> vector<17x96xf32>
    %363 = vector.broadcast %360 : vector<1x96xf32> to vector<17x96xf32>
    %364 = arith.addf %362, %363 : vector<17x96xf32>
    %365 = vector.extract_strided_slice %364 {offsets = [0, 0], sizes = [17, 8], strides = [1, 1]} : vector<17x96xf32> to vector<17x8xf32>
    %366 = vector.extract_strided_slice %364 {offsets = [0, 32], sizes = [17, 8], strides = [1, 1]} : vector<17x96xf32> to vector<17x8xf32>
    %367 = vector.extract_strided_slice %364 {offsets = [0, 64], sizes = [17, 8], strides = [1, 1]} : vector<17x96xf32> to vector<17x8xf32>
    %368 = arith.truncf %365 : vector<17x8xf32> to vector<17x8xbf16>
    %369 = arith.truncf %366 : vector<17x8xf32> to vector<17x8xbf16>
    %cst_161 = arith.constant dense<0.000000e+00> : vector<17x17xf32>
    %370 = tpu.matmul %368, %369, %cst_161 {dimension_numbers = #tpu.dot_dimension_numbers<[1], [1], [0], [0], [0, 0, 1, 0], [], []>} : vector<17x8xbf16>, vector<17x8xbf16>, vector<17x17xf32> -> vector<17x17xf32>
    %cst_162 = arith.constant dense<0xFF800000> : vector<17xf32>
    %371 = vector.multi_reduction <maximumf>, %370, %cst_162 [1] : vector<17x17xf32> to vector<17xf32>
    %372 = vector.shape_cast %371 : vector<17xf32> to vector<17x1xf32>
    %373 = vector.broadcast %372 : vector<17x1xf32> to vector<17x17xf32>
    %374 = arith.subf %370, %373 : vector<17x17xf32>
    %375 = math.exp %374 : vector<17x17xf32>
    %cst_163 = arith.constant dense<0.000000e+00> : vector<17xf32>
    %376 = vector.multi_reduction <add>, %375, %cst_163 [1] : vector<17x17xf32> to vector<17xf32>
    %377 = vector.shape_cast %376 : vector<17xf32> to vector<17x1xf32>
    %378 = tpu.reciprocal %377 {approx = true} : vector<17x1xf32> -> vector<17x1xf32>
    %379 = vector.broadcast %378 : vector<17x1xf32> to vector<17x17xf32>
    %380 = arith.mulf %375, %379 : vector<17x17xf32>
    %381 = arith.truncf %380 : vector<17x17xf32> to vector<17x17xbf16>
    %382 = arith.truncf %367 : vector<17x8xf32> to vector<17x8xbf16>
    %cst_164 = arith.constant dense<0.000000e+00> : vector<17x8xf32>
    %383 = tpu.matmul %381, %382, %cst_164 {dimension_numbers = #tpu.dot_dimension_numbers<[1], [0], [0], [1], [0, 0, 1, 1], [], []>} : vector<17x17xbf16>, vector<17x8xbf16>, vector<17x8xf32> -> vector<17x8xf32>
    %c0_165 = arith.constant 0 : index
    %c0_166 = arith.constant 0 : index
    %384 = vector.load %arg11[%c0_165, %c0_166] : memref<17x32xf32, #tpu.memory_space<vmem>>, vector<17x8xf32>
    tpu.vector_store %arg11[%c0_165, %c0_166], %383 {strides = array<i32>} : memref<17x32xf32, #tpu.memory_space<vmem>>, vector<17x8xf32>,
    %385 = vector.extract_strided_slice %364 {offsets = [0, 8], sizes = [17, 8], strides = [1, 1]} : vector<17x96xf32> to vector<17x8xf32>
    %386 = vector.extract_strided_slice %364 {offsets = [0, 40], sizes = [17, 8], strides = [1, 1]} : vector<17x96xf32> to vector<17x8xf32>
    %387 = vector.extract_strided_slice %364 {offsets = [0, 72], sizes = [17, 8], strides = [1, 1]} : vector<17x96xf32> to vector<17x8xf32>
    %388 = arith.truncf %385 : vector<17x8xf32> to vector<17x8xbf16>
    %389 = arith.truncf %386 : vector<17x8xf32> to vector<17x8xbf16>
    %cst_167 = arith.constant dense<0.000000e+00> : vector<17x17xf32>
    %390 = tpu.matmul %388, %389, %cst_167 {dimension_numbers = #tpu.dot_dimension_numbers<[1], [1], [0], [0], [0, 0, 1, 0], [], []>} : vector<17x8xbf16>, vector<17x8xbf16>, vector<17x17xf32> -> vector<17x17xf32>
    %cst_168 = arith.constant dense<0xFF800000> : vector<17xf32>
    %391 = vector.multi_reduction <maximumf>, %390, %cst_168 [1] : vector<17x17xf32> to vector<17xf32>
    %392 = vector.shape_cast %391 : vector<17xf32> to vector<17x1xf32>
    %393 = vector.broadcast %392 : vector<17x1xf32> to vector<17x17xf32>
    %394 = arith.subf %390, %393 : vector<17x17xf32>
    %395 = math.exp %394 : vector<17x17xf32>
    %cst_169 = arith.constant dense<0.000000e+00> : vector<17xf32>
    %396 = vector.multi_reduction <add>, %395, %cst_169 [1] : vector<17x17xf32> to vector<17xf32>
    %397 = vector.shape_cast %396 : vector<17xf32> to vector<17x1xf32>
    %398 = tpu.reciprocal %397 {approx = true} : vector<17x1xf32> -> vector<17x1xf32>
    %399 = vector.broadcast %398 : vector<17x1xf32> to vector<17x17xf32>
    %400 = arith.mulf %395, %399 : vector<17x17xf32>
    %401 = arith.truncf %400 : vector<17x17xf32> to vector<17x17xbf16>
    %402 = arith.truncf %387 : vector<17x8xf32> to vector<17x8xbf16>
    %cst_170 = arith.constant dense<0.000000e+00> : vector<17x8xf32>
    %403 = tpu.matmul %401, %402, %cst_170 {dimension_numbers = #tpu.dot_dimension_numbers<[1], [0], [0], [1], [0, 0, 1, 1], [], []>} : vector<17x17xbf16>, vector<17x8xbf16>, vector<17x8xf32> -> vector<17x8xf32>
    %c0_171 = arith.constant 0 : index
    %c8_172 = arith.constant 8 : index
    %404 = vector.load %arg11[%c0_171, %c8_172] : memref<17x32xf32, #tpu.memory_space<vmem>>, vector<17x8xf32>
    tpu.vector_store %arg11[%c0_171, %c8_172], %403 {strides = array<i32>} : memref<17x32xf32, #tpu.memory_space<vmem>>, vector<17x8xf32>,
    %405 = vector.extract_strided_slice %364 {offsets = [0, 16], sizes = [17, 8], strides = [1, 1]} : vector<17x96xf32> to vector<17x8xf32>
    %406 = vector.extract_strided_slice %364 {offsets = [0, 48], sizes = [17, 8], strides = [1, 1]} : vector<17x96xf32> to vector<17x8xf32>
    %407 = vector.extract_strided_slice %364 {offsets = [0, 80], sizes = [17, 8], strides = [1, 1]} : vector<17x96xf32> to vector<17x8xf32>
    %408 = arith.truncf %405 : vector<17x8xf32> to vector<17x8xbf16>
    %409 = arith.truncf %406 : vector<17x8xf32> to vector<17x8xbf16>
    %cst_173 = arith.constant dense<0.000000e+00> : vector<17x17xf32>
    %410 = tpu.matmul %408, %409, %cst_173 {dimension_numbers = #tpu.dot_dimension_numbers<[1], [1], [0], [0], [0, 0, 1, 0], [], []>} : vector<17x8xbf16>, vector<17x8xbf16>, vector<17x17xf32> -> vector<17x17xf32>
    %cst_174 = arith.constant dense<0xFF800000> : vector<17xf32>
    %411 = vector.multi_reduction <maximumf>, %410, %cst_174 [1] : vector<17x17xf32> to vector<17xf32>
    %412 = vector.shape_cast %411 : vector<17xf32> to vector<17x1xf32>
    %413 = vector.broadcast %412 : vector<17x1xf32> to vector<17x17xf32>
    %414 = arith.subf %410, %413 : vector<17x17xf32>
    %415 = math.exp %414 : vector<17x17xf32>
    %cst_175 = arith.constant dense<0.000000e+00> : vector<17xf32>
    %416 = vector.multi_reduction <add>, %415, %cst_175 [1] : vector<17x17xf32> to vector<17xf32>
    %417 = vector.shape_cast %416 : vector<17xf32> to vector<17x1xf32>
    %418 = tpu.reciprocal %417 {approx = true} : vector<17x1xf32> -> vector<17x1xf32>
    %419 = vector.broadcast %418 : vector<17x1xf32> to vector<17x17xf32>
    %420 = arith.mulf %415, %419 : vector<17x17xf32>
    %421 = arith.truncf %420 : vector<17x17xf32> to vector<17x17xbf16>
    %422 = arith.truncf %407 : vector<17x8xf32> to vector<17x8xbf16>
    %cst_176 = arith.constant dense<0.000000e+00> : vector<17x8xf32>
    %423 = tpu.matmul %421, %422, %cst_176 {dimension_numbers = #tpu.dot_dimension_numbers<[1], [0], [0], [1], [0, 0, 1, 1], [], []>} : vector<17x17xbf16>, vector<17x8xbf16>, vector<17x8xf32> -> vector<17x8xf32>
    %c0_177 = arith.constant 0 : index
    %c16_178 = arith.constant 16 : index
    %424 = vector.load %arg11[%c0_177, %c16_178] : memref<17x32xf32, #tpu.memory_space<vmem>>, vector<17x8xf32>
    tpu.vector_store %arg11[%c0_177, %c16_178], %423 {strides = array<i32>} : memref<17x32xf32, #tpu.memory_space<vmem>>, vector<17x8xf32>,
    %425 = vector.extract_strided_slice %364 {offsets = [0, 24], sizes = [17, 8], strides = [1, 1]} : vector<17x96xf32> to vector<17x8xf32>
    %426 = vector.extract_strided_slice %364 {offsets = [0, 56], sizes = [17, 8], strides = [1, 1]} : vector<17x96xf32> to vector<17x8xf32>
    %427 = vector.extract_strided_slice %364 {offsets = [0, 88], sizes = [17, 8], strides = [1, 1]} : vector<17x96xf32> to vector<17x8xf32>
    %428 = arith.truncf %425 : vector<17x8xf32> to vector<17x8xbf16>
    %429 = arith.truncf %426 : vector<17x8xf32> to vector<17x8xbf16>
    %cst_179 = arith.constant dense<0.000000e+00> : vector<17x17xf32>
    %430 = tpu.matmul %428, %429, %cst_179 {dimension_numbers = #tpu.dot_dimension_numbers<[1], [1], [0], [0], [0, 0, 1, 0], [], []>} : vector<17x8xbf16>, vector<17x8xbf16>, vector<17x17xf32> -> vector<17x17xf32>
    %cst_180 = arith.constant dense<0xFF800000> : vector<17xf32>
    %431 = vector.multi_reduction <maximumf>, %430, %cst_180 [1] : vector<17x17xf32> to vector<17xf32>
    %432 = vector.shape_cast %431 : vector<17xf32> to vector<17x1xf32>
    %433 = vector.broadcast %432 : vector<17x1xf32> to vector<17x17xf32>
    %434 = arith.subf %430, %433 : vector<17x17xf32>
    %435 = math.exp %434 : vector<17x17xf32>
    %cst_181 = arith.constant dense<0.000000e+00> : vector<17xf32>
    %436 = vector.multi_reduction <add>, %435, %cst_181 [1] : vector<17x17xf32> to vector<17xf32>
    %437 = vector.shape_cast %436 : vector<17xf32> to vector<17x1xf32>
    %438 = tpu.reciprocal %437 {approx = true} : vector<17x1xf32> -> vector<17x1xf32>
    %439 = vector.broadcast %438 : vector<17x1xf32> to vector<17x17xf32>
    %440 = arith.mulf %435, %439 : vector<17x17xf32>
    %441 = arith.truncf %440 : vector<17x17xf32> to vector<17x17xbf16>
    %442 = arith.truncf %427 : vector<17x8xf32> to vector<17x8xbf16>
    %cst_182 = arith.constant dense<0.000000e+00> : vector<17x8xf32>
    %443 = tpu.matmul %441, %442, %cst_182 {dimension_numbers = #tpu.dot_dimension_numbers<[1], [0], [0], [1], [0, 0, 1, 1], [], []>} : vector<17x17xbf16>, vector<17x8xbf16>, vector<17x8xf32> -> vector<17x8xf32>
    %c0_183 = arith.constant 0 : index
    %c24_184 = arith.constant 24 : index
    %444 = vector.load %arg11[%c0_183, %c24_184] : memref<17x32xf32, #tpu.memory_space<vmem>>, vector<17x8xf32>
    tpu.vector_store %arg11[%c0_183, %c24_184], %443 {strides = array<i32>} : memref<17x32xf32, #tpu.memory_space<vmem>>, vector<17x8xf32>,
    %c0_185 = arith.constant 0 : index
    %c0_186 = arith.constant 0 : index
    %445 = vector.load %arg11[%c0_185, %c0_186] : memref<17x32xf32, #tpu.memory_space<vmem>>, vector<17x32xf32>
    %c2_187 = arith.constant 2 : index
    %c0_188 = arith.constant 0 : index
    %c0_189 = arith.constant 0 : index
    %446 = vector.load %arg5[%c2_187, %c0_188, %c0_189] : memref<3x32x32xbf16, #tpu.memory_space<vmem>>, vector<1x32x32xbf16>
    %447 = vector.shape_cast %446 : vector<1x32x32xbf16> to vector<32x32xbf16>
    %c20 = arith.constant 20 : index
    %c0_190 = arith.constant 0 : index
    %448 = vector.load %arg9[%c20, %c0_190] : memref<28x128xf32, #tpu.memory_space<vmem>>, vector<1x32xf32>
    %449 = arith.truncf %445 : vector<17x32xf32> to vector<17x32xbf16>
    %cst_191 = arith.constant dense<0.000000e+00> : vector<17x32xf32>
    %450 = tpu.matmul %449, %447, %cst_191 {dimension_numbers = #tpu.dot_dimension_numbers<[1], [0], [0], [1], [0, 0, 1, 1], [], []>} : vector<17x32xbf16>, vector<32x32xbf16>, vector<17x32xf32> -> vector<17x32xf32>
    %451 = vector.broadcast %448 : vector<1x32xf32> to vector<17x32xf32>
    %452 = arith.addf %450, %451 : vector<17x32xf32>
    %453 = arith.addf %357, %452 : vector<17x32xf32>
    %c23 = arith.constant 23 : index
    %c0_192 = arith.constant 0 : index
    %454 = vector.load %arg9[%c23, %c0_192] : memref<28x128xf32, #tpu.memory_space<vmem>>, vector<1x32xf32>
    %c24_193 = arith.constant 24 : index
    %c0_194 = arith.constant 0 : index
    %455 = vector.load %arg9[%c24_193, %c0_194] : memref<28x128xf32, #tpu.memory_space<vmem>>, vector<1x32xf32>
    %cst_195 = arith.constant dense<0.000000e+00> : vector<17xf32>
    %456 = vector.multi_reduction <add>, %453, %cst_195 [1] : vector<17x32xf32> to vector<17xf32>
    %457 = vector.shape_cast %456 : vector<17xf32> to vector<17x1xf32>
    %cst_196 = arith.constant 3.200000e+01 : f32
    %458 = vector.broadcast %cst_196 : f32 to vector<17x1xf32>
    %459 = arith.divf %457, %458 : vector<17x1xf32>
    %460 = vector.broadcast %459 : vector<17x1xf32> to vector<17x32xf32>
    %461 = arith.subf %453, %460 : vector<17x32xf32>
    %462 = arith.mulf %461, %461 : vector<17x32xf32>
    %cst_197 = arith.constant dense<0.000000e+00> : vector<17xf32>
    %463 = vector.multi_reduction <add>, %462, %cst_197 [1] : vector<17x32xf32> to vector<17xf32>
    %464 = vector.shape_cast %463 : vector<17xf32> to vector<17x1xf32>
    %cst_198 = arith.constant 3.200000e+01 : f32
    %465 = vector.broadcast %cst_198 : f32 to vector<17x1xf32>
    %466 = arith.divf %464, %465 : vector<17x1xf32>
    %467 = vector.broadcast %459 : vector<17x1xf32> to vector<17x32xf32>
    %468 = arith.subf %453, %467 : vector<17x32xf32>
    %cst_199 = arith.constant 9.99999974E-6 : f32
    %469 = vector.broadcast %cst_199 : f32 to vector<17x1xf32>
    %470 = arith.addf %466, %469 : vector<17x1xf32>
    %471 = math.rsqrt %470 : vector<17x1xf32>
    %472 = vector.broadcast %471 : vector<17x1xf32> to vector<17x32xf32>
    %473 = arith.mulf %468, %472 : vector<17x32xf32>
    %474 = vector.broadcast %454 : vector<1x32xf32> to vector<17x32xf32>
    %475 = arith.mulf %473, %474 : vector<17x32xf32>
    %476 = vector.broadcast %455 : vector<1x32xf32> to vector<17x32xf32>
    %477 = arith.addf %475, %476 : vector<17x32xf32>
    %c2_200 = arith.constant 2 : index
    %c0_201 = arith.constant 0 : index
    %c0_202 = arith.constant 0 : index
    %478 = vector.load %arg6[%c2_200, %c0_201, %c0_202] : memref<3x32x64xbf16, #tpu.memory_space<vmem>>, vector<1x32x64xbf16>
    %479 = vector.shape_cast %478 : vector<1x32x64xbf16> to vector<32x64xbf16>
    %c21 = arith.constant 21 : index
    %c0_203 = arith.constant 0 : index
    %480 = vector.load %arg9[%c21, %c0_203] : memref<28x128xf32, #tpu.memory_space<vmem>>, vector<1x64xf32>
    %481 = arith.truncf %477 : vector<17x32xf32> to vector<17x32xbf16>
    %cst_204 = arith.constant dense<0.000000e+00> : vector<17x64xf32>
    %482 = tpu.matmul %481, %479, %cst_204 {dimension_numbers = #tpu.dot_dimension_numbers<[1], [0], [0], [1], [0, 0, 1, 1], [], []>} : vector<17x32xbf16>, vector<32x64xbf16>, vector<17x64xf32> -> vector<17x64xf32>
    %483 = vector.broadcast %480 : vector<1x64xf32> to vector<17x64xf32>
    %484 = arith.addf %482, %483 : vector<17x64xf32>
    %cst_205 = arith.constant 0.000000e+00 : f32
    %485 = vector.broadcast %cst_205 : f32 to vector<17x64xf32>
    %486 = arith.maximumf %484, %485 : vector<17x64xf32>
    %c2_206 = arith.constant 2 : index
    %c0_207 = arith.constant 0 : index
    %c0_208 = arith.constant 0 : index
    %487 = vector.load %arg7[%c2_206, %c0_207, %c0_208] : memref<3x64x32xbf16, #tpu.memory_space<vmem>>, vector<1x64x32xbf16>
    %488 = vector.shape_cast %487 : vector<1x64x32xbf16> to vector<64x32xbf16>
    %c22 = arith.constant 22 : index
    %c0_209 = arith.constant 0 : index
    %489 = vector.load %arg9[%c22, %c0_209] : memref<28x128xf32, #tpu.memory_space<vmem>>, vector<1x32xf32>
    %490 = arith.truncf %486 : vector<17x64xf32> to vector<17x64xbf16>
    %cst_210 = arith.constant dense<0.000000e+00> : vector<17x32xf32>
    %491 = tpu.matmul %490, %488, %cst_210 {dimension_numbers = #tpu.dot_dimension_numbers<[1], [0], [0], [1], [0, 0, 1, 1], [], []>} : vector<17x64xbf16>, vector<64x32xbf16>, vector<17x32xf32> -> vector<17x32xf32>
    %492 = vector.broadcast %489 : vector<1x32xf32> to vector<17x32xf32>
    %493 = arith.addf %491, %492 : vector<17x32xf32>
    %494 = arith.addf %477, %493 : vector<17x32xf32>
    %c25 = arith.constant 25 : index
    %c0_211 = arith.constant 0 : index
    %495 = vector.load %arg9[%c25, %c0_211] : memref<28x128xf32, #tpu.memory_space<vmem>>, vector<1x32xf32>
    %c26 = arith.constant 26 : index
    %c0_212 = arith.constant 0 : index
    %496 = vector.load %arg9[%c26, %c0_212] : memref<28x128xf32, #tpu.memory_space<vmem>>, vector<1x32xf32>
    %cst_213 = arith.constant dense<0.000000e+00> : vector<17xf32>
    %497 = vector.multi_reduction <add>, %494, %cst_213 [1] : vector<17x32xf32> to vector<17xf32>
    %498 = vector.shape_cast %497 : vector<17xf32> to vector<17x1xf32>
    %cst_214 = arith.constant 3.200000e+01 : f32
    %499 = vector.broadcast %cst_214 : f32 to vector<17x1xf32>
    %500 = arith.divf %498, %499 : vector<17x1xf32>
    %501 = vector.broadcast %500 : vector<17x1xf32> to vector<17x32xf32>
    %502 = arith.subf %494, %501 : vector<17x32xf32>
    %503 = arith.mulf %502, %502 : vector<17x32xf32>
    %cst_215 = arith.constant dense<0.000000e+00> : vector<17xf32>
    %504 = vector.multi_reduction <add>, %503, %cst_215 [1] : vector<17x32xf32> to vector<17xf32>
    %505 = vector.shape_cast %504 : vector<17xf32> to vector<17x1xf32>
    %cst_216 = arith.constant 3.200000e+01 : f32
    %506 = vector.broadcast %cst_216 : f32 to vector<17x1xf32>
    %507 = arith.divf %505, %506 : vector<17x1xf32>
    %508 = vector.broadcast %500 : vector<17x1xf32> to vector<17x32xf32>
    %509 = arith.subf %494, %508 : vector<17x32xf32>
    %cst_217 = arith.constant 9.99999974E-6 : f32
    %510 = vector.broadcast %cst_217 : f32 to vector<17x1xf32>
    %511 = arith.addf %507, %510 : vector<17x1xf32>
    %512 = math.rsqrt %511 : vector<17x1xf32>
    %513 = vector.broadcast %512 : vector<17x1xf32> to vector<17x32xf32>
    %514 = arith.mulf %509, %513 : vector<17x32xf32>
    %515 = vector.broadcast %495 : vector<1x32xf32> to vector<17x32xf32>
    %516 = arith.mulf %514, %515 : vector<17x32xf32>
    %517 = vector.broadcast %496 : vector<1x32xf32> to vector<17x32xf32>
    %518 = arith.addf %516, %517 : vector<17x32xf32>
    %519 = arith.truncf %518 : vector<17x32xf32> to vector<17x32xbf16>
    %cst_218 = arith.constant dense<0.000000e+00> : vector<17x128xf32>
    %520 = tpu.matmul %519, %0, %cst_218 {dimension_numbers = #tpu.dot_dimension_numbers<[1], [0], [0], [1], [0, 0, 1, 1], [], []>} : vector<17x32xbf16>, vector<32x128xbf16>, vector<17x128xf32> -> vector<17x128xf32>
    %521 = vector.broadcast %1 : vector<1x128xf32> to vector<17x128xf32>
    %522 = arith.addf %520, %521 : vector<17x128xf32>
    %c0_219 = arith.constant 0 : index
    %c0_220 = arith.constant 0 : index
    %c0_221 = arith.constant 0 : index
    %523 = vector.load %arg10[%c0_219, %c0_220, %c0_221] : memref<2x17x128xf32, #tpu.memory_space<vmem>>, vector<1x17x128xf32>
    %524 = vector.shape_cast %523 : vector<1x17x128xf32> to vector<17x128xf32>
    %525 = vector.shape_cast %522 : vector<17x128xf32> to vector<1x17x128xf32>
    tpu.vector_store %arg10[%c0_219, %c0_220, %c0_221], %525 {strides = array<i32>} : memref<2x17x128xf32, #tpu.memory_space<vmem>>, vector<1x17x128xf32>,
    %c0_222 = arith.constant 0 : index
    %c1_223 = arith.constant 1 : index
    %c0_224 = arith.constant 0 : index
    %c0_225 = arith.constant 0 : index
    %526 = vector.load %arg1[%c0_222, %c1_223, %c0_224, %c0_225] : memref<3x2x17x32xbf16, #tpu.memory_space<vmem>>, vector<1x1x17x32xbf16>
    %527 = vector.shape_cast %526 : vector<1x1x17x32xbf16> to vector<17x32xbf16>
    %c0_226 = arith.constant 0 : index
    %c0_227 = arith.constant 0 : index
    %c0_228 = arith.constant 0 : index
    %528 = vector.load %arg3[%c0_226, %c0_227, %c0_228] : memref<3x32x32xbf16, #tpu.memory_space<vmem>>, vector<1x32x32xbf16>
    %529 = vector.shape_cast %528 : vector<1x32x32xbf16> to vector<32x32xbf16>
    %c0_229 = arith.constant 0 : index
    %c0_230 = arith.constant 0 : index
    %530 = vector.load %arg9[%c0_229, %c0_230] : memref<28x128xf32, #tpu.memory_space<vmem>>, vector<1x32xf32>
    %cst_231 = arith.constant dense<0.000000e+00> : vector<17x32xf32>
    %531 = tpu.matmul %527, %529, %cst_231 {dimension_numbers = #tpu.dot_dimension_numbers<[1], [0], [0], [1], [0, 0, 1, 1], [], []>} : vector<17x32xbf16>, vector<32x32xbf16>, vector<17x32xf32> -> vector<17x32xf32>
    %532 = vector.broadcast %530 : vector<1x32xf32> to vector<17x32xf32>
    %533 = arith.addf %531, %532 : vector<17x32xf32>
    %c1_232 = arith.constant 1 : index
    %c0_233 = arith.constant 0 : index
    %c0_234 = arith.constant 0 : index
    %534 = vector.load %arg2[%c1_232, %c0_233, %c0_234] : memref<2x2x32xf32, #tpu.memory_space<vmem>>, vector<1x1x32xf32>
    %535 = vector.shape_cast %534 : vector<1x1x32xf32> to vector<1x32xf32>
    %536 = vector.broadcast %535 : vector<1x32xf32> to vector<17x32xf32>
    %537 = arith.mulf %533, %536 : vector<17x32xf32>
    %c1_235 = arith.constant 1 : index
    %c1_236 = arith.constant 1 : index
    %c0_237 = arith.constant 0 : index
    %538 = vector.load %arg2[%c1_235, %c1_236, %c0_237] : memref<2x2x32xf32, #tpu.memory_space<vmem>>, vector<1x1x32xf32>
    %539 = vector.shape_cast %538 : vector<1x1x32xf32> to vector<1x32xf32>
    %540 = vector.broadcast %539 : vector<1x32xf32> to vector<17x32xf32>
    %541 = arith.addf %537, %540 : vector<17x32xf32>
    %c0_238 = arith.constant 0 : index
    %c0_239 = arith.constant 0 : index
    %c0_240 = arith.constant 0 : index
    %542 = vector.load %arg4[%c0_238, %c0_239, %c0_240] : memref<3x32x96xbf16, #tpu.memory_space<vmem>>, vector<1x32x96xbf16>
    %543 = vector.shape_cast %542 : vector<1x32x96xbf16> to vector<32x96xbf16>
    %c1_241 = arith.constant 1 : index
    %c0_242 = arith.constant 0 : index
    %544 = vector.load %arg9[%c1_241, %c0_242] : memref<28x128xf32, #tpu.memory_space<vmem>>, vector<1x96xf32>
    %545 = arith.truncf %541 : vector<17x32xf32> to vector<17x32xbf16>
    %cst_243 = arith.constant dense<0.000000e+00> : vector<17x96xf32>
    %546 = tpu.matmul %545, %543, %cst_243 {dimension_numbers = #tpu.dot_dimension_numbers<[1], [0], [0], [1], [0, 0, 1, 1], [], []>} : vector<17x32xbf16>, vector<32x96xbf16>, vector<17x96xf32> -> vector<17x96xf32>
    %547 = vector.broadcast %544 : vector<1x96xf32> to vector<17x96xf32>
    %548 = arith.addf %546, %547 : vector<17x96xf32>
    %549 = vector.extract_strided_slice %548 {offsets = [0, 0], sizes = [17, 8], strides = [1, 1]} : vector<17x96xf32> to vector<17x8xf32>
    %550 = vector.extract_strided_slice %548 {offsets = [0, 32], sizes = [17, 8], strides = [1, 1]} : vector<17x96xf32> to vector<17x8xf32>
    %551 = vector.extract_strided_slice %548 {offsets = [0, 64], sizes = [17, 8], strides = [1, 1]} : vector<17x96xf32> to vector<17x8xf32>
    %552 = arith.truncf %549 : vector<17x8xf32> to vector<17x8xbf16>
    %553 = arith.truncf %550 : vector<17x8xf32> to vector<17x8xbf16>
    %cst_244 = arith.constant dense<0.000000e+00> : vector<17x17xf32>
    %554 = tpu.matmul %552, %553, %cst_244 {dimension_numbers = #tpu.dot_dimension_numbers<[1], [1], [0], [0], [0, 0, 1, 0], [], []>} : vector<17x8xbf16>, vector<17x8xbf16>, vector<17x17xf32> -> vector<17x17xf32>
    %cst_245 = arith.constant dense<0xFF800000> : vector<17xf32>
    %555 = vector.multi_reduction <maximumf>, %554, %cst_245 [1] : vector<17x17xf32> to vector<17xf32>
    %556 = vector.shape_cast %555 : vector<17xf32> to vector<17x1xf32>
    %557 = vector.broadcast %556 : vector<17x1xf32> to vector<17x17xf32>
    %558 = arith.subf %554, %557 : vector<17x17xf32>
    %559 = math.exp %558 : vector<17x17xf32>
    %cst_246 = arith.constant dense<0.000000e+00> : vector<17xf32>
    %560 = vector.multi_reduction <add>, %559, %cst_246 [1] : vector<17x17xf32> to vector<17xf32>
    %561 = vector.shape_cast %560 : vector<17xf32> to vector<17x1xf32>
    %562 = tpu.reciprocal %561 {approx = true} : vector<17x1xf32> -> vector<17x1xf32>
    %563 = vector.broadcast %562 : vector<17x1xf32> to vector<17x17xf32>
    %564 = arith.mulf %559, %563 : vector<17x17xf32>
    %565 = arith.truncf %564 : vector<17x17xf32> to vector<17x17xbf16>
    %566 = arith.truncf %551 : vector<17x8xf32> to vector<17x8xbf16>
    %cst_247 = arith.constant dense<0.000000e+00> : vector<17x8xf32>
    %567 = tpu.matmul %565, %566, %cst_247 {dimension_numbers = #tpu.dot_dimension_numbers<[1], [0], [0], [1], [0, 0, 1, 1], [], []>} : vector<17x17xbf16>, vector<17x8xbf16>, vector<17x8xf32> -> vector<17x8xf32>
    %c0_248 = arith.constant 0 : index
    %c0_249 = arith.constant 0 : index
    %568 = vector.load %arg11[%c0_248, %c0_249] : memref<17x32xf32, #tpu.memory_space<vmem>>, vector<17x8xf32>
    tpu.vector_store %arg11[%c0_248, %c0_249], %567 {strides = array<i32>} : memref<17x32xf32, #tpu.memory_space<vmem>>, vector<17x8xf32>,
    %569 = vector.extract_strided_slice %548 {offsets = [0, 8], sizes = [17, 8], strides = [1, 1]} : vector<17x96xf32> to vector<17x8xf32>
    %570 = vector.extract_strided_slice %548 {offsets = [0, 40], sizes = [17, 8], strides = [1, 1]} : vector<17x96xf32> to vector<17x8xf32>
    %571 = vector.extract_strided_slice %548 {offsets = [0, 72], sizes = [17, 8], strides = [1, 1]} : vector<17x96xf32> to vector<17x8xf32>
    %572 = arith.truncf %569 : vector<17x8xf32> to vector<17x8xbf16>
    %573 = arith.truncf %570 : vector<17x8xf32> to vector<17x8xbf16>
    %cst_250 = arith.constant dense<0.000000e+00> : vector<17x17xf32>
    %574 = tpu.matmul %572, %573, %cst_250 {dimension_numbers = #tpu.dot_dimension_numbers<[1], [1], [0], [0], [0, 0, 1, 0], [], []>} : vector<17x8xbf16>, vector<17x8xbf16>, vector<17x17xf32> -> vector<17x17xf32>
    %cst_251 = arith.constant dense<0xFF800000> : vector<17xf32>
    %575 = vector.multi_reduction <maximumf>, %574, %cst_251 [1] : vector<17x17xf32> to vector<17xf32>
    %576 = vector.shape_cast %575 : vector<17xf32> to vector<17x1xf32>
    %577 = vector.broadcast %576 : vector<17x1xf32> to vector<17x17xf32>
    %578 = arith.subf %574, %577 : vector<17x17xf32>
    %579 = math.exp %578 : vector<17x17xf32>
    %cst_252 = arith.constant dense<0.000000e+00> : vector<17xf32>
    %580 = vector.multi_reduction <add>, %579, %cst_252 [1] : vector<17x17xf32> to vector<17xf32>
    %581 = vector.shape_cast %580 : vector<17xf32> to vector<17x1xf32>
    %582 = tpu.reciprocal %581 {approx = true} : vector<17x1xf32> -> vector<17x1xf32>
    %583 = vector.broadcast %582 : vector<17x1xf32> to vector<17x17xf32>
    %584 = arith.mulf %579, %583 : vector<17x17xf32>
    %585 = arith.truncf %584 : vector<17x17xf32> to vector<17x17xbf16>
    %586 = arith.truncf %571 : vector<17x8xf32> to vector<17x8xbf16>
    %cst_253 = arith.constant dense<0.000000e+00> : vector<17x8xf32>
    %587 = tpu.matmul %585, %586, %cst_253 {dimension_numbers = #tpu.dot_dimension_numbers<[1], [0], [0], [1], [0, 0, 1, 1], [], []>} : vector<17x17xbf16>, vector<17x8xbf16>, vector<17x8xf32> -> vector<17x8xf32>
    %c0_254 = arith.constant 0 : index
    %c8_255 = arith.constant 8 : index
    %588 = vector.load %arg11[%c0_254, %c8_255] : memref<17x32xf32, #tpu.memory_space<vmem>>, vector<17x8xf32>
    tpu.vector_store %arg11[%c0_254, %c8_255], %587 {strides = array<i32>} : memref<17x32xf32, #tpu.memory_space<vmem>>, vector<17x8xf32>,
    %589 = vector.extract_strided_slice %548 {offsets = [0, 16], sizes = [17, 8], strides = [1, 1]} : vector<17x96xf32> to vector<17x8xf32>
    %590 = vector.extract_strided_slice %548 {offsets = [0, 48], sizes = [17, 8], strides = [1, 1]} : vector<17x96xf32> to vector<17x8xf32>
    %591 = vector.extract_strided_slice %548 {offsets = [0, 80], sizes = [17, 8], strides = [1, 1]} : vector<17x96xf32> to vector<17x8xf32>
    %592 = arith.truncf %589 : vector<17x8xf32> to vector<17x8xbf16>
    %593 = arith.truncf %590 : vector<17x8xf32> to vector<17x8xbf16>
    %cst_256 = arith.constant dense<0.000000e+00> : vector<17x17xf32>
    %594 = tpu.matmul %592, %593, %cst_256 {dimension_numbers = #tpu.dot_dimension_numbers<[1], [1], [0], [0], [0, 0, 1, 0], [], []>} : vector<17x8xbf16>, vector<17x8xbf16>, vector<17x17xf32> -> vector<17x17xf32>
    %cst_257 = arith.constant dense<0xFF800000> : vector<17xf32>
    %595 = vector.multi_reduction <maximumf>, %594, %cst_257 [1] : vector<17x17xf32> to vector<17xf32>
    %596 = vector.shape_cast %595 : vector<17xf32> to vector<17x1xf32>
    %597 = vector.broadcast %596 : vector<17x1xf32> to vector<17x17xf32>
    %598 = arith.subf %594, %597 : vector<17x17xf32>
    %599 = math.exp %598 : vector<17x17xf32>
    %cst_258 = arith.constant dense<0.000000e+00> : vector<17xf32>
    %600 = vector.multi_reduction <add>, %599, %cst_258 [1] : vector<17x17xf32> to vector<17xf32>
    %601 = vector.shape_cast %600 : vector<17xf32> to vector<17x1xf32>
    %602 = tpu.reciprocal %601 {approx = true} : vector<17x1xf32> -> vector<17x1xf32>
    %603 = vector.broadcast %602 : vector<17x1xf32> to vector<17x17xf32>
    %604 = arith.mulf %599, %603 : vector<17x17xf32>
    %605 = arith.truncf %604 : vector<17x17xf32> to vector<17x17xbf16>
    %606 = arith.truncf %591 : vector<17x8xf32> to vector<17x8xbf16>
    %cst_259 = arith.constant dense<0.000000e+00> : vector<17x8xf32>
    %607 = tpu.matmul %605, %606, %cst_259 {dimension_numbers = #tpu.dot_dimension_numbers<[1], [0], [0], [1], [0, 0, 1, 1], [], []>} : vector<17x17xbf16>, vector<17x8xbf16>, vector<17x8xf32> -> vector<17x8xf32>
    %c0_260 = arith.constant 0 : index
    %c16_261 = arith.constant 16 : index
    %608 = vector.load %arg11[%c0_260, %c16_261] : memref<17x32xf32, #tpu.memory_space<vmem>>, vector<17x8xf32>
    tpu.vector_store %arg11[%c0_260, %c16_261], %607 {strides = array<i32>} : memref<17x32xf32, #tpu.memory_space<vmem>>, vector<17x8xf32>,
    %609 = vector.extract_strided_slice %548 {offsets = [0, 24], sizes = [17, 8], strides = [1, 1]} : vector<17x96xf32> to vector<17x8xf32>
    %610 = vector.extract_strided_slice %548 {offsets = [0, 56], sizes = [17, 8], strides = [1, 1]} : vector<17x96xf32> to vector<17x8xf32>
    %611 = vector.extract_strided_slice %548 {offsets = [0, 88], sizes = [17, 8], strides = [1, 1]} : vector<17x96xf32> to vector<17x8xf32>
    %612 = arith.truncf %609 : vector<17x8xf32> to vector<17x8xbf16>
    %613 = arith.truncf %610 : vector<17x8xf32> to vector<17x8xbf16>
    %cst_262 = arith.constant dense<0.000000e+00> : vector<17x17xf32>
    %614 = tpu.matmul %612, %613, %cst_262 {dimension_numbers = #tpu.dot_dimension_numbers<[1], [1], [0], [0], [0, 0, 1, 0], [], []>} : vector<17x8xbf16>, vector<17x8xbf16>, vector<17x17xf32> -> vector<17x17xf32>
    %cst_263 = arith.constant dense<0xFF800000> : vector<17xf32>
    %615 = vector.multi_reduction <maximumf>, %614, %cst_263 [1] : vector<17x17xf32> to vector<17xf32>
    %616 = vector.shape_cast %615 : vector<17xf32> to vector<17x1xf32>
    %617 = vector.broadcast %616 : vector<17x1xf32> to vector<17x17xf32>
    %618 = arith.subf %614, %617 : vector<17x17xf32>
    %619 = math.exp %618 : vector<17x17xf32>
    %cst_264 = arith.constant dense<0.000000e+00> : vector<17xf32>
    %620 = vector.multi_reduction <add>, %619, %cst_264 [1] : vector<17x17xf32> to vector<17xf32>
    %621 = vector.shape_cast %620 : vector<17xf32> to vector<17x1xf32>
    %622 = tpu.reciprocal %621 {approx = true} : vector<17x1xf32> -> vector<17x1xf32>
    %623 = vector.broadcast %622 : vector<17x1xf32> to vector<17x17xf32>
    %624 = arith.mulf %619, %623 : vector<17x17xf32>
    %625 = arith.truncf %624 : vector<17x17xf32> to vector<17x17xbf16>
    %626 = arith.truncf %611 : vector<17x8xf32> to vector<17x8xbf16>
    %cst_265 = arith.constant dense<0.000000e+00> : vector<17x8xf32>
    %627 = tpu.matmul %625, %626, %cst_265 {dimension_numbers = #tpu.dot_dimension_numbers<[1], [0], [0], [1], [0, 0, 1, 1], [], []>} : vector<17x17xbf16>, vector<17x8xbf16>, vector<17x8xf32> -> vector<17x8xf32>
    %c0_266 = arith.constant 0 : index
    %c24_267 = arith.constant 24 : index
    %628 = vector.load %arg11[%c0_266, %c24_267] : memref<17x32xf32, #tpu.memory_space<vmem>>, vector<17x8xf32>
    tpu.vector_store %arg11[%c0_266, %c24_267], %627 {strides = array<i32>} : memref<17x32xf32, #tpu.memory_space<vmem>>, vector<17x8xf32>,
    %c0_268 = arith.constant 0 : index
    %c0_269 = arith.constant 0 : index
    %629 = vector.load %arg11[%c0_268, %c0_269] : memref<17x32xf32, #tpu.memory_space<vmem>>, vector<17x32xf32>
    %c0_270 = arith.constant 0 : index
    %c0_271 = arith.constant 0 : index
    %c0_272 = arith.constant 0 : index
    %630 = vector.load %arg5[%c0_270, %c0_271, %c0_272] : memref<3x32x32xbf16, #tpu.memory_space<vmem>>, vector<1x32x32xbf16>
    %631 = vector.shape_cast %630 : vector<1x32x32xbf16> to vector<32x32xbf16>
    %c2_273 = arith.constant 2 : index
    %c0_274 = arith.constant 0 : index
    %632 = vector.load %arg9[%c2_273, %c0_274] : memref<28x128xf32, #tpu.memory_space<vmem>>, vector<1x32xf32>
    %633 = arith.truncf %629 : vector<17x32xf32> to vector<17x32xbf16>
    %cst_275 = arith.constant dense<0.000000e+00> : vector<17x32xf32>
    %634 = tpu.matmul %633, %631, %cst_275 {dimension_numbers = #tpu.dot_dimension_numbers<[1], [0], [0], [1], [0, 0, 1, 1], [], []>} : vector<17x32xbf16>, vector<32x32xbf16>, vector<17x32xf32> -> vector<17x32xf32>
    %635 = vector.broadcast %632 : vector<1x32xf32> to vector<17x32xf32>
    %636 = arith.addf %634, %635 : vector<17x32xf32>
    %637 = arith.addf %541, %636 : vector<17x32xf32>
    %c5_276 = arith.constant 5 : index
    %c0_277 = arith.constant 0 : index
    %638 = vector.load %arg9[%c5_276, %c0_277] : memref<28x128xf32, #tpu.memory_space<vmem>>, vector<1x32xf32>
    %c6_278 = arith.constant 6 : index
    %c0_279 = arith.constant 0 : index
    %639 = vector.load %arg9[%c6_278, %c0_279] : memref<28x128xf32, #tpu.memory_space<vmem>>, vector<1x32xf32>
    %cst_280 = arith.constant dense<0.000000e+00> : vector<17xf32>
    %640 = vector.multi_reduction <add>, %637, %cst_280 [1] : vector<17x32xf32> to vector<17xf32>
    %641 = vector.shape_cast %640 : vector<17xf32> to vector<17x1xf32>
    %cst_281 = arith.constant 3.200000e+01 : f32
    %642 = vector.broadcast %cst_281 : f32 to vector<17x1xf32>
    %643 = arith.divf %641, %642 : vector<17x1xf32>
    %644 = vector.broadcast %643 : vector<17x1xf32> to vector<17x32xf32>
    %645 = arith.subf %637, %644 : vector<17x32xf32>
    %646 = arith.mulf %645, %645 : vector<17x32xf32>
    %cst_282 = arith.constant dense<0.000000e+00> : vector<17xf32>
    %647 = vector.multi_reduction <add>, %646, %cst_282 [1] : vector<17x32xf32> to vector<17xf32>
    %648 = vector.shape_cast %647 : vector<17xf32> to vector<17x1xf32>
    %cst_283 = arith.constant 3.200000e+01 : f32
    %649 = vector.broadcast %cst_283 : f32 to vector<17x1xf32>
    %650 = arith.divf %648, %649 : vector<17x1xf32>
    %651 = vector.broadcast %643 : vector<17x1xf32> to vector<17x32xf32>
    %652 = arith.subf %637, %651 : vector<17x32xf32>
    %cst_284 = arith.constant 9.99999974E-6 : f32
    %653 = vector.broadcast %cst_284 : f32 to vector<17x1xf32>
    %654 = arith.addf %650, %653 : vector<17x1xf32>
    %655 = math.rsqrt %654 : vector<17x1xf32>
    %656 = vector.broadcast %655 : vector<17x1xf32> to vector<17x32xf32>
    %657 = arith.mulf %652, %656 : vector<17x32xf32>
    %658 = vector.broadcast %638 : vector<1x32xf32> to vector<17x32xf32>
    %659 = arith.mulf %657, %658 : vector<17x32xf32>
    %660 = vector.broadcast %639 : vector<1x32xf32> to vector<17x32xf32>
    %661 = arith.addf %659, %660 : vector<17x32xf32>
    %c0_285 = arith.constant 0 : index
    %c0_286 = arith.constant 0 : index
    %c0_287 = arith.constant 0 : index
    %662 = vector.load %arg6[%c0_285, %c0_286, %c0_287] : memref<3x32x64xbf16, #tpu.memory_space<vmem>>, vector<1x32x64xbf16>
    %663 = vector.shape_cast %662 : vector<1x32x64xbf16> to vector<32x64xbf16>
    %c3_288 = arith.constant 3 : index
    %c0_289 = arith.constant 0 : index
    %664 = vector.load %arg9[%c3_288, %c0_289] : memref<28x128xf32, #tpu.memory_space<vmem>>, vector<1x64xf32>
    %665 = arith.truncf %661 : vector<17x32xf32> to vector<17x32xbf16>
    %cst_290 = arith.constant dense<0.000000e+00> : vector<17x64xf32>
    %666 = tpu.matmul %665, %663, %cst_290 {dimension_numbers = #tpu.dot_dimension_numbers<[1], [0], [0], [1], [0, 0, 1, 1], [], []>} : vector<17x32xbf16>, vector<32x64xbf16>, vector<17x64xf32> -> vector<17x64xf32>
    %667 = vector.broadcast %664 : vector<1x64xf32> to vector<17x64xf32>
    %668 = arith.addf %666, %667 : vector<17x64xf32>
    %cst_291 = arith.constant 0.000000e+00 : f32
    %669 = vector.broadcast %cst_291 : f32 to vector<17x64xf32>
    %670 = arith.maximumf %668, %669 : vector<17x64xf32>
    %c0_292 = arith.constant 0 : index
    %c0_293 = arith.constant 0 : index
    %c0_294 = arith.constant 0 : index
    %671 = vector.load %arg7[%c0_292, %c0_293, %c0_294] : memref<3x64x32xbf16, #tpu.memory_space<vmem>>, vector<1x64x32xbf16>
    %672 = vector.shape_cast %671 : vector<1x64x32xbf16> to vector<64x32xbf16>
    %c4_295 = arith.constant 4 : index
    %c0_296 = arith.constant 0 : index
    %673 = vector.load %arg9[%c4_295, %c0_296] : memref<28x128xf32, #tpu.memory_space<vmem>>, vector<1x32xf32>
    %674 = arith.truncf %670 : vector<17x64xf32> to vector<17x64xbf16>
    %cst_297 = arith.constant dense<0.000000e+00> : vector<17x32xf32>
    %675 = tpu.matmul %674, %672, %cst_297 {dimension_numbers = #tpu.dot_dimension_numbers<[1], [0], [0], [1], [0, 0, 1, 1], [], []>} : vector<17x64xbf16>, vector<64x32xbf16>, vector<17x32xf32> -> vector<17x32xf32>
    %676 = vector.broadcast %673 : vector<1x32xf32> to vector<17x32xf32>
    %677 = arith.addf %675, %676 : vector<17x32xf32>
    %678 = arith.addf %661, %677 : vector<17x32xf32>
    %c7_298 = arith.constant 7 : index
    %c0_299 = arith.constant 0 : index
    %679 = vector.load %arg9[%c7_298, %c0_299] : memref<28x128xf32, #tpu.memory_space<vmem>>, vector<1x32xf32>
    %c8_300 = arith.constant 8 : index
    %c0_301 = arith.constant 0 : index
    %680 = vector.load %arg9[%c8_300, %c0_301] : memref<28x128xf32, #tpu.memory_space<vmem>>, vector<1x32xf32>
    %cst_302 = arith.constant dense<0.000000e+00> : vector<17xf32>
    %681 = vector.multi_reduction <add>, %678, %cst_302 [1] : vector<17x32xf32> to vector<17xf32>
    %682 = vector.shape_cast %681 : vector<17xf32> to vector<17x1xf32>
    %cst_303 = arith.constant 3.200000e+01 : f32
    %683 = vector.broadcast %cst_303 : f32 to vector<17x1xf32>
    %684 = arith.divf %682, %683 : vector<17x1xf32>
    %685 = vector.broadcast %684 : vector<17x1xf32> to vector<17x32xf32>
    %686 = arith.subf %678, %685 : vector<17x32xf32>
    %687 = arith.mulf %686, %686 : vector<17x32xf32>
    %cst_304 = arith.constant dense<0.000000e+00> : vector<17xf32>
    %688 = vector.multi_reduction <add>, %687, %cst_304 [1] : vector<17x32xf32> to vector<17xf32>
    %689 = vector.shape_cast %688 : vector<17xf32> to vector<17x1xf32>
    %cst_305 = arith.constant 3.200000e+01 : f32
    %690 = vector.broadcast %cst_305 : f32 to vector<17x1xf32>
    %691 = arith.divf %689, %690 : vector<17x1xf32>
    %692 = vector.broadcast %684 : vector<17x1xf32> to vector<17x32xf32>
    %693 = arith.subf %678, %692 : vector<17x32xf32>
    %cst_306 = arith.constant 9.99999974E-6 : f32
    %694 = vector.broadcast %cst_306 : f32 to vector<17x1xf32>
    %695 = arith.addf %691, %694 : vector<17x1xf32>
    %696 = math.rsqrt %695 : vector<17x1xf32>
    %697 = vector.broadcast %696 : vector<17x1xf32> to vector<17x32xf32>
    %698 = arith.mulf %693, %697 : vector<17x32xf32>
    %699 = vector.broadcast %679 : vector<1x32xf32> to vector<17x32xf32>
    %700 = arith.mulf %698, %699 : vector<17x32xf32>
    %701 = vector.broadcast %680 : vector<1x32xf32> to vector<17x32xf32>
    %702 = arith.addf %700, %701 : vector<17x32xf32>
    %c1_307 = arith.constant 1 : index
    %c1_308 = arith.constant 1 : index
    %c0_309 = arith.constant 0 : index
    %c0_310 = arith.constant 0 : index
    %703 = vector.load %arg1[%c1_307, %c1_308, %c0_309, %c0_310] : memref<3x2x17x32xbf16, #tpu.memory_space<vmem>>, vector<1x1x17x32xbf16>
    %704 = vector.shape_cast %703 : vector<1x1x17x32xbf16> to vector<17x32xbf16>
    %c1_311 = arith.constant 1 : index
    %c0_312 = arith.constant 0 : index
    %c0_313 = arith.constant 0 : index
    %705 = vector.load %arg3[%c1_311, %c0_312, %c0_313] : memref<3x32x32xbf16, #tpu.memory_space<vmem>>, vector<1x32x32xbf16>
    %706 = vector.shape_cast %705 : vector<1x32x32xbf16> to vector<32x32xbf16>
    %c9_314 = arith.constant 9 : index
    %c0_315 = arith.constant 0 : index
    %707 = vector.load %arg9[%c9_314, %c0_315] : memref<28x128xf32, #tpu.memory_space<vmem>>, vector<1x32xf32>
    %cst_316 = arith.constant dense<0.000000e+00> : vector<17x32xf32>
    %708 = tpu.matmul %704, %706, %cst_316 {dimension_numbers = #tpu.dot_dimension_numbers<[1], [0], [0], [1], [0, 0, 1, 1], [], []>} : vector<17x32xbf16>, vector<32x32xbf16>, vector<17x32xf32> -> vector<17x32xf32>
    %709 = vector.broadcast %707 : vector<1x32xf32> to vector<17x32xf32>
    %710 = arith.addf %708, %709 : vector<17x32xf32>
    %711 = arith.addf %702, %710 : vector<17x32xf32>
    %c1_317 = arith.constant 1 : index
    %c0_318 = arith.constant 0 : index
    %c0_319 = arith.constant 0 : index
    %712 = vector.load %arg4[%c1_317, %c0_318, %c0_319] : memref<3x32x96xbf16, #tpu.memory_space<vmem>>, vector<1x32x96xbf16>
    %713 = vector.shape_cast %712 : vector<1x32x96xbf16> to vector<32x96xbf16>
    %c10_320 = arith.constant 10 : index
    %c0_321 = arith.constant 0 : index
    %714 = vector.load %arg9[%c10_320, %c0_321] : memref<28x128xf32, #tpu.memory_space<vmem>>, vector<1x96xf32>
    %715 = arith.truncf %711 : vector<17x32xf32> to vector<17x32xbf16>
    %cst_322 = arith.constant dense<0.000000e+00> : vector<17x96xf32>
    %716 = tpu.matmul %715, %713, %cst_322 {dimension_numbers = #tpu.dot_dimension_numbers<[1], [0], [0], [1], [0, 0, 1, 1], [], []>} : vector<17x32xbf16>, vector<32x96xbf16>, vector<17x96xf32> -> vector<17x96xf32>
    %717 = vector.broadcast %714 : vector<1x96xf32> to vector<17x96xf32>
    %718 = arith.addf %716, %717 : vector<17x96xf32>
    %719 = vector.extract_strided_slice %718 {offsets = [0, 0], sizes = [17, 8], strides = [1, 1]} : vector<17x96xf32> to vector<17x8xf32>
    %720 = vector.extract_strided_slice %718 {offsets = [0, 32], sizes = [17, 8], strides = [1, 1]} : vector<17x96xf32> to vector<17x8xf32>
    %721 = vector.extract_strided_slice %718 {offsets = [0, 64], sizes = [17, 8], strides = [1, 1]} : vector<17x96xf32> to vector<17x8xf32>
    %722 = arith.truncf %719 : vector<17x8xf32> to vector<17x8xbf16>
    %723 = arith.truncf %720 : vector<17x8xf32> to vector<17x8xbf16>
    %cst_323 = arith.constant dense<0.000000e+00> : vector<17x17xf32>
    %724 = tpu.matmul %722, %723, %cst_323 {dimension_numbers = #tpu.dot_dimension_numbers<[1], [1], [0], [0], [0, 0, 1, 0], [], []>} : vector<17x8xbf16>, vector<17x8xbf16>, vector<17x17xf32> -> vector<17x17xf32>
    %cst_324 = arith.constant dense<0xFF800000> : vector<17xf32>
    %725 = vector.multi_reduction <maximumf>, %724, %cst_324 [1] : vector<17x17xf32> to vector<17xf32>
    %726 = vector.shape_cast %725 : vector<17xf32> to vector<17x1xf32>
    %727 = vector.broadcast %726 : vector<17x1xf32> to vector<17x17xf32>
    %728 = arith.subf %724, %727 : vector<17x17xf32>
    %729 = math.exp %728 : vector<17x17xf32>
    %cst_325 = arith.constant dense<0.000000e+00> : vector<17xf32>
    %730 = vector.multi_reduction <add>, %729, %cst_325 [1] : vector<17x17xf32> to vector<17xf32>
    %731 = vector.shape_cast %730 : vector<17xf32> to vector<17x1xf32>
    %732 = tpu.reciprocal %731 {approx = true} : vector<17x1xf32> -> vector<17x1xf32>
    %733 = vector.broadcast %732 : vector<17x1xf32> to vector<17x17xf32>
    %734 = arith.mulf %729, %733 : vector<17x17xf32>
    %735 = arith.truncf %734 : vector<17x17xf32> to vector<17x17xbf16>
    %736 = arith.truncf %721 : vector<17x8xf32> to vector<17x8xbf16>
    %cst_326 = arith.constant dense<0.000000e+00> : vector<17x8xf32>
    %737 = tpu.matmul %735, %736, %cst_326 {dimension_numbers = #tpu.dot_dimension_numbers<[1], [0], [0], [1], [0, 0, 1, 1], [], []>} : vector<17x17xbf16>, vector<17x8xbf16>, vector<17x8xf32> -> vector<17x8xf32>
    %c0_327 = arith.constant 0 : index
    %c0_328 = arith.constant 0 : index
    %738 = vector.load %arg11[%c0_327, %c0_328] : memref<17x32xf32, #tpu.memory_space<vmem>>, vector<17x8xf32>
    tpu.vector_store %arg11[%c0_327, %c0_328], %737 {strides = array<i32>} : memref<17x32xf32, #tpu.memory_space<vmem>>, vector<17x8xf32>,
    %739 = vector.extract_strided_slice %718 {offsets = [0, 8], sizes = [17, 8], strides = [1, 1]} : vector<17x96xf32> to vector<17x8xf32>
    %740 = vector.extract_strided_slice %718 {offsets = [0, 40], sizes = [17, 8], strides = [1, 1]} : vector<17x96xf32> to vector<17x8xf32>
    %741 = vector.extract_strided_slice %718 {offsets = [0, 72], sizes = [17, 8], strides = [1, 1]} : vector<17x96xf32> to vector<17x8xf32>
    %742 = arith.truncf %739 : vector<17x8xf32> to vector<17x8xbf16>
    %743 = arith.truncf %740 : vector<17x8xf32> to vector<17x8xbf16>
    %cst_329 = arith.constant dense<0.000000e+00> : vector<17x17xf32>
    %744 = tpu.matmul %742, %743, %cst_329 {dimension_numbers = #tpu.dot_dimension_numbers<[1], [1], [0], [0], [0, 0, 1, 0], [], []>} : vector<17x8xbf16>, vector<17x8xbf16>, vector<17x17xf32> -> vector<17x17xf32>
    %cst_330 = arith.constant dense<0xFF800000> : vector<17xf32>
    %745 = vector.multi_reduction <maximumf>, %744, %cst_330 [1] : vector<17x17xf32> to vector<17xf32>
    %746 = vector.shape_cast %745 : vector<17xf32> to vector<17x1xf32>
    %747 = vector.broadcast %746 : vector<17x1xf32> to vector<17x17xf32>
    %748 = arith.subf %744, %747 : vector<17x17xf32>
    %749 = math.exp %748 : vector<17x17xf32>
    %cst_331 = arith.constant dense<0.000000e+00> : vector<17xf32>
    %750 = vector.multi_reduction <add>, %749, %cst_331 [1] : vector<17x17xf32> to vector<17xf32>
    %751 = vector.shape_cast %750 : vector<17xf32> to vector<17x1xf32>
    %752 = tpu.reciprocal %751 {approx = true} : vector<17x1xf32> -> vector<17x1xf32>
    %753 = vector.broadcast %752 : vector<17x1xf32> to vector<17x17xf32>
    %754 = arith.mulf %749, %753 : vector<17x17xf32>
    %755 = arith.truncf %754 : vector<17x17xf32> to vector<17x17xbf16>
    %756 = arith.truncf %741 : vector<17x8xf32> to vector<17x8xbf16>
    %cst_332 = arith.constant dense<0.000000e+00> : vector<17x8xf32>
    %757 = tpu.matmul %755, %756, %cst_332 {dimension_numbers = #tpu.dot_dimension_numbers<[1], [0], [0], [1], [0, 0, 1, 1], [], []>} : vector<17x17xbf16>, vector<17x8xbf16>, vector<17x8xf32> -> vector<17x8xf32>
    %c0_333 = arith.constant 0 : index
    %c8_334 = arith.constant 8 : index
    %758 = vector.load %arg11[%c0_333, %c8_334] : memref<17x32xf32, #tpu.memory_space<vmem>>, vector<17x8xf32>
    tpu.vector_store %arg11[%c0_333, %c8_334], %757 {strides = array<i32>} : memref<17x32xf32, #tpu.memory_space<vmem>>, vector<17x8xf32>,
    %759 = vector.extract_strided_slice %718 {offsets = [0, 16], sizes = [17, 8], strides = [1, 1]} : vector<17x96xf32> to vector<17x8xf32>
    %760 = vector.extract_strided_slice %718 {offsets = [0, 48], sizes = [17, 8], strides = [1, 1]} : vector<17x96xf32> to vector<17x8xf32>
    %761 = vector.extract_strided_slice %718 {offsets = [0, 80], sizes = [17, 8], strides = [1, 1]} : vector<17x96xf32> to vector<17x8xf32>
    %762 = arith.truncf %759 : vector<17x8xf32> to vector<17x8xbf16>
    %763 = arith.truncf %760 : vector<17x8xf32> to vector<17x8xbf16>
    %cst_335 = arith.constant dense<0.000000e+00> : vector<17x17xf32>
    %764 = tpu.matmul %762, %763, %cst_335 {dimension_numbers = #tpu.dot_dimension_numbers<[1], [1], [0], [0], [0, 0, 1, 0], [], []>} : vector<17x8xbf16>, vector<17x8xbf16>, vector<17x17xf32> -> vector<17x17xf32>
    %cst_336 = arith.constant dense<0xFF800000> : vector<17xf32>
    %765 = vector.multi_reduction <maximumf>, %764, %cst_336 [1] : vector<17x17xf32> to vector<17xf32>
    %766 = vector.shape_cast %765 : vector<17xf32> to vector<17x1xf32>
    %767 = vector.broadcast %766 : vector<17x1xf32> to vector<17x17xf32>
    %768 = arith.subf %764, %767 : vector<17x17xf32>
    %769 = math.exp %768 : vector<17x17xf32>
    %cst_337 = arith.constant dense<0.000000e+00> : vector<17xf32>
    %770 = vector.multi_reduction <add>, %769, %cst_337 [1] : vector<17x17xf32> to vector<17xf32>
    %771 = vector.shape_cast %770 : vector<17xf32> to vector<17x1xf32>
    %772 = tpu.reciprocal %771 {approx = true} : vector<17x1xf32> -> vector<17x1xf32>
    %773 = vector.broadcast %772 : vector<17x1xf32> to vector<17x17xf32>
    %774 = arith.mulf %769, %773 : vector<17x17xf32>
    %775 = arith.truncf %774 : vector<17x17xf32> to vector<17x17xbf16>
    %776 = arith.truncf %761 : vector<17x8xf32> to vector<17x8xbf16>
    %cst_338 = arith.constant dense<0.000000e+00> : vector<17x8xf32>
    %777 = tpu.matmul %775, %776, %cst_338 {dimension_numbers = #tpu.dot_dimension_numbers<[1], [0], [0], [1], [0, 0, 1, 1], [], []>} : vector<17x17xbf16>, vector<17x8xbf16>, vector<17x8xf32> -> vector<17x8xf32>
    %c0_339 = arith.constant 0 : index
    %c16_340 = arith.constant 16 : index
    %778 = vector.load %arg11[%c0_339, %c16_340] : memref<17x32xf32, #tpu.memory_space<vmem>>, vector<17x8xf32>
    tpu.vector_store %arg11[%c0_339, %c16_340], %777 {strides = array<i32>} : memref<17x32xf32, #tpu.memory_space<vmem>>, vector<17x8xf32>,
    %779 = vector.extract_strided_slice %718 {offsets = [0, 24], sizes = [17, 8], strides = [1, 1]} : vector<17x96xf32> to vector<17x8xf32>
    %780 = vector.extract_strided_slice %718 {offsets = [0, 56], sizes = [17, 8], strides = [1, 1]} : vector<17x96xf32> to vector<17x8xf32>
    %781 = vector.extract_strided_slice %718 {offsets = [0, 88], sizes = [17, 8], strides = [1, 1]} : vector<17x96xf32> to vector<17x8xf32>
    %782 = arith.truncf %779 : vector<17x8xf32> to vector<17x8xbf16>
    %783 = arith.truncf %780 : vector<17x8xf32> to vector<17x8xbf16>
    %cst_341 = arith.constant dense<0.000000e+00> : vector<17x17xf32>
    %784 = tpu.matmul %782, %783, %cst_341 {dimension_numbers = #tpu.dot_dimension_numbers<[1], [1], [0], [0], [0, 0, 1, 0], [], []>} : vector<17x8xbf16>, vector<17x8xbf16>, vector<17x17xf32> -> vector<17x17xf32>
    %cst_342 = arith.constant dense<0xFF800000> : vector<17xf32>
    %785 = vector.multi_reduction <maximumf>, %784, %cst_342 [1] : vector<17x17xf32> to vector<17xf32>
    %786 = vector.shape_cast %785 : vector<17xf32> to vector<17x1xf32>
    %787 = vector.broadcast %786 : vector<17x1xf32> to vector<17x17xf32>
    %788 = arith.subf %784, %787 : vector<17x17xf32>
    %789 = math.exp %788 : vector<17x17xf32>
    %cst_343 = arith.constant dense<0.000000e+00> : vector<17xf32>
    %790 = vector.multi_reduction <add>, %789, %cst_343 [1] : vector<17x17xf32> to vector<17xf32>
    %791 = vector.shape_cast %790 : vector<17xf32> to vector<17x1xf32>
    %792 = tpu.reciprocal %791 {approx = true} : vector<17x1xf32> -> vector<17x1xf32>
    %793 = vector.broadcast %792 : vector<17x1xf32> to vector<17x17xf32>
    %794 = arith.mulf %789, %793 : vector<17x17xf32>
    %795 = arith.truncf %794 : vector<17x17xf32> to vector<17x17xbf16>
    %796 = arith.truncf %781 : vector<17x8xf32> to vector<17x8xbf16>
    %cst_344 = arith.constant dense<0.000000e+00> : vector<17x8xf32>
    %797 = tpu.matmul %795, %796, %cst_344 {dimension_numbers = #tpu.dot_dimension_numbers<[1], [0], [0], [1], [0, 0, 1, 1], [], []>} : vector<17x17xbf16>, vector<17x8xbf16>, vector<17x8xf32> -> vector<17x8xf32>
    %c0_345 = arith.constant 0 : index
    %c24_346 = arith.constant 24 : index
    %798 = vector.load %arg11[%c0_345, %c24_346] : memref<17x32xf32, #tpu.memory_space<vmem>>, vector<17x8xf32>
    tpu.vector_store %arg11[%c0_345, %c24_346], %797 {strides = array<i32>} : memref<17x32xf32, #tpu.memory_space<vmem>>, vector<17x8xf32>,
    %c0_347 = arith.constant 0 : index
    %c0_348 = arith.constant 0 : index
    %799 = vector.load %arg11[%c0_347, %c0_348] : memref<17x32xf32, #tpu.memory_space<vmem>>, vector<17x32xf32>
    %c1_349 = arith.constant 1 : index
    %c0_350 = arith.constant 0 : index
    %c0_351 = arith.constant 0 : index
    %800 = vector.load %arg5[%c1_349, %c0_350, %c0_351] : memref<3x32x32xbf16, #tpu.memory_space<vmem>>, vector<1x32x32xbf16>
    %801 = vector.shape_cast %800 : vector<1x32x32xbf16> to vector<32x32xbf16>
    %c11_352 = arith.constant 11 : index
    %c0_353 = arith.constant 0 : index
    %802 = vector.load %arg9[%c11_352, %c0_353] : memref<28x128xf32, #tpu.memory_space<vmem>>, vector<1x32xf32>
    %803 = arith.truncf %799 : vector<17x32xf32> to vector<17x32xbf16>
    %cst_354 = arith.constant dense<0.000000e+00> : vector<17x32xf32>
    %804 = tpu.matmul %803, %801, %cst_354 {dimension_numbers = #tpu.dot_dimension_numbers<[1], [0], [0], [1], [0, 0, 1, 1], [], []>} : vector<17x32xbf16>, vector<32x32xbf16>, vector<17x32xf32> -> vector<17x32xf32>
    %805 = vector.broadcast %802 : vector<1x32xf32> to vector<17x32xf32>
    %806 = arith.addf %804, %805 : vector<17x32xf32>
    %807 = arith.addf %711, %806 : vector<17x32xf32>
    %c14_355 = arith.constant 14 : index
    %c0_356 = arith.constant 0 : index
    %808 = vector.load %arg9[%c14_355, %c0_356] : memref<28x128xf32, #tpu.memory_space<vmem>>, vector<1x32xf32>
    %c15_357 = arith.constant 15 : index
    %c0_358 = arith.constant 0 : index
    %809 = vector.load %arg9[%c15_357, %c0_358] : memref<28x128xf32, #tpu.memory_space<vmem>>, vector<1x32xf32>
    %cst_359 = arith.constant dense<0.000000e+00> : vector<17xf32>
    %810 = vector.multi_reduction <add>, %807, %cst_359 [1] : vector<17x32xf32> to vector<17xf32>
    %811 = vector.shape_cast %810 : vector<17xf32> to vector<17x1xf32>
    %cst_360 = arith.constant 3.200000e+01 : f32
    %812 = vector.broadcast %cst_360 : f32 to vector<17x1xf32>
    %813 = arith.divf %811, %812 : vector<17x1xf32>
    %814 = vector.broadcast %813 : vector<17x1xf32> to vector<17x32xf32>
    %815 = arith.subf %807, %814 : vector<17x32xf32>
    %816 = arith.mulf %815, %815 : vector<17x32xf32>
    %cst_361 = arith.constant dense<0.000000e+00> : vector<17xf32>
    %817 = vector.multi_reduction <add>, %816, %cst_361 [1] : vector<17x32xf32> to vector<17xf32>
    %818 = vector.shape_cast %817 : vector<17xf32> to vector<17x1xf32>
    %cst_362 = arith.constant 3.200000e+01 : f32
    %819 = vector.broadcast %cst_362 : f32 to vector<17x1xf32>
    %820 = arith.divf %818, %819 : vector<17x1xf32>
    %821 = vector.broadcast %813 : vector<17x1xf32> to vector<17x32xf32>
    %822 = arith.subf %807, %821 : vector<17x32xf32>
    %cst_363 = arith.constant 9.99999974E-6 : f32
    %823 = vector.broadcast %cst_363 : f32 to vector<17x1xf32>
    %824 = arith.addf %820, %823 : vector<17x1xf32>
    %825 = math.rsqrt %824 : vector<17x1xf32>
    %826 = vector.broadcast %825 : vector<17x1xf32> to vector<17x32xf32>
    %827 = arith.mulf %822, %826 : vector<17x32xf32>
    %828 = vector.broadcast %808 : vector<1x32xf32> to vector<17x32xf32>
    %829 = arith.mulf %827, %828 : vector<17x32xf32>
    %830 = vector.broadcast %809 : vector<1x32xf32> to vector<17x32xf32>
    %831 = arith.addf %829, %830 : vector<17x32xf32>
    %c1_364 = arith.constant 1 : index
    %c0_365 = arith.constant 0 : index
    %c0_366 = arith.constant 0 : index
    %832 = vector.load %arg6[%c1_364, %c0_365, %c0_366] : memref<3x32x64xbf16, #tpu.memory_space<vmem>>, vector<1x32x64xbf16>
    %833 = vector.shape_cast %832 : vector<1x32x64xbf16> to vector<32x64xbf16>
    %c12_367 = arith.constant 12 : index
    %c0_368 = arith.constant 0 : index
    %834 = vector.load %arg9[%c12_367, %c0_368] : memref<28x128xf32, #tpu.memory_space<vmem>>, vector<1x64xf32>
    %835 = arith.truncf %831 : vector<17x32xf32> to vector<17x32xbf16>
    %cst_369 = arith.constant dense<0.000000e+00> : vector<17x64xf32>
    %836 = tpu.matmul %835, %833, %cst_369 {dimension_numbers = #tpu.dot_dimension_numbers<[1], [0], [0], [1], [0, 0, 1, 1], [], []>} : vector<17x32xbf16>, vector<32x64xbf16>, vector<17x64xf32> -> vector<17x64xf32>
    %837 = vector.broadcast %834 : vector<1x64xf32> to vector<17x64xf32>
    %838 = arith.addf %836, %837 : vector<17x64xf32>
    %cst_370 = arith.constant 0.000000e+00 : f32
    %839 = vector.broadcast %cst_370 : f32 to vector<17x64xf32>
    %840 = arith.maximumf %838, %839 : vector<17x64xf32>
    %c1_371 = arith.constant 1 : index
    %c0_372 = arith.constant 0 : index
    %c0_373 = arith.constant 0 : index
    %841 = vector.load %arg7[%c1_371, %c0_372, %c0_373] : memref<3x64x32xbf16, #tpu.memory_space<vmem>>, vector<1x64x32xbf16>
    %842 = vector.shape_cast %841 : vector<1x64x32xbf16> to vector<64x32xbf16>
    %c13_374 = arith.constant 13 : index
    %c0_375 = arith.constant 0 : index
    %843 = vector.load %arg9[%c13_374, %c0_375] : memref<28x128xf32, #tpu.memory_space<vmem>>, vector<1x32xf32>
    %844 = arith.truncf %840 : vector<17x64xf32> to vector<17x64xbf16>
    %cst_376 = arith.constant dense<0.000000e+00> : vector<17x32xf32>
    %845 = tpu.matmul %844, %842, %cst_376 {dimension_numbers = #tpu.dot_dimension_numbers<[1], [0], [0], [1], [0, 0, 1, 1], [], []>} : vector<17x64xbf16>, vector<64x32xbf16>, vector<17x32xf32> -> vector<17x32xf32>
    %846 = vector.broadcast %843 : vector<1x32xf32> to vector<17x32xf32>
    %847 = arith.addf %845, %846 : vector<17x32xf32>
    %848 = arith.addf %831, %847 : vector<17x32xf32>
    %c16_377 = arith.constant 16 : index
    %c0_378 = arith.constant 0 : index
    %849 = vector.load %arg9[%c16_377, %c0_378] : memref<28x128xf32, #tpu.memory_space<vmem>>, vector<1x32xf32>
    %c17_379 = arith.constant 17 : index
    %c0_380 = arith.constant 0 : index
    %850 = vector.load %arg9[%c17_379, %c0_380] : memref<28x128xf32, #tpu.memory_space<vmem>>, vector<1x32xf32>
    %cst_381 = arith.constant dense<0.000000e+00> : vector<17xf32>
    %851 = vector.multi_reduction <add>, %848, %cst_381 [1] : vector<17x32xf32> to vector<17xf32>
    %852 = vector.shape_cast %851 : vector<17xf32> to vector<17x1xf32>
    %cst_382 = arith.constant 3.200000e+01 : f32
    %853 = vector.broadcast %cst_382 : f32 to vector<17x1xf32>
    %854 = arith.divf %852, %853 : vector<17x1xf32>
    %855 = vector.broadcast %854 : vector<17x1xf32> to vector<17x32xf32>
    %856 = arith.subf %848, %855 : vector<17x32xf32>
    %857 = arith.mulf %856, %856 : vector<17x32xf32>
    %cst_383 = arith.constant dense<0.000000e+00> : vector<17xf32>
    %858 = vector.multi_reduction <add>, %857, %cst_383 [1] : vector<17x32xf32> to vector<17xf32>
    %859 = vector.shape_cast %858 : vector<17xf32> to vector<17x1xf32>
    %cst_384 = arith.constant 3.200000e+01 : f32
    %860 = vector.broadcast %cst_384 : f32 to vector<17x1xf32>
    %861 = arith.divf %859, %860 : vector<17x1xf32>
    %862 = vector.broadcast %854 : vector<17x1xf32> to vector<17x32xf32>
    %863 = arith.subf %848, %862 : vector<17x32xf32>
    %cst_385 = arith.constant 9.99999974E-6 : f32
    %864 = vector.broadcast %cst_385 : f32 to vector<17x1xf32>
    %865 = arith.addf %861, %864 : vector<17x1xf32>
    %866 = math.rsqrt %865 : vector<17x1xf32>
    %867 = vector.broadcast %866 : vector<17x1xf32> to vector<17x32xf32>
    %868 = arith.mulf %863, %867 : vector<17x32xf32>
    %869 = vector.broadcast %849 : vector<1x32xf32> to vector<17x32xf32>
    %870 = arith.mulf %868, %869 : vector<17x32xf32>
    %871 = vector.broadcast %850 : vector<1x32xf32> to vector<17x32xf32>
    %872 = arith.addf %870, %871 : vector<17x32xf32>
    %c2_386 = arith.constant 2 : index
    %c1_387 = arith.constant 1 : index
    %c0_388 = arith.constant 0 : index
    %c0_389 = arith.constant 0 : index
    %873 = vector.load %arg1[%c2_386, %c1_387, %c0_388, %c0_389] : memref<3x2x17x32xbf16, #tpu.memory_space<vmem>>, vector<1x1x17x32xbf16>
    %874 = vector.shape_cast %873 : vector<1x1x17x32xbf16> to vector<17x32xbf16>
    %c2_390 = arith.constant 2 : index
    %c0_391 = arith.constant 0 : index
    %c0_392 = arith.constant 0 : index
    %875 = vector.load %arg3[%c2_390, %c0_391, %c0_392] : memref<3x32x32xbf16, #tpu.memory_space<vmem>>, vector<1x32x32xbf16>
    %876 = vector.shape_cast %875 : vector<1x32x32xbf16> to vector<32x32xbf16>
    %c18_393 = arith.constant 18 : index
    %c0_394 = arith.constant 0 : index
    %877 = vector.load %arg9[%c18_393, %c0_394] : memref<28x128xf32, #tpu.memory_space<vmem>>, vector<1x32xf32>
    %cst_395 = arith.constant dense<0.000000e+00> : vector<17x32xf32>
    %878 = tpu.matmul %874, %876, %cst_395 {dimension_numbers = #tpu.dot_dimension_numbers<[1], [0], [0], [1], [0, 0, 1, 1], [], []>} : vector<17x32xbf16>, vector<32x32xbf16>, vector<17x32xf32> -> vector<17x32xf32>
    %879 = vector.broadcast %877 : vector<1x32xf32> to vector<17x32xf32>
    %880 = arith.addf %878, %879 : vector<17x32xf32>
    %881 = arith.addf %872, %880 : vector<17x32xf32>
    %c2_396 = arith.constant 2 : index
    %c0_397 = arith.constant 0 : index
    %c0_398 = arith.constant 0 : index
    %882 = vector.load %arg4[%c2_396, %c0_397, %c0_398] : memref<3x32x96xbf16, #tpu.memory_space<vmem>>, vector<1x32x96xbf16>
    %883 = vector.shape_cast %882 : vector<1x32x96xbf16> to vector<32x96xbf16>
    %c19_399 = arith.constant 19 : index
    %c0_400 = arith.constant 0 : index
    %884 = vector.load %arg9[%c19_399, %c0_400] : memref<28x128xf32, #tpu.memory_space<vmem>>, vector<1x96xf32>
    %885 = arith.truncf %881 : vector<17x32xf32> to vector<17x32xbf16>
    %cst_401 = arith.constant dense<0.000000e+00> : vector<17x96xf32>
    %886 = tpu.matmul %885, %883, %cst_401 {dimension_numbers = #tpu.dot_dimension_numbers<[1], [0], [0], [1], [0, 0, 1, 1], [], []>} : vector<17x32xbf16>, vector<32x96xbf16>, vector<17x96xf32> -> vector<17x96xf32>
    %887 = vector.broadcast %884 : vector<1x96xf32> to vector<17x96xf32>
    %888 = arith.addf %886, %887 : vector<17x96xf32>
    %889 = vector.extract_strided_slice %888 {offsets = [0, 0], sizes = [17, 8], strides = [1, 1]} : vector<17x96xf32> to vector<17x8xf32>
    %890 = vector.extract_strided_slice %888 {offsets = [0, 32], sizes = [17, 8], strides = [1, 1]} : vector<17x96xf32> to vector<17x8xf32>
    %891 = vector.extract_strided_slice %888 {offsets = [0, 64], sizes = [17, 8], strides = [1, 1]} : vector<17x96xf32> to vector<17x8xf32>
    %892 = arith.truncf %889 : vector<17x8xf32> to vector<17x8xbf16>
    %893 = arith.truncf %890 : vector<17x8xf32> to vector<17x8xbf16>
    %cst_402 = arith.constant dense<0.000000e+00> : vector<17x17xf32>
    %894 = tpu.matmul %892, %893, %cst_402 {dimension_numbers = #tpu.dot_dimension_numbers<[1], [1], [0], [0], [0, 0, 1, 0], [], []>} : vector<17x8xbf16>, vector<17x8xbf16>, vector<17x17xf32> -> vector<17x17xf32>
    %cst_403 = arith.constant dense<0xFF800000> : vector<17xf32>
    %895 = vector.multi_reduction <maximumf>, %894, %cst_403 [1] : vector<17x17xf32> to vector<17xf32>
    %896 = vector.shape_cast %895 : vector<17xf32> to vector<17x1xf32>
    %897 = vector.broadcast %896 : vector<17x1xf32> to vector<17x17xf32>
    %898 = arith.subf %894, %897 : vector<17x17xf32>
    %899 = math.exp %898 : vector<17x17xf32>
    %cst_404 = arith.constant dense<0.000000e+00> : vector<17xf32>
    %900 = vector.multi_reduction <add>, %899, %cst_404 [1] : vector<17x17xf32> to vector<17xf32>
    %901 = vector.shape_cast %900 : vector<17xf32> to vector<17x1xf32>
    %902 = tpu.reciprocal %901 {approx = true} : vector<17x1xf32> -> vector<17x1xf32>
    %903 = vector.broadcast %902 : vector<17x1xf32> to vector<17x17xf32>
    %904 = arith.mulf %899, %903 : vector<17x17xf32>
    %905 = arith.truncf %904 : vector<17x17xf32> to vector<17x17xbf16>
    %906 = arith.truncf %891 : vector<17x8xf32> to vector<17x8xbf16>
    %cst_405 = arith.constant dense<0.000000e+00> : vector<17x8xf32>
    %907 = tpu.matmul %905, %906, %cst_405 {dimension_numbers = #tpu.dot_dimension_numbers<[1], [0], [0], [1], [0, 0, 1, 1], [], []>} : vector<17x17xbf16>, vector<17x8xbf16>, vector<17x8xf32> -> vector<17x8xf32>
    %c0_406 = arith.constant 0 : index
    %c0_407 = arith.constant 0 : index
    %908 = vector.load %arg11[%c0_406, %c0_407] : memref<17x32xf32, #tpu.memory_space<vmem>>, vector<17x8xf32>
    tpu.vector_store %arg11[%c0_406, %c0_407], %907 {strides = array<i32>} : memref<17x32xf32, #tpu.memory_space<vmem>>, vector<17x8xf32>,
    %909 = vector.extract_strided_slice %888 {offsets = [0, 8], sizes = [17, 8], strides = [1, 1]} : vector<17x96xf32> to vector<17x8xf32>
    %910 = vector.extract_strided_slice %888 {offsets = [0, 40], sizes = [17, 8], strides = [1, 1]} : vector<17x96xf32> to vector<17x8xf32>
    %911 = vector.extract_strided_slice %888 {offsets = [0, 72], sizes = [17, 8], strides = [1, 1]} : vector<17x96xf32> to vector<17x8xf32>
    %912 = arith.truncf %909 : vector<17x8xf32> to vector<17x8xbf16>
    %913 = arith.truncf %910 : vector<17x8xf32> to vector<17x8xbf16>
    %cst_408 = arith.constant dense<0.000000e+00> : vector<17x17xf32>
    %914 = tpu.matmul %912, %913, %cst_408 {dimension_numbers = #tpu.dot_dimension_numbers<[1], [1], [0], [0], [0, 0, 1, 0], [], []>} : vector<17x8xbf16>, vector<17x8xbf16>, vector<17x17xf32> -> vector<17x17xf32>
    %cst_409 = arith.constant dense<0xFF800000> : vector<17xf32>
    %915 = vector.multi_reduction <maximumf>, %914, %cst_409 [1] : vector<17x17xf32> to vector<17xf32>
    %916 = vector.shape_cast %915 : vector<17xf32> to vector<17x1xf32>
    %917 = vector.broadcast %916 : vector<17x1xf32> to vector<17x17xf32>
    %918 = arith.subf %914, %917 : vector<17x17xf32>
    %919 = math.exp %918 : vector<17x17xf32>
    %cst_410 = arith.constant dense<0.000000e+00> : vector<17xf32>
    %920 = vector.multi_reduction <add>, %919, %cst_410 [1] : vector<17x17xf32> to vector<17xf32>
    %921 = vector.shape_cast %920 : vector<17xf32> to vector<17x1xf32>
    %922 = tpu.reciprocal %921 {approx = true} : vector<17x1xf32> -> vector<17x1xf32>
    %923 = vector.broadcast %922 : vector<17x1xf32> to vector<17x17xf32>
    %924 = arith.mulf %919, %923 : vector<17x17xf32>
    %925 = arith.truncf %924 : vector<17x17xf32> to vector<17x17xbf16>
    %926 = arith.truncf %911 : vector<17x8xf32> to vector<17x8xbf16>
    %cst_411 = arith.constant dense<0.000000e+00> : vector<17x8xf32>
    %927 = tpu.matmul %925, %926, %cst_411 {dimension_numbers = #tpu.dot_dimension_numbers<[1], [0], [0], [1], [0, 0, 1, 1], [], []>} : vector<17x17xbf16>, vector<17x8xbf16>, vector<17x8xf32> -> vector<17x8xf32>
    %c0_412 = arith.constant 0 : index
    %c8_413 = arith.constant 8 : index
    %928 = vector.load %arg11[%c0_412, %c8_413] : memref<17x32xf32, #tpu.memory_space<vmem>>, vector<17x8xf32>
    tpu.vector_store %arg11[%c0_412, %c8_413], %927 {strides = array<i32>} : memref<17x32xf32, #tpu.memory_space<vmem>>, vector<17x8xf32>,
    %929 = vector.extract_strided_slice %888 {offsets = [0, 16], sizes = [17, 8], strides = [1, 1]} : vector<17x96xf32> to vector<17x8xf32>
    %930 = vector.extract_strided_slice %888 {offsets = [0, 48], sizes = [17, 8], strides = [1, 1]} : vector<17x96xf32> to vector<17x8xf32>
    %931 = vector.extract_strided_slice %888 {offsets = [0, 80], sizes = [17, 8], strides = [1, 1]} : vector<17x96xf32> to vector<17x8xf32>
    %932 = arith.truncf %929 : vector<17x8xf32> to vector<17x8xbf16>
    %933 = arith.truncf %930 : vector<17x8xf32> to vector<17x8xbf16>
    %cst_414 = arith.constant dense<0.000000e+00> : vector<17x17xf32>
    %934 = tpu.matmul %932, %933, %cst_414 {dimension_numbers = #tpu.dot_dimension_numbers<[1], [1], [0], [0], [0, 0, 1, 0], [], []>} : vector<17x8xbf16>, vector<17x8xbf16>, vector<17x17xf32> -> vector<17x17xf32>
    %cst_415 = arith.constant dense<0xFF800000> : vector<17xf32>
    %935 = vector.multi_reduction <maximumf>, %934, %cst_415 [1] : vector<17x17xf32> to vector<17xf32>
    %936 = vector.shape_cast %935 : vector<17xf32> to vector<17x1xf32>
    %937 = vector.broadcast %936 : vector<17x1xf32> to vector<17x17xf32>
    %938 = arith.subf %934, %937 : vector<17x17xf32>
    %939 = math.exp %938 : vector<17x17xf32>
    %cst_416 = arith.constant dense<0.000000e+00> : vector<17xf32>
    %940 = vector.multi_reduction <add>, %939, %cst_416 [1] : vector<17x17xf32> to vector<17xf32>
    %941 = vector.shape_cast %940 : vector<17xf32> to vector<17x1xf32>
    %942 = tpu.reciprocal %941 {approx = true} : vector<17x1xf32> -> vector<17x1xf32>
    %943 = vector.broadcast %942 : vector<17x1xf32> to vector<17x17xf32>
    %944 = arith.mulf %939, %943 : vector<17x17xf32>
    %945 = arith.truncf %944 : vector<17x17xf32> to vector<17x17xbf16>
    %946 = arith.truncf %931 : vector<17x8xf32> to vector<17x8xbf16>
    %cst_417 = arith.constant dense<0.000000e+00> : vector<17x8xf32>
    %947 = tpu.matmul %945, %946, %cst_417 {dimension_numbers = #tpu.dot_dimension_numbers<[1], [0], [0], [1], [0, 0, 1, 1], [], []>} : vector<17x17xbf16>, vector<17x8xbf16>, vector<17x8xf32> -> vector<17x8xf32>
    %c0_418 = arith.constant 0 : index
    %c16_419 = arith.constant 16 : index
    %948 = vector.load %arg11[%c0_418, %c16_419] : memref<17x32xf32, #tpu.memory_space<vmem>>, vector<17x8xf32>
    tpu.vector_store %arg11[%c0_418, %c16_419], %947 {strides = array<i32>} : memref<17x32xf32, #tpu.memory_space<vmem>>, vector<17x8xf32>,
    %949 = vector.extract_strided_slice %888 {offsets = [0, 24], sizes = [17, 8], strides = [1, 1]} : vector<17x96xf32> to vector<17x8xf32>
    %950 = vector.extract_strided_slice %888 {offsets = [0, 56], sizes = [17, 8], strides = [1, 1]} : vector<17x96xf32> to vector<17x8xf32>
    %951 = vector.extract_strided_slice %888 {offsets = [0, 88], sizes = [17, 8], strides = [1, 1]} : vector<17x96xf32> to vector<17x8xf32>
    %952 = arith.truncf %949 : vector<17x8xf32> to vector<17x8xbf16>
    %953 = arith.truncf %950 : vector<17x8xf32> to vector<17x8xbf16>
    %cst_420 = arith.constant dense<0.000000e+00> : vector<17x17xf32>
    %954 = tpu.matmul %952, %953, %cst_420 {dimension_numbers = #tpu.dot_dimension_numbers<[1], [1], [0], [0], [0, 0, 1, 0], [], []>} : vector<17x8xbf16>, vector<17x8xbf16>, vector<17x17xf32> -> vector<17x17xf32>
    %cst_421 = arith.constant dense<0xFF800000> : vector<17xf32>
    %955 = vector.multi_reduction <maximumf>, %954, %cst_421 [1] : vector<17x17xf32> to vector<17xf32>
    %956 = vector.shape_cast %955 : vector<17xf32> to vector<17x1xf32>
    %957 = vector.broadcast %956 : vector<17x1xf32> to vector<17x17xf32>
    %958 = arith.subf %954, %957 : vector<17x17xf32>
    %959 = math.exp %958 : vector<17x17xf32>
    %cst_422 = arith.constant dense<0.000000e+00> : vector<17xf32>
    %960 = vector.multi_reduction <add>, %959, %cst_422 [1] : vector<17x17xf32> to vector<17xf32>
    %961 = vector.shape_cast %960 : vector<17xf32> to vector<17x1xf32>
    %962 = tpu.reciprocal %961 {approx = true} : vector<17x1xf32> -> vector<17x1xf32>
    %963 = vector.broadcast %962 : vector<17x1xf32> to vector<17x17xf32>
    %964 = arith.mulf %959, %963 : vector<17x17xf32>
    %965 = arith.truncf %964 : vector<17x17xf32> to vector<17x17xbf16>
    %966 = arith.truncf %951 : vector<17x8xf32> to vector<17x8xbf16>
    %cst_423 = arith.constant dense<0.000000e+00> : vector<17x8xf32>
    %967 = tpu.matmul %965, %966, %cst_423 {dimension_numbers = #tpu.dot_dimension_numbers<[1], [0], [0], [1], [0, 0, 1, 1], [], []>} : vector<17x17xbf16>, vector<17x8xbf16>, vector<17x8xf32> -> vector<17x8xf32>
    %c0_424 = arith.constant 0 : index
    %c24_425 = arith.constant 24 : index
    %968 = vector.load %arg11[%c0_424, %c24_425] : memref<17x32xf32, #tpu.memory_space<vmem>>, vector<17x8xf32>
    tpu.vector_store %arg11[%c0_424, %c24_425], %967 {strides = array<i32>} : memref<17x32xf32, #tpu.memory_space<vmem>>, vector<17x8xf32>,
    %c0_426 = arith.constant 0 : index
    %c0_427 = arith.constant 0 : index
    %969 = vector.load %arg11[%c0_426, %c0_427] : memref<17x32xf32, #tpu.memory_space<vmem>>, vector<17x32xf32>
    %c2_428 = arith.constant 2 : index
    %c0_429 = arith.constant 0 : index
    %c0_430 = arith.constant 0 : index
    %970 = vector.load %arg5[%c2_428, %c0_429, %c0_430] : memref<3x32x32xbf16, #tpu.memory_space<vmem>>, vector<1x32x32xbf16>
    %971 = vector.shape_cast %970 : vector<1x32x32xbf16> to vector<32x32xbf16>
    %c20_431 = arith.constant 20 : index
    %c0_432 = arith.constant 0 : index
    %972 = vector.load %arg9[%c20_431, %c0_432] : memref<28x128xf32, #tpu.memory_space<vmem>>, vector<1x32xf32>
    %973 = arith.truncf %969 : vector<17x32xf32> to vector<17x32xbf16>
    %cst_433 = arith.constant dense<0.000000e+00> : vector<17x32xf32>
    %974 = tpu.matmul %973, %971, %cst_433 {dimension_numbers = #tpu.dot_dimension_numbers<[1], [0], [0], [1], [0, 0, 1, 1], [], []>} : vector<17x32xbf16>, vector<32x32xbf16>, vector<17x32xf32> -> vector<17x32xf32>
    %975 = vector.broadcast %972 : vector<1x32xf32> to vector<17x32xf32>
    %976 = arith.addf %974, %975 : vector<17x32xf32>
    %977 = arith.addf %881, %976 : vector<17x32xf32>
    %c23_434 = arith.constant 23 : index
    %c0_435 = arith.constant 0 : index
    %978 = vector.load %arg9[%c23_434, %c0_435] : memref<28x128xf32, #tpu.memory_space<vmem>>, vector<1x32xf32>
    %c24_436 = arith.constant 24 : index
    %c0_437 = arith.constant 0 : index
    %979 = vector.load %arg9[%c24_436, %c0_437] : memref<28x128xf32, #tpu.memory_space<vmem>>, vector<1x32xf32>
    %cst_438 = arith.constant dense<0.000000e+00> : vector<17xf32>
    %980 = vector.multi_reduction <add>, %977, %cst_438 [1] : vector<17x32xf32> to vector<17xf32>
    %981 = vector.shape_cast %980 : vector<17xf32> to vector<17x1xf32>
    %cst_439 = arith.constant 3.200000e+01 : f32
    %982 = vector.broadcast %cst_439 : f32 to vector<17x1xf32>
    %983 = arith.divf %981, %982 : vector<17x1xf32>
    %984 = vector.broadcast %983 : vector<17x1xf32> to vector<17x32xf32>
    %985 = arith.subf %977, %984 : vector<17x32xf32>
    %986 = arith.mulf %985, %985 : vector<17x32xf32>
    %cst_440 = arith.constant dense<0.000000e+00> : vector<17xf32>
    %987 = vector.multi_reduction <add>, %986, %cst_440 [1] : vector<17x32xf32> to vector<17xf32>
    %988 = vector.shape_cast %987 : vector<17xf32> to vector<17x1xf32>
    %cst_441 = arith.constant 3.200000e+01 : f32
    %989 = vector.broadcast %cst_441 : f32 to vector<17x1xf32>
    %990 = arith.divf %988, %989 : vector<17x1xf32>
    %991 = vector.broadcast %983 : vector<17x1xf32> to vector<17x32xf32>
    %992 = arith.subf %977, %991 : vector<17x32xf32>
    %cst_442 = arith.constant 9.99999974E-6 : f32
    %993 = vector.broadcast %cst_442 : f32 to vector<17x1xf32>
    %994 = arith.addf %990, %993 : vector<17x1xf32>
    %995 = math.rsqrt %994 : vector<17x1xf32>
    %996 = vector.broadcast %995 : vector<17x1xf32> to vector<17x32xf32>
    %997 = arith.mulf %992, %996 : vector<17x32xf32>
    %998 = vector.broadcast %978 : vector<1x32xf32> to vector<17x32xf32>
    %999 = arith.mulf %997, %998 : vector<17x32xf32>
    %1000 = vector.broadcast %979 : vector<1x32xf32> to vector<17x32xf32>
    %1001 = arith.addf %999, %1000 : vector<17x32xf32>
    %c2_443 = arith.constant 2 : index
    %c0_444 = arith.constant 0 : index
    %c0_445 = arith.constant 0 : index
    %1002 = vector.load %arg6[%c2_443, %c0_444, %c0_445] : memref<3x32x64xbf16, #tpu.memory_space<vmem>>, vector<1x32x64xbf16>
    %1003 = vector.shape_cast %1002 : vector<1x32x64xbf16> to vector<32x64xbf16>
    %c21_446 = arith.constant 21 : index
    %c0_447 = arith.constant 0 : index
    %1004 = vector.load %arg9[%c21_446, %c0_447] : memref<28x128xf32, #tpu.memory_space<vmem>>, vector<1x64xf32>
    %1005 = arith.truncf %1001 : vector<17x32xf32> to vector<17x32xbf16>
    %cst_448 = arith.constant dense<0.000000e+00> : vector<17x64xf32>
    %1006 = tpu.matmul %1005, %1003, %cst_448 {dimension_numbers = #tpu.dot_dimension_numbers<[1], [0], [0], [1], [0, 0, 1, 1], [], []>} : vector<17x32xbf16>, vector<32x64xbf16>, vector<17x64xf32> -> vector<17x64xf32>
    %1007 = vector.broadcast %1004 : vector<1x64xf32> to vector<17x64xf32>
    %1008 = arith.addf %1006, %1007 : vector<17x64xf32>
    %cst_449 = arith.constant 0.000000e+00 : f32
    %1009 = vector.broadcast %cst_449 : f32 to vector<17x64xf32>
    %1010 = arith.maximumf %1008, %1009 : vector<17x64xf32>
    %c2_450 = arith.constant 2 : index
    %c0_451 = arith.constant 0 : index
    %c0_452 = arith.constant 0 : index
    %1011 = vector.load %arg7[%c2_450, %c0_451, %c0_452] : memref<3x64x32xbf16, #tpu.memory_space<vmem>>, vector<1x64x32xbf16>
    %1012 = vector.shape_cast %1011 : vector<1x64x32xbf16> to vector<64x32xbf16>
    %c22_453 = arith.constant 22 : index
    %c0_454 = arith.constant 0 : index
    %1013 = vector.load %arg9[%c22_453, %c0_454] : memref<28x128xf32, #tpu.memory_space<vmem>>, vector<1x32xf32>
    %1014 = arith.truncf %1010 : vector<17x64xf32> to vector<17x64xbf16>
    %cst_455 = arith.constant dense<0.000000e+00> : vector<17x32xf32>
    %1015 = tpu.matmul %1014, %1012, %cst_455 {dimension_numbers = #tpu.dot_dimension_numbers<[1], [0], [0], [1], [0, 0, 1, 1], [], []>} : vector<17x64xbf16>, vector<64x32xbf16>, vector<17x32xf32> -> vector<17x32xf32>
    %1016 = vector.broadcast %1013 : vector<1x32xf32> to vector<17x32xf32>
    %1017 = arith.addf %1015, %1016 : vector<17x32xf32>
    %1018 = arith.addf %1001, %1017 : vector<17x32xf32>
    %c25_456 = arith.constant 25 : index
    %c0_457 = arith.constant 0 : index
    %1019 = vector.load %arg9[%c25_456, %c0_457] : memref<28x128xf32, #tpu.memory_space<vmem>>, vector<1x32xf32>
    %c26_458 = arith.constant 26 : index
    %c0_459 = arith.constant 0 : index
    %1020 = vector.load %arg9[%c26_458, %c0_459] : memref<28x128xf32, #tpu.memory_space<vmem>>, vector<1x32xf32>
    %cst_460 = arith.constant dense<0.000000e+00> : vector<17xf32>
    %1021 = vector.multi_reduction <add>, %1018, %cst_460 [1] : vector<17x32xf32> to vector<17xf32>
    %1022 = vector.shape_cast %1021 : vector<17xf32> to vector<17x1xf32>
    %cst_461 = arith.constant 3.200000e+01 : f32
    %1023 = vector.broadcast %cst_461 : f32 to vector<17x1xf32>
    %1024 = arith.divf %1022, %1023 : vector<17x1xf32>
    %1025 = vector.broadcast %1024 : vector<17x1xf32> to vector<17x32xf32>
    %1026 = arith.subf %1018, %1025 : vector<17x32xf32>
    %1027 = arith.mulf %1026, %1026 : vector<17x32xf32>
    %cst_462 = arith.constant dense<0.000000e+00> : vector<17xf32>
    %1028 = vector.multi_reduction <add>, %1027, %cst_462 [1] : vector<17x32xf32> to vector<17xf32>
    %1029 = vector.shape_cast %1028 : vector<17xf32> to vector<17x1xf32>
    %cst_463 = arith.constant 3.200000e+01 : f32
    %1030 = vector.broadcast %cst_463 : f32 to vector<17x1xf32>
    %1031 = arith.divf %1029, %1030 : vector<17x1xf32>
    %1032 = vector.broadcast %1024 : vector<17x1xf32> to vector<17x32xf32>
    %1033 = arith.subf %1018, %1032 : vector<17x32xf32>
    %cst_464 = arith.constant 9.99999974E-6 : f32
    %1034 = vector.broadcast %cst_464 : f32 to vector<17x1xf32>
    %1035 = arith.addf %1031, %1034 : vector<17x1xf32>
    %1036 = math.rsqrt %1035 : vector<17x1xf32>
    %1037 = vector.broadcast %1036 : vector<17x1xf32> to vector<17x32xf32>
    %1038 = arith.mulf %1033, %1037 : vector<17x32xf32>
    %1039 = vector.broadcast %1019 : vector<1x32xf32> to vector<17x32xf32>
    %1040 = arith.mulf %1038, %1039 : vector<17x32xf32>
    %1041 = vector.broadcast %1020 : vector<1x32xf32> to vector<17x32xf32>
    %1042 = arith.addf %1040, %1041 : vector<17x32xf32>
    %1043 = arith.truncf %1042 : vector<17x32xf32> to vector<17x32xbf16>
    %cst_465 = arith.constant dense<0.000000e+00> : vector<17x128xf32>
    %1044 = tpu.matmul %1043, %0, %cst_465 {dimension_numbers = #tpu.dot_dimension_numbers<[1], [0], [0], [1], [0, 0, 1, 1], [], []>} : vector<17x32xbf16>, vector<32x128xbf16>, vector<17x128xf32> -> vector<17x128xf32>
    %1045 = vector.broadcast %1 : vector<1x128xf32> to vector<17x128xf32>
    %1046 = arith.addf %1044, %1045 : vector<17x128xf32>
    %c1_466 = arith.constant 1 : index
    %c0_467 = arith.constant 0 : index
    %c0_468 = arith.constant 0 : index
    %1047 = vector.load %arg10[%c1_466, %c0_467, %c0_468] : memref<2x17x128xf32, #tpu.memory_space<vmem>>, vector<1x17x128xf32>
    %1048 = vector.shape_cast %1047 : vector<1x17x128xf32> to vector<17x128xf32>
    %1049 = vector.shape_cast %1046 : vector<17x128xf32> to vector<1x17x128xf32>
    tpu.vector_store %arg10[%c1_466, %c0_467, %c0_468], %1049 {strides = array<i32>} : memref<2x17x128xf32, #tpu.memory_space<vmem>>, vector<1x17x128xf32>,
    return
  }
  func.func @transform_0(%arg0: i32) -> (i32, i32, i32, i32) {
    %c0_i32 = arith.constant 0 : i32
    %c0_i32_0 = arith.constant 0 : i32
    %c0_i32_1 = arith.constant 0 : i32
    %c0_i32_2 = arith.constant 0 : i32
    return %c0_i32, %arg0, %c0_i32_0, %c0_i32_1 : i32, i32, i32, i32
  }
  func.func @transform_1(%arg0: i32) -> (i32, i32, i32) {
    %c0_i32 = arith.constant 0 : i32
    %c0_i32_0 = arith.constant 0 : i32
    %c0_i32_1 = arith.constant 0 : i32
    return %arg0, %c0_i32, %c0_i32_0 : i32, i32, i32
  }
  func.func @transform_2(%arg0: i32) -> (i32, i32, i32) {
    %c0_i32 = arith.constant 0 : i32
    %c0_i32_0 = arith.constant 0 : i32
    %c0_i32_1 = arith.constant 0 : i32
    %c0_i32_2 = arith.constant 0 : i32
    return %c0_i32, %c0_i32_0, %c0_i32_1 : i32, i32, i32
  }
  func.func @transform_3(%arg0: i32) -> (i32, i32, i32) {
    %c0_i32 = arith.constant 0 : i32
    %c0_i32_0 = arith.constant 0 : i32
    %c0_i32_1 = arith.constant 0 : i32
    %c0_i32_2 = arith.constant 0 : i32
    return %c0_i32, %c0_i32_0, %c0_i32_1 : i32, i32, i32
  }
  func.func @transform_4(%arg0: i32) -> (i32, i32, i32) {
    %c0_i32 = arith.constant 0 : i32
    %c0_i32_0 = arith.constant 0 : i32
    %c0_i32_1 = arith.constant 0 : i32
    %c0_i32_2 = arith.constant 0 : i32
    return %c0_i32, %c0_i32_0, %c0_i32_1 : i32, i32, i32
  }
  func.func @transform_5(%arg0: i32) -> (i32, i32, i32) {
    %c0_i32 = arith.constant 0 : i32
    %c0_i32_0 = arith.constant 0 : i32
    %c0_i32_1 = arith.constant 0 : i32
    %c0_i32_2 = arith.constant 0 : i32
    return %c0_i32, %c0_i32_0, %c0_i32_1 : i32, i32, i32
  }
  func.func @transform_6(%arg0: i32) -> (i32, i32, i32) {
    %c0_i32 = arith.constant 0 : i32
    %c0_i32_0 = arith.constant 0 : i32
    %c0_i32_1 = arith.constant 0 : i32
    %c0_i32_2 = arith.constant 0 : i32
    return %c0_i32, %c0_i32_0, %c0_i32_1 : i32, i32, i32
  }
  func.func @transform_7(%arg0: i32) -> (i32, i32) {
    %c0_i32 = arith.constant 0 : i32
    %c0_i32_0 = arith.constant 0 : i32
    %c0_i32_1 = arith.constant 0 : i32
    return %c0_i32, %c0_i32_0 : i32, i32
  }
  func.func @transform_8(%arg0: i32) -> (i32, i32) {
    %c0_i32 = arith.constant 0 : i32
    %c0_i32_0 = arith.constant 0 : i32
    %c0_i32_1 = arith.constant 0 : i32
    return %c0_i32, %c0_i32_0 : i32, i32
  }
  func.func @transform_9(%arg0: i32) -> (i32, i32, i32) {
    %c0_i32 = arith.constant 0 : i32
    %c0_i32_0 = arith.constant 0 : i32
    %c0_i32_1 = arith.constant 0 : i32
    return %arg0, %c0_i32, %c0_i32_0 : i32, i32, i32
  }
}

</mosaic_0001>

<llo_original>
// kernel: tpu_custom_call.1
$region0: #{tpu_custom_call.1}
  #allocation0 [shape = 'u32[]', space=smem, size = 0x4, offset = 0x4, fixed_abs, tag = 'smem constant byte address 0x4 - core index']
  #allocation1 [shape = 'u32[72,128]{1,0:T(1,128)}', space=vmem, size = 0x9000, scoped, tag = 'internal scratch']
  #allocation2 [shape = 'f32[17,32]{1,0:T(8,128)}', space=vmem, size = 0x3000, scoped, tag = 'scratch operand']
  %s0 = inlined_call_operand.vmem [shape: bf16[3,4,17,32], index: 0, kind: input, shape index: {}]
  %s1 = inlined_call_operand.vmem [shape: f32[4,2,32], index: 1, kind: input, shape index: {}]
  %s2 = inlined_call_operand.vmem [shape: bf16[3,32,32], index: 2, kind: input, shape index: {}]
  %s3 = inlined_call_operand.vmem [shape: bf16[3,32,96], index: 3, kind: input, shape index: {}]
  %s4 = inlined_call_operand.vmem [shape: bf16[3,32,32], index: 4, kind: input, shape index: {}]
  %s5 = inlined_call_operand.vmem [shape: bf16[3,32,64], index: 5, kind: input, shape index: {}]
  %s6 = inlined_call_operand.vmem [shape: bf16[3,64,32], index: 6, kind: input, shape index: {}]
  %s7 = inlined_call_operand.vmem [shape: bf16[32,128], index: 7, kind: input, shape index: {}]
  %s8 = inlined_call_operand.vmem [shape: f32[28,128], index: 8, kind: input, shape index: {}]
  %s9 = inlined_call_operand.vmem [shape: f32[4,17,128], index: 9, kind: output, shape index: {}]
  %s10 = sld [smem:[#allocation0]]
  $region110: #{tpu_custom_call.1} parent=0
    _
  %s12 = ssub.s32 1, %s10
  %s13 = scalar_select 0, %s12, %s10
  $region1: #{tpu_custom_call.1} parent=0
    #allocation3 [shape = 'u8[73728]{0}', space=vmem, size = 0x12000, scoped, tag = 'input window, operand 0']
    loop: start=0, step=1, limit=4
    $region2: #{tpu_custom_call.1} parent=1 // loop_pre_header
      _
    $region3: #{tpu_custom_call.1} parent=1 // loop_header
      %s15 = sphi 0, %s19
      %p16 = scmp.ge.s32.totalorder %s15, 4
      %s25 = sphi 0, %s27
      %s28 = sphi 0, %s25
      %s29 = sphi 0, %s28
      %s45 = sphi 0, %s29
      %s51 = sphi 0, %s53
      %s54 = sphi 0, %s51
      %s55 = sphi 0, %s54
      %s71 = sphi 0, %s55
      %s75 = sphi 0, %s75
      %s77 = sphi 0, %s75
      %s78 = sphi 0, %s77
      %s92 = sphi 0, %s78
      %s96 = sphi 0, %s96
      %s98 = sphi 0, %s96
      %s99 = sphi 0, %s98
      %s113 = sphi 0, %s99
      %s117 = sphi 0, %s117
      %s119 = sphi 0, %s117
      %s120 = sphi 0, %s119
      %s134 = sphi 0, %s120
      %s138 = sphi 0, %s138
      %s140 = sphi 0, %s138
      %s141 = sphi 0, %s140
      %s155 = sphi 0, %s141
      %s159 = sphi 0, %s159
      %s161 = sphi 0, %s159
      %s162 = sphi 0, %s161
      %s176 = sphi 0, %s162
      %s180 = sphi 0, %s180
      %s182 = sphi 0, %s180
      %s183 = sphi 0, %s182
      %s197 = sphi 0, %s183
      %s201 = sphi 0, %s201
      %s203 = sphi 0, %s201
      %s204 = sphi 0, %s203
      %s218 = sphi 0, %s204
      %s224 = sphi 0, %s226
      %s227 = sphi 0, %s224
      %s228 = sphi 0, %s227
      %s244 = sphi 0, %s228
    $region4: #{tpu_custom_call.1} parent=1 // loop_header_branch
      %18 = sbr.rel (%p16) target = $region8
    $region5: #{tpu_custom_call.1} parent=1 // loop_body
      %s20 = ssub.s32 %s15, 1
      %s21 = ssub.s32 %s15, 2
      %s22 = sadd.s32 %s15, 1
      %s23 = ssub.s32 %s15, %s22
      %p24 = scmp.eq.s32.totalorder %s23, 0
      %s26 = sadd.s32 %s25, 1
      %s27 = scalar_select %p24, %s25, %s26
      %p30 = pneg %p24
      %p31 = scmp.eq.s32.totalorder %s15, 1
      %p32 = por %p30, %p31
      %p33 = scmp.ne.s32.totalorder %s25, %s28
      %p34 = scmp.eq.s32.totalorder %s15, 0
      %p35 = por %p33, %p34
      %p36 = scmp.ne.s32.totalorder %s25, %s28
      %p37 = scmp.eq.s32.totalorder %s20, 1
      %p38 = por %p36, %p37
      %p39 = scmp.ne.s32.totalorder %s28, %s29
      %p40 = scmp.eq.s32.totalorder %s20, 0
      %p41 = por %p39, %p40
      %p42 = scmp.ne.s32.totalorder %s28, %s29
      %p43 = scmp.eq.s32.totalorder %s21, 1
      %p44 = por %p42, %p43
      %p46 = scmp.ne.s32.totalorder %s29, %s45
      %p47 = scmp.eq.s32.totalorder %s21, 0
      %p48 = por %p46, %p47
      %s49 = ssub.s32 %s15, %s22
      %p50 = scmp.eq.s32.totalorder %s49, 0
      %s52 = sadd.s32 %s51, 1
      %s53 = scalar_select %p50, %s51, %s52
      %p56 = pneg %p50
      %p57 = scmp.eq.s32.totalorder %s15, 1
      %p58 = por %p56, %p57
      %p59 = scmp.ne.s32.totalorder %s51, %s54
      %p60 = scmp.eq.s32.totalorder %s15, 0
      %p61 = por %p59, %p60
      %p62 = scmp.ne.s32.totalorder %s51, %s54
      %p63 = scmp.eq.s32.totalorder %s20, 1
      %p64 = por %p62, %p63
      %p65 = scmp.ne.s32.totalorder %s54, %s55
      %p66 = scmp.eq.s32.totalorder %s20, 0
      %p67 = por %p65, %p66
      %p68 = scmp.ne.s32.totalorder %s54, %s55
      %p69 = scmp.eq.s32.totalorder %s21, 1
      %p70 = por %p68, %p69
      %p72 = scmp.ne.s32.totalorder %s55, %s71
      %p73 = scmp.eq.s32.totalorder %s21, 0
      %p74 = por %p72, %p73
      %s76 = sadd.s32 %s75, 1
      %p79 = scmp.eq.s32.totalorder %s15, 1
      %p80 = scmp.ne.s32.totalorder %s75, %s77
      %p81 = scmp.eq.s32.totalorder %s15, 0
      %p82 = por %p80, %p81
      %p83 = scmp.ne.s32.totalorder %s75, %s77
      %p84 = scmp.eq.s32.totalorder %s20, 1
      %p85 = por %p83, %p84
      %p86 = scmp.ne.s32.totalorder %s77, %s78
      %p87 = scmp.eq.s32.totalorder %s20, 0
      %p88 = por %p86, %p87
      %p89 = scmp.ne.s32.totalorder %s77, %s78
      %p90 = scmp.eq.s32.totalorder %s21, 1
      %p91 = por %p89, %p90
      %p93 = scmp.ne.s32.totalorder %s78, %s92
      %p94 = scmp.eq.s32.totalorder %s21, 0
      %p95 = por %p93, %p94
      %s97 = sadd.s32 %s96, 1
      %p100 = scmp.eq.s32.totalorder %s15, 1
      %p101 = scmp.ne.s32.totalorder %s96, %s98
      %p102 = scmp.eq.s32.totalorder %s15, 0
      %p103 = por %p101, %p102
      %p104 = scmp.ne.s32.totalorder %s96, %s98
      %p105 = scmp.eq.s32.totalorder %s20, 1
      %p106 = por %p104, %p105
      %p107 = scmp.ne.s32.totalorder %s98, %s99
      %p108 = scmp.eq.s32.totalorder %s20, 0
      %p109 = por %p107, %p108
      %p110 = scmp.ne.s32.totalorder %s98, %s99
      %p111 = scmp.eq.s32.totalorder %s21, 1
      %p112 = por %p110, %p111
      %p114 = scmp.ne.s32.totalorder %s99, %s113
      %p115 = scmp.eq.s32.totalorder %s21, 0
      %p116 = por %p114, %p115
      %s118 = sadd.s32 %s117, 1
      %p121 = scmp.eq.s32.totalorder %s15, 1
      %p122 = scmp.ne.s32.totalorder %s117, %s119
      %p123 = scmp.eq.s32.totalorder %s15, 0
      %p124 = por %p122, %p123
      %p125 = scmp.ne.s32.totalorder %s117, %s119
      %p126 = scmp.eq.s32.totalorder %s20, 1
      %p127 = por %p125, %p126
      %p128 = scmp.ne.s32.totalorder %s119, %s120
      %p129 = scmp.eq.s32.totalorder %s20, 0
      %p130 = por %p128, %p129
      %p131 = scmp.ne.s32.totalorder %s119, %s120
      %p132 = scmp.eq.s32.totalorder %s21, 1
      %p133 = por %p131, %p132
      %p135 = scmp.ne.s32.totalorder %s120, %s134
      %p136 = scmp.eq.s32.totalorder %s21, 0
      %p137 = por %p135, %p136
      %s139 = sadd.s32 %s138, 1
      %p142 = scmp.eq.s32.totalorder %s15, 1
      %p143 = scmp.ne.s32.totalorder %s138, %s140
      %p144 = scmp.eq.s32.totalorder %s15, 0
      %p145 = por %p143, %p144
      %p146 = scmp.ne.s32.totalorder %s138, %s140
      %p147 = scmp.eq.s32.totalorder %s20, 1
      %p148 = por %p146, %p147
      %p149 = scmp.ne.s32.totalorder %s140, %s141
      %p150 = scmp.eq.s32.totalorder %s20, 0
      %p151 = por %p149, %p150
      %p152 = scmp.ne.s32.totalorder %s140, %s141
      %p153 = scmp.eq.s32.totalorder %s21, 1
      %p154 = por %p152, %p153
      %p156 = scmp.ne.s32.totalorder %s141, %s155
      %p157 = scmp.eq.s32.totalorder %s21, 0
      %p158 = por %p156, %p157
      %s160 = sadd.s32 %s159, 1
      %p163 = scmp.eq.s32.totalorder %s15, 1
      %p164 = scmp.ne.s32.totalorder %s159, %s161
      %p165 = scmp.eq.s32.totalorder %s15, 0
      %p166 = por %p164, %p165
      %p167 = scmp.ne.s32.totalorder %s159, %s161
      %p168 = scmp.eq.s32.totalorder %s20, 1
      %p169 = por %p167, %p168
      %p170 = scmp.ne.s32.totalorder %s161, %s162
      %p171 = scmp.eq.s32.totalorder %s20, 0
      %p172 = por %p170, %p171
      %p173 = scmp.ne.s32.totalorder %s161, %s162
      %p174 = scmp.eq.s32.totalorder %s21, 1
      %p175 = por %p173, %p174
      %p177 = scmp.ne.s32.totalorder %s162, %s176
      %p178 = scmp.eq.s32.totalorder %s21, 0
      %p179 = por %p177, %p178
      %s181 = sadd.s32 %s180, 1
      %p184 = scmp.eq.s32.totalorder %s15, 1
      %p185 = scmp.ne.s32.totalorder %s180, %s182
      %p186 = scmp.eq.s32.totalorder %s15, 0
      %p187 = por %p185, %p186
      %p188 = scmp.ne.s32.totalorder %s180, %s182
      %p189 = scmp.eq.s32.totalorder %s20, 1
      %p190 = por %p188, %p189
      %p191 = scmp.ne.s32.totalorder %s182, %s183
      %p192 = scmp.eq.s32.totalorder %s20, 0
      %p193 = por %p191, %p192
      %p194 = scmp.ne.s32.totalorder %s182, %s183
      %p195 = scmp.eq.s32.totalorder %s21, 1
      %p196 = por %p194, %p195
      %p198 = scmp.ne.s32.totalorder %s183, %s197
      %p199 = scmp.eq.s32.totalorder %s21, 0
      %p200 = por %p198, %p199
      %s202 = sadd.s32 %s201, 1
      %p205 = scmp.eq.s32.totalorder %s15, 1
      %p206 = scmp.ne.s32.totalorder %s201, %s203
      %p207 = scmp.eq.s32.totalorder %s15, 0
      %p208 = por %p206, %p207
      %p209 = scmp.ne.s32.totalorder %s201, %s203
      %p210 = scmp.eq.s32.totalorder %s20, 1
      %p211 = por %p209, %p210
      %p212 = scmp.ne.s32.totalorder %s203, %s204
      %p213 = scmp.eq.s32.totalorder %s20, 0
      %p214 = por %p212, %p213
      %p215 = scmp.ne.s32.totalorder %s203, %s204
      %p216 = scmp.eq.s32.totalorder %s21, 1
      %p217 = por %p215, %p216
      %p219 = scmp.ne.s32.totalorder %s204, %s218
      %p220 = scmp.eq.s32.totalorder %s21, 0
      %p221 = por %p219, %p220
      %s222 = ssub.s32 %s15, %s22
      %p223 = scmp.eq.s32.totalorder %s222, 0
      %s225 = sadd.s32 %s224, 1
      %s226 = scalar_select %p223, %s224, %s225
      %p229 = pneg %p223
      %p230 = scmp.eq.s32.totalorder %s15, 1
      %p231 = por %p229, %p230
      %p232 = scmp.ne.s32.totalorder %s224, %s227
      %p233 = scmp.eq.s32.totalorder %s15, 0
      %p234 = por %p232, %p233
      %p235 = scmp.ne.s32.totalorder %s224, %s227
      %p236 = scmp.eq.s32.totalorder %s20, 1
      %p237 = por %p235, %p236
      %p238 = scmp.ne.s32.totalorder %s227, %s228
      %p239 = scmp.eq.s32.totalorder %s20, 0
      %p240 = por %p238, %p239
      %p241 = scmp.ne.s32.totalorder %s227, %s228
      %p242 = scmp.eq.s32.totalorder %s21, 1
      %p243 = por %p241, %p242
      %p245 = scmp.ne.s32.totalorder %s228, %s244
      %p246 = scmp.eq.s32.totalorder %s21, 0
      %p247 = por %p245, %p246
      %p248 = scmp.le.s32.totalorder 1, %s15
      %p249 = scmp.lt.s32.totalorder %s15, 3
      %p250 = pnand %p248, %p249
      %p251 = pneg %p250
      // Predicated region
      $region9: #{tpu_custom_call.1} parent=5 // pred_check
        _
      $region10: #{tpu_custom_call.1} parent=5 // pred_check_branch
        %253 = sbr.rel (%p250) target = $region12
      $region11: #{tpu_custom_call.1} parent=5 // pred_region
        %s254 = ssub.s32 %s15, 1
        // Predicated region
        $region13: #{tpu_custom_call.1} parent=11 // pred_check
          %p255 = pneg %p88
        $region14: #{tpu_custom_call.1} parent=11 // pred_check_branch
          %257 = sbr.rel (%p255) target = $region16
        $region15: #{tpu_custom_call.1} parent=11 // pred_region
          _
        $region16: #{tpu_custom_call.1} parent=11 // pred_fallthru
          _
        // Predicated region
        $region17: #{tpu_custom_call.1} parent=11 // pred_check
          %p258 = pneg %p109
        $region18: #{tpu_custom_call.1} parent=11 // pred_check_branch
          %260 = sbr.rel (%p258) target = $region20
        $region19: #{tpu_custom_call.1} parent=11 // pred_region
          _
        $region20: #{tpu_custom_call.1} parent=11 // pred_fallthru
          _
        // Predicated region
        $region21: #{tpu_custom_call.1} parent=11 // pred_check
          %p261 = pneg %p130
        $region22: #{tpu_custom_call.1} parent=11 // pred_check_branch
          %263 = sbr.rel (%p261) target = $region24
        $region23: #{tpu_custom_call.1} parent=11 // pred_region
          _
        $region24: #{tpu_custom_call.1} parent=11 // pred_fallthru
          _
        // Predicated region
        $region25: #{tpu_custom_call.1} parent=11 // pred_check
          %p264 = pneg %p151
        $region26: #{tpu_custom_call.1} parent=11 // pred_check_branch
          %266 = sbr.rel (%p264) target = $region28
        $region27: #{tpu_custom_call.1} parent=11 // pred_region
          _
        $region28: #{tpu_custom_call.1} parent=11 // pred_fallthru
          _
        // Predicated region
        $region29: #{tpu_custom_call.1} parent=11 // pred_check
          %p267 = pneg %p172
        $region30: #{tpu_custom_call.1} parent=11 // pred_check_branch
          %269 = sbr.rel (%p267) target = $region32
        $region31: #{tpu_custom_call.1} parent=11 // pred_region
          _
        $region32: #{tpu_custom_call.1} parent=11 // pred_fallthru
          _
        // Predicated region
        $region33: #{tpu_custom_call.1} parent=11 // pred_check
          %p270 = pneg %p193
        $region34: #{tpu_custom_call.1} parent=11 // pred_check_branch
          %272 = sbr.rel (%p270) target = $region36
        $region35: #{tpu_custom_call.1} parent=11 // pred_region
          _
        $region36: #{tpu_custom_call.1} parent=11 // pred_fallthru
          _
        // Predicated region
        $region37: #{tpu_custom_call.1} parent=11 // pred_check
          %p273 = pneg %p214
        $region38: #{tpu_custom_call.1} parent=11 // pred_check_branch
          %275 = sbr.rel (%p273) target = $region40
        $region39: #{tpu_custom_call.1} parent=11 // pred_region
          _
        $region40: #{tpu_custom_call.1} parent=11 // pred_fallthru
          _
      $region12: #{tpu_custom_call.1} parent=5 // pred_fallthru
        _
      %p276 = scmp.lt.s32.totalorder %s15, 2
      // Predicated region
      $region41: #{tpu_custom_call.1} parent=5 // pred_check
        %p277 = pneg %p276
      $region42: #{tpu_custom_call.1} parent=5 // pred_check_branch
        %279 = sbr.rel (%p277) target = $region44
      $region43: #{tpu_custom_call.1} parent=5 // pred_region
        // Predicated region
        $region45: #{tpu_custom_call.1} parent=43 // pred_check
          %p280 = pneg %p35
        $region46: #{tpu_custom_call.1} parent=43 // pred_check_branch
          %282 = sbr.rel (%p280) target = $region48
        $region47: #{tpu_custom_call.1} parent=43 // pred_region
          %s283 = sand.u32 %s25, 1
          %s284 = sand.u32 %s25, 1
          %s285 = smul.addr %s284, 72
          %s286 = scalar_lea.vmem [#allocation3], %s285
          %s287 = smul.u32 2, %s15
          %s288 = smul.addr %s287, 3
          %s289 = smul.addr %s288, 4
          %s290 = scalar_lea.vmem %s0, %s289
          // Predicated region
          $region49: #{tpu_custom_call.1} parent=47 // pred_check
            _
          $region50: #{tpu_custom_call.1} parent=47 // pred_check_branch
            %292 = sbr.rel (0) target = $region52
          $region51: #{tpu_custom_call.1} parent=47 // pred_region
            // Predicated region
            $region53: #{tpu_custom_call.1} parent=51 // pred_check
              _
            $region54: #{tpu_custom_call.1} parent=51 // pred_check_branch
              %294 = sbr.rel target = $region56
            $region55: #{tpu_custom_call.1} parent=51 // pred_region
              // Predicated region
              $region68: #{tpu_custom_call.1} parent=55 // pred_check
                _
              $region69: #{tpu_custom_call.1} parent=55 // pred_check_branch
                %344 = sbr.rel (0) target = $region71
              $region70: #{tpu_custom_call.1} parent=55 // pred_region
                loop: start=0, step=1, limit=1
                $region72: #{tpu_custom_call.1} parent=70 // loop_pre_header
                  _
                $region73: #{tpu_custom_call.1} parent=70 // loop_header
                  %s346 = sphi 0, %s350
                  %p347 = scmp.ge.s32.totalorder %s346, 1
                  %s351 = sphi %s290, %s290
                  %s352 = sphi %s286, %s286
                $region74: #{tpu_custom_call.1} parent=70 // loop_header_branch
                  %349 = sbr.rel (%p347) target = $region78
                $region75: #{tpu_custom_call.1} parent=70 // loop_body
                  _
                $region76: #{tpu_custom_call.1} parent=70 // loop_footer
                  %s350 = sadd.s32 1, %s346
                $region77: #{tpu_custom_call.1} parent=70 // loop_footer_branch
                  %345 = sbr.rel target = $region73
                $region78: #{tpu_custom_call.1} parent=70 // loop_exit
                  _
                %s354 = ssub.s32 16, 1
                loop: start=0, step=1, limit=1
                $region79: #{tpu_custom_call.1} parent=70 // loop_pre_header
                  _
                $region80: #{tpu_custom_call.1} parent=70 // loop_header
                  %s356 = sphi 0, %s360
                  %p357 = scmp.ge.s32.totalorder %s356, 1
                  %s361 = sphi %s290, %s290
                  %s362 = sphi %s286, %s286
                $region81: #{tpu_custom_call.1} parent=70 // loop_header_branch
                  %359 = sbr.rel (%p357) target = $region85
                $region82: #{tpu_custom_call.1} parent=70 // loop_body
                  %v363 = vld [vmem:[%s361] sm:%s354]
                  %364 = vst [vmem:[%s362] sm:%s354] %v363
                  %v365 = vld [vmem:[%s361 + $0x4] sm:%s354]
                  %366 = vst [vmem:[%s362 + $0x4] sm:%s354] %v365
                  %v367 = vld [vmem:[%s361 + $0x8] sm:%s354]
                  %368 = vst [vmem:[%s362 + $0x8] sm:%s354] %v367
                  %v369 = vld [vmem:[%s361 + $0xc] sm:%s354]
                  %370 = vst [vmem:[%s362 + $0xc] sm:%s354] %v369
                  %v371 = vld [vmem:[%s361 + $0x10] sm:%s354]
                  %372 = vst [vmem:[%s362 + $0x10] sm:%s354] %v371
                  %v373 = vld [vmem:[%s361 + $0x14] sm:%s354]
                  %374 = vst [vmem:[%s362 + $0x14] sm:%s354] %v373
                  %v375 = vld [vmem:[%s361 + $0x30] sm:%s354]
                  %376 = vst [vmem:[%s362 + $0x18] sm:%s354] %v375
                  %v377 = vld [vmem:[%s361 + $0x34] sm:%s354]
                  %378 = vst [vmem:[%s362 + $0x1c] sm:%s354] %v377
                  %v379 = vld [vmem:[%s361 + $0x38] sm:%s354]
                  %380 = vst [vmem:[%s362 + $0x20] sm:%s354] %v379
                  %v381 = vld [vmem:[%s361 + $0x3c] sm:%s354]
                  %382 = vst [vmem:[%s362 + $0x24] sm:%s354] %v381
                  %v383 = vld [vmem:[%s361 + $0x40] sm:%s354]
                  %384 = vst [vmem:[%s362 + $0x28] sm:%s354] %v383
                  %v385 = vld [vmem:[%s361 + $0x44] sm:%s354]
                  %386 = vst [vmem:[%s362 + $0x2c] sm:%s354] %v385
                  %v387 = vld [vmem:[%s361 + $0x60] sm:%s354]
                  %388 = vst [vmem:[%s362 + $0x30] sm:%s354] %v387
                  %v389 = vld [vmem:[%s361 + $0x64] sm:%s354]
                  %390 = vst [vmem:[%s362 + $0x34] sm:%s354] %v389
                  %v391 = vld [vmem:[%s361 + $0x68] sm:%s354]
                  %392 = vst [vmem:[%s362 + $0x38] sm:%s354] %v391
                  %v393 = vld [vmem:[%s361 + $0x6c] sm:%s354]
                  %394 = vst [vmem:[%s362 + $0x3c] sm:%s354] %v393
                  %v395 = vld [vmem:[%s361 + $0x70] sm:%s354]
                  %396 = vst [vmem:[%s362 + $0x40] sm:%s354] %v395
                  %v397 = vld [vmem:[%s361 + $0x74] sm:%s354]
                  %398 = vst [vmem:[%s362 + $0x44] sm:%s354] %v397
                $region83: #{tpu_custom_call.1} parent=70 // loop_footer
                  %s360 = sadd.s32 1, %s356
                $region84: #{tpu_custom_call.1} parent=70 // loop_footer_branch
                  %355 = sbr.rel target = $region80
                $region85: #{tpu_custom_call.1} parent=70 // loop_exit
                  _
              $region71: #{tpu_custom_call.1} parent=55 // pred_fallthru
                _
            $region56: #{tpu_custom_call.1} parent=51 // pred_fallthru
              _
            // Predicated region
            $region57: #{tpu_custom_call.1} parent=51 // pred_check
              _
            $region58: #{tpu_custom_call.1} parent=51 // pred_check_branch
              %296 = sbr.rel (0) target = $region60
            $region59: #{tpu_custom_call.1} parent=51 // pred_region
              %s298 = ssub.s32 16, 1
              loop: start=0, step=1, limit=1
              $region61: #{tpu_custom_call.1} parent=59 // loop_pre_header
                _
              $region62: #{tpu_custom_call.1} parent=59 // loop_header
                %s300 = sphi 0, %s304
                %p301 = scmp.ge.s32.totalorder %s300, 1
                %s305 = sphi %s290, %s290
                %s306 = sphi %s286, %s286
              $region63: #{tpu_custom_call.1} parent=59 // loop_header_branch
                %303 = sbr.rel (%p301) target = $region67
              $region64: #{tpu_custom_call.1} parent=59 // loop_body
                %v307 = vld [vmem:[%s305] sm:%s298]
                %308 = vst [vmem:[%s306] sm:%s298] %v307
                %v309 = vld [vmem:[%s305 + $0x4] sm:%s298]
                %310 = vst [vmem:[%s306 + $0x4] sm:%s298] %v309
                %v311 = vld [vmem:[%s305 + $0x8] sm:%s298]
                %312 = vst [vmem:[%s306 + $0x8] sm:%s298] %v311
                %v313 = vld [vmem:[%s305 + $0xc] sm:%s298]
                %314 = vst [vmem:[%s306 + $0xc] sm:%s298] %v313
                %v315 = vld [vmem:[%s305 + $0x10] sm:%s298]
                %316 = vst [vmem:[%s306 + $0x10] sm:%s298] %v315
                %v317 = vld [vmem:[%s305 + $0x14] sm:%s298]
                %318 = vst [vmem:[%s306 + $0x14] sm:%s298] %v317
                %v319 = vld [vmem:[%s305 + $0x30] sm:%s298]
                %320 = vst [vmem:[%s306 + $0x18] sm:%s298] %v319
                %v321 = vld [vmem:[%s305 + $0x34] sm:%s298]
                %322 = vst [vmem:[%s306 + $0x1c] sm:%s298] %v321
                %v323 = vld [vmem:[%s305 + $0x38] sm:%s298]
                %324 = vst [vmem:[%s306 + $0x20] sm:%s298] %v323
                %v325 = vld [vmem:[%s305 + $0x3c] sm:%s298]
                %326 = vst [vmem:[%s306 + $0x24] sm:%s298] %v325
                %v327 = vld [vmem:[%s305 + $0x40] sm:%s298]
                %328 = vst [vmem:[%s306 + $0x28] sm:%s298] %v327
                %v329 = vld [vmem:[%s305 + $0x44] sm:%s298]
                %330 = vst [vmem:[%s306 + $0x2c] sm:%s298] %v329
                %v331 = vld [vmem:[%s305 + $0x60] sm:%s298]
                %332 = vst [vmem:[%s306 + $0x30] sm:%s298] %v331
                %v333 = vld [vmem:[%s305 + $0x64] sm:%s298]
                %334 = vst [vmem:[%s306 + $0x34] sm:%s298] %v333
                %v335 = vld [vmem:[%s305 + $0x68] sm:%s298]
                %336 = vst [vmem:[%s306 + $0x38] sm:%s298] %v335
                %v337 = vld [vmem:[%s305 + $0x6c] sm:%s298]
                %338 = vst [vmem:[%s306 + $0x3c] sm:%s298] %v337
                %v339 = vld [vmem:[%s305 + $0x70] sm:%s298]
                %340 = vst [vmem:[%s306 + $0x40] sm:%s298] %v339
                %v341 = vld [vmem:[%s305 + $0x74] sm:%s298]
                %342 = vst [vmem:[%s306 + $0x44] sm:%s298] %v341
              $region65: #{tpu_custom_call.1} parent=59 // loop_footer
                %s304 = sadd.s32 1, %s300
              $region66: #{tpu_custom_call.1} parent=59 // loop_footer_branch
                %299 = sbr.rel target = $region62
              $region67: #{tpu_custom_call.1} parent=59 // loop_exit
                _
            $region60: #{tpu_custom_call.1} parent=51 // pred_fallthru
              _
          $region52: #{tpu_custom_call.1} parent=47 // pred_fallthru
            _
          %399 = vnop
        $region48: #{tpu_custom_call.1} parent=43 // pred_fallthru
          _
        // Predicated region
        $region86: #{tpu_custom_call.1} parent=43 // pred_check
          %p400 = pneg %p61
        $region87: #{tpu_custom_call.1} parent=43 // pred_check_branch
          %402 = sbr.rel (%p400) target = $region89
        $region88: #{tpu_custom_call.1} parent=43 // pred_region
          %s403 = smul.u32 2, %s15
          %p404 = scmp.lt.s32.totalorder %s403, 3
          %s405 = scalar_select %p404, %s403, 3
          %s406 = smul.addr %s405, 2
          %s407 = scalar_lea.vmem %s1, %s406
          %s408 = smul.u32 2, %s15
        $region89: #{tpu_custom_call.1} parent=43 // pred_fallthru
          _
      $region44: #{tpu_custom_call.1} parent=5 // pred_fallthru
        _
      %p409 = scmp.le.s32.totalorder 1, %s15
      %p410 = scmp.lt.s32.totalorder %s15, 3
      %p411 = pnand %p409, %p410
      %p412 = pneg %p411
      // Predicated region
      $region90: #{tpu_custom_call.1} parent=5 // pred_check
        _
      $region91: #{tpu_custom_call.1} parent=5 // pred_check_branch
        %414 = sbr.rel (%p411) target = $region93
      $region92: #{tpu_custom_call.1} parent=5 // pred_region
        %s415 = ssub.s32 %s15, 1
        %s416 = sand.u32 %s28, 1
        %s417 = sand.u32 %s28, 1
        %s418 = smul.addr %s417, 72
        %s419 = scalar_lea.vmem [#allocation3], %s418
        // Predicated region
        $region94: #{tpu_custom_call.1} parent=92 // pred_check
          %p420 = pneg %p41
        $region95: #{tpu_custom_call.1} parent=92 // pred_check_branch
          %422 = sbr.rel (%p420) target = $region97
        $region96: #{tpu_custom_call.1} parent=92 // pred_region
          _
        $region97: #{tpu_custom_call.1} parent=92 // pred_fallthru
          _
        %s423 = sand.u32 %s28, 1
        %s424 = sand.u32 %s28, 1
        %s425 = smul.addr %s424, 72
        %s426 = scalar_lea.vmem [#allocation3], %s425
        %p427 = pneg %p41
        %p428 = pneg %p38
        %s429 = smul.u32 2, %s20
        %p430 = scmp.lt.s32.totalorder %s429, 3
        %s431 = scalar_select %p430, %s429, 3
        %s432 = smul.addr %s431, 2
        %s433 = scalar_lea.vmem %s1, %s432
        %p434 = pneg %p67
        %p435 = pneg %p64
        %p436 = pneg %p88
        %p437 = pneg %p85
        %p438 = pneg %p109
        %p439 = pneg %p106
        %p440 = pneg %p130
        %p441 = pneg %p127
        %p442 = pneg %p151
        %p443 = pneg %p148
        %p444 = pneg %p172
        %p445 = pneg %p169
        %p446 = pneg %p193
        %p447 = pneg %p190
        %p448 = pneg %p214
        %p449 = pneg %p211
        %p450 = pneg %p240
        %p451 = pneg %p237
        %s452 = smul.u32 2, %s20
        %p453 = scmp.lt.s32.totalorder %s452, 3
        %s454 = scalar_select %p453, %s452, 3
        %s455 = smul.addr %s454, 3
        %s456 = smul.addr %s455, 8
        %s457 = scalar_lea.vmem %s9, %s456
        %s458 = smul.u32 2, %s20
        %s459 = smul.u32 2, %s20
        %p460 = scmp.lt.s32.totalorder %s459, 3
        %s461 = scalar_select %p460, %s459, 3
        %s462 = smul.addr %s461, 2
        %s463 = scalar_lea.vmem %s1, %s462
        %s464 = smul.u32 2, %s20
        %s465 = smul.u32 2, %s20
        %p466 = scmp.lt.s32.totalorder %s465, 3
        %s467 = scalar_select %p466, %s465, 3
        %s468 = smul.addr %s467, 3
        %s469 = smul.addr %s468, 8
        %s470 = scalar_lea.vmem %s9, %s469
        %s471 = smul.u32 2, %s20
        %v473 = vld [vmem:[%s7] sm:$0xf]
        %v474 = vld [vmem:[%s7 + $0x4] sm:$0xf]
        %v475 = vld [vmem:[%s7 + $0x8] sm:$0xf]
        %v476 = vld [vmem:[%s7 + $0xc] sm:$0xf]
        %v477 = vld [vmem:[%s8 + $0x1b] sm:$0x1]
        %v478 = vld [vmem:[%s419] sm:$0xf]
        %v479 = vld [vmem:[%s419 + $0x4] sm:$0xf]
        %v480 = vld [vmem:[%s419 + $0x8] sm:$0x1]
        %v481 = vld [vmem:[%s2] sm:$0xf]
        %v482 = vld [vmem:[%s2 + $0x4] sm:$0xf]
        %v483 = vld [vmem:[%s2 + $0x8] sm:$0xf]
        %v484 = vld [vmem:[%s2 + $0xc] sm:$0xf]
        %v485 = vld [vmem:[%s8] sm:$0x1]
        %v486 = vperm.slane %v485, 0
        %v490 = vunpack.c.l.b16 %v478
        %v491 = vunpack.c.l.b16 %v479
        %v492 = vunpack.c.l.b16 %v480
        %v493 = vpack.c.b16 %v491, %v490
        %v494 = vpack.c.b16 %v492, %v492
        %v499 = vunpack.c.l.b16 %v481
        %v500 = vunpack.c.l.b16 %v482
        %v501 = vunpack.c.l.b16 %v483
        %v502 = vunpack.c.l.b16 %v484
        %v503 = vpack.c.b16 %v500, %v499
        %v504 = vpack.c.b16 %v502, %v501
        %vm507 = vcmask 261120
        %v509 = vsel %vm507, %v493, 0
        %v512 = vsel %vm507, %v494, 0
        %514 = vmatpush.bf16.msra.mxu0 0
        %515 = vmatpush.bf16.msra.mxu0 0
        %516 = vmatpush.bf16.msra.mxu0 0
        %517 = vmatpush.bf16.msra.mxu0 0
        %518 = vmatpush.bf16.msra.mxu0 0
        %519 = vmatpush.bf16.msra.mxu0 0
        %520 = vmatpush.bf16.msra.mxu0 %v504
        %521 = vmatpush.bf16.msra.mxu0 %v503
        %522 = vmatmul.bf16.gmra.mxu0 %v509
        %v523 = vpop.f32.mrf.mxu0
        %v524 = vadd.f32 %v486, %v523
        %v525 = vpop.f32.mrf.mxu0
        %v526 = vadd.f32 %v486, %v525
        %527 = vmatmul.bf16.gmra.mxu0 %v512
        %v528 = vpop.f32.mrf.mxu0
        %v529 = vadd.f32 %v486, %v528
        %v530 = vpop.f32.mrf.mxu0
        %531 = vdwg.mxu0
        %v532 = vld [vmem:[%s463] sm:$0x1]
        %v533 = vperm.slane %v532, 0
        %v534 = vmul.f32 %v524, %v533
        %v535 = vmul.f32 %v526, %v533
        %v536 = vmul.f32 %v529, %v533
        %v537 = vld [vmem:[%s463 + $0x1] sm:$0x1]
        %v538 = vperm.slane %v537, 0
        %v539 = vadd.f32 %v534, %v538
        %v540 = vadd.f32 %v535, %v538
        %v541 = vadd.f32 %v536, %v538
        %v542 = vld [vmem:[%s3] sm:$0xf]
        %v543 = vld [vmem:[%s3 + $0x4] sm:$0xf]
        %v544 = vld [vmem:[%s3 + $0x8] sm:$0xf]
        %v545 = vld [vmem:[%s3 + $0xc] sm:$0xf]
        %v546 = vld [vmem:[%s8 + $0x1] sm:$0x1]
        %v547 = vpack.c.bf16 %v540, %v539
        %v548 = vpack.c.bf16 %v541, %v541
        %v549 = vperm.slane %v546, 0
        %v554 = vunpack.c.l.b16 %v542
        %v555 = vunpack.c.l.b16 %v543
        %v556 = vunpack.c.l.b16 %v544
        %v557 = vunpack.c.l.b16 %v545
        %v558 = vpack.c.b16 %v555, %v554
        %v559 = vpack.c.b16 %v557, %v556
        %v563 = vsel %vm507, %v547, 0
        %v566 = vsel %vm507, %v548, 0
        %568 = vmatpush.bf16.msra.mxu0 0
        %569 = vmatpush.bf16.msra.mxu0 0
        %570 = vmatpush.bf16.msra.mxu0 0
        %571 = vmatpush.bf16.msra.mxu0 0
        %572 = vmatpush.bf16.msra.mxu0 0
        %573 = vmatpush.bf16.msra.mxu0 0
        %574 = vmatpush.bf16.msra.mxu0 %v559
        %575 = vmatpush.bf16.msra.mxu0 %v558
        %576 = vmatmul.bf16.gmra.mxu0 %v563
        %v577 = vpop.f32.mrf.mxu0
        %v578 = vadd.f32 %v549, %v577
        %v579 = vpop.f32.mrf.mxu0
        %v580 = vadd.f32 %v549, %v579
        %581 = vmatmul.bf16.gmra.mxu0 %v566
        %v582 = vpop.f32.mrf.mxu0
        %v583 = vadd.f32 %v549, %v582
        %v584 = vpop.f32.mrf.mxu0
        %585 = vdwg.mxu0
        %v586 = vpack.c.bf16 %v580, %v578
        %v587 = vpack.c.bf16 %v583, %v583
        %590 = vrot.lane.b32.xlu0 %v586, 96
        %v591 = vpop.permute.xlu0 %590
        %592 = vrot.lane.b32.xlu0 %v587, 96
        %v593 = vpop.permute.xlu0 %592
        %vm594 = vcmask 64512
        %v596 = vsel %vm594, %v586, 0
        %v599 = vsel %vm594, %v587, 0
        %v602 = vsel %vm594, %v591, 0
        %v605 = vsel %vm594, %v593, 0
        %607 = vmatpush.bf16.xpose.msra.mxu0 0
        %608 = vmatpush.bf16.xpose.msra.mxu0 0
        %609 = vmatpush.bf16.xpose.msra.mxu0 0
        %610 = vmatpush.bf16.xpose.msra.mxu0 0
        %611 = vmatpush.bf16.xpose.msra.mxu0 0
        %612 = vmatpush.bf16.xpose.msra.mxu0 0
        %613 = vmatpush.bf16.xpose.msra.mxu0 %v605
        %614 = vmatpush.bf16.xpose.msra.mxu0 %v602
        %615 = vmatmul.bf16.gmra.mxu0 %v596
        %v616 = vpop.f32.mrf.mxu0
        %v617 = vadd.f32 0.0, %v616
        %v618 = vpop.f32.mrf.mxu0
        %v619 = vadd.f32 0.0, %v618
        %620 = vmatmul.bf16.gmra.mxu0 %v599
        %v621 = vpop.f32.mrf.mxu0
        %v622 = vadd.f32 0.0, %v621
        %v623 = vpop.f32.mrf.mxu0
        %624 = vdwg.mxu0
        %vm625 = vcmask 138240
        %v626 = vsel %vm625, %v617, -inf
        %627 = vmax.xlane.f32.xlu0 %v626
        %v628 = vpop.xlane.xlu0 %627
        %v629 = vsel %vm625, %v619, -inf
        %630 = vmax.xlane.f32.xlu0 %v629
        %v631 = vpop.xlane.xlu0 %630
        %vm632 = vcmask 131072
        %v633 = vsel %vm632, %v622, -inf
        %634 = vmax.xlane.f32.xlu0 %v633
        %v635 = vpop.xlane.xlu0 %634
        %v636 = vsub.f32 %v617, %v628
        %v637 = vsub.f32 %v619, %v631
        %v638 = vsub.f32 %v622, %v635
        %v639 = vmul.f32 %v636, 1.442695
        %v640 = vpow.pop %v639
        %v641 = vmul.f32 %v637, 1.442695
        %v642 = vpow.pop %v641
        %v643 = vmul.f32 %v638, 1.442695
        %v644 = vpow.pop %v643
        %v645 = vsel %vm625, %v640, 0.0
        %646 = vadd.xlane.f32.xlu0 %v645
        %v647 = vpop.xlane.xlu0 %646
        %v648 = vsel %vm625, %v642, 0.0
        %649 = vadd.xlane.f32.xlu0 %v648
        %v650 = vpop.xlane.xlu0 %649
        %v651 = vsel %vm632, %v644, 0.0
        %652 = vadd.xlane.f32.xlu0 %v651
        %v653 = vpop.xlane.xlu0 %652
        %v654 = vrcp.pop %v647
        %v655 = vrcp.pop %v650
        %v656 = vrcp.pop %v653
        %v657 = vmul.f32 %v640, %v654
        %v658 = vmul.f32 %v642, %v655
        %v659 = vmul.f32 %v644, %v656
        %v660 = vpack.c.bf16 %v658, %v657
        %v661 = vpack.c.bf16 %v659, %v659
        %662 = vrot.lane.b32.xlu0 %v586, 64
        %v663 = vpop.permute.xlu0 %662
        %664 = vrot.lane.b32.xlu0 %v587, 64
        %v665 = vpop.permute.xlu0 %664
        %v668 = vsel %vm625, %v660, 0
        %v671 = vsel %vm625, %v661, 0
        %vm673 = vcmask 1040384
        %v674 = vsel 0, 4294967295, 65535
        %v675 = vsel %vm673, %v674, 0
        %v677 = vand.u32 %v665, %v675
        %679 = vmatpush.bf16.msra.mxu0 0
        %680 = vmatpush.bf16.msra.mxu0 0
        %681 = vmatpush.bf16.msra.mxu0 0
        %682 = vmatpush.bf16.msra.mxu0 0
        %683 = vmatpush.bf16.msra.mxu0 0
        %684 = vmatpush.bf16.msra.mxu0 0
        %685 = vmatpush.bf16.msra.mxu0 %v677
        %686 = vmatpush.bf16.msra.mxu0 %v663
        %687 = vmatmul.bf16.gmra.mxu0 %v668
        %v688 = vpop.f32.mrf.mxu0
        %v689 = vadd.f32 0.0, %v688
        %v690 = vpop.f32.mrf.mxu0
        %v691 = vadd.f32 0.0, %v690
        %692 = vmatmul.bf16.gmra.mxu0 %v671
        %v693 = vpop.f32.mrf.mxu0
        %v694 = vadd.f32 0.0, %v693
        %v695 = vpop.f32.mrf.mxu0
        %696 = vdwg.mxu0
        %697 = vst.msk [vmem:[#allocation2] sm:$0xff] %vm594, %v689
        %698 = vst.msk [vmem:[#allocation2 + $0x8] sm:$0xff] %vm594, %v691
        %vm699 = vcmask 57344
        %700 = vst.msk [vmem:[#allocation2 + $0x10] sm:$0x1] %vm699, %v694
        %701 = vrot.lane.b32.xlu0 %v586, 120
        %v702 = vpop.permute.xlu0 %701
        %703 = vrot.lane.b32.xlu0 %v587, 120
        %v704 = vpop.permute.xlu0 %703
        %705 = vrot.lane.b32.xlu0 %v586, 88
        %v706 = vpop.permute.xlu0 %705
        %707 = vrot.lane.b32.xlu0 %v587, 88
        %v708 = vpop.permute.xlu0 %707
        %v710 = vsel %vm594, %v702, 0
        %v713 = vsel %vm594, %v704, 0
        %v716 = vsel %vm594, %v706, 0
        %v719 = vsel %vm594, %v708, 0
        %721 = vmatpush.bf16.xpose.msra.mxu0 0
        %722 = vmatpush.bf16.xpose.msra.mxu0 0
        %723 = vmatpush.bf16.xpose.msra.mxu0 0
        %724 = vmatpush.bf16.xpose.msra.mxu0 0
        %725 = vmatpush.bf16.xpose.msra.mxu0 0
        %726 = vmatpush.bf16.xpose.msra.mxu0 0
        %727 = vmatpush.bf16.xpose.msra.mxu0 %v719
        %728 = vmatpush.bf16.xpose.msra.mxu0 %v716
        %729 = vmatmul.bf16.gmra.mxu0 %v710
        %v730 = vpop.f32.mrf.mxu0
        %v731 = vadd.f32 0.0, %v730
        %v732 = vpop.f32.mrf.mxu0
        %v733 = vadd.f32 0.0, %v732
        %734 = vmatmul.bf16.gmra.mxu0 %v713
        %v735 = vpop.f32.mrf.mxu0
        %v736 = vadd.f32 0.0, %v735
        %v737 = vpop.f32.mrf.mxu0
        %738 = vdwg.mxu0
        %v739 = vsel %vm625, %v731, -inf
        %740 = vmax.xlane.f32.xlu0 %v739
        %v741 = vpop.xlane.xlu0 %740
        %v742 = vsel %vm625, %v733, -inf
        %743 = vmax.xlane.f32.xlu0 %v742
        %v744 = vpop.xlane.xlu0 %743
        %v745 = vsel %vm632, %v736, -inf
        %746 = vmax.xlane.f32.xlu0 %v745
        %v747 = vpop.xlane.xlu0 %746
        %v748 = vsub.f32 %v731, %v741
        %v749 = vsub.f32 %v733, %v744
        %v750 = vsub.f32 %v736, %v747
        %v751 = vmul.f32 %v748, 1.442695
        %v752 = vpow.pop %v751
        %v753 = vmul.f32 %v749, 1.442695
        %v754 = vpow.pop %v753
        %v755 = vmul.f32 %v750, 1.442695
        %v756 = vpow.pop %v755
        %v757 = vsel %vm625, %v752, 0.0
        %758 = vadd.xlane.f32.xlu0 %v757
        %v759 = vpop.xlane.xlu0 %758
        %v760 = vsel %vm625, %v754, 0.0
        %761 = vadd.xlane.f32.xlu0 %v760
        %v762 = vpop.xlane.xlu0 %761
        %v763 = vsel %vm632, %v756, 0.0
        %764 = vadd.xlane.f32.xlu0 %v763
        %v765 = vpop.xlane.xlu0 %764
        %v766 = vrcp.pop %v759
        %v767 = vrcp.pop %v762
        %v768 = vrcp.pop %v765
        %v769 = vmul.f32 %v752, %v766
        %v770 = vmul.f32 %v754, %v767
        %v771 = vmul.f32 %v756, %v768
        %v772 = vpack.c.bf16 %v770, %v769
        %v773 = vpack.c.bf16 %v771, %v771
        %774 = vrot.lane.b32.xlu0 %v586, 56
        %v775 = vpop.permute.xlu0 %774
        %776 = vrot.lane.b32.xlu0 %v587, 56
        %v777 = vpop.permute.xlu0 %776
        %v780 = vsel %vm625, %v772, 0
        %v783 = vsel %vm625, %v773, 0
        %v786 = vand.u32 %v777, %v675
        %788 = vmatpush.bf16.msra.mxu0 0
        %789 = vmatpush.bf16.msra.mxu0 0
        %790 = vmatpush.bf16.msra.mxu0 0
        %791 = vmatpush.bf16.msra.mxu0 0
        %792 = vmatpush.bf16.msra.mxu0 0
        %793 = vmatpush.bf16.msra.mxu0 0
        %794 = vmatpush.bf16.msra.mxu0 %v786
        %795 = vmatpush.bf16.msra.mxu0 %v775
        %796 = vmatmul.bf16.gmra.mxu0 %v780
        %v797 = vpop.f32.mrf.mxu0
        %v798 = vadd.f32 0.0, %v797
        %v799 = vpop.f32.mrf.mxu0
        %v800 = vadd.f32 0.0, %v799
        %801 = vmatmul.bf16.gmra.mxu0 %v783
        %v802 = vpop.f32.mrf.mxu0
        %v803 = vadd.f32 0.0, %v802
        %v804 = vpop.f32.mrf.mxu0
        %805 = vdwg.mxu0
        %809 = vrot.lane.b32.xlu0 %v798, 8
        %v810 = vpop.permute.xlu0 %809
        %811 = vrot.lane.b32.xlu0 %v800, 8
        %v812 = vpop.permute.xlu0 %811
        %813 = vrot.lane.b32.xlu0 %v803, 8
        %v814 = vpop.permute.xlu0 %813
        %vm818 = vcmask 130112
        %819 = vst.msk [vmem:[#allocation2] sm:$0xff] %vm818, %v810
        %820 = vst.msk [vmem:[#allocation2 + $0x8] sm:$0xff] %vm818, %v812
        %vm821 = vcmask 122944
        %822 = vst.msk [vmem:[#allocation2 + $0x10] sm:$0x1] %vm821, %v814
        %823 = vrot.lane.b32.xlu0 %v586, 112
        %v824 = vpop.permute.xlu0 %823
        %825 = vrot.lane.b32.xlu0 %v587, 112
        %v826 = vpop.permute.xlu0 %825
        %827 = vrot.lane.b32.xlu0 %v586, 80
        %v828 = vpop.permute.xlu0 %827
        %829 = vrot.lane.b32.xlu0 %v587, 80
        %v830 = vpop.permute.xlu0 %829
        %v832 = vsel %vm594, %v824, 0
        %v835 = vsel %vm594, %v826, 0
        %v838 = vsel %vm594, %v828, 0
        %v841 = vsel %vm594, %v830, 0
        %843 = vmatpush.bf16.xpose.msra.mxu0 0
        %844 = vmatpush.bf16.xpose.msra.mxu0 0
        %845 = vmatpush.bf16.xpose.msra.mxu0 0
        %846 = vmatpush.bf16.xpose.msra.mxu0 0
        %847 = vmatpush.bf16.xpose.msra.mxu0 0
        %848 = vmatpush.bf16.xpose.msra.mxu0 0
        %849 = vmatpush.bf16.xpose.msra.mxu0 %v841
        %850 = vmatpush.bf16.xpose.msra.mxu0 %v838
        %851 = vmatmul.bf16.gmra.mxu0 %v832
        %v852 = vpop.f32.mrf.mxu0
        %v853 = vadd.f32 0.0, %v852
        %v854 = vpop.f32.mrf.mxu0
        %v855 = vadd.f32 0.0, %v854
        %856 = vmatmul.bf16.gmra.mxu0 %v835
        %v857 = vpop.f32.mrf.mxu0
        %v858 = vadd.f32 0.0, %v857
        %v859 = vpop.f32.mrf.mxu0
        %860 = vdwg.mxu0
        %v861 = vsel %vm625, %v853, -inf
        %862 = vmax.xlane.f32.xlu0 %v861
        %v863 = vpop.xlane.xlu0 %862
        %v864 = vsel %vm625, %v855, -inf
        %865 = vmax.xlane.f32.xlu0 %v864
        %v866 = vpop.xlane.xlu0 %865
        %v867 = vsel %vm632, %v858, -inf
        %868 = vmax.xlane.f32.xlu0 %v867
        %v869 = vpop.xlane.xlu0 %868
        %v870 = vsub.f32 %v853, %v863
        %v871 = vsub.f32 %v855, %v866
        %v872 = vsub.f32 %v858, %v869
        %v873 = vmul.f32 %v870, 1.442695
        %v874 = vpow.pop %v873
        %v875 = vmul.f32 %v871, 1.442695
        %v876 = vpow.pop %v875
        %v877 = vmul.f32 %v872, 1.442695
        %v878 = vpow.pop %v877
        %v879 = vsel %vm625, %v874, 0.0
        %880 = vadd.xlane.f32.xlu0 %v879
        %v881 = vpop.xlane.xlu0 %880
        %v882 = vsel %vm625, %v876, 0.0
        %883 = vadd.xlane.f32.xlu0 %v882
        %v884 = vpop.xlane.xlu0 %883
        %v885 = vsel %vm632, %v878, 0.0
        %886 = vadd.xlane.f32.xlu0 %v885
        %v887 = vpop.xlane.xlu0 %886
        %v888 = vrcp.pop %v881
        %v889 = vrcp.pop %v884
        %v890 = vrcp.pop %v887
        %v891 = vmul.f32 %v874, %v888
        %v892 = vmul.f32 %v876, %v889
        %v893 = vmul.f32 %v878, %v890
        %v894 = vpack.c.bf16 %v892, %v891
        %v895 = vpack.c.bf16 %v893, %v893
        %896 = vrot.lane.b32.xlu0 %v586, 48
        %v897 = vpop.permute.xlu0 %896
        %898 = vrot.lane.b32.xlu0 %v587, 48
        %v899 = vpop.permute.xlu0 %898
        %v902 = vsel %vm625, %v894, 0
        %v905 = vsel %vm625, %v895, 0
        %v908 = vand.u32 %v899, %v675
        %910 = vmatpush.bf16.msra.mxu0 0
        %911 = vmatpush.bf16.msra.mxu0 0
        %912 = vmatpush.bf16.msra.mxu0 0
        %913 = vmatpush.bf16.msra.mxu0 0
        %914 = vmatpush.bf16.msra.mxu0 0
        %915 = vmatpush.bf16.msra.mxu0 0
        %916 = vmatpush.bf16.msra.mxu0 %v908
        %917 = vmatpush.bf16.msra.mxu0 %v897
        %918 = vmatmul.bf16.gmra.mxu0 %v902
        %v919 = vpop.f32.mrf.mxu0
        %v920 = vadd.f32 0.0, %v919
        %v921 = vpop.f32.mrf.mxu0
        %v922 = vadd.f32 0.0, %v921
        %923 = vmatmul.bf16.gmra.mxu0 %v905
        %v924 = vpop.f32.mrf.mxu0
        %v925 = vadd.f32 0.0, %v924
        %v926 = vpop.f32.mrf.mxu0
        %927 = vdwg.mxu0
        %931 = vrot.lane.b32.xlu0 %v920, 16
        %v932 = vpop.permute.xlu0 %931
        %933 = vrot.lane.b32.xlu0 %v922, 16
        %v934 = vpop.permute.xlu0 %933
        %935 = vrot.lane.b32.xlu0 %v925, 16
        %v936 = vpop.permute.xlu0 %935
        %vm940 = vcmask 195712
        %941 = vst.msk [vmem:[#allocation2] sm:$0xff] %vm940, %v932
        %942 = vst.msk [vmem:[#allocation2 + $0x8] sm:$0xff] %vm940, %v934
        %vm943 = vcmask 188544
        %944 = vst.msk [vmem:[#allocation2 + $0x10] sm:$0x1] %vm943, %v936
        %945 = vrot.lane.b32.xlu0 %v586, 104
        %v946 = vpop.permute.xlu0 %945
        %947 = vrot.lane.b32.xlu0 %v587, 104
        %v948 = vpop.permute.xlu0 %947
        %949 = vrot.lane.b32.xlu0 %v586, 72
        %v950 = vpop.permute.xlu0 %949
        %951 = vrot.lane.b32.xlu0 %v587, 72
        %v952 = vpop.permute.xlu0 %951
        %v954 = vsel %vm594, %v946, 0
        %v957 = vsel %vm594, %v948, 0
        %v960 = vsel %vm594, %v950, 0
        %v963 = vsel %vm594, %v952, 0
        %965 = vmatpush.bf16.xpose.msra.mxu0 0
        %966 = vmatpush.bf16.xpose.msra.mxu0 0
        %967 = vmatpush.bf16.xpose.msra.mxu0 0
        %968 = vmatpush.bf16.xpose.msra.mxu0 0
        %969 = vmatpush.bf16.xpose.msra.mxu0 0
        %970 = vmatpush.bf16.xpose.msra.mxu0 0
        %971 = vmatpush.bf16.xpose.msra.mxu0 %v963
        %972 = vmatpush.bf16.xpose.msra.mxu0 %v960
        %973 = vmatmul.bf16.gmra.mxu0 %v954
        %v974 = vpop.f32.mrf.mxu0
        %v975 = vadd.f32 0.0, %v974
        %v976 = vpop.f32.mrf.mxu0
        %v977 = vadd.f32 0.0, %v976
        %978 = vmatmul.bf16.gmra.mxu0 %v957
        %v979 = vpop.f32.mrf.mxu0
        %v980 = vadd.f32 0.0, %v979
        %v981 = vpop.f32.mrf.mxu0
        %982 = vdwg.mxu0
        %v983 = vsel %vm625, %v975, -inf
        %984 = vmax.xlane.f32.xlu0 %v983
        %v985 = vpop.xlane.xlu0 %984
        %v986 = vsel %vm625, %v977, -inf
        %987 = vmax.xlane.f32.xlu0 %v986
        %v988 = vpop.xlane.xlu0 %987
        %v989 = vsel %vm632, %v980, -inf
        %990 = vmax.xlane.f32.xlu0 %v989
        %v991 = vpop.xlane.xlu0 %990
        %v992 = vsub.f32 %v975, %v985
        %v993 = vsub.f32 %v977, %v988
        %v994 = vsub.f32 %v980, %v991
        %v995 = vmul.f32 %v992, 1.442695
        %v996 = vpow.pop %v995
        %v997 = vmul.f32 %v993, 1.442695
        %v998 = vpow.pop %v997
        %v999 = vmul.f32 %v994, 1.442695
        %v1000 = vpow.pop %v999
        %v1001 = vsel %vm625, %v996, 0.0
        %1002 = vadd.xlane.f32.xlu0 %v1001
        %v1003 = vpop.xlane.xlu0 %1002
        %v1004 = vsel %vm625, %v998, 0.0
        %1005 = vadd.xlane.f32.xlu0 %v1004
        %v1006 = vpop.xlane.xlu0 %1005
        %v1007 = vsel %vm632, %v1000, 0.0
        %1008 = vadd.xlane.f32.xlu0 %v1007
        %v1009 = vpop.xlane.xlu0 %1008
        %v1010 = vrcp.pop %v1003
        %v1011 = vrcp.pop %v1006
        %v1012 = vrcp.pop %v1009
        %v1013 = vmul.f32 %v996, %v1010
        %v1014 = vmul.f32 %v998, %v1011
        %v1015 = vmul.f32 %v1000, %v1012
        %v1016 = vpack.c.bf16 %v1014, %v1013
        %v1017 = vpack.c.bf16 %v1015, %v1015
        %1018 = vrot.lane.b32.xlu0 %v586, 40
        %v1019 = vpop.permute.xlu0 %1018
        %1020 = vrot.lane.b32.xlu0 %v587, 40
        %v1021 = vpop.permute.xlu0 %1020
        %v1024 = vsel %vm625, %v1016, 0
        %v1027 = vsel %vm625, %v1017, 0
        %v1030 = vand.u32 %v1021, %v675
        %1032 = vmatpush.bf16.msra.mxu0 0
        %1033 = vmatpush.bf16.msra.mxu0 0
        %1034 = vmatpush.bf16.msra.mxu0 0
        %1035 = vmatpush.bf16.msra.mxu0 0
        %1036 = vmatpush.bf16.msra.mxu0 0
        %1037 = vmatpush.bf16.msra.mxu0 0
        %1038 = vmatpush.bf16.msra.mxu0 %v1030
        %1039 = vmatpush.bf16.msra.mxu0 %v1019
        %1040 = vmatmul.bf16.gmra.mxu0 %v1024
        %v1041 = vpop.f32.mrf.mxu0
        %v1042 = vadd.f32 0.0, %v1041
        %v1043 = vpop.f32.mrf.mxu0
        %v1044 = vadd.f32 0.0, %v1043
        %1045 = vmatmul.bf16.gmra.mxu0 %v1027
        %v1046 = vpop.f32.mrf.mxu0
        %v1047 = vadd.f32 0.0, %v1046
        %v1048 = vpop.f32.mrf.mxu0
        %1049 = vdwg.mxu0
        %1053 = vrot.lane.b32.xlu0 %v1042, 24
        %v1054 = vpop.permute.xlu0 %1053
        %1055 = vrot.lane.b32.xlu0 %v1044, 24
        %v1056 = vpop.permute.xlu0 %1055
        %1057 = vrot.lane.b32.xlu0 %v1047, 24
        %v1058 = vpop.permute.xlu0 %1057
        %vm1062 = vcmask 261312
        %1063 = vst.msk [vmem:[#allocation2] sm:$0xff] %vm1062, %v1054
        %1064 = vst.msk [vmem:[#allocation2 + $0x8] sm:$0xff] %vm1062, %v1056
        %vm1065 = vcmask 254144
        %1066 = vst.msk [vmem:[#allocation2 + $0x10] sm:$0x1] %vm1065, %v1058
        %v1067 = vld [vmem:[#allocation2] sm:$0xff]
        %v1068 = vld [vmem:[#allocation2 + $0x8] sm:$0xff]
        %v1069 = vld [vmem:[#allocation2 + $0x10] sm:$0x1]
        %v1070 = vld [vmem:[%s4] sm:$0xf]
        %v1071 = vld [vmem:[%s4 + $0x4] sm:$0xf]
        %v1072 = vld [vmem:[%s4 + $0x8] sm:$0xf]
        %v1073 = vld [vmem:[%s4 + $0xc] sm:$0xf]
        %v1074 = vld [vmem:[%s8 + $0x2] sm:$0x1]
        %v1075 = vpack.c.bf16 %v1068, %v1067
        %v1076 = vpack.c.bf16 %v1069, %v1069
        %v1077 = vperm.slane %v1074, 0
        %v1082 = vunpack.c.l.b16 %v1070
        %v1083 = vunpack.c.l.b16 %v1071
        %v1084 = vunpack.c.l.b16 %v1072
        %v1085 = vunpack.c.l.b16 %v1073
        %v1086 = vpack.c.b16 %v1083, %v1082
        %v1087 = vpack.c.b16 %v1085, %v1084
        %v1091 = vsel %vm507, %v1075, 0
        %v1094 = vsel %vm507, %v1076, 0
        %1096 = vmatpush.bf16.msra.mxu0 0
        %1097 = vmatpush.bf16.msra.mxu0 0
        %1098 = vmatpush.bf16.msra.mxu0 0
        %1099 = vmatpush.bf16.msra.mxu0 0
        %1100 = vmatpush.bf16.msra.mxu0 0
        %1101 = vmatpush.bf16.msra.mxu0 0
        %1102 = vmatpush.bf16.msra.mxu0 %v1087
        %1103 = vmatpush.bf16.msra.mxu0 %v1086
        %1104 = vmatmul.bf16.gmra.mxu0 %v1091
        %v1105 = vpop.f32.mrf.mxu0
        %v1106 = vadd.f32 %v1077, %v1105
        %v1107 = vpop.f32.mrf.mxu0
        %v1108 = vadd.f32 %v1077, %v1107
        %1109 = vmatmul.bf16.gmra.mxu0 %v1094
        %v1110 = vpop.f32.mrf.mxu0
        %v1111 = vadd.f32 %v1077, %v1110
        %v1112 = vpop.f32.mrf.mxu0
        %1113 = vdwg.mxu0
        %v1114 = vadd.f32 %v539, %v1106
        %v1115 = vadd.f32 %v540, %v1108
        %v1116 = vadd.f32 %v541, %v1111
        %v1117 = vld [vmem:[%s8 + $0x5] sm:$0x1]
        %v1118 = vld [vmem:[%s8 + $0x6] sm:$0x1]
        %v1119 = vsel %vm507, %v1114, 0.0
        %1120 = vadd.xlane.f32.xlu0 %v1119
        %v1121 = vpop.xlane.xlu0 %1120
        %v1122 = vsel %vm507, %v1115, 0.0
        %1123 = vadd.xlane.f32.xlu0 %v1122
        %v1124 = vpop.xlane.xlu0 %1123
        %vm1125 = vcmask 253952
        %v1126 = vsel %vm1125, %v1116, 0.0
        %1127 = vadd.xlane.f32.xlu0 %v1126
        %v1128 = vpop.xlane.xlu0 %1127
        %v1129 = vrcp.pop 32.0
        %v1130 = vmul.f32 32.0, %v1129
        %v1131 = vsub.f32 1.0, %v1130
        %v1132 = vmul.f32 %v1129, %v1131
        %v1133 = vadd.f32 %v1129, %v1132
        %vm1134 = vweird.f32 %v1129
        %v1135 = vsel %vm1134, %v1129, %v1133
        %v1136 = vmul.f32 %v1121, %v1135
        %v1137 = vmul.f32 %v1124, %v1135
        %v1138 = vmul.f32 %v1128, %v1135
        %v1139 = vsub.f32 %v1114, %v1136
        %v1140 = vsub.f32 %v1115, %v1137
        %v1141 = vsub.f32 %v1116, %v1138
        %v1142 = vmul.f32 %v1139, %v1139
        %v1143 = vmul.f32 %v1140, %v1140
        %v1144 = vmul.f32 %v1141, %v1141
        %v1145 = vsel %vm507, %v1142, 0.0
        %1146 = vadd.xlane.f32.xlu0 %v1145
        %v1147 = vpop.xlane.xlu0 %1146
        %v1148 = vsel %vm507, %v1143, 0.0
        %1149 = vadd.xlane.f32.xlu0 %v1148
        %v1150 = vpop.xlane.xlu0 %1149
        %v1151 = vsel %vm1125, %v1144, 0.0
        %1152 = vadd.xlane.f32.xlu0 %v1151
        %v1153 = vpop.xlane.xlu0 %1152
        %v1154 = vmul.f32 %v1147, %v1135
        %v1155 = vmul.f32 %v1150, %v1135
        %v1156 = vmul.f32 %v1153, %v1135
        %v1157 = vadd.f32 %v1154, 1e-05
        %v1158 = vadd.f32 %v1155, 1e-05
        %v1159 = vadd.f32 %v1156, 1e-05
        %v1160 = vrsqrt.pop %v1157
        %v1161 = vmul.f32 %v1160, %v1157
        %v1162 = vmul.f32 %v1161, %v1160
        %v1163 = vmul.f32 0.5, %v1162
        %v1164 = vsub.f32 1.5, %v1163
        %v1165 = vmul.f32 %v1160, %v1164
        %vm1166 = vweird.f32 %v1157
        %vm1167 = vweird.f32 %v1160
        %vm1168 = vmor %vm1166, %vm1167
        %v1169 = vsel %vm1168, %v1160, %v1165
        %v1170 = vrsqrt.pop %v1158
        %v1171 = vmul.f32 %v1170, %v1158
        %v1172 = vmul.f32 %v1171, %v1170
        %v1173 = vmul.f32 0.5, %v1172
        %v1174 = vsub.f32 1.5, %v1173
        %v1175 = vmul.f32 %v1170, %v1174
        %vm1176 = vweird.f32 %v1158
        %vm1177 = vweird.f32 %v1170
        %vm1178 = vmor %vm1176, %vm1177
        %v1179 = vsel %vm1178, %v1170, %v1175
        %v1180 = vrsqrt.pop %v1159
        %v1181 = vmul.f32 %v1180, %v1159
        %v1182 = vmul.f32 %v1181, %v1180
        %v1183 = vmul.f32 0.5, %v1182
        %v1184 = vsub.f32 1.5, %v1183
        %v1185 = vmul.f32 %v1180, %v1184
        %vm1186 = vweird.f32 %v1159
        %vm1187 = vweird.f32 %v1180
        %vm1188 = vmor %vm1186, %vm1187
        %v1189 = vsel %vm1188, %v1180, %v1185
        %v1190 = vmul.f32 %v1139, %v1169
        %v1191 = vmul.f32 %v1140, %v1179
        %v1192 = vmul.f32 %v1141, %v1189
        %v1193 = vperm.slane %v1117, 0
        %v1194 = vmul.f32 %v1190, %v1193
        %v1195 = vmul.f32 %v1191, %v1193
        %v1196 = vmul.f32 %v1192, %v1193
        %v1197 = vperm.slane %v1118, 0
        %v1198 = vadd.f32 %v1194, %v1197
        %v1199 = vadd.f32 %v1195, %v1197
        %v1200 = vadd.f32 %v1196, %v1197
        %v1201 = vld [vmem:[%s5] sm:$0xf]
        %v1202 = vld [vmem:[%s5 + $0x4] sm:$0xf]
        %v1203 = vld [vmem:[%s5 + $0x8] sm:$0xf]
        %v1204 = vld [vmem:[%s5 + $0xc] sm:$0xf]
        %v1205 = vld [vmem:[%s8 + $0x3] sm:$0x1]
        %v1206 = vpack.c.bf16 %v1199, %v1198
        %v1207 = vpack.c.bf16 %v1200, %v1200
        %v1208 = vperm.slane %v1205, 0
        %v1213 = vunpack.c.l.b16 %v1201
        %v1214 = vunpack.c.l.b16 %v1202
        %v1215 = vunpack.c.l.b16 %v1203
        %v1216 = vunpack.c.l.b16 %v1204
        %v1217 = vpack.c.b16 %v1214, %v1213
        %v1218 = vpack.c.b16 %v1216, %v1215
        %v1222 = vsel %vm507, %v1206, 0
        %v1225 = vsel %vm507, %v1207, 0
        %1227 = vmatpush.bf16.msra.mxu0 0
        %1228 = vmatpush.bf16.msra.mxu0 0
        %1229 = vmatpush.bf16.msra.mxu0 0
        %1230 = vmatpush.bf16.msra.mxu0 0
        %1231 = vmatpush.bf16.msra.mxu0 0
        %1232 = vmatpush.bf16.msra.mxu0 0
        %1233 = vmatpush.bf16.msra.mxu0 %v1218
        %1234 = vmatpush.bf16.msra.mxu0 %v1217
        %1235 = vmatmul.bf16.gmra.mxu0 %v1222
        %v1236 = vpop.f32.mrf.mxu0
        %v1237 = vadd.f32 %v1208, %v1236
        %v1238 = vpop.f32.mrf.mxu0
        %v1239 = vadd.f32 %v1208, %v1238
        %1240 = vmatmul.bf16.gmra.mxu0 %v1225
        %v1241 = vpop.f32.mrf.mxu0
        %v1242 = vadd.f32 %v1208, %v1241
        %v1243 = vpop.f32.mrf.mxu0
        %1244 = vdwg.mxu0
        %v1245 = vmax.f32 %v1237, 0.0
        %v1246 = vmax.f32 %v1239, 0.0
        %v1247 = vmax.f32 %v1242, 0.0
        %v1248 = vld [vmem:[%s6] sm:$0xf]
        %v1249 = vld [vmem:[%s6 + $0x4] sm:$0xf]
        %v1250 = vld [vmem:[%s6 + $0x8] sm:$0xf]
        %v1251 = vld [vmem:[%s6 + $0xc] sm:$0xf]
        %v1252 = vld [vmem:[%s6 + $0x10] sm:$0xf]
        %v1253 = vld [vmem:[%s6 + $0x14] sm:$0xf]
        %v1254 = vld [vmem:[%s6 + $0x18] sm:$0xf]
        %v1255 = vld [vmem:[%s6 + $0x1c] sm:$0xf]
        %v1256 = vld [vmem:[%s8 + $0x4] sm:$0x1]
        %v1257 = vpack.c.bf16 %v1246, %v1245
        %v1258 = vpack.c.bf16 %v1247, %v1247
        %v1259 = vperm.slane %v1256, 0
        %v1268 = vunpack.c.l.b16 %v1248
        %v1269 = vunpack.c.l.b16 %v1249
        %v1270 = vunpack.c.l.b16 %v1250
        %v1271 = vunpack.c.l.b16 %v1251
        %v1272 = vunpack.c.l.b16 %v1252
        %v1273 = vunpack.c.l.b16 %v1253
        %v1274 = vunpack.c.l.b16 %v1254
        %v1275 = vunpack.c.l.b16 %v1255
        %v1276 = vpack.c.b16 %v1269, %v1268
        %v1277 = vpack.c.b16 %v1271, %v1270
        %v1278 = vpack.c.b16 %v1273, %v1272
        %v1279 = vpack.c.b16 %v1275, %v1274
        %vm1284 = vcmask 523264
        %v1286 = vsel %vm1284, %v1257, 0
        %v1289 = vsel %vm1284, %v1258, 0
        %1291 = vmatpush.bf16.msra.mxu0 0
        %1292 = vmatpush.bf16.msra.mxu0 0
        %1293 = vmatpush.bf16.msra.mxu0 0
        %1294 = vmatpush.bf16.msra.mxu0 0
        %1295 = vmatpush.bf16.msra.mxu0 %v1279
        %1296 = vmatpush.bf16.msra.mxu0 %v1278
        %1297 = vmatpush.bf16.msra.mxu0 %v1277
        %1298 = vmatpush.bf16.msra.mxu0 %v1276
        %1299 = vmatmul.bf16.gmra.mxu0 %v1286
        %v1300 = vpop.f32.mrf.mxu0
        %v1301 = vadd.f32 %v1259, %v1300
        %v1302 = vpop.f32.mrf.mxu0
        %v1303 = vadd.f32 %v1259, %v1302
        %1304 = vmatmul.bf16.gmra.mxu0 %v1289
        %v1305 = vpop.f32.mrf.mxu0
        %v1306 = vadd.f32 %v1259, %v1305
        %v1307 = vpop.f32.mrf.mxu0
        %1308 = vdwg.mxu0
        %v1309 = vadd.f32 %v1198, %v1301
        %v1310 = vadd.f32 %v1199, %v1303
        %v1311 = vadd.f32 %v1200, %v1306
        %v1312 = vld [vmem:[%s8 + $0x7] sm:$0x1]
        %v1313 = vld [vmem:[%s8 + $0x8] sm:$0x1]
        %v1314 = vsel %vm507, %v1309, 0.0
        %1315 = vadd.xlane.f32.xlu0 %v1314
        %v1316 = vpop.xlane.xlu0 %1315
        %v1317 = vsel %vm507, %v1310, 0.0
        %1318 = vadd.xlane.f32.xlu0 %v1317
        %v1319 = vpop.xlane.xlu0 %1318
        %v1320 = vsel %vm1125, %v1311, 0.0
        %1321 = vadd.xlane.f32.xlu0 %v1320
        %v1322 = vpop.xlane.xlu0 %1321
        %v1323 = vmul.f32 %v1316, %v1135
        %v1324 = vmul.f32 %v1319, %v1135
        %v1325 = vmul.f32 %v1322, %v1135
        %v1326 = vsub.f32 %v1309, %v1323
        %v1327 = vsub.f32 %v1310, %v1324
        %v1328 = vsub.f32 %v1311, %v1325
        %v1329 = vmul.f32 %v1326, %v1326
        %v1330 = vmul.f32 %v1327, %v1327
        %v1331 = vmul.f32 %v1328, %v1328
        %v1332 = vsel %vm507, %v1329, 0.0
        %1333 = vadd.xlane.f32.xlu0 %v1332
        %v1334 = vpop.xlane.xlu0 %1333
        %v1335 = vsel %vm507, %v1330, 0.0
        %1336 = vadd.xlane.f32.xlu0 %v1335
        %v1337 = vpop.xlane.xlu0 %1336
        %v1338 = vsel %vm1125, %v1331, 0.0
        %1339 = vadd.xlane.f32.xlu0 %v1338
        %v1340 = vpop.xlane.xlu0 %1339
        %v1341 = vmul.f32 %v1334, %v1135
        %v1342 = vmul.f32 %v1337, %v1135
        %v1343 = vmul.f32 %v1340, %v1135
        %v1344 = vadd.f32 %v1341, 1e-05
        %v1345 = vadd.f32 %v1342, 1e-05
        %v1346 = vadd.f32 %v1343, 1e-05
        %v1347 = vrsqrt.pop %v1344
        %v1348 = vmul.f32 %v1347, %v1344
        %v1349 = vmul.f32 %v1348, %v1347
        %v1350 = vmul.f32 0.5, %v1349
        %v1351 = vsub.f32 1.5, %v1350
        %v1352 = vmul.f32 %v1347, %v1351
        %vm1353 = vweird.f32 %v1344
        %vm1354 = vweird.f32 %v1347
        %vm1355 = vmor %vm1353, %vm1354
        %v1356 = vsel %vm1355, %v1347, %v1352
        %v1357 = vrsqrt.pop %v1345
        %v1358 = vmul.f32 %v1357, %v1345
        %v1359 = vmul.f32 %v1358, %v1357
        %v1360 = vmul.f32 0.5, %v1359
        %v1361 = vsub.f32 1.5, %v1360
        %v1362 = vmul.f32 %v1357, %v1361
        %vm1363 = vweird.f32 %v1345
        %vm1364 = vweird.f32 %v1357
        %vm1365 = vmor %vm1363, %vm1364
        %v1366 = vsel %vm1365, %v1357, %v1362
        %v1367 = vrsqrt.pop %v1346
        %v1368 = vmul.f32 %v1367, %v1346
        %v1369 = vmul.f32 %v1368, %v1367
        %v1370 = vmul.f32 0.5, %v1369
        %v1371 = vsub.f32 1.5, %v1370
        %v1372 = vmul.f32 %v1367, %v1371
        %vm1373 = vweird.f32 %v1346
        %vm1374 = vweird.f32 %v1367
        %vm1375 = vmor %vm1373, %vm1374
        %v1376 = vsel %vm1375, %v1367, %v1372
        %v1377 = vmul.f32 %v1326, %v1356
        %v1378 = vmul.f32 %v1327, %v1366
        %v1379 = vmul.f32 %v1328, %v1376
        %v1380 = vperm.slane %v1312, 0
        %v1381 = vmul.f32 %v1377, %v1380
        %v1382 = vmul.f32 %v1378, %v1380
        %v1383 = vmul.f32 %v1379, %v1380
        %v1384 = vperm.slane %v1313, 0
        %v1385 = vadd.f32 %v1381, %v1384
        %v1386 = vadd.f32 %v1382, %v1384
        %v1387 = vadd.f32 %v1383, %v1384
        %s1388 = scalar_lea.vmem %s419, 24 [#allocation3]
        %v1389 = vld [vmem:[%s1388] sm:$0xf]
        %v1390 = vld [vmem:[%s1388 + $0x4] sm:$0xf]
        %v1391 = vld [vmem:[%s1388 + $0x8] sm:$0x1]
        %s1392 = scalar_lea.vmem %s2, 16
        %v1393 = vld [vmem:[%s1392] sm:$0xf]
        %v1394 = vld [vmem:[%s1392 + $0x4] sm:$0xf]
        %v1395 = vld [vmem:[%s1392 + $0x8] sm:$0xf]
        %v1396 = vld [vmem:[%s1392 + $0xc] sm:$0xf]
        %v1397 = vld [vmem:[%s8 + $0x9] sm:$0x1]
        %v1398 = vperm.slane %v1397, 0
        %v1402 = vunpack.c.l.b16 %v1389
        %v1403 = vunpack.c.l.b16 %v1390
        %v1404 = vunpack.c.l.b16 %v1391
        %v1405 = vpack.c.b16 %v1403, %v1402
        %v1406 = vpack.c.b16 %v1404, %v1404
        %v1411 = vunpack.c.l.b16 %v1393
        %v1412 = vunpack.c.l.b16 %v1394
        %v1413 = vunpack.c.l.b16 %v1395
        %v1414 = vunpack.c.l.b16 %v1396
        %v1415 = vpack.c.b16 %v1412, %v1411
        %v1416 = vpack.c.b16 %v1414, %v1413
        %v1420 = vsel %vm507, %v1405, 0
        %v1423 = vsel %vm507, %v1406, 0
        %1425 = vmatpush.bf16.msra.mxu0 0
        %1426 = vmatpush.bf16.msra.mxu0 0
        %1427 = vmatpush.bf16.msra.mxu0 0
        %1428 = vmatpush.bf16.msra.mxu0 0
        %1429 = vmatpush.bf16.msra.mxu0 0
        %1430 = vmatpush.bf16.msra.mxu0 0
        %1431 = vmatpush.bf16.msra.mxu0 %v1416
        %1432 = vmatpush.bf16.msra.mxu0 %v1415
        %1433 = vmatmul.bf16.gmra.mxu0 %v1420
        %v1434 = vpop.f32.mrf.mxu0
        %v1435 = vadd.f32 %v1398, %v1434
        %v1436 = vpop.f32.mrf.mxu0
        %v1437 = vadd.f32 %v1398, %v1436
        %1438 = vmatmul.bf16.gmra.mxu0 %v1423
        %v1439 = vpop.f32.mrf.mxu0
        %v1440 = vadd.f32 %v1398, %v1439
        %v1441 = vpop.f32.mrf.mxu0
        %1442 = vdwg.mxu0
        %v1443 = vadd.f32 %v1385, %v1435
        %v1444 = vadd.f32 %v1386, %v1437
        %v1445 = vadd.f32 %v1387, %v1440
        %s1446 = scalar_lea.vmem %s3, 16
        %v1447 = vld [vmem:[%s1446] sm:$0xf]
        %v1448 = vld [vmem:[%s1446 + $0x4] sm:$0xf]
        %v1449 = vld [vmem:[%s1446 + $0x8] sm:$0xf]
        %v1450 = vld [vmem:[%s1446 + $0xc] sm:$0xf]
        %v1451 = vld [vmem:[%s8 + $0xa] sm:$0x1]
        %v1452 = vpack.c.bf16 %v1444, %v1443
        %v1453 = vpack.c.bf16 %v1445, %v1445
        %v1454 = vperm.slane %v1451, 0
        %v1459 = vunpack.c.l.b16 %v1447
        %v1460 = vunpack.c.l.b16 %v1448
        %v1461 = vunpack.c.l.b16 %v1449
        %v1462 = vunpack.c.l.b16 %v1450
        %v1463 = vpack.c.b16 %v1460, %v1459
        %v1464 = vpack.c.b16 %v1462, %v1461
        %v1468 = vsel %vm507, %v1452, 0
        %v1471 = vsel %vm507, %v1453, 0
        %1473 = vmatpush.bf16.msra.mxu0 0
        %1474 = vmatpush.bf16.msra.mxu0 0
        %1475 = vmatpush.bf16.msra.mxu0 0
        %1476 = vmatpush.bf16.msra.mxu0 0
        %1477 = vmatpush.bf16.msra.mxu0 0
        %1478 = vmatpush.bf16.msra.mxu0 0
        %1479 = vmatpush.bf16.msra.mxu0 %v1464
        %1480 = vmatpush.bf16.msra.mxu0 %v1463
        %1481 = vmatmul.bf16.gmra.mxu0 %v1468
        %v1482 = vpop.f32.mrf.mxu0
        %v1483 = vadd.f32 %v1454, %v1482
        %v1484 = vpop.f32.mrf.mxu0
        %v1485 = vadd.f32 %v1454, %v1484
        %1486 = vmatmul.bf16.gmra.mxu0 %v1471
        %v1487 = vpop.f32.mrf.mxu0
        %v1488 = vadd.f32 %v1454, %v1487
        %v1489 = vpop.f32.mrf.mxu0
        %1490 = vdwg.mxu0
        %v1491 = vpack.c.bf16 %v1485, %v1483
        %v1492 = vpack.c.bf16 %v1488, %v1488
        %1495 = vrot.lane.b32.xlu0 %v1491, 96
        %v1496 = vpop.permute.xlu0 %1495
        %1497 = vrot.lane.b32.xlu0 %v1492, 96
        %v1498 = vpop.permute.xlu0 %1497
        %v1500 = vsel %vm594, %v1491, 0
        %v1503 = vsel %vm594, %v1492, 0
        %v1506 = vsel %vm594, %v1496, 0
        %v1509 = vsel %vm594, %v1498, 0
        %1511 = vmatpush.bf16.xpose.msra.mxu0 0
        %1512 = vmatpush.bf16.xpose.msra.mxu0 0
        %1513 = vmatpush.bf16.xpose.msra.mxu0 0
        %1514 = vmatpush.bf16.xpose.msra.mxu0 0
        %1515 = vmatpush.bf16.xpose.msra.mxu0 0
        %1516 = vmatpush.bf16.xpose.msra.mxu0 0
        %1517 = vmatpush.bf16.xpose.msra.mxu0 %v1509
        %1518 = vmatpush.bf16.xpose.msra.mxu0 %v1506
        %1519 = vmatmul.bf16.gmra.mxu0 %v1500
        %v1520 = vpop.f32.mrf.mxu0
        %v1521 = vadd.f32 0.0, %v1520
        %v1522 = vpop.f32.mrf.mxu0
        %v1523 = vadd.f32 0.0, %v1522
        %1524 = vmatmul.bf16.gmra.mxu0 %v1503
        %v1525 = vpop.f32.mrf.mxu0
        %v1526 = vadd.f32 0.0, %v1525
        %v1527 = vpop.f32.mrf.mxu0
        %1528 = vdwg.mxu0
        %v1529 = vsel %vm625, %v1521, -inf
        %1530 = vmax.xlane.f32.xlu0 %v1529
        %v1531 = vpop.xlane.xlu0 %1530
        %v1532 = vsel %vm625, %v1523, -inf
        %1533 = vmax.xlane.f32.xlu0 %v1532
        %v1534 = vpop.xlane.xlu0 %1533
        %v1535 = vsel %vm632, %v1526, -inf
        %1536 = vmax.xlane.f32.xlu0 %v1535
        %v1537 = vpop.xlane.xlu0 %1536
        %v1538 = vsub.f32 %v1521, %v1531
        %v1539 = vsub.f32 %v1523, %v1534
        %v1540 = vsub.f32 %v1526, %v1537
        %v1541 = vmul.f32 %v1538, 1.442695
        %v1542 = vpow.pop %v1541
        %v1543 = vmul.f32 %v1539, 1.442695
        %v1544 = vpow.pop %v1543
        %v1545 = vmul.f32 %v1540, 1.442695
        %v1546 = vpow.pop %v1545
        %v1547 = vsel %vm625, %v1542, 0.0
        %1548 = vadd.xlane.f32.xlu0 %v1547
        %v1549 = vpop.xlane.xlu0 %1548
        %v1550 = vsel %vm625, %v1544, 0.0
        %1551 = vadd.xlane.f32.xlu0 %v1550
        %v1552 = vpop.xlane.xlu0 %1551
        %v1553 = vsel %vm632, %v1546, 0.0
        %1554 = vadd.xlane.f32.xlu0 %v1553
        %v1555 = vpop.xlane.xlu0 %1554
        %v1556 = vrcp.pop %v1549
        %v1557 = vrcp.pop %v1552
        %v1558 = vrcp.pop %v1555
        %v1559 = vmul.f32 %v1542, %v1556
        %v1560 = vmul.f32 %v1544, %v1557
        %v1561 = vmul.f32 %v1546, %v1558
        %v1562 = vpack.c.bf16 %v1560, %v1559
        %v1563 = vpack.c.bf16 %v1561, %v1561
        %1564 = vrot.lane.b32.xlu0 %v1491, 64
        %v1565 = vpop.permute.xlu0 %1564
        %1566 = vrot.lane.b32.xlu0 %v1492, 64
        %v1567 = vpop.permute.xlu0 %1566
        %v1570 = vsel %vm625, %v1562, 0
        %v1573 = vsel %vm625, %v1563, 0
        %v1576 = vand.u32 %v1567, %v675
        %1578 = vmatpush.bf16.msra.mxu0 0
        %1579 = vmatpush.bf16.msra.mxu0 0
        %1580 = vmatpush.bf16.msra.mxu0 0
        %1581 = vmatpush.bf16.msra.mxu0 0
        %1582 = vmatpush.bf16.msra.mxu0 0
        %1583 = vmatpush.bf16.msra.mxu0 0
        %1584 = vmatpush.bf16.msra.mxu0 %v1576
        %1585 = vmatpush.bf16.msra.mxu0 %v1565
        %1586 = vmatmul.bf16.gmra.mxu0 %v1570
        %v1587 = vpop.f32.mrf.mxu0
        %v1588 = vadd.f32 0.0, %v1587
        %v1589 = vpop.f32.mrf.mxu0
        %v1590 = vadd.f32 0.0, %v1589
        %1591 = vmatmul.bf16.gmra.mxu0 %v1573
        %v1592 = vpop.f32.mrf.mxu0
        %v1593 = vadd.f32 0.0, %v1592
        %v1594 = vpop.f32.mrf.mxu0
        %1595 = vdwg.mxu0
        %1596 = vst.msk [vmem:[#allocation2] sm:$0xff] %vm594, %v1588
        %1597 = vst.msk [vmem:[#allocation2 + $0x8] sm:$0xff] %vm594, %v1590
        %1598 = vst.msk [vmem:[#allocation2 + $0x10] sm:$0x1] %vm699, %v1593
        %1599 = vrot.lane.b32.xlu0 %v1491, 120
        %v1600 = vpop.permute.xlu0 %1599
        %1601 = vrot.lane.b32.xlu0 %v1492, 120
        %v1602 = vpop.permute.xlu0 %1601
        %1603 = vrot.lane.b32.xlu0 %v1491, 88
        %v1604 = vpop.permute.xlu0 %1603
        %1605 = vrot.lane.b32.xlu0 %v1492, 88
        %v1606 = vpop.permute.xlu0 %1605
        %v1608 = vsel %vm594, %v1600, 0
        %v1611 = vsel %vm594, %v1602, 0
        %v1614 = vsel %vm594, %v1604, 0
        %v1617 = vsel %vm594, %v1606, 0
        %1619 = vmatpush.bf16.xpose.msra.mxu0 0
        %1620 = vmatpush.bf16.xpose.msra.mxu0 0
        %1621 = vmatpush.bf16.xpose.msra.mxu0 0
        %1622 = vmatpush.bf16.xpose.msra.mxu0 0
        %1623 = vmatpush.bf16.xpose.msra.mxu0 0
        %1624 = vmatpush.bf16.xpose.msra.mxu0 0
        %1625 = vmatpush.bf16.xpose.msra.mxu0 %v1617
        %1626 = vmatpush.bf16.xpose.msra.mxu0 %v1614
        %1627 = vmatmul.bf16.gmra.mxu0 %v1608
        %v1628 = vpop.f32.mrf.mxu0
        %v1629 = vadd.f32 0.0, %v1628
        %v1630 = vpop.f32.mrf.mxu0
        %v1631 = vadd.f32 0.0, %v1630
        %1632 = vmatmul.bf16.gmra.mxu0 %v1611
        %v1633 = vpop.f32.mrf.mxu0
        %v1634 = vadd.f32 0.0, %v1633
        %v1635 = vpop.f32.mrf.mxu0
        %1636 = vdwg.mxu0
        %v1637 = vsel %vm625, %v1629, -inf
        %1638 = vmax.xlane.f32.xlu0 %v1637
        %v1639 = vpop.xlane.xlu0 %1638
        %v1640 = vsel %vm625, %v1631, -inf
        %1641 = vmax.xlane.f32.xlu0 %v1640
        %v1642 = vpop.xlane.xlu0 %1641
        %v1643 = vsel %vm632, %v1634, -inf
        %1644 = vmax.xlane.f32.xlu0 %v1643
        %v1645 = vpop.xlane.xlu0 %1644
        %v1646 = vsub.f32 %v1629, %v1639
        %v1647 = vsub.f32 %v1631, %v1642
        %v1648 = vsub.f32 %v1634, %v1645
        %v1649 = vmul.f32 %v1646, 1.442695
        %v1650 = vpow.pop %v1649
        %v1651 = vmul.f32 %v1647, 1.442695
        %v1652 = vpow.pop %v1651
        %v1653 = vmul.f32 %v1648, 1.442695
        %v1654 = vpow.pop %v1653
        %v1655 = vsel %vm625, %v1650, 0.0
        %1656 = vadd.xlane.f32.xlu0 %v1655
        %v1657 = vpop.xlane.xlu0 %1656
        %v1658 = vsel %vm625, %v1652, 0.0
        %1659 = vadd.xlane.f32.xlu0 %v1658
        %v1660 = vpop.xlane.xlu0 %1659
        %v1661 = vsel %vm632, %v1654, 0.0
        %1662 = vadd.xlane.f32.xlu0 %v1661
        %v1663 = vpop.xlane.xlu0 %1662
        %v1664 = vrcp.pop %v1657
        %v1665 = vrcp.pop %v1660
        %v1666 = vrcp.pop %v1663
        %v1667 = vmul.f32 %v1650, %v1664
        %v1668 = vmul.f32 %v1652, %v1665
        %v1669 = vmul.f32 %v1654, %v1666
        %v1670 = vpack.c.bf16 %v1668, %v1667
        %v1671 = vpack.c.bf16 %v1669, %v1669
        %1672 = vrot.lane.b32.xlu0 %v1491, 56
        %v1673 = vpop.permute.xlu0 %1672
        %1674 = vrot.lane.b32.xlu0 %v1492, 56
        %v1675 = vpop.permute.xlu0 %1674
        %v1678 = vsel %vm625, %v1670, 0
        %v1681 = vsel %vm625, %v1671, 0
        %v1684 = vand.u32 %v1675, %v675
        %1686 = vmatpush.bf16.msra.mxu0 0
        %1687 = vmatpush.bf16.msra.mxu0 0
        %1688 = vmatpush.bf16.msra.mxu0 0
        %1689 = vmatpush.bf16.msra.mxu0 0
        %1690 = vmatpush.bf16.msra.mxu0 0
        %1691 = vmatpush.bf16.msra.mxu0 0
        %1692 = vmatpush.bf16.msra.mxu0 %v1684
        %1693 = vmatpush.bf16.msra.mxu0 %v1673
        %1694 = vmatmul.bf16.gmra.mxu0 %v1678
        %v1695 = vpop.f32.mrf.mxu0
        %v1696 = vadd.f32 0.0, %v1695
        %v1697 = vpop.f32.mrf.mxu0
        %v1698 = vadd.f32 0.0, %v1697
        %1699 = vmatmul.bf16.gmra.mxu0 %v1681
        %v1700 = vpop.f32.mrf.mxu0
        %v1701 = vadd.f32 0.0, %v1700
        %v1702 = vpop.f32.mrf.mxu0
        %1703 = vdwg.mxu0
        %1707 = vrot.lane.b32.xlu0 %v1696, 8
        %v1708 = vpop.permute.xlu0 %1707
        %1709 = vrot.lane.b32.xlu0 %v1698, 8
        %v1710 = vpop.permute.xlu0 %1709
        %1711 = vrot.lane.b32.xlu0 %v1701, 8
        %v1712 = vpop.permute.xlu0 %1711
        %1716 = vst.msk [vmem:[#allocation2] sm:$0xff] %vm818, %v1708
        %1717 = vst.msk [vmem:[#allocation2 + $0x8] sm:$0xff] %vm818, %v1710
        %1718 = vst.msk [vmem:[#allocation2 + $0x10] sm:$0x1] %vm821, %v1712
        %1719 = vrot.lane.b32.xlu0 %v1491, 112
        %v1720 = vpop.permute.xlu0 %1719
        %1721 = vrot.lane.b32.xlu0 %v1492, 112
        %v1722 = vpop.permute.xlu0 %1721
        %1723 = vrot.lane.b32.xlu0 %v1491, 80
        %v1724 = vpop.permute.xlu0 %1723
        %1725 = vrot.lane.b32.xlu0 %v1492, 80
        %v1726 = vpop.permute.xlu0 %1725
        %v1728 = vsel %vm594, %v1720, 0
        %v1731 = vsel %vm594, %v1722, 0
        %v1734 = vsel %vm594, %v1724, 0
        %v1737 = vsel %vm594, %v1726, 0
        %1739 = vmatpush.bf16.xpose.msra.mxu0 0
        %1740 = vmatpush.bf16.xpose.msra.mxu0 0
        %1741 = vmatpush.bf16.xpose.msra.mxu0 0
        %1742 = vmatpush.bf16.xpose.msra.mxu0 0
        %1743 = vmatpush.bf16.xpose.msra.mxu0 0
        %1744 = vmatpush.bf16.xpose.msra.mxu0 0
        %1745 = vmatpush.bf16.xpose.msra.mxu0 %v1737
        %1746 = vmatpush.bf16.xpose.msra.mxu0 %v1734
        %1747 = vmatmul.bf16.gmra.mxu0 %v1728
        %v1748 = vpop.f32.mrf.mxu0
        %v1749 = vadd.f32 0.0, %v1748
        %v1750 = vpop.f32.mrf.mxu0
        %v1751 = vadd.f32 0.0, %v1750
        %1752 = vmatmul.bf16.gmra.mxu0 %v1731
        %v1753 = vpop.f32.mrf.mxu0
        %v1754 = vadd.f32 0.0, %v1753
        %v1755 = vpop.f32.mrf.mxu0
        %1756 = vdwg.mxu0
        %v1757 = vsel %vm625, %v1749, -inf
        %1758 = vmax.xlane.f32.xlu0 %v1757
        %v1759 = vpop.xlane.xlu0 %1758
        %v1760 = vsel %vm625, %v1751, -inf
        %1761 = vmax.xlane.f32.xlu0 %v1760
        %v1762 = vpop.xlane.xlu0 %1761
        %v1763 = vsel %vm632, %v1754, -inf
        %1764 = vmax.xlane.f32.xlu0 %v1763
        %v1765 = vpop.xlane.xlu0 %1764
        %v1766 = vsub.f32 %v1749, %v1759
        %v1767 = vsub.f32 %v1751, %v1762
        %v1768 = vsub.f32 %v1754, %v1765
        %v1769 = vmul.f32 %v1766, 1.442695
        %v1770 = vpow.pop %v1769
        %v1771 = vmul.f32 %v1767, 1.442695
        %v1772 = vpow.pop %v1771
        %v1773 = vmul.f32 %v1768, 1.442695
        %v1774 = vpow.pop %v1773
        %v1775 = vsel %vm625, %v1770, 0.0
        %1776 = vadd.xlane.f32.xlu0 %v1775
        %v1777 = vpop.xlane.xlu0 %1776
        %v1778 = vsel %vm625, %v1772, 0.0
        %1779 = vadd.xlane.f32.xlu0 %v1778
        %v1780 = vpop.xlane.xlu0 %1779
        %v1781 = vsel %vm632, %v1774, 0.0
        %1782 = vadd.xlane.f32.xlu0 %v1781
        %v1783 = vpop.xlane.xlu0 %1782
        %v1784 = vrcp.pop %v1777
        %v1785 = vrcp.pop %v1780
        %v1786 = vrcp.pop %v1783
        %v1787 = vmul.f32 %v1770, %v1784
        %v1788 = vmul.f32 %v1772, %v1785
        %v1789 = vmul.f32 %v1774, %v1786
        %v1790 = vpack.c.bf16 %v1788, %v1787
        %v1791 = vpack.c.bf16 %v1789, %v1789
        %1792 = vrot.lane.b32.xlu0 %v1491, 48
        %v1793 = vpop.permute.xlu0 %1792
        %1794 = vrot.lane.b32.xlu0 %v1492, 48
        %v1795 = vpop.permute.xlu0 %1794
        %v1798 = vsel %vm625, %v1790, 0
        %v1801 = vsel %vm625, %v1791, 0
        %v1804 = vand.u32 %v1795, %v675
        %1806 = vmatpush.bf16.msra.mxu0 0
        %1807 = vmatpush.bf16.msra.mxu0 0
        %1808 = vmatpush.bf16.msra.mxu0 0
        %1809 = vmatpush.bf16.msra.mxu0 0
        %1810 = vmatpush.bf16.msra.mxu0 0
        %1811 = vmatpush.bf16.msra.mxu0 0
        %1812 = vmatpush.bf16.msra.mxu0 %v1804
        %1813 = vmatpush.bf16.msra.mxu0 %v1793
        %1814 = vmatmul.bf16.gmra.mxu0 %v1798
        %v1815 = vpop.f32.mrf.mxu0
        %v1816 = vadd.f32 0.0, %v1815
        %v1817 = vpop.f32.mrf.mxu0
        %v1818 = vadd.f32 0.0, %v1817
        %1819 = vmatmul.bf16.gmra.mxu0 %v1801
        %v1820 = vpop.f32.mrf.mxu0
        %v1821 = vadd.f32 0.0, %v1820
        %v1822 = vpop.f32.mrf.mxu0
        %1823 = vdwg.mxu0
        %1827 = vrot.lane.b32.xlu0 %v1816, 16
        %v1828 = vpop.permute.xlu0 %1827
        %1829 = vrot.lane.b32.xlu0 %v1818, 16
        %v1830 = vpop.permute.xlu0 %1829
        %1831 = vrot.lane.b32.xlu0 %v1821, 16
        %v1832 = vpop.permute.xlu0 %1831
        %1836 = vst.msk [vmem:[#allocation2] sm:$0xff] %vm940, %v1828
        %1837 = vst.msk [vmem:[#allocation2 + $0x8] sm:$0xff] %vm940, %v1830
        %1838 = vst.msk [vmem:[#allocation2 + $0x10] sm:$0x1] %vm943, %v1832
        %1839 = vrot.lane.b32.xlu0 %v1491, 104
        %v1840 = vpop.permute.xlu0 %1839
        %1841 = vrot.lane.b32.xlu0 %v1492, 104
        %v1842 = vpop.permute.xlu0 %1841
        %1843 = vrot.lane.b32.xlu0 %v1491, 72
        %v1844 = vpop.permute.xlu0 %1843
        %1845 = vrot.lane.b32.xlu0 %v1492, 72
        %v1846 = vpop.permute.xlu0 %1845
        %v1848 = vsel %vm594, %v1840, 0
        %v1851 = vsel %vm594, %v1842, 0
        %v1854 = vsel %vm594, %v1844, 0
        %v1857 = vsel %vm594, %v1846, 0
        %1859 = vmatpush.bf16.xpose.msra.mxu0 0
        %1860 = vmatpush.bf16.xpose.msra.mxu0 0
        %1861 = vmatpush.bf16.xpose.msra.mxu0 0
        %1862 = vmatpush.bf16.xpose.msra.mxu0 0
        %1863 = vmatpush.bf16.xpose.msra.mxu0 0
        %1864 = vmatpush.bf16.xpose.msra.mxu0 0
        %1865 = vmatpush.bf16.xpose.msra.mxu0 %v1857
        %1866 = vmatpush.bf16.xpose.msra.mxu0 %v1854
        %1867 = vmatmul.bf16.gmra.mxu0 %v1848
        %v1868 = vpop.f32.mrf.mxu0
        %v1869 = vadd.f32 0.0, %v1868
        %v1870 = vpop.f32.mrf.mxu0
        %v1871 = vadd.f32 0.0, %v1870
        %1872 = vmatmul.bf16.gmra.mxu0 %v1851
        %v1873 = vpop.f32.mrf.mxu0
        %v1874 = vadd.f32 0.0, %v1873
        %v1875 = vpop.f32.mrf.mxu0
        %1876 = vdwg.mxu0
        %v1877 = vsel %vm625, %v1869, -inf
        %1878 = vmax.xlane.f32.xlu0 %v1877
        %v1879 = vpop.xlane.xlu0 %1878
        %v1880 = vsel %vm625, %v1871, -inf
        %1881 = vmax.xlane.f32.xlu0 %v1880
        %v1882 = vpop.xlane.xlu0 %1881
        %v1883 = vsel %vm632, %v1874, -inf
        %1884 = vmax.xlane.f32.xlu0 %v1883
        %v1885 = vpop.xlane.xlu0 %1884
        %v1886 = vsub.f32 %v1869, %v1879
        %v1887 = vsub.f32 %v1871, %v1882
        %v1888 = vsub.f32 %v1874, %v1885
        %v1889 = vmul.f32 %v1886, 1.442695
        %v1890 = vpow.pop %v1889
        %v1891 = vmul.f32 %v1887, 1.442695
        %v1892 = vpow.pop %v1891
        %v1893 = vmul.f32 %v1888, 1.442695
        %v1894 = vpow.pop %v1893
        %v1895 = vsel %vm625, %v1890, 0.0
        %1896 = vadd.xlane.f32.xlu0 %v1895
        %v1897 = vpop.xlane.xlu0 %1896
        %v1898 = vsel %vm625, %v1892, 0.0
        %1899 = vadd.xlane.f32.xlu0 %v1898
        %v1900 = vpop.xlane.xlu0 %1899
        %v1901 = vsel %vm632, %v1894, 0.0
        %1902 = vadd.xlane.f32.xlu0 %v1901
        %v1903 = vpop.xlane.xlu0 %1902
        %v1904 = vrcp.pop %v1897
        %v1905 = vrcp.pop %v1900
        %v1906 = vrcp.pop %v1903
        %v1907 = vmul.f32 %v1890, %v1904
        %v1908 = vmul.f32 %v1892, %v1905
        %v1909 = vmul.f32 %v1894, %v1906
        %v1910 = vpack.c.bf16 %v1908, %v1907
        %v1911 = vpack.c.bf16 %v1909, %v1909
        %1912 = vrot.lane.b32.xlu0 %v1491, 40
        %v1913 = vpop.permute.xlu0 %1912
        %1914 = vrot.lane.b32.xlu0 %v1492, 40
        %v1915 = vpop.permute.xlu0 %1914
        %v1918 = vsel %vm625, %v1910, 0
        %v1921 = vsel %vm625, %v1911, 0
        %v1924 = vand.u32 %v1915, %v675
        %1926 = vmatpush.bf16.msra.mxu0 0
        %1927 = vmatpush.bf16.msra.mxu0 0
        %1928 = vmatpush.bf16.msra.mxu0 0
        %1929 = vmatpush.bf16.msra.mxu0 0
        %1930 = vmatpush.bf16.msra.mxu0 0
        %1931 = vmatpush.bf16.msra.mxu0 0
        %1932 = vmatpush.bf16.msra.mxu0 %v1924
        %1933 = vmatpush.bf16.msra.mxu0 %v1913
        %1934 = vmatmul.bf16.gmra.mxu0 %v1918
        %v1935 = vpop.f32.mrf.mxu0
        %v1936 = vadd.f32 0.0, %v1935
        %v1937 = vpop.f32.mrf.mxu0
        %v1938 = vadd.f32 0.0, %v1937
        %1939 = vmatmul.bf16.gmra.mxu0 %v1921
        %v1940 = vpop.f32.mrf.mxu0
        %v1941 = vadd.f32 0.0, %v1940
        %v1942 = vpop.f32.mrf.mxu0
        %1943 = vdwg.mxu0
        %1947 = vrot.lane.b32.xlu0 %v1936, 24
        %v1948 = vpop.permute.xlu0 %1947
        %1949 = vrot.lane.b32.xlu0 %v1938, 24
        %v1950 = vpop.permute.xlu0 %1949
        %1951 = vrot.lane.b32.xlu0 %v1941, 24
        %v1952 = vpop.permute.xlu0 %1951
        %1956 = vst.msk [vmem:[#allocation2] sm:$0xff] %vm1062, %v1948
        %1957 = vst.msk [vmem:[#allocation2 + $0x8] sm:$0xff] %vm1062, %v1950
        %1958 = vst.msk [vmem:[#allocation2 + $0x10] sm:$0x1] %vm1065, %v1952
        %v1959 = vld [vmem:[#allocation2] sm:$0xff]
        %v1960 = vld [vmem:[#allocation2 + $0x8] sm:$0xff]
        %v1961 = vld [vmem:[#allocation2 + $0x10] sm:$0x1]
        %s1962 = scalar_lea.vmem %s4, 16
        %v1963 = vld [vmem:[%s1962] sm:$0xf]
        %v1964 = vld [vmem:[%s1962 + $0x4] sm:$0xf]
        %v1965 = vld [vmem:[%s1962 + $0x8] sm:$0xf]
        %v1966 = vld [vmem:[%s1962 + $0xc] sm:$0xf]
        %v1967 = vld [vmem:[%s8 + $0xb] sm:$0x1]
        %v1968 = vpack.c.bf16 %v1960, %v1959
        %v1969 = vpack.c.bf16 %v1961, %v1961
        %v1970 = vperm.slane %v1967, 0
        %v1975 = vunpack.c.l.b16 %v1963
        %v1976 = vunpack.c.l.b16 %v1964
        %v1977 = vunpack.c.l.b16 %v1965
        %v1978 = vunpack.c.l.b16 %v1966
        %v1979 = vpack.c.b16 %v1976, %v1975
        %v1980 = vpack.c.b16 %v1978, %v1977
        %v1984 = vsel %vm507, %v1968, 0
        %v1987 = vsel %vm507, %v1969, 0
        %1989 = vmatpush.bf16.msra.mxu0 0
        %1990 = vmatpush.bf16.msra.mxu0 0
        %1991 = vmatpush.bf16.msra.mxu0 0
        %1992 = vmatpush.bf16.msra.mxu0 0
        %1993 = vmatpush.bf16.msra.mxu0 0
        %1994 = vmatpush.bf16.msra.mxu0 0
        %1995 = vmatpush.bf16.msra.mxu0 %v1980
        %1996 = vmatpush.bf16.msra.mxu0 %v1979
        %1997 = vmatmul.bf16.gmra.mxu0 %v1984
        %v1998 = vpop.f32.mrf.mxu0
        %v1999 = vadd.f32 %v1970, %v1998
        %v2000 = vpop.f32.mrf.mxu0
        %v2001 = vadd.f32 %v1970, %v2000
        %2002 = vmatmul.bf16.gmra.mxu0 %v1987
        %v2003 = vpop.f32.mrf.mxu0
        %v2004 = vadd.f32 %v1970, %v2003
        %v2005 = vpop.f32.mrf.mxu0
        %2006 = vdwg.mxu0
        %v2007 = vadd.f32 %v1443, %v1999
        %v2008 = vadd.f32 %v1444, %v2001
        %v2009 = vadd.f32 %v1445, %v2004
        %v2010 = vld [vmem:[%s8 + $0xe] sm:$0x1]
        %v2011 = vld [vmem:[%s8 + $0xf] sm:$0x1]
        %v2012 = vsel %vm507, %v2007, 0.0
        %2013 = vadd.xlane.f32.xlu0 %v2012
        %v2014 = vpop.xlane.xlu0 %2013
        %v2015 = vsel %vm507, %v2008, 0.0
        %2016 = vadd.xlane.f32.xlu0 %v2015
        %v2017 = vpop.xlane.xlu0 %2016
        %v2018 = vsel %vm1125, %v2009, 0.0
        %2019 = vadd.xlane.f32.xlu0 %v2018
        %v2020 = vpop.xlane.xlu0 %2019
        %v2021 = vmul.f32 %v2014, %v1135
        %v2022 = vmul.f32 %v2017, %v1135
        %v2023 = vmul.f32 %v2020, %v1135
        %v2024 = vsub.f32 %v2007, %v2021
        %v2025 = vsub.f32 %v2008, %v2022
        %v2026 = vsub.f32 %v2009, %v2023
        %v2027 = vmul.f32 %v2024, %v2024
        %v2028 = vmul.f32 %v2025, %v2025
        %v2029 = vmul.f32 %v2026, %v2026
        %v2030 = vsel %vm507, %v2027, 0.0
        %2031 = vadd.xlane.f32.xlu0 %v2030
        %v2032 = vpop.xlane.xlu0 %2031
        %v2033 = vsel %vm507, %v2028, 0.0
        %2034 = vadd.xlane.f32.xlu0 %v2033
        %v2035 = vpop.xlane.xlu0 %2034
        %v2036 = vsel %vm1125, %v2029, 0.0
        %2037 = vadd.xlane.f32.xlu0 %v2036
        %v2038 = vpop.xlane.xlu0 %2037
        %v2039 = vmul.f32 %v2032, %v1135
        %v2040 = vmul.f32 %v2035, %v1135
        %v2041 = vmul.f32 %v2038, %v1135
        %v2042 = vadd.f32 %v2039, 1e-05
        %v2043 = vadd.f32 %v2040, 1e-05
        %v2044 = vadd.f32 %v2041, 1e-05
        %v2045 = vrsqrt.pop %v2042
        %v2046 = vmul.f32 %v2045, %v2042
        %v2047 = vmul.f32 %v2046, %v2045
        %v2048 = vmul.f32 0.5, %v2047
        %v2049 = vsub.f32 1.5, %v2048
        %v2050 = vmul.f32 %v2045, %v2049
        %vm2051 = vweird.f32 %v2042
        %vm2052 = vweird.f32 %v2045
        %vm2053 = vmor %vm2051, %vm2052
        %v2054 = vsel %vm2053, %v2045, %v2050
        %v2055 = vrsqrt.pop %v2043
        %v2056 = vmul.f32 %v2055, %v2043
        %v2057 = vmul.f32 %v2056, %v2055
        %v2058 = vmul.f32 0.5, %v2057
        %v2059 = vsub.f32 1.5, %v2058
        %v2060 = vmul.f32 %v2055, %v2059
        %vm2061 = vweird.f32 %v2043
        %vm2062 = vweird.f32 %v2055
        %vm2063 = vmor %vm2061, %vm2062
        %v2064 = vsel %vm2063, %v2055, %v2060
        %v2065 = vrsqrt.pop %v2044
        %v2066 = vmul.f32 %v2065, %v2044
        %v2067 = vmul.f32 %v2066, %v2065
        %v2068 = vmul.f32 0.5, %v2067
        %v2069 = vsub.f32 1.5, %v2068
        %v2070 = vmul.f32 %v2065, %v2069
        %vm2071 = vweird.f32 %v2044
        %vm2072 = vweird.f32 %v2065
        %vm2073 = vmor %vm2071, %vm2072
        %v2074 = vsel %vm2073, %v2065, %v2070
        %v2075 = vmul.f32 %v2024, %v2054
        %v2076 = vmul.f32 %v2025, %v2064
        %v2077 = vmul.f32 %v2026, %v2074
        %v2078 = vperm.slane %v2010, 0
        %v2079 = vmul.f32 %v2075, %v2078
        %v2080 = vmul.f32 %v2076, %v2078
        %v2081 = vmul.f32 %v2077, %v2078
        %v2082 = vperm.slane %v2011, 0
        %v2083 = vadd.f32 %v2079, %v2082
        %v2084 = vadd.f32 %v2080, %v2082
        %v2085 = vadd.f32 %v2081, %v2082
        %s2086 = scalar_lea.vmem %s5, 16
        %v2087 = vld [vmem:[%s2086] sm:$0xf]
        %v2088 = vld [vmem:[%s2086 + $0x4] sm:$0xf]
        %v2089 = vld [vmem:[%s2086 + $0x8] sm:$0xf]
        %v2090 = vld [vmem:[%s2086 + $0xc] sm:$0xf]
        %v2091 = vld [vmem:[%s8 + $0xc] sm:$0x1]
        %v2092 = vpack.c.bf16 %v2084, %v2083
        %v2093 = vpack.c.bf16 %v2085, %v2085
        %v2094 = vperm.slane %v2091, 0
        %v2099 = vunpack.c.l.b16 %v2087
        %v2100 = vunpack.c.l.b16 %v2088
        %v2101 = vunpack.c.l.b16 %v2089
        %v2102 = vunpack.c.l.b16 %v2090
        %v2103 = vpack.c.b16 %v2100, %v2099
        %v2104 = vpack.c.b16 %v2102, %v2101
        %v2108 = vsel %vm507, %v2092, 0
        %v2111 = vsel %vm507, %v2093, 0
        %2113 = vmatpush.bf16.msra.mxu0 0
        %2114 = vmatpush.bf16.msra.mxu0 0
        %2115 = vmatpush.bf16.msra.mxu0 0
        %2116 = vmatpush.bf16.msra.mxu0 0
        %2117 = vmatpush.bf16.msra.mxu0 0
        %2118 = vmatpush.bf16.msra.mxu0 0
        %2119 = vmatpush.bf16.msra.mxu0 %v2104
        %2120 = vmatpush.bf16.msra.mxu0 %v2103
        %2121 = vmatmul.bf16.gmra.mxu0 %v2108
        %v2122 = vpop.f32.mrf.mxu0
        %v2123 = vadd.f32 %v2094, %v2122
        %v2124 = vpop.f32.mrf.mxu0
        %v2125 = vadd.f32 %v2094, %v2124
        %2126 = vmatmul.bf16.gmra.mxu0 %v2111
        %v2127 = vpop.f32.mrf.mxu0
        %v2128 = vadd.f32 %v2094, %v2127
        %v2129 = vpop.f32.mrf.mxu0
        %2130 = vdwg.mxu0
        %v2131 = vmax.f32 %v2123, 0.0
        %v2132 = vmax.f32 %v2125, 0.0
        %v2133 = vmax.f32 %v2128, 0.0
        %s2134 = scalar_lea.vmem %s6, 32
        %v2135 = vld [vmem:[%s2134] sm:$0xf]
        %v2136 = vld [vmem:[%s2134 + $0x4] sm:$0xf]
        %v2137 = vld [vmem:[%s2134 + $0x8] sm:$0xf]
        %v2138 = vld [vmem:[%s2134 + $0xc] sm:$0xf]
        %v2139 = vld [vmem:[%s2134 + $0x10] sm:$0xf]
        %v2140 = vld [vmem:[%s2134 + $0x14] sm:$0xf]
        %v2141 = vld [vmem:[%s2134 + $0x18] sm:$0xf]
        %v2142 = vld [vmem:[%s2134 + $0x1c] sm:$0xf]
        %v2143 = vld [vmem:[%s8 + $0xd] sm:$0x1]
        %v2144 = vpack.c.bf16 %v2132, %v2131
        %v2145 = vpack.c.bf16 %v2133, %v2133
        %v2146 = vperm.slane %v2143, 0
        %v2155 = vunpack.c.l.b16 %v2135
        %v2156 = vunpack.c.l.b16 %v2136
        %v2157 = vunpack.c.l.b16 %v2137
        %v2158 = vunpack.c.l.b16 %v2138
        %v2159 = vunpack.c.l.b16 %v2139
        %v2160 = vunpack.c.l.b16 %v2140
        %v2161 = vunpack.c.l.b16 %v2141
        %v2162 = vunpack.c.l.b16 %v2142
        %v2163 = vpack.c.b16 %v2156, %v2155
        %v2164 = vpack.c.b16 %v2158, %v2157
        %v2165 = vpack.c.b16 %v2160, %v2159
        %v2166 = vpack.c.b16 %v2162, %v2161
        %v2172 = vsel %vm1284, %v2144, 0
        %v2175 = vsel %vm1284, %v2145, 0
        %2177 = vmatpush.bf16.msra.mxu0 0
        %2178 = vmatpush.bf16.msra.mxu0 0
        %2179 = vmatpush.bf16.msra.mxu0 0
        %2180 = vmatpush.bf16.msra.mxu0 0
        %2181 = vmatpush.bf16.msra.mxu0 %v2166
        %2182 = vmatpush.bf16.msra.mxu0 %v2165
        %2183 = vmatpush.bf16.msra.mxu0 %v2164
        %2184 = vmatpush.bf16.msra.mxu0 %v2163
        %2185 = vmatmul.bf16.gmra.mxu0 %v2172
        %v2186 = vpop.f32.mrf.mxu0
        %v2187 = vadd.f32 %v2146, %v2186
        %v2188 = vpop.f32.mrf.mxu0
        %v2189 = vadd.f32 %v2146, %v2188
        %2190 = vmatmul.bf16.gmra.mxu0 %v2175
        %v2191 = vpop.f32.mrf.mxu0
        %v2192 = vadd.f32 %v2146, %v2191
        %v2193 = vpop.f32.mrf.mxu0
        %2194 = vdwg.mxu0
        %v2195 = vadd.f32 %v2083, %v2187
        %v2196 = vadd.f32 %v2084, %v2189
        %v2197 = vadd.f32 %v2085, %v2192
        %v2198 = vld [vmem:[%s8 + $0x10] sm:$0x1]
        %v2199 = vld [vmem:[%s8 + $0x11] sm:$0x1]
        %v2200 = vsel %vm507, %v2195, 0.0
        %2201 = vadd.xlane.f32.xlu0 %v2200
        %v2202 = vpop.xlane.xlu0 %2201
        %v2203 = vsel %vm507, %v2196, 0.0
        %2204 = vadd.xlane.f32.xlu0 %v2203
        %v2205 = vpop.xlane.xlu0 %2204
        %v2206 = vsel %vm1125, %v2197, 0.0
        %2207 = vadd.xlane.f32.xlu0 %v2206
        %v2208 = vpop.xlane.xlu0 %2207
        %v2209 = vmul.f32 %v2202, %v1135
        %v2210 = vmul.f32 %v2205, %v1135
        %v2211 = vmul.f32 %v2208, %v1135
        %v2212 = vsub.f32 %v2195, %v2209
        %v2213 = vsub.f32 %v2196, %v2210
        %v2214 = vsub.f32 %v2197, %v2211
        %v2215 = vmul.f32 %v2212, %v2212
        %v2216 = vmul.f32 %v2213, %v2213
        %v2217 = vmul.f32 %v2214, %v2214
        %v2218 = vsel %vm507, %v2215, 0.0
        %2219 = vadd.xlane.f32.xlu0 %v2218
        %v2220 = vpop.xlane.xlu0 %2219
        %v2221 = vsel %vm507, %v2216, 0.0
        %2222 = vadd.xlane.f32.xlu0 %v2221
        %v2223 = vpop.xlane.xlu0 %2222
        %v2224 = vsel %vm1125, %v2217, 0.0
        %2225 = vadd.xlane.f32.xlu0 %v2224
        %v2226 = vpop.xlane.xlu0 %2225
        %v2227 = vmul.f32 %v2220, %v1135
        %v2228 = vmul.f32 %v2223, %v1135
        %v2229 = vmul.f32 %v2226, %v1135
        %v2230 = vadd.f32 %v2227, 1e-05
        %v2231 = vadd.f32 %v2228, 1e-05
        %v2232 = vadd.f32 %v2229, 1e-05
        %v2233 = vrsqrt.pop %v2230
        %v2234 = vmul.f32 %v2233, %v2230
        %v2235 = vmul.f32 %v2234, %v2233
        %v2236 = vmul.f32 0.5, %v2235
        %v2237 = vsub.f32 1.5, %v2236
        %v2238 = vmul.f32 %v2233, %v2237
        %vm2239 = vweird.f32 %v2230
        %vm2240 = vweird.f32 %v2233
        %vm2241 = vmor %vm2239, %vm2240
        %v2242 = vsel %vm2241, %v2233, %v2238
        %v2243 = vrsqrt.pop %v2231
        %v2244 = vmul.f32 %v2243, %v2231
        %v2245 = vmul.f32 %v2244, %v2243
        %v2246 = vmul.f32 0.5, %v2245
        %v2247 = vsub.f32 1.5, %v2246
        %v2248 = vmul.f32 %v2243, %v2247
        %vm2249 = vweird.f32 %v2231
        %vm2250 = vweird.f32 %v2243
        %vm2251 = vmor %vm2249, %vm2250
        %v2252 = vsel %vm2251, %v2243, %v2248
        %v2253 = vrsqrt.pop %v2232
        %v2254 = vmul.f32 %v2253, %v2232
        %v2255 = vmul.f32 %v2254, %v2253
        %v2256 = vmul.f32 0.5, %v2255
        %v2257 = vsub.f32 1.5, %v2256
        %v2258 = vmul.f32 %v2253, %v2257
        %vm2259 = vweird.f32 %v2232
        %vm2260 = vweird.f32 %v2253
        %vm2261 = vmor %vm2259, %vm2260
        %v2262 = vsel %vm2261, %v2253, %v2258
        %v2263 = vmul.f32 %v2212, %v2242
        %v2264 = vmul.f32 %v2213, %v2252
        %v2265 = vmul.f32 %v2214, %v2262
        %v2266 = vperm.slane %v2198, 0
        %v2267 = vmul.f32 %v2263, %v2266
        %v2268 = vmul.f32 %v2264, %v2266
        %v2269 = vmul.f32 %v2265, %v2266
        %v2270 = vperm.slane %v2199, 0
        %v2271 = vadd.f32 %v2267, %v2270
        %v2272 = vadd.f32 %v2268, %v2270
        %v2273 = vadd.f32 %v2269, %v2270
        %s2274 = scalar_lea.vmem %s419, 48 [#allocation3]
        %v2275 = vld [vmem:[%s2274] sm:$0xf]
        %v2276 = vld [vmem:[%s2274 + $0x4] sm:$0xf]
        %v2277 = vld [vmem:[%s2274 + $0x8] sm:$0x1]
        %s2278 = scalar_lea.vmem %s2, 32
        %v2279 = vld [vmem:[%s2278] sm:$0xf]
        %v2280 = vld [vmem:[%s2278 + $0x4] sm:$0xf]
        %v2281 = vld [vmem:[%s2278 + $0x8] sm:$0xf]
        %v2282 = vld [vmem:[%s2278 + $0xc] sm:$0xf]
        %v2283 = vld [vmem:[%s8 + $0x12] sm:$0x1]
        %v2284 = vperm.slane %v2283, 0
        %v2288 = vunpack.c.l.b16 %v2275
        %v2289 = vunpack.c.l.b16 %v2276
        %v2290 = vunpack.c.l.b16 %v2277
        %v2291 = vpack.c.b16 %v2289, %v2288
        %v2292 = vpack.c.b16 %v2290, %v2290
        %v2297 = vunpack.c.l.b16 %v2279
        %v2298 = vunpack.c.l.b16 %v2280
        %v2299 = vunpack.c.l.b16 %v2281
        %v2300 = vunpack.c.l.b16 %v2282
        %v2301 = vpack.c.b16 %v2298, %v2297
        %v2302 = vpack.c.b16 %v2300, %v2299
        %v2306 = vsel %vm507, %v2291, 0
        %v2309 = vsel %vm507, %v2292, 0
        %2311 = vmatpush.bf16.msra.mxu0 0
        %2312 = vmatpush.bf16.msra.mxu0 0
        %2313 = vmatpush.bf16.msra.mxu0 0
        %2314 = vmatpush.bf16.msra.mxu0 0
        %2315 = vmatpush.bf16.msra.mxu0 0
        %2316 = vmatpush.bf16.msra.mxu0 0
        %2317 = vmatpush.bf16.msra.mxu0 %v2302
        %2318 = vmatpush.bf16.msra.mxu0 %v2301
        %2319 = vmatmul.bf16.gmra.mxu0 %v2306
        %v2320 = vpop.f32.mrf.mxu0
        %v2321 = vadd.f32 %v2284, %v2320
        %v2322 = vpop.f32.mrf.mxu0
        %v2323 = vadd.f32 %v2284, %v2322
        %2324 = vmatmul.bf16.gmra.mxu0 %v2309
        %v2325 = vpop.f32.mrf.mxu0
        %v2326 = vadd.f32 %v2284, %v2325
        %v2327 = vpop.f32.mrf.mxu0
        %2328 = vdwg.mxu0
        %v2329 = vadd.f32 %v2271, %v2321
        %v2330 = vadd.f32 %v2272, %v2323
        %v2331 = vadd.f32 %v2273, %v2326
        %s2332 = scalar_lea.vmem %s3, 32
        %v2333 = vld [vmem:[%s2332] sm:$0xf]
        %v2334 = vld [vmem:[%s2332 + $0x4] sm:$0xf]
        %v2335 = vld [vmem:[%s2332 + $0x8] sm:$0xf]
        %v2336 = vld [vmem:[%s2332 + $0xc] sm:$0xf]
        %v2337 = vld [vmem:[%s8 + $0x13] sm:$0x1]
        %v2338 = vpack.c.bf16 %v2330, %v2329
        %v2339 = vpack.c.bf16 %v2331, %v2331
        %v2340 = vperm.slane %v2337, 0
        %v2345 = vunpack.c.l.b16 %v2333
        %v2346 = vunpack.c.l.b16 %v2334
        %v2347 = vunpack.c.l.b16 %v2335
        %v2348 = vunpack.c.l.b16 %v2336
        %v2349 = vpack.c.b16 %v2346, %v2345
        %v2350 = vpack.c.b16 %v2348, %v2347
        %v2354 = vsel %vm507, %v2338, 0
        %v2357 = vsel %vm507, %v2339, 0
        %2359 = vmatpush.bf16.msra.mxu0 0
        %2360 = vmatpush.bf16.msra.mxu0 0
        %2361 = vmatpush.bf16.msra.mxu0 0
        %2362 = vmatpush.bf16.msra.mxu0 0
        %2363 = vmatpush.bf16.msra.mxu0 0
        %2364 = vmatpush.bf16.msra.mxu0 0
        %2365 = vmatpush.bf16.msra.mxu0 %v2350
        %2366 = vmatpush.bf16.msra.mxu0 %v2349
        %2367 = vmatmul.bf16.gmra.mxu0 %v2354
        %v2368 = vpop.f32.mrf.mxu0
        %v2369 = vadd.f32 %v2340, %v2368
        %v2370 = vpop.f32.mrf.mxu0
        %v2371 = vadd.f32 %v2340, %v2370
        %2372 = vmatmul.bf16.gmra.mxu0 %v2357
        %v2373 = vpop.f32.mrf.mxu0
        %v2374 = vadd.f32 %v2340, %v2373
        %v2375 = vpop.f32.mrf.mxu0
        %2376 = vdwg.mxu0
        %v2377 = vpack.c.bf16 %v2371, %v2369
        %v2378 = vpack.c.bf16 %v2374, %v2374
        %2381 = vrot.lane.b32.xlu0 %v2377, 96
        %v2382 = vpop.permute.xlu0 %2381
        %2383 = vrot.lane.b32.xlu0 %v2378, 96
        %v2384 = vpop.permute.xlu0 %2383
        %v2386 = vsel %vm594, %v2377, 0
        %v2389 = vsel %vm594, %v2378, 0
        %v2392 = vsel %vm594, %v2382, 0
        %v2395 = vsel %vm594, %v2384, 0
        %2397 = vmatpush.bf16.xpose.msra.mxu0 0
        %2398 = vmatpush.bf16.xpose.msra.mxu0 0
        %2399 = vmatpush.bf16.xpose.msra.mxu0 0
        %2400 = vmatpush.bf16.xpose.msra.mxu0 0
        %2401 = vmatpush.bf16.xpose.msra.mxu0 0
        %2402 = vmatpush.bf16.xpose.msra.mxu0 0
        %2403 = vmatpush.bf16.xpose.msra.mxu0 %v2395
        %2404 = vmatpush.bf16.xpose.msra.mxu0 %v2392
        %2405 = vmatmul.bf16.gmra.mxu0 %v2386
        %v2406 = vpop.f32.mrf.mxu0
        %v2407 = vadd.f32 0.0, %v2406
        %v2408 = vpop.f32.mrf.mxu0
        %v2409 = vadd.f32 0.0, %v2408
        %2410 = vmatmul.bf16.gmra.mxu0 %v2389
        %v2411 = vpop.f32.mrf.mxu0
        %v2412 = vadd.f32 0.0, %v2411
        %v2413 = vpop.f32.mrf.mxu0
        %2414 = vdwg.mxu0
        %v2415 = vsel %vm625, %v2407, -inf
        %2416 = vmax.xlane.f32.xlu0 %v2415
        %v2417 = vpop.xlane.xlu0 %2416
        %v2418 = vsel %vm625, %v2409, -inf
        %2419 = vmax.xlane.f32.xlu0 %v2418
        %v2420 = vpop.xlane.xlu0 %2419
        %v2421 = vsel %vm632, %v2412, -inf
        %2422 = vmax.xlane.f32.xlu0 %v2421
        %v2423 = vpop.xlane.xlu0 %2422
        %v2424 = vsub.f32 %v2407, %v2417
        %v2425 = vsub.f32 %v2409, %v2420
        %v2426 = vsub.f32 %v2412, %v2423
        %v2427 = vmul.f32 %v2424, 1.442695
        %v2428 = vpow.pop %v2427
        %v2429 = vmul.f32 %v2425, 1.442695
        %v2430 = vpow.pop %v2429
        %v2431 = vmul.f32 %v2426, 1.442695
        %v2432 = vpow.pop %v2431
        %v2433 = vsel %vm625, %v2428, 0.0
        %2434 = vadd.xlane.f32.xlu0 %v2433
        %v2435 = vpop.xlane.xlu0 %2434
        %v2436 = vsel %vm625, %v2430, 0.0
        %2437 = vadd.xlane.f32.xlu0 %v2436
        %v2438 = vpop.xlane.xlu0 %2437
        %v2439 = vsel %vm632, %v2432, 0.0
        %2440 = vadd.xlane.f32.xlu0 %v2439
        %v2441 = vpop.xlane.xlu0 %2440
        %v2442 = vrcp.pop %v2435
        %v2443 = vrcp.pop %v2438
        %v2444 = vrcp.pop %v2441
        %v2445 = vmul.f32 %v2428, %v2442
        %v2446 = vmul.f32 %v2430, %v2443
        %v2447 = vmul.f32 %v2432, %v2444
        %v2448 = vpack.c.bf16 %v2446, %v2445
        %v2449 = vpack.c.bf16 %v2447, %v2447
        %2450 = vrot.lane.b32.xlu0 %v2377, 64
        %v2451 = vpop.permute.xlu0 %2450
        %2452 = vrot.lane.b32.xlu0 %v2378, 64
        %v2453 = vpop.permute.xlu0 %2452
        %v2456 = vsel %vm625, %v2448, 0
        %v2459 = vsel %vm625, %v2449, 0
        %v2462 = vand.u32 %v2453, %v675
        %2464 = vmatpush.bf16.msra.mxu0 0
        %2465 = vmatpush.bf16.msra.mxu0 0
        %2466 = vmatpush.bf16.msra.mxu0 0
        %2467 = vmatpush.bf16.msra.mxu0 0
        %2468 = vmatpush.bf16.msra.mxu0 0
        %2469 = vmatpush.bf16.msra.mxu0 0
        %2470 = vmatpush.bf16.msra.mxu0 %v2462
        %2471 = vmatpush.bf16.msra.mxu0 %v2451
        %2472 = vmatmul.bf16.gmra.mxu0 %v2456
        %v2473 = vpop.f32.mrf.mxu0
        %v2474 = vadd.f32 0.0, %v2473
        %v2475 = vpop.f32.mrf.mxu0
        %v2476 = vadd.f32 0.0, %v2475
        %2477 = vmatmul.bf16.gmra.mxu0 %v2459
        %v2478 = vpop.f32.mrf.mxu0
        %v2479 = vadd.f32 0.0, %v2478
        %v2480 = vpop.f32.mrf.mxu0
        %2481 = vdwg.mxu0
        %2482 = vst.msk [vmem:[#allocation2] sm:$0xff] %vm594, %v2474
        %2483 = vst.msk [vmem:[#allocation2 + $0x8] sm:$0xff] %vm594, %v2476
        %2484 = vst.msk [vmem:[#allocation2 + $0x10] sm:$0x1] %vm699, %v2479
        %2485 = vrot.lane.b32.xlu0 %v2377, 120
        %v2486 = vpop.permute.xlu0 %2485
        %2487 = vrot.lane.b32.xlu0 %v2378, 120
        %v2488 = vpop.permute.xlu0 %2487
        %2489 = vrot.lane.b32.xlu0 %v2377, 88
        %v2490 = vpop.permute.xlu0 %2489
        %2491 = vrot.lane.b32.xlu0 %v2378, 88
        %v2492 = vpop.permute.xlu0 %2491
        %v2494 = vsel %vm594, %v2486, 0
        %v2497 = vsel %vm594, %v2488, 0
        %v2500 = vsel %vm594, %v2490, 0
        %v2503 = vsel %vm594, %v2492, 0
        %2505 = vmatpush.bf16.xpose.msra.mxu0 0
        %2506 = vmatpush.bf16.xpose.msra.mxu0 0
        %2507 = vmatpush.bf16.xpose.msra.mxu0 0
        %2508 = vmatpush.bf16.xpose.msra.mxu0 0
        %2509 = vmatpush.bf16.xpose.msra.mxu0 0
        %2510 = vmatpush.bf16.xpose.msra.mxu0 0
        %2511 = vmatpush.bf16.xpose.msra.mxu0 %v2503
        %2512 = vmatpush.bf16.xpose.msra.mxu0 %v2500
        %2513 = vmatmul.bf16.gmra.mxu0 %v2494
        %v2514 = vpop.f32.mrf.mxu0
        %v2515 = vadd.f32 0.0, %v2514
        %v2516 = vpop.f32.mrf.mxu0
        %v2517 = vadd.f32 0.0, %v2516
        %2518 = vmatmul.bf16.gmra.mxu0 %v2497
        %v2519 = vpop.f32.mrf.mxu0
        %v2520 = vadd.f32 0.0, %v2519
        %v2521 = vpop.f32.mrf.mxu0
        %2522 = vdwg.mxu0
        %v2523 = vsel %vm625, %v2515, -inf
        %2524 = vmax.xlane.f32.xlu0 %v2523
        %v2525 = vpop.xlane.xlu0 %2524
        %v2526 = vsel %vm625, %v2517, -inf
        %2527 = vmax.xlane.f32.xlu0 %v2526
        %v2528 = vpop.xlane.xlu0 %2527
        %v2529 = vsel %vm632, %v2520, -inf
        %2530 = vmax.xlane.f32.xlu0 %v2529
        %v2531 = vpop.xlane.xlu0 %2530
        %v2532 = vsub.f32 %v2515, %v2525
        %v2533 = vsub.f32 %v2517, %v2528
        %v2534 = vsub.f32 %v2520, %v2531
        %v2535 = vmul.f32 %v2532, 1.442695
        %v2536 = vpow.pop %v2535
        %v2537 = vmul.f32 %v2533, 1.442695
        %v2538 = vpow.pop %v2537
        %v2539 = vmul.f32 %v2534, 1.442695
        %v2540 = vpow.pop %v2539
        %v2541 = vsel %vm625, %v2536, 0.0
        %2542 = vadd.xlane.f32.xlu0 %v2541
        %v2543 = vpop.xlane.xlu0 %2542
        %v2544 = vsel %vm625, %v2538, 0.0
        %2545 = vadd.xlane.f32.xlu0 %v2544
        %v2546 = vpop.xlane.xlu0 %2545
        %v2547 = vsel %vm632, %v2540, 0.0
        %2548 = vadd.xlane.f32.xlu0 %v2547
        %v2549 = vpop.xlane.xlu0 %2548
        %v2550 = vrcp.pop %v2543
        %v2551 = vrcp.pop %v2546
        %v2552 = vrcp.pop %v2549
        %v2553 = vmul.f32 %v2536, %v2550
        %v2554 = vmul.f32 %v2538, %v2551
        %v2555 = vmul.f32 %v2540, %v2552
        %v2556 = vpack.c.bf16 %v2554, %v2553
        %v2557 = vpack.c.bf16 %v2555, %v2555
        %2558 = vrot.lane.b32.xlu0 %v2377, 56
        %v2559 = vpop.permute.xlu0 %2558
        %2560 = vrot.lane.b32.xlu0 %v2378, 56
        %v2561 = vpop.permute.xlu0 %2560
        %v2564 = vsel %vm625, %v2556, 0
        %v2567 = vsel %vm625, %v2557, 0
        %v2570 = vand.u32 %v2561, %v675
        %2572 = vmatpush.bf16.msra.mxu0 0
        %2573 = vmatpush.bf16.msra.mxu0 0
        %2574 = vmatpush.bf16.msra.mxu0 0
        %2575 = vmatpush.bf16.msra.mxu0 0
        %2576 = vmatpush.bf16.msra.mxu0 0
        %2577 = vmatpush.bf16.msra.mxu0 0
        %2578 = vmatpush.bf16.msra.mxu0 %v2570
        %2579 = vmatpush.bf16.msra.mxu0 %v2559
        %2580 = vmatmul.bf16.gmra.mxu0 %v2564
        %v2581 = vpop.f32.mrf.mxu0
        %v2582 = vadd.f32 0.0, %v2581
        %v2583 = vpop.f32.mrf.mxu0
        %v2584 = vadd.f32 0.0, %v2583
        %2585 = vmatmul.bf16.gmra.mxu0 %v2567
        %v2586 = vpop.f32.mrf.mxu0
        %v2587 = vadd.f32 0.0, %v2586
        %v2588 = vpop.f32.mrf.mxu0
        %2589 = vdwg.mxu0
        %2593 = vrot.lane.b32.xlu0 %v2582, 8
        %v2594 = vpop.permute.xlu0 %2593
        %2595 = vrot.lane.b32.xlu0 %v2584, 8
        %v2596 = vpop.permute.xlu0 %2595
        %2597 = vrot.lane.b32.xlu0 %v2587, 8
        %v2598 = vpop.permute.xlu0 %2597
        %2602 = vst.msk [vmem:[#allocation2] sm:$0xff] %vm818, %v2594
        %2603 = vst.msk [vmem:[#allocation2 + $0x8] sm:$0xff] %vm818, %v2596
        %2604 = vst.msk [vmem:[#allocation2 + $0x10] sm:$0x1] %vm821, %v2598
        %2605 = vrot.lane.b32.xlu0 %v2377, 112
        %v2606 = vpop.permute.xlu0 %2605
        %2607 = vrot.lane.b32.xlu0 %v2378, 112
        %v2608 = vpop.permute.xlu0 %2607
        %2609 = vrot.lane.b32.xlu0 %v2377, 80
        %v2610 = vpop.permute.xlu0 %2609
        %2611 = vrot.lane.b32.xlu0 %v2378, 80
        %v2612 = vpop.permute.xlu0 %2611
        %v2614 = vsel %vm594, %v2606, 0
        %v2617 = vsel %vm594, %v2608, 0
        %v2620 = vsel %vm594, %v2610, 0
        %v2623 = vsel %vm594, %v2612, 0
        %2625 = vmatpush.bf16.xpose.msra.mxu0 0
        %2626 = vmatpush.bf16.xpose.msra.mxu0 0
        %2627 = vmatpush.bf16.xpose.msra.mxu0 0
        %2628 = vmatpush.bf16.xpose.msra.mxu0 0
        %2629 = vmatpush.bf16.xpose.msra.mxu0 0
        %2630 = vmatpush.bf16.xpose.msra.mxu0 0
        %2631 = vmatpush.bf16.xpose.msra.mxu0 %v2623
        %2632 = vmatpush.bf16.xpose.msra.mxu0 %v2620
        %2633 = vmatmul.bf16.gmra.mxu0 %v2614
        %v2634 = vpop.f32.mrf.mxu0
        %v2635 = vadd.f32 0.0, %v2634
        %v2636 = vpop.f32.mrf.mxu0
        %v2637 = vadd.f32 0.0, %v2636
        %2638 = vmatmul.bf16.gmra.mxu0 %v2617
        %v2639 = vpop.f32.mrf.mxu0
        %v2640 = vadd.f32 0.0, %v2639
        %v2641 = vpop.f32.mrf.mxu0
        %2642 = vdwg.mxu0
        %v2643 = vsel %vm625, %v2635, -inf
        %2644 = vmax.xlane.f32.xlu0 %v2643
        %v2645 = vpop.xlane.xlu0 %2644
        %v2646 = vsel %vm625, %v2637, -inf
        %2647 = vmax.xlane.f32.xlu0 %v2646
        %v2648 = vpop.xlane.xlu0 %2647
        %v2649 = vsel %vm632, %v2640, -inf
        %2650 = vmax.xlane.f32.xlu0 %v2649
        %v2651 = vpop.xlane.xlu0 %2650
        %v2652 = vsub.f32 %v2635, %v2645
        %v2653 = vsub.f32 %v2637, %v2648
        %v2654 = vsub.f32 %v2640, %v2651
        %v2655 = vmul.f32 %v2652, 1.442695
        %v2656 = vpow.pop %v2655
        %v2657 = vmul.f32 %v2653, 1.442695
        %v2658 = vpow.pop %v2657
        %v2659 = vmul.f32 %v2654, 1.442695
        %v2660 = vpow.pop %v2659
        %v2661 = vsel %vm625, %v2656, 0.0
        %2662 = vadd.xlane.f32.xlu0 %v2661
        %v2663 = vpop.xlane.xlu0 %2662
        %v2664 = vsel %vm625, %v2658, 0.0
        %2665 = vadd.xlane.f32.xlu0 %v2664
        %v2666 = vpop.xlane.xlu0 %2665
        %v2667 = vsel %vm632, %v2660, 0.0
        %2668 = vadd.xlane.f32.xlu0 %v2667
        %v2669 = vpop.xlane.xlu0 %2668
        %v2670 = vrcp.pop %v2663
        %v2671 = vrcp.pop %v2666
        %v2672 = vrcp.pop %v2669
        %v2673 = vmul.f32 %v2656, %v2670
        %v2674 = vmul.f32 %v2658, %v2671
        %v2675 = vmul.f32 %v2660, %v2672
        %v2676 = vpack.c.bf16 %v2674, %v2673
        %v2677 = vpack.c.bf16 %v2675, %v2675
        %2678 = vrot.lane.b32.xlu0 %v2377, 48
        %v2679 = vpop.permute.xlu0 %2678
        %2680 = vrot.lane.b32.xlu0 %v2378, 48
        %v2681 = vpop.permute.xlu0 %2680
        %v2684 = vsel %vm625, %v2676, 0
        %v2687 = vsel %vm625, %v2677, 0
        %v2690 = vand.u32 %v2681, %v675
        %2692 = vmatpush.bf16.msra.mxu0 0
        %2693 = vmatpush.bf16.msra.mxu0 0
        %2694 = vmatpush.bf16.msra.mxu0 0
        %2695 = vmatpush.bf16.msra.mxu0 0
        %2696 = vmatpush.bf16.msra.mxu0 0
        %2697 = vmatpush.bf16.msra.mxu0 0
        %2698 = vmatpush.bf16.msra.mxu0 %v2690
        %2699 = vmatpush.bf16.msra.mxu0 %v2679
        %2700 = vmatmul.bf16.gmra.mxu0 %v2684
        %v2701 = vpop.f32.mrf.mxu0
        %v2702 = vadd.f32 0.0, %v2701
        %v2703 = vpop.f32.mrf.mxu0
        %v2704 = vadd.f32 0.0, %v2703
        %2705 = vmatmul.bf16.gmra.mxu0 %v2687
        %v2706 = vpop.f32.mrf.mxu0
        %v2707 = vadd.f32 0.0, %v2706
        %v2708 = vpop.f32.mrf.mxu0
        %2709 = vdwg.mxu0
        %2713 = vrot.lane.b32.xlu0 %v2702, 16
        %v2714 = vpop.permute.xlu0 %2713
        %2715 = vrot.lane.b32.xlu0 %v2704, 16
        %v2716 = vpop.permute.xlu0 %2715
        %2717 = vrot.lane.b32.xlu0 %v2707, 16
        %v2718 = vpop.permute.xlu0 %2717
        %2722 = vst.msk [vmem:[#allocation2] sm:$0xff] %vm940, %v2714
        %2723 = vst.msk [vmem:[#allocation2 + $0x8] sm:$0xff] %vm940, %v2716
        %2724 = vst.msk [vmem:[#allocation2 + $0x10] sm:$0x1] %vm943, %v2718
        %2725 = vrot.lane.b32.xlu0 %v2377, 104
        %v2726 = vpop.permute.xlu0 %2725
        %2727 = vrot.lane.b32.xlu0 %v2378, 104
        %v2728 = vpop.permute.xlu0 %2727
        %2729 = vrot.lane.b32.xlu0 %v2377, 72
        %v2730 = vpop.permute.xlu0 %2729
        %2731 = vrot.lane.b32.xlu0 %v2378, 72
        %v2732 = vpop.permute.xlu0 %2731
        %v2734 = vsel %vm594, %v2726, 0
        %v2737 = vsel %vm594, %v2728, 0
        %v2740 = vsel %vm594, %v2730, 0
        %v2743 = vsel %vm594, %v2732, 0
        %2745 = vmatpush.bf16.xpose.msra.mxu0 0
        %2746 = vmatpush.bf16.xpose.msra.mxu0 0
        %2747 = vmatpush.bf16.xpose.msra.mxu0 0
        %2748 = vmatpush.bf16.xpose.msra.mxu0 0
        %2749 = vmatpush.bf16.xpose.msra.mxu0 0
        %2750 = vmatpush.bf16.xpose.msra.mxu0 0
        %2751 = vmatpush.bf16.xpose.msra.mxu0 %v2743
        %2752 = vmatpush.bf16.xpose.msra.mxu0 %v2740
        %2753 = vmatmul.bf16.gmra.mxu0 %v2734
        %v2754 = vpop.f32.mrf.mxu0
        %v2755 = vadd.f32 0.0, %v2754
        %v2756 = vpop.f32.mrf.mxu0
        %v2757 = vadd.f32 0.0, %v2756
        %2758 = vmatmul.bf16.gmra.mxu0 %v2737
        %v2759 = vpop.f32.mrf.mxu0
        %v2760 = vadd.f32 0.0, %v2759
        %v2761 = vpop.f32.mrf.mxu0
        %2762 = vdwg.mxu0
        %v2763 = vsel %vm625, %v2755, -inf
        %2764 = vmax.xlane.f32.xlu0 %v2763
        %v2765 = vpop.xlane.xlu0 %2764
        %v2766 = vsel %vm625, %v2757, -inf
        %2767 = vmax.xlane.f32.xlu0 %v2766
        %v2768 = vpop.xlane.xlu0 %2767
        %v2769 = vsel %vm632, %v2760, -inf
        %2770 = vmax.xlane.f32.xlu0 %v2769
        %v2771 = vpop.xlane.xlu0 %2770
        %v2772 = vsub.f32 %v2755, %v2765
        %v2773 = vsub.f32 %v2757, %v2768
        %v2774 = vsub.f32 %v2760, %v2771
        %v2775 = vmul.f32 %v2772, 1.442695
        %v2776 = vpow.pop %v2775
        %v2777 = vmul.f32 %v2773, 1.442695
        %v2778 = vpow.pop %v2777
        %v2779 = vmul.f32 %v2774, 1.442695
        %v2780 = vpow.pop %v2779
        %v2781 = vsel %vm625, %v2776, 0.0
        %2782 = vadd.xlane.f32.xlu0 %v2781
        %v2783 = vpop.xlane.xlu0 %2782
        %v2784 = vsel %vm625, %v2778, 0.0
        %2785 = vadd.xlane.f32.xlu0 %v2784
        %v2786 = vpop.xlane.xlu0 %2785
        %v2787 = vsel %vm632, %v2780, 0.0
        %2788 = vadd.xlane.f32.xlu0 %v2787
        %v2789 = vpop.xlane.xlu0 %2788
        %v2790 = vrcp.pop %v2783
        %v2791 = vrcp.pop %v2786
        %v2792 = vrcp.pop %v2789
        %v2793 = vmul.f32 %v2776, %v2790
        %v2794 = vmul.f32 %v2778, %v2791
        %v2795 = vmul.f32 %v2780, %v2792
        %v2796 = vpack.c.bf16 %v2794, %v2793
        %v2797 = vpack.c.bf16 %v2795, %v2795
        %2798 = vrot.lane.b32.xlu0 %v2377, 40
        %v2799 = vpop.permute.xlu0 %2798
        %2800 = vrot.lane.b32.xlu0 %v2378, 40
        %v2801 = vpop.permute.xlu0 %2800
        %v2804 = vsel %vm625, %v2796, 0
        %v2807 = vsel %vm625, %v2797, 0
        %v2810 = vand.u32 %v2801, %v675
        %2812 = vmatpush.bf16.msra.mxu0 0
        %2813 = vmatpush.bf16.msra.mxu0 0
        %2814 = vmatpush.bf16.msra.mxu0 0
        %2815 = vmatpush.bf16.msra.mxu0 0
        %2816 = vmatpush.bf16.msra.mxu0 0
        %2817 = vmatpush.bf16.msra.mxu0 0
        %2818 = vmatpush.bf16.msra.mxu0 %v2810
        %2819 = vmatpush.bf16.msra.mxu0 %v2799
        %2820 = vmatmul.bf16.gmra.mxu0 %v2804
        %v2821 = vpop.f32.mrf.mxu0
        %v2822 = vadd.f32 0.0, %v2821
        %v2823 = vpop.f32.mrf.mxu0
        %v2824 = vadd.f32 0.0, %v2823
        %2825 = vmatmul.bf16.gmra.mxu0 %v2807
        %v2826 = vpop.f32.mrf.mxu0
        %v2827 = vadd.f32 0.0, %v2826
        %v2828 = vpop.f32.mrf.mxu0
        %2829 = vdwg.mxu0
        %2833 = vrot.lane.b32.xlu0 %v2822, 24
        %v2834 = vpop.permute.xlu0 %2833
        %2835 = vrot.lane.b32.xlu0 %v2824, 24
        %v2836 = vpop.permute.xlu0 %2835
        %2837 = vrot.lane.b32.xlu0 %v2827, 24
        %v2838 = vpop.permute.xlu0 %2837
        %2842 = vst.msk [vmem:[#allocation2] sm:$0xff] %vm1062, %v2834
        %2843 = vst.msk [vmem:[#allocation2 + $0x8] sm:$0xff] %vm1062, %v2836
        %2844 = vst.msk [vmem:[#allocation2 + $0x10] sm:$0x1] %vm1065, %v2838
        %v2845 = vld [vmem:[#allocation2] sm:$0xff]
        %v2846 = vld [vmem:[#allocation2 + $0x8] sm:$0xff]
        %v2847 = vld [vmem:[#allocation2 + $0x10] sm:$0x1]
        %s2848 = scalar_lea.vmem %s4, 32
        %v2849 = vld [vmem:[%s2848] sm:$0xf]
        %v2850 = vld [vmem:[%s2848 + $0x4] sm:$0xf]
        %v2851 = vld [vmem:[%s2848 + $0x8] sm:$0xf]
        %v2852 = vld [vmem:[%s2848 + $0xc] sm:$0xf]
        %v2853 = vld [vmem:[%s8 + $0x14] sm:$0x1]
        %v2854 = vpack.c.bf16 %v2846, %v2845
        %v2855 = vpack.c.bf16 %v2847, %v2847
        %v2856 = vperm.slane %v2853, 0
        %v2861 = vunpack.c.l.b16 %v2849
        %v2862 = vunpack.c.l.b16 %v2850
        %v2863 = vunpack.c.l.b16 %v2851
        %v2864 = vunpack.c.l.b16 %v2852
        %v2865 = vpack.c.b16 %v2862, %v2861
        %v2866 = vpack.c.b16 %v2864, %v2863
        %v2870 = vsel %vm507, %v2854, 0
        %v2873 = vsel %vm507, %v2855, 0
        %2875 = vmatpush.bf16.msra.mxu0 0
        %2876 = vmatpush.bf16.msra.mxu0 0
        %2877 = vmatpush.bf16.msra.mxu0 0
        %2878 = vmatpush.bf16.msra.mxu0 0
        %2879 = vmatpush.bf16.msra.mxu0 0
        %2880 = vmatpush.bf16.msra.mxu0 0
        %2881 = vmatpush.bf16.msra.mxu0 %v2866
        %2882 = vmatpush.bf16.msra.mxu0 %v2865
        %2883 = vmatmul.bf16.gmra.mxu0 %v2870
        %v2884 = vpop.f32.mrf.mxu0
        %v2885 = vadd.f32 %v2856, %v2884
        %v2886 = vpop.f32.mrf.mxu0
        %v2887 = vadd.f32 %v2856, %v2886
        %2888 = vmatmul.bf16.gmra.mxu0 %v2873
        %v2889 = vpop.f32.mrf.mxu0
        %v2890 = vadd.f32 %v2856, %v2889
        %v2891 = vpop.f32.mrf.mxu0
        %2892 = vdwg.mxu0
        %v2893 = vadd.f32 %v2329, %v2885
        %v2894 = vadd.f32 %v2330, %v2887
        %v2895 = vadd.f32 %v2331, %v2890
        %v2896 = vld [vmem:[%s8 + $0x17] sm:$0x1]
        %v2897 = vld [vmem:[%s8 + $0x18] sm:$0x1]
        %v2898 = vsel %vm507, %v2893, 0.0
        %2899 = vadd.xlane.f32.xlu0 %v2898
        %v2900 = vpop.xlane.xlu0 %2899
        %v2901 = vsel %vm507, %v2894, 0.0
        %2902 = vadd.xlane.f32.xlu0 %v2901
        %v2903 = vpop.xlane.xlu0 %2902
        %v2904 = vsel %vm1125, %v2895, 0.0
        %2905 = vadd.xlane.f32.xlu0 %v2904
        %v2906 = vpop.xlane.xlu0 %2905
        %v2907 = vmul.f32 %v2900, %v1135
        %v2908 = vmul.f32 %v2903, %v1135
        %v2909 = vmul.f32 %v2906, %v1135
        %v2910 = vsub.f32 %v2893, %v2907
        %v2911 = vsub.f32 %v2894, %v2908
        %v2912 = vsub.f32 %v2895, %v2909
        %v2913 = vmul.f32 %v2910, %v2910
        %v2914 = vmul.f32 %v2911, %v2911
        %v2915 = vmul.f32 %v2912, %v2912
        %v2916 = vsel %vm507, %v2913, 0.0
        %2917 = vadd.xlane.f32.xlu0 %v2916
        %v2918 = vpop.xlane.xlu0 %2917
        %v2919 = vsel %vm507, %v2914, 0.0
        %2920 = vadd.xlane.f32.xlu0 %v2919
        %v2921 = vpop.xlane.xlu0 %2920
        %v2922 = vsel %vm1125, %v2915, 0.0
        %2923 = vadd.xlane.f32.xlu0 %v2922
        %v2924 = vpop.xlane.xlu0 %2923
        %v2925 = vmul.f32 %v2918, %v1135
        %v2926 = vmul.f32 %v2921, %v1135
        %v2927 = vmul.f32 %v2924, %v1135
        %v2928 = vadd.f32 %v2925, 1e-05
        %v2929 = vadd.f32 %v2926, 1e-05
        %v2930 = vadd.f32 %v2927, 1e-05
        %v2931 = vrsqrt.pop %v2928
        %v2932 = vmul.f32 %v2931, %v2928
        %v2933 = vmul.f32 %v2932, %v2931
        %v2934 = vmul.f32 0.5, %v2933
        %v2935 = vsub.f32 1.5, %v2934
        %v2936 = vmul.f32 %v2931, %v2935
        %vm2937 = vweird.f32 %v2928
        %vm2938 = vweird.f32 %v2931
        %vm2939 = vmor %vm2937, %vm2938
        %v2940 = vsel %vm2939, %v2931, %v2936
        %v2941 = vrsqrt.pop %v2929
        %v2942 = vmul.f32 %v2941, %v2929
        %v2943 = vmul.f32 %v2942, %v2941
        %v2944 = vmul.f32 0.5, %v2943
        %v2945 = vsub.f32 1.5, %v2944
        %v2946 = vmul.f32 %v2941, %v2945
        %vm2947 = vweird.f32 %v2929
        %vm2948 = vweird.f32 %v2941
        %vm2949 = vmor %vm2947, %vm2948
        %v2950 = vsel %vm2949, %v2941, %v2946
        %v2951 = vrsqrt.pop %v2930
        %v2952 = vmul.f32 %v2951, %v2930
        %v2953 = vmul.f32 %v2952, %v2951
        %v2954 = vmul.f32 0.5, %v2953
        %v2955 = vsub.f32 1.5, %v2954
        %v2956 = vmul.f32 %v2951, %v2955
        %vm2957 = vweird.f32 %v2930
        %vm2958 = vweird.f32 %v2951
        %vm2959 = vmor %vm2957, %vm2958
        %v2960 = vsel %vm2959, %v2951, %v2956
        %v2961 = vmul.f32 %v2910, %v2940
        %v2962 = vmul.f32 %v2911, %v2950
        %v2963 = vmul.f32 %v2912, %v2960
        %v2964 = vperm.slane %v2896, 0
        %v2965 = vmul.f32 %v2961, %v2964
        %v2966 = vmul.f32 %v2962, %v2964
        %v2967 = vmul.f32 %v2963, %v2964
        %v2968 = vperm.slane %v2897, 0
        %v2969 = vadd.f32 %v2965, %v2968
        %v2970 = vadd.f32 %v2966, %v2968
        %v2971 = vadd.f32 %v2967, %v2968
        %s2972 = scalar_lea.vmem %s5, 32
        %v2973 = vld [vmem:[%s2972] sm:$0xf]
        %v2974 = vld [vmem:[%s2972 + $0x4] sm:$0xf]
        %v2975 = vld [vmem:[%s2972 + $0x8] sm:$0xf]
        %v2976 = vld [vmem:[%s2972 + $0xc] sm:$0xf]
        %v2977 = vld [vmem:[%s8 + $0x15] sm:$0x1]
        %v2978 = vpack.c.bf16 %v2970, %v2969
        %v2979 = vpack.c.bf16 %v2971, %v2971
        %v2980 = vperm.slane %v2977, 0
        %v2985 = vunpack.c.l.b16 %v2973
        %v2986 = vunpack.c.l.b16 %v2974
        %v2987 = vunpack.c.l.b16 %v2975
        %v2988 = vunpack.c.l.b16 %v2976
        %v2989 = vpack.c.b16 %v2986, %v2985
        %v2990 = vpack.c.b16 %v2988, %v2987
        %v2994 = vsel %vm507, %v2978, 0
        %v2997 = vsel %vm507, %v2979, 0
        %2999 = vmatpush.bf16.msra.mxu0 0
        %3000 = vmatpush.bf16.msra.mxu0 0
        %3001 = vmatpush.bf16.msra.mxu0 0
        %3002 = vmatpush.bf16.msra.mxu0 0
        %3003 = vmatpush.bf16.msra.mxu0 0
        %3004 = vmatpush.bf16.msra.mxu0 0
        %3005 = vmatpush.bf16.msra.mxu0 %v2990
        %3006 = vmatpush.bf16.msra.mxu0 %v2989
        %3007 = vmatmul.bf16.gmra.mxu0 %v2994
        %v3008 = vpop.f32.mrf.mxu0
        %v3009 = vadd.f32 %v2980, %v3008
        %v3010 = vpop.f32.mrf.mxu0
        %v3011 = vadd.f32 %v2980, %v3010
        %3012 = vmatmul.bf16.gmra.mxu0 %v2997
        %v3013 = vpop.f32.mrf.mxu0
        %v3014 = vadd.f32 %v2980, %v3013
        %v3015 = vpop.f32.mrf.mxu0
        %3016 = vdwg.mxu0
        %v3017 = vmax.f32 %v3009, 0.0
        %v3018 = vmax.f32 %v3011, 0.0
        %v3019 = vmax.f32 %v3014, 0.0
        %s3020 = scalar_lea.vmem %s6, 64
        %v3021 = vld [vmem:[%s3020] sm:$0xf]
        %v3022 = vld [vmem:[%s3020 + $0x4] sm:$0xf]
        %v3023 = vld [vmem:[%s3020 + $0x8] sm:$0xf]
        %v3024 = vld [vmem:[%s3020 + $0xc] sm:$0xf]
        %v3025 = vld [vmem:[%s3020 + $0x10] sm:$0xf]
        %v3026 = vld [vmem:[%s3020 + $0x14] sm:$0xf]
        %v3027 = vld [vmem:[%s3020 + $0x18] sm:$0xf]
        %v3028 = vld [vmem:[%s3020 + $0x1c] sm:$0xf]
        %v3029 = vld [vmem:[%s8 + $0x16] sm:$0x1]
        %v3030 = vpack.c.bf16 %v3018, %v3017
        %v3031 = vpack.c.bf16 %v3019, %v3019
        %v3032 = vperm.slane %v3029, 0
        %v3041 = vunpack.c.l.b16 %v3021
        %v3042 = vunpack.c.l.b16 %v3022
        %v3043 = vunpack.c.l.b16 %v3023
        %v3044 = vunpack.c.l.b16 %v3024
        %v3045 = vunpack.c.l.b16 %v3025
        %v3046 = vunpack.c.l.b16 %v3026
        %v3047 = vunpack.c.l.b16 %v3027
        %v3048 = vunpack.c.l.b16 %v3028
        %v3049 = vpack.c.b16 %v3042, %v3041
        %v3050 = vpack.c.b16 %v3044, %v3043
        %v3051 = vpack.c.b16 %v3046, %v3045
        %v3052 = vpack.c.b16 %v3048, %v3047
        %v3058 = vsel %vm1284, %v3030, 0
        %v3061 = vsel %vm1284, %v3031, 0
        %3063 = vmatpush.bf16.msra.mxu0 0
        %3064 = vmatpush.bf16.msra.mxu0 0
        %3065 = vmatpush.bf16.msra.mxu0 0
        %3066 = vmatpush.bf16.msra.mxu0 0
        %3067 = vmatpush.bf16.msra.mxu0 %v3052
        %3068 = vmatpush.bf16.msra.mxu0 %v3051
        %3069 = vmatpush.bf16.msra.mxu0 %v3050
        %3070 = vmatpush.bf16.msra.mxu0 %v3049
        %3071 = vmatmul.bf16.gmra.mxu0 %v3058
        %v3072 = vpop.f32.mrf.mxu0
        %v3073 = vadd.f32 %v3032, %v3072
        %v3074 = vpop.f32.mrf.mxu0
        %v3075 = vadd.f32 %v3032, %v3074
        %3076 = vmatmul.bf16.gmra.mxu0 %v3061
        %v3077 = vpop.f32.mrf.mxu0
        %v3078 = vadd.f32 %v3032, %v3077
        %v3079 = vpop.f32.mrf.mxu0
        %3080 = vdwg.mxu0
        %v3081 = vadd.f32 %v2969, %v3073
        %v3082 = vadd.f32 %v2970, %v3075
        %v3083 = vadd.f32 %v2971, %v3078
        %v3084 = vld [vmem:[%s8 + $0x19] sm:$0x1]
        %v3085 = vld [vmem:[%s8 + $0x1a] sm:$0x1]
        %v3086 = vsel %vm507, %v3081, 0.0
        %3087 = vadd.xlane.f32.xlu0 %v3086
        %v3088 = vpop.xlane.xlu0 %3087
        %v3089 = vsel %vm507, %v3082, 0.0
        %3090 = vadd.xlane.f32.xlu0 %v3089
        %v3091 = vpop.xlane.xlu0 %3090
        %v3092 = vsel %vm1125, %v3083, 0.0
        %3093 = vadd.xlane.f32.xlu0 %v3092
        %v3094 = vpop.xlane.xlu0 %3093
        %v3095 = vmul.f32 %v3088, %v1135
        %v3096 = vmul.f32 %v3091, %v1135
        %v3097 = vmul.f32 %v3094, %v1135
        %v3098 = vsub.f32 %v3081, %v3095
        %v3099 = vsub.f32 %v3082, %v3096
        %v3100 = vsub.f32 %v3083, %v3097
        %v3101 = vmul.f32 %v3098, %v3098
        %v3102 = vmul.f32 %v3099, %v3099
        %v3103 = vmul.f32 %v3100, %v3100
        %v3104 = vsel %vm507, %v3101, 0.0
        %3105 = vadd.xlane.f32.xlu0 %v3104
        %v3106 = vpop.xlane.xlu0 %3105
        %v3107 = vsel %vm507, %v3102, 0.0
        %3108 = vadd.xlane.f32.xlu0 %v3107
        %v3109 = vpop.xlane.xlu0 %3108
        %v3110 = vsel %vm1125, %v3103, 0.0
        %3111 = vadd.xlane.f32.xlu0 %v3110
        %v3112 = vpop.xlane.xlu0 %3111
        %v3113 = vmul.f32 %v3106, %v1135
        %v3114 = vmul.f32 %v3109, %v1135
        %v3115 = vmul.f32 %v3112, %v1135
        %v3116 = vadd.f32 %v3113, 1e-05
        %v3117 = vadd.f32 %v3114, 1e-05
        %v3118 = vadd.f32 %v3115, 1e-05
        %v3119 = vrsqrt.pop %v3116
        %v3120 = vmul.f32 %v3119, %v3116
        %v3121 = vmul.f32 %v3120, %v3119
        %v3122 = vmul.f32 0.5, %v3121
        %v3123 = vsub.f32 1.5, %v3122
        %v3124 = vmul.f32 %v3119, %v3123
        %vm3125 = vweird.f32 %v3116
        %vm3126 = vweird.f32 %v3119
        %vm3127 = vmor %vm3125, %vm3126
        %v3128 = vsel %vm3127, %v3119, %v3124
        %v3129 = vrsqrt.pop %v3117
        %v3130 = vmul.f32 %v3129, %v3117
        %v3131 = vmul.f32 %v3130, %v3129
        %v3132 = vmul.f32 0.5, %v3131
        %v3133 = vsub.f32 1.5, %v3132
        %v3134 = vmul.f32 %v3129, %v3133
        %vm3135 = vweird.f32 %v3117
        %vm3136 = vweird.f32 %v3129
        %vm3137 = vmor %vm3135, %vm3136
        %v3138 = vsel %vm3137, %v3129, %v3134
        %v3139 = vrsqrt.pop %v3118
        %v3140 = vmul.f32 %v3139, %v3118
        %v3141 = vmul.f32 %v3140, %v3139
        %v3142 = vmul.f32 0.5, %v3141
        %v3143 = vsub.f32 1.5, %v3142
        %v3144 = vmul.f32 %v3139, %v3143
        %vm3145 = vweird.f32 %v3118
        %vm3146 = vweird.f32 %v3139
        %vm3147 = vmor %vm3145, %vm3146
        %v3148 = vsel %vm3147, %v3139, %v3144
        %v3149 = vmul.f32 %v3098, %v3128
        %v3150 = vmul.f32 %v3099, %v3138
        %v3151 = vmul.f32 %v3100, %v3148
        %v3152 = vperm.slane %v3084, 0
        %v3153 = vmul.f32 %v3149, %v3152
        %v3154 = vmul.f32 %v3150, %v3152
        %v3155 = vmul.f32 %v3151, %v3152
        %v3156 = vperm.slane %v3085, 0
        %v3157 = vadd.f32 %v3153, %v3156
        %v3158 = vadd.f32 %v3154, %v3156
        %v3159 = vadd.f32 %v3155, %v3156
        %v3160 = vpack.c.bf16 %v3158, %v3157
        %v3161 = vpack.c.bf16 %v3159, %v3159
        %v3162 = vperm.slane %v477, 0
        %v3167 = vunpack.c.l.b16 %v473
        %v3168 = vunpack.c.l.b16 %v474
        %v3169 = vunpack.c.l.b16 %v475
        %v3170 = vunpack.c.l.b16 %v476
        %v3171 = vpack.c.b16 %v3168, %v3167
        %v3172 = vpack.c.b16 %v3170, %v3169
        %v3176 = vsel %vm507, %v3160, 0
        %v3179 = vsel %vm507, %v3161, 0
        %3181 = vmatpush.bf16.msra.mxu0 0
        %3182 = vmatpush.bf16.msra.mxu0 0
        %3183 = vmatpush.bf16.msra.mxu0 0
        %3184 = vmatpush.bf16.msra.mxu0 0
        %3185 = vmatpush.bf16.msra.mxu0 0
        %3186 = vmatpush.bf16.msra.mxu0 0
        %3187 = vmatpush.bf16.msra.mxu0 %v3172
        %3188 = vmatpush.bf16.msra.mxu0 %v3171
        %3189 = vmatmul.bf16.gmra.mxu0 %v3176
        %v3190 = vpop.f32.mrf.mxu0
        %v3191 = vadd.f32 %v3162, %v3190
        %v3192 = vpop.f32.mrf.mxu0
        %v3193 = vadd.f32 %v3162, %v3192
        %3194 = vmatmul.bf16.gmra.mxu0 %v3179
        %v3195 = vpop.f32.mrf.mxu0
        %v3196 = vadd.f32 %v3162, %v3195
        %v3197 = vpop.f32.mrf.mxu0
        %3198 = vdwg.mxu0
        %3199 = vst [vmem:[%s470] sm:$0xff] %v3191
        %3200 = vst [vmem:[%s470 + $0x8] sm:$0xff] %v3193
        %3201 = vst [vmem:[%s470 + $0x10] sm:$0x1] %v3196
        %s3202 = scalar_lea.vmem %s419, 12 [#allocation3]
        %v3203 = vld [vmem:[%s3202] sm:$0xf]
        %v3204 = vld [vmem:[%s3202 + $0x4] sm:$0xf]
        %v3205 = vld [vmem:[%s3202 + $0x8] sm:$0x1]
        %v3206 = vld [vmem:[%s2] sm:$0xf]
        %v3207 = vld [vmem:[%s2 + $0x4] sm:$0xf]
        %v3208 = vld [vmem:[%s2 + $0x8] sm:$0xf]
        %v3209 = vld [vmem:[%s2 + $0xc] sm:$0xf]
        %v3210 = vld [vmem:[%s8] sm:$0x1]
        %v3211 = vperm.slane %v3210, 0
        %v3215 = vunpack.c.l.b16 %v3203
        %v3216 = vunpack.c.l.b16 %v3204
        %v3217 = vunpack.c.l.b16 %v3205
        %v3218 = vpack.c.b16 %v3216, %v3215
        %v3219 = vpack.c.b16 %v3217, %v3217
        %v3224 = vunpack.c.l.b16 %v3206
        %v3225 = vunpack.c.l.b16 %v3207
        %v3226 = vunpack.c.l.b16 %v3208
        %v3227 = vunpack.c.l.b16 %v3209
        %v3228 = vpack.c.b16 %v3225, %v3224
        %v3229 = vpack.c.b16 %v3227, %v3226
        %v3233 = vsel %vm507, %v3218, 0
        %v3236 = vsel %vm507, %v3219, 0
        %3238 = vmatpush.bf16.msra.mxu0 0
        %3239 = vmatpush.bf16.msra.mxu0 0
        %3240 = vmatpush.bf16.msra.mxu0 0
        %3241 = vmatpush.bf16.msra.mxu0 0
        %3242 = vmatpush.bf16.msra.mxu0 0
        %3243 = vmatpush.bf16.msra.mxu0 0
        %3244 = vmatpush.bf16.msra.mxu0 %v3229
        %3245 = vmatpush.bf16.msra.mxu0 %v3228
        %3246 = vmatmul.bf16.gmra.mxu0 %v3233
        %v3247 = vpop.f32.mrf.mxu0
        %v3248 = vadd.f32 %v3211, %v3247
        %v3249 = vpop.f32.mrf.mxu0
        %v3250 = vadd.f32 %v3211, %v3249
        %3251 = vmatmul.bf16.gmra.mxu0 %v3236
        %v3252 = vpop.f32.mrf.mxu0
        %v3253 = vadd.f32 %v3211, %v3252
        %v3254 = vpop.f32.mrf.mxu0
        %3255 = vdwg.mxu0
        %s3256 = scalar_lea.vmem %s463, 2
        %v3257 = vld [vmem:[%s3256] sm:$0x1]
        %v3258 = vperm.slane %v3257, 0
        %v3259 = vmul.f32 %v3248, %v3258
        %v3260 = vmul.f32 %v3250, %v3258
        %v3261 = vmul.f32 %v3253, %v3258
        %v3262 = vld [vmem:[%s3256 + $0x1] sm:$0x1]
        %v3263 = vperm.slane %v3262, 0
        %v3264 = vadd.f32 %v3259, %v3263
        %v3265 = vadd.f32 %v3260, %v3263
        %v3266 = vadd.f32 %v3261, %v3263
        %v3267 = vld [vmem:[%s3] sm:$0xf]
        %v3268 = vld [vmem:[%s3 + $0x4] sm:$0xf]
        %v3269 = vld [vmem:[%s3 + $0x8] sm:$0xf]
        %v3270 = vld [vmem:[%s3 + $0xc] sm:$0xf]
        %v3271 = vld [vmem:[%s8 + $0x1] sm:$0x1]
        %v3272 = vpack.c.bf16 %v3265, %v3264
        %v3273 = vpack.c.bf16 %v3266, %v3266
        %v3274 = vperm.slane %v3271, 0
        %v3279 = vunpack.c.l.b16 %v3267
        %v3280 = vunpack.c.l.b16 %v3268
        %v3281 = vunpack.c.l.b16 %v3269
        %v3282 = vunpack.c.l.b16 %v3270
        %v3283 = vpack.c.b16 %v3280, %v3279
        %v3284 = vpack.c.b16 %v3282, %v3281
        %v3288 = vsel %vm507, %v3272, 0
        %v3291 = vsel %vm507, %v3273, 0
        %3293 = vmatpush.bf16.msra.mxu0 0
        %3294 = vmatpush.bf16.msra.mxu0 0
        %3295 = vmatpush.bf16.msra.mxu0 0
        %3296 = vmatpush.bf16.msra.mxu0 0
        %3297 = vmatpush.bf16.msra.mxu0 0
        %3298 = vmatpush.bf16.msra.mxu0 0
        %3299 = vmatpush.bf16.msra.mxu0 %v3284
        %3300 = vmatpush.bf16.msra.mxu0 %v3283
        %3301 = vmatmul.bf16.gmra.mxu0 %v3288
        %v3302 = vpop.f32.mrf.mxu0
        %v3303 = vadd.f32 %v3274, %v3302
        %v3304 = vpop.f32.mrf.mxu0
        %v3305 = vadd.f32 %v3274, %v3304
        %3306 = vmatmul.bf16.gmra.mxu0 %v3291
        %v3307 = vpop.f32.mrf.mxu0
        %v3308 = vadd.f32 %v3274, %v3307
        %v3309 = vpop.f32.mrf.mxu0
        %3310 = vdwg.mxu0
        %v3311 = vpack.c.bf16 %v3305, %v3303
        %v3312 = vpack.c.bf16 %v3308, %v3308
        %3315 = vrot.lane.b32.xlu0 %v3311, 96
        %v3316 = vpop.permute.xlu0 %3315
        %3317 = vrot.lane.b32.xlu0 %v3312, 96
        %v3318 = vpop.permute.xlu0 %3317
        %v3320 = vsel %vm594, %v3311, 0
        %v3323 = vsel %vm594, %v3312, 0
        %v3326 = vsel %vm594, %v3316, 0
        %v3329 = vsel %vm594, %v3318, 0
        %3331 = vmatpush.bf16.xpose.msra.mxu0 0
        %3332 = vmatpush.bf16.xpose.msra.mxu0 0
        %3333 = vmatpush.bf16.xpose.msra.mxu0 0
        %3334 = vmatpush.bf16.xpose.msra.mxu0 0
        %3335 = vmatpush.bf16.xpose.msra.mxu0 0
        %3336 = vmatpush.bf16.xpose.msra.mxu0 0
        %3337 = vmatpush.bf16.xpose.msra.mxu0 %v3329
        %3338 = vmatpush.bf16.xpose.msra.mxu0 %v3326
        %3339 = vmatmul.bf16.gmra.mxu0 %v3320
        %v3340 = vpop.f32.mrf.mxu0
        %v3341 = vadd.f32 0.0, %v3340
        %v3342 = vpop.f32.mrf.mxu0
        %v3343 = vadd.f32 0.0, %v3342
        %3344 = vmatmul.bf16.gmra.mxu0 %v3323
        %v3345 = vpop.f32.mrf.mxu0
        %v3346 = vadd.f32 0.0, %v3345
        %v3347 = vpop.f32.mrf.mxu0
        %3348 = vdwg.mxu0
        %v3349 = vsel %vm625, %v3341, -inf
        %3350 = vmax.xlane.f32.xlu0 %v3349
        %v3351 = vpop.xlane.xlu0 %3350
        %v3352 = vsel %vm625, %v3343, -inf
        %3353 = vmax.xlane.f32.xlu0 %v3352
        %v3354 = vpop.xlane.xlu0 %3353
        %v3355 = vsel %vm632, %v3346, -inf
        %3356 = vmax.xlane.f32.xlu0 %v3355
        %v3357 = vpop.xlane.xlu0 %3356
        %v3358 = vsub.f32 %v3341, %v3351
        %v3359 = vsub.f32 %v3343, %v3354
        %v3360 = vsub.f32 %v3346, %v3357
        %v3361 = vmul.f32 %v3358, 1.442695
        %v3362 = vpow.pop %v3361
        %v3363 = vmul.f32 %v3359, 1.442695
        %v3364 = vpow.pop %v3363
        %v3365 = vmul.f32 %v3360, 1.442695
        %v3366 = vpow.pop %v3365
        %v3367 = vsel %vm625, %v3362, 0.0
        %3368 = vadd.xlane.f32.xlu0 %v3367
        %v3369 = vpop.xlane.xlu0 %3368
        %v3370 = vsel %vm625, %v3364, 0.0
        %3371 = vadd.xlane.f32.xlu0 %v3370
        %v3372 = vpop.xlane.xlu0 %3371
        %v3373 = vsel %vm632, %v3366, 0.0
        %3374 = vadd.xlane.f32.xlu0 %v3373
        %v3375 = vpop.xlane.xlu0 %3374
        %v3376 = vrcp.pop %v3369
        %v3377 = vrcp.pop %v3372
        %v3378 = vrcp.pop %v3375
        %v3379 = vmul.f32 %v3362, %v3376
        %v3380 = vmul.f32 %v3364, %v3377
        %v3381 = vmul.f32 %v3366, %v3378
        %v3382 = vpack.c.bf16 %v3380, %v3379
        %v3383 = vpack.c.bf16 %v3381, %v3381
        %3384 = vrot.lane.b32.xlu0 %v3311, 64
        %v3385 = vpop.permute.xlu0 %3384
        %3386 = vrot.lane.b32.xlu0 %v3312, 64
        %v3387 = vpop.permute.xlu0 %3386
        %v3390 = vsel %vm625, %v3382, 0
        %v3393 = vsel %vm625, %v3383, 0
        %v3396 = vand.u32 %v3387, %v675
        %3398 = vmatpush.bf16.msra.mxu0 0
        %3399 = vmatpush.bf16.msra.mxu0 0
        %3400 = vmatpush.bf16.msra.mxu0 0
        %3401 = vmatpush.bf16.msra.mxu0 0
        %3402 = vmatpush.bf16.msra.mxu0 0
        %3403 = vmatpush.bf16.msra.mxu0 0
        %3404 = vmatpush.bf16.msra.mxu0 %v3396
        %3405 = vmatpush.bf16.msra.mxu0 %v3385
        %3406 = vmatmul.bf16.gmra.mxu0 %v3390
        %v3407 = vpop.f32.mrf.mxu0
        %v3408 = vadd.f32 0.0, %v3407
        %v3409 = vpop.f32.mrf.mxu0
        %v3410 = vadd.f32 0.0, %v3409
        %3411 = vmatmul.bf16.gmra.mxu0 %v3393
        %v3412 = vpop.f32.mrf.mxu0
        %v3413 = vadd.f32 0.0, %v3412
        %v3414 = vpop.f32.mrf.mxu0
        %3415 = vdwg.mxu0
        %3416 = vst.msk [vmem:[#allocation2] sm:$0xff] %vm594, %v3408
        %3417 = vst.msk [vmem:[#allocation2 + $0x8] sm:$0xff] %vm594, %v3410
        %3418 = vst.msk [vmem:[#allocation2 + $0x10] sm:$0x1] %vm699, %v3413
        %3419 = vrot.lane.b32.xlu0 %v3311, 120
        %v3420 = vpop.permute.xlu0 %3419
        %3421 = vrot.lane.b32.xlu0 %v3312, 120
        %v3422 = vpop.permute.xlu0 %3421
        %3423 = vrot.lane.b32.xlu0 %v3311, 88
        %v3424 = vpop.permute.xlu0 %3423
        %3425 = vrot.lane.b32.xlu0 %v3312, 88
        %v3426 = vpop.permute.xlu0 %3425
        %v3428 = vsel %vm594, %v3420, 0
        %v3431 = vsel %vm594, %v3422, 0
        %v3434 = vsel %vm594, %v3424, 0
        %v3437 = vsel %vm594, %v3426, 0
        %3439 = vmatpush.bf16.xpose.msra.mxu0 0
        %3440 = vmatpush.bf16.xpose.msra.mxu0 0
        %3441 = vmatpush.bf16.xpose.msra.mxu0 0
        %3442 = vmatpush.bf16.xpose.msra.mxu0 0
        %3443 = vmatpush.bf16.xpose.msra.mxu0 0
        %3444 = vmatpush.bf16.xpose.msra.mxu0 0
        %3445 = vmatpush.bf16.xpose.msra.mxu0 %v3437
        %3446 = vmatpush.bf16.xpose.msra.mxu0 %v3434
        %3447 = vmatmul.bf16.gmra.mxu0 %v3428
        %v3448 = vpop.f32.mrf.mxu0
        %v3449 = vadd.f32 0.0, %v3448
        %v3450 = vpop.f32.mrf.mxu0
        %v3451 = vadd.f32 0.0, %v3450
        %3452 = vmatmul.bf16.gmra.mxu0 %v3431
        %v3453 = vpop.f32.mrf.mxu0
        %v3454 = vadd.f32 0.0, %v3453
        %v3455 = vpop.f32.mrf.mxu0
        %3456 = vdwg.mxu0
        %v3457 = vsel %vm625, %v3449, -inf
        %3458 = vmax.xlane.f32.xlu0 %v3457
        %v3459 = vpop.xlane.xlu0 %3458
        %v3460 = vsel %vm625, %v3451, -inf
        %3461 = vmax.xlane.f32.xlu0 %v3460
        %v3462 = vpop.xlane.xlu0 %3461
        %v3463 = vsel %vm632, %v3454, -inf
        %3464 = vmax.xlane.f32.xlu0 %v3463
        %v3465 = vpop.xlane.xlu0 %3464
        %v3466 = vsub.f32 %v3449, %v3459
        %v3467 = vsub.f32 %v3451, %v3462
        %v3468 = vsub.f32 %v3454, %v3465
        %v3469 = vmul.f32 %v3466, 1.442695
        %v3470 = vpow.pop %v3469
        %v3471 = vmul.f32 %v3467, 1.442695
        %v3472 = vpow.pop %v3471
        %v3473 = vmul.f32 %v3468, 1.442695
        %v3474 = vpow.pop %v3473
        %v3475 = vsel %vm625, %v3470, 0.0
        %3476 = vadd.xlane.f32.xlu0 %v3475
        %v3477 = vpop.xlane.xlu0 %3476
        %v3478 = vsel %vm625, %v3472, 0.0
        %3479 = vadd.xlane.f32.xlu0 %v3478
        %v3480 = vpop.xlane.xlu0 %3479
        %v3481 = vsel %vm632, %v3474, 0.0
        %3482 = vadd.xlane.f32.xlu0 %v3481
        %v3483 = vpop.xlane.xlu0 %3482
        %v3484 = vrcp.pop %v3477
        %v3485 = vrcp.pop %v3480
        %v3486 = vrcp.pop %v3483
        %v3487 = vmul.f32 %v3470, %v3484
        %v3488 = vmul.f32 %v3472, %v3485
        %v3489 = vmul.f32 %v3474, %v3486
        %v3490 = vpack.c.bf16 %v3488, %v3487
        %v3491 = vpack.c.bf16 %v3489, %v3489
        %3492 = vrot.lane.b32.xlu0 %v3311, 56
        %v3493 = vpop.permute.xlu0 %3492
        %3494 = vrot.lane.b32.xlu0 %v3312, 56
        %v3495 = vpop.permute.xlu0 %3494
        %v3498 = vsel %vm625, %v3490, 0
        %v3501 = vsel %vm625, %v3491, 0
        %v3504 = vand.u32 %v3495, %v675
        %3506 = vmatpush.bf16.msra.mxu0 0
        %3507 = vmatpush.bf16.msra.mxu0 0
        %3508 = vmatpush.bf16.msra.mxu0 0
        %3509 = vmatpush.bf16.msra.mxu0 0
        %3510 = vmatpush.bf16.msra.mxu0 0
        %3511 = vmatpush.bf16.msra.mxu0 0
        %3512 = vmatpush.bf16.msra.mxu0 %v3504
        %3513 = vmatpush.bf16.msra.mxu0 %v3493
        %3514 = vmatmul.bf16.gmra.mxu0 %v3498
        %v3515 = vpop.f32.mrf.mxu0
        %v3516 = vadd.f32 0.0, %v3515
        %v3517 = vpop.f32.mrf.mxu0
        %v3518 = vadd.f32 0.0, %v3517
        %3519 = vmatmul.bf16.gmra.mxu0 %v3501
        %v3520 = vpop.f32.mrf.mxu0
        %v3521 = vadd.f32 0.0, %v3520
        %v3522 = vpop.f32.mrf.mxu0
        %3523 = vdwg.mxu0
        %3527 = vrot.lane.b32.xlu0 %v3516, 8
        %v3528 = vpop.permute.xlu0 %3527
        %3529 = vrot.lane.b32.xlu0 %v3518, 8
        %v3530 = vpop.permute.xlu0 %3529
        %3531 = vrot.lane.b32.xlu0 %v3521, 8
        %v3532 = vpop.permute.xlu0 %3531
        %3536 = vst.msk [vmem:[#allocation2] sm:$0xff] %vm818, %v3528
        %3537 = vst.msk [vmem:[#allocation2 + $0x8] sm:$0xff] %vm818, %v3530
        %3538 = vst.msk [vmem:[#allocation2 + $0x10] sm:$0x1] %vm821, %v3532
        %3539 = vrot.lane.b32.xlu0 %v3311, 112
        %v3540 = vpop.permute.xlu0 %3539
        %3541 = vrot.lane.b32.xlu0 %v3312, 112
        %v3542 = vpop.permute.xlu0 %3541
        %3543 = vrot.lane.b32.xlu0 %v3311, 80
        %v3544 = vpop.permute.xlu0 %3543
        %3545 = vrot.lane.b32.xlu0 %v3312, 80
        %v3546 = vpop.permute.xlu0 %3545
        %v3548 = vsel %vm594, %v3540, 0
        %v3551 = vsel %vm594, %v3542, 0
        %v3554 = vsel %vm594, %v3544, 0
        %v3557 = vsel %vm594, %v3546, 0
        %3559 = vmatpush.bf16.xpose.msra.mxu0 0
        %3560 = vmatpush.bf16.xpose.msra.mxu0 0
        %3561 = vmatpush.bf16.xpose.msra.mxu0 0
        %3562 = vmatpush.bf16.xpose.msra.mxu0 0
        %3563 = vmatpush.bf16.xpose.msra.mxu0 0
        %3564 = vmatpush.bf16.xpose.msra.mxu0 0
        %3565 = vmatpush.bf16.xpose.msra.mxu0 %v3557
        %3566 = vmatpush.bf16.xpose.msra.mxu0 %v3554
        %3567 = vmatmul.bf16.gmra.mxu0 %v3548
        %v3568 = vpop.f32.mrf.mxu0
        %v3569 = vadd.f32 0.0, %v3568
        %v3570 = vpop.f32.mrf.mxu0
        %v3571 = vadd.f32 0.0, %v3570
        %3572 = vmatmul.bf16.gmra.mxu0 %v3551
        %v3573 = vpop.f32.mrf.mxu0
        %v3574 = vadd.f32 0.0, %v3573
        %v3575 = vpop.f32.mrf.mxu0
        %3576 = vdwg.mxu0
        %v3577 = vsel %vm625, %v3569, -inf
        %3578 = vmax.xlane.f32.xlu0 %v3577
        %v3579 = vpop.xlane.xlu0 %3578
        %v3580 = vsel %vm625, %v3571, -inf
        %3581 = vmax.xlane.f32.xlu0 %v3580
        %v3582 = vpop.xlane.xlu0 %3581
        %v3583 = vsel %vm632, %v3574, -inf
        %3584 = vmax.xlane.f32.xlu0 %v3583
        %v3585 = vpop.xlane.xlu0 %3584
        %v3586 = vsub.f32 %v3569, %v3579
        %v3587 = vsub.f32 %v3571, %v3582
        %v3588 = vsub.f32 %v3574, %v3585
        %v3589 = vmul.f32 %v3586, 1.442695
        %v3590 = vpow.pop %v3589
        %v3591 = vmul.f32 %v3587, 1.442695
        %v3592 = vpow.pop %v3591
        %v3593 = vmul.f32 %v3588, 1.442695
        %v3594 = vpow.pop %v3593
        %v3595 = vsel %vm625, %v3590, 0.0
        %3596 = vadd.xlane.f32.xlu0 %v3595
        %v3597 = vpop.xlane.xlu0 %3596
        %v3598 = vsel %vm625, %v3592, 0.0
        %3599 = vadd.xlane.f32.xlu0 %v3598
        %v3600 = vpop.xlane.xlu0 %3599
        %v3601 = vsel %vm632, %v3594, 0.0
        %3602 = vadd.xlane.f32.xlu0 %v3601
        %v3603 = vpop.xlane.xlu0 %3602
        %v3604 = vrcp.pop %v3597
        %v3605 = vrcp.pop %v3600
        %v3606 = vrcp.pop %v3603
        %v3607 = vmul.f32 %v3590, %v3604
        %v3608 = vmul.f32 %v3592, %v3605
        %v3609 = vmul.f32 %v3594, %v3606
        %v3610 = vpack.c.bf16 %v3608, %v3607
        %v3611 = vpack.c.bf16 %v3609, %v3609
        %3612 = vrot.lane.b32.xlu0 %v3311, 48
        %v3613 = vpop.permute.xlu0 %3612
        %3614 = vrot.lane.b32.xlu0 %v3312, 48
        %v3615 = vpop.permute.xlu0 %3614
        %v3618 = vsel %vm625, %v3610, 0
        %v3621 = vsel %vm625, %v3611, 0
        %v3624 = vand.u32 %v3615, %v675
        %3626 = vmatpush.bf16.msra.mxu0 0
        %3627 = vmatpush.bf16.msra.mxu0 0
        %3628 = vmatpush.bf16.msra.mxu0 0
        %3629 = vmatpush.bf16.msra.mxu0 0
        %3630 = vmatpush.bf16.msra.mxu0 0
        %3631 = vmatpush.bf16.msra.mxu0 0
        %3632 = vmatpush.bf16.msra.mxu0 %v3624
        %3633 = vmatpush.bf16.msra.mxu0 %v3613
        %3634 = vmatmul.bf16.gmra.mxu0 %v3618
        %v3635 = vpop.f32.mrf.mxu0
        %v3636 = vadd.f32 0.0, %v3635
        %v3637 = vpop.f32.mrf.mxu0
        %v3638 = vadd.f32 0.0, %v3637
        %3639 = vmatmul.bf16.gmra.mxu0 %v3621
        %v3640 = vpop.f32.mrf.mxu0
        %v3641 = vadd.f32 0.0, %v3640
        %v3642 = vpop.f32.mrf.mxu0
        %3643 = vdwg.mxu0
        %3647 = vrot.lane.b32.xlu0 %v3636, 16
        %v3648 = vpop.permute.xlu0 %3647
        %3649 = vrot.lane.b32.xlu0 %v3638, 16
        %v3650 = vpop.permute.xlu0 %3649
        %3651 = vrot.lane.b32.xlu0 %v3641, 16
        %v3652 = vpop.permute.xlu0 %3651
        %3656 = vst.msk [vmem:[#allocation2] sm:$0xff] %vm940, %v3648
        %3657 = vst.msk [vmem:[#allocation2 + $0x8] sm:$0xff] %vm940, %v3650
        %3658 = vst.msk [vmem:[#allocation2 + $0x10] sm:$0x1] %vm943, %v3652
        %3659 = vrot.lane.b32.xlu0 %v3311, 104
        %v3660 = vpop.permute.xlu0 %3659
        %3661 = vrot.lane.b32.xlu0 %v3312, 104
        %v3662 = vpop.permute.xlu0 %3661
        %3663 = vrot.lane.b32.xlu0 %v3311, 72
        %v3664 = vpop.permute.xlu0 %3663
        %3665 = vrot.lane.b32.xlu0 %v3312, 72
        %v3666 = vpop.permute.xlu0 %3665
        %v3668 = vsel %vm594, %v3660, 0
        %v3671 = vsel %vm594, %v3662, 0
        %v3674 = vsel %vm594, %v3664, 0
        %v3677 = vsel %vm594, %v3666, 0
        %3679 = vmatpush.bf16.xpose.msra.mxu0 0
        %3680 = vmatpush.bf16.xpose.msra.mxu0 0
        %3681 = vmatpush.bf16.xpose.msra.mxu0 0
        %3682 = vmatpush.bf16.xpose.msra.mxu0 0
        %3683 = vmatpush.bf16.xpose.msra.mxu0 0
        %3684 = vmatpush.bf16.xpose.msra.mxu0 0
        %3685 = vmatpush.bf16.xpose.msra.mxu0 %v3677
        %3686 = vmatpush.bf16.xpose.msra.mxu0 %v3674
        %3687 = vmatmul.bf16.gmra.mxu0 %v3668
        %v3688 = vpop.f32.mrf.mxu0
        %v3689 = vadd.f32 0.0, %v3688
        %v3690 = vpop.f32.mrf.mxu0
        %v3691 = vadd.f32 0.0, %v3690
        %3692 = vmatmul.bf16.gmra.mxu0 %v3671
        %v3693 = vpop.f32.mrf.mxu0
        %v3694 = vadd.f32 0.0, %v3693
        %v3695 = vpop.f32.mrf.mxu0
        %3696 = vdwg.mxu0
        %v3697 = vsel %vm625, %v3689, -inf
        %3698 = vmax.xlane.f32.xlu0 %v3697
        %v3699 = vpop.xlane.xlu0 %3698
        %v3700 = vsel %vm625, %v3691, -inf
        %3701 = vmax.xlane.f32.xlu0 %v3700
        %v3702 = vpop.xlane.xlu0 %3701
        %v3703 = vsel %vm632, %v3694, -inf
        %3704 = vmax.xlane.f32.xlu0 %v3703
        %v3705 = vpop.xlane.xlu0 %3704
        %v3706 = vsub.f32 %v3689, %v3699
        %v3707 = vsub.f32 %v3691, %v3702
        %v3708 = vsub.f32 %v3694, %v3705
        %v3709 = vmul.f32 %v3706, 1.442695
        %v3710 = vpow.pop %v3709
        %v3711 = vmul.f32 %v3707, 1.442695
        %v3712 = vpow.pop %v3711
        %v3713 = vmul.f32 %v3708, 1.442695
        %v3714 = vpow.pop %v3713
        %v3715 = vsel %vm625, %v3710, 0.0
        %3716 = vadd.xlane.f32.xlu0 %v3715
        %v3717 = vpop.xlane.xlu0 %3716
        %v3718 = vsel %vm625, %v3712, 0.0
        %3719 = vadd.xlane.f32.xlu0 %v3718
        %v3720 = vpop.xlane.xlu0 %3719
        %v3721 = vsel %vm632, %v3714, 0.0
        %3722 = vadd.xlane.f32.xlu0 %v3721
        %v3723 = vpop.xlane.xlu0 %3722
        %v3724 = vrcp.pop %v3717
        %v3725 = vrcp.pop %v3720
        %v3726 = vrcp.pop %v3723
        %v3727 = vmul.f32 %v3710, %v3724
        %v3728 = vmul.f32 %v3712, %v3725
        %v3729 = vmul.f32 %v3714, %v3726
        %v3730 = vpack.c.bf16 %v3728, %v3727
        %v3731 = vpack.c.bf16 %v3729, %v3729
        %3732 = vrot.lane.b32.xlu0 %v3311, 40
        %v3733 = vpop.permute.xlu0 %3732
        %3734 = vrot.lane.b32.xlu0 %v3312, 40
        %v3735 = vpop.permute.xlu0 %3734
        %v3738 = vsel %vm625, %v3730, 0
        %v3741 = vsel %vm625, %v3731, 0
        %v3744 = vand.u32 %v3735, %v675
        %3746 = vmatpush.bf16.msra.mxu0 0
        %3747 = vmatpush.bf16.msra.mxu0 0
        %3748 = vmatpush.bf16.msra.mxu0 0
        %3749 = vmatpush.bf16.msra.mxu0 0
        %3750 = vmatpush.bf16.msra.mxu0 0
        %3751 = vmatpush.bf16.msra.mxu0 0
        %3752 = vmatpush.bf16.msra.mxu0 %v3744
        %3753 = vmatpush.bf16.msra.mxu0 %v3733
        %3754 = vmatmul.bf16.gmra.mxu0 %v3738
        %v3755 = vpop.f32.mrf.mxu0
        %v3756 = vadd.f32 0.0, %v3755
        %v3757 = vpop.f32.mrf.mxu0
        %v3758 = vadd.f32 0.0, %v3757
        %3759 = vmatmul.bf16.gmra.mxu0 %v3741
        %v3760 = vpop.f32.mrf.mxu0
        %v3761 = vadd.f32 0.0, %v3760
        %v3762 = vpop.f32.mrf.mxu0
        %3763 = vdwg.mxu0
        %3767 = vrot.lane.b32.xlu0 %v3756, 24
        %v3768 = vpop.permute.xlu0 %3767
        %3769 = vrot.lane.b32.xlu0 %v3758, 24
        %v3770 = vpop.permute.xlu0 %3769
        %3771 = vrot.lane.b32.xlu0 %v3761, 24
        %v3772 = vpop.permute.xlu0 %3771
        %3776 = vst.msk [vmem:[#allocation2] sm:$0xff] %vm1062, %v3768
        %3777 = vst.msk [vmem:[#allocation2 + $0x8] sm:$0xff] %vm1062, %v3770
        %3778 = vst.msk [vmem:[#allocation2 + $0x10] sm:$0x1] %vm1065, %v3772
        %v3779 = vld [vmem:[#allocation2] sm:$0xff]
        %v3780 = vld [vmem:[#allocation2 + $0x8] sm:$0xff]
        %v3781 = vld [vmem:[#allocation2 + $0x10] sm:$0x1]
        %v3782 = vld [vmem:[%s4] sm:$0xf]
        %v3783 = vld [vmem:[%s4 + $0x4] sm:$0xf]
        %v3784 = vld [vmem:[%s4 + $0x8] sm:$0xf]
        %v3785 = vld [vmem:[%s4 + $0xc] sm:$0xf]
        %v3786 = vld [vmem:[%s8 + $0x2] sm:$0x1]
        %v3787 = vpack.c.bf16 %v3780, %v3779
        %v3788 = vpack.c.bf16 %v3781, %v3781
        %v3789 = vperm.slane %v3786, 0
        %v3794 = vunpack.c.l.b16 %v3782
        %v3795 = vunpack.c.l.b16 %v3783
        %v3796 = vunpack.c.l.b16 %v3784
        %v3797 = vunpack.c.l.b16 %v3785
        %v3798 = vpack.c.b16 %v3795, %v3794
        %v3799 = vpack.c.b16 %v3797, %v3796
        %v3803 = vsel %vm507, %v3787, 0
        %v3806 = vsel %vm507, %v3788, 0
        %3808 = vmatpush.bf16.msra.mxu0 0
        %3809 = vmatpush.bf16.msra.mxu0 0
        %3810 = vmatpush.bf16.msra.mxu0 0
        %3811 = vmatpush.bf16.msra.mxu0 0
        %3812 = vmatpush.bf16.msra.mxu0 0
        %3813 = vmatpush.bf16.msra.mxu0 0
        %3814 = vmatpush.bf16.msra.mxu0 %v3799
        %3815 = vmatpush.bf16.msra.mxu0 %v3798
        %3816 = vmatmul.bf16.gmra.mxu0 %v3803
        %v3817 = vpop.f32.mrf.mxu0
        %v3818 = vadd.f32 %v3789, %v3817
        %v3819 = vpop.f32.mrf.mxu0
        %v3820 = vadd.f32 %v3789, %v3819
        %3821 = vmatmul.bf16.gmra.mxu0 %v3806
        %v3822 = vpop.f32.mrf.mxu0
        %v3823 = vadd.f32 %v3789, %v3822
        %v3824 = vpop.f32.mrf.mxu0
        %3825 = vdwg.mxu0
        %v3826 = vadd.f32 %v3264, %v3818
        %v3827 = vadd.f32 %v3265, %v3820
        %v3828 = vadd.f32 %v3266, %v3823
        %v3829 = vld [vmem:[%s8 + $0x5] sm:$0x1]
        %v3830 = vld [vmem:[%s8 + $0x6] sm:$0x1]
        %v3831 = vsel %vm507, %v3826, 0.0
        %3832 = vadd.xlane.f32.xlu0 %v3831
        %v3833 = vpop.xlane.xlu0 %3832
        %v3834 = vsel %vm507, %v3827, 0.0
        %3835 = vadd.xlane.f32.xlu0 %v3834
        %v3836 = vpop.xlane.xlu0 %3835
        %v3837 = vsel %vm1125, %v3828, 0.0
        %3838 = vadd.xlane.f32.xlu0 %v3837
        %v3839 = vpop.xlane.xlu0 %3838
        %v3840 = vmul.f32 %v3833, %v1135
        %v3841 = vmul.f32 %v3836, %v1135
        %v3842 = vmul.f32 %v3839, %v1135
        %v3843 = vsub.f32 %v3826, %v3840
        %v3844 = vsub.f32 %v3827, %v3841
        %v3845 = vsub.f32 %v3828, %v3842
        %v3846 = vmul.f32 %v3843, %v3843
        %v3847 = vmul.f32 %v3844, %v3844
        %v3848 = vmul.f32 %v3845, %v3845
        %v3849 = vsel %vm507, %v3846, 0.0
        %3850 = vadd.xlane.f32.xlu0 %v3849
        %v3851 = vpop.xlane.xlu0 %3850
        %v3852 = vsel %vm507, %v3847, 0.0
        %3853 = vadd.xlane.f32.xlu0 %v3852
        %v3854 = vpop.xlane.xlu0 %3853
        %v3855 = vsel %vm1125, %v3848, 0.0
        %3856 = vadd.xlane.f32.xlu0 %v3855
        %v3857 = vpop.xlane.xlu0 %3856
        %v3858 = vmul.f32 %v3851, %v1135
        %v3859 = vmul.f32 %v3854, %v1135
        %v3860 = vmul.f32 %v3857, %v1135
        %v3861 = vadd.f32 %v3858, 1e-05
        %v3862 = vadd.f32 %v3859, 1e-05
        %v3863 = vadd.f32 %v3860, 1e-05
        %v3864 = vrsqrt.pop %v3861
        %v3865 = vmul.f32 %v3864, %v3861
        %v3866 = vmul.f32 %v3865, %v3864
        %v3867 = vmul.f32 0.5, %v3866
        %v3868 = vsub.f32 1.5, %v3867
        %v3869 = vmul.f32 %v3864, %v3868
        %vm3870 = vweird.f32 %v3861
        %vm3871 = vweird.f32 %v3864
        %vm3872 = vmor %vm3870, %vm3871
        %v3873 = vsel %vm3872, %v3864, %v3869
        %v3874 = vrsqrt.pop %v3862
        %v3875 = vmul.f32 %v3874, %v3862
        %v3876 = vmul.f32 %v3875, %v3874
        %v3877 = vmul.f32 0.5, %v3876
        %v3878 = vsub.f32 1.5, %v3877
        %v3879 = vmul.f32 %v3874, %v3878
        %vm3880 = vweird.f32 %v3862
        %vm3881 = vweird.f32 %v3874
        %vm3882 = vmor %vm3880, %vm3881
        %v3883 = vsel %vm3882, %v3874, %v3879
        %v3884 = vrsqrt.pop %v3863
        %v3885 = vmul.f32 %v3884, %v3863
        %v3886 = vmul.f32 %v3885, %v3884
        %v3887 = vmul.f32 0.5, %v3886
        %v3888 = vsub.f32 1.5, %v3887
        %v3889 = vmul.f32 %v3884, %v3888
        %vm3890 = vweird.f32 %v3863
        %vm3891 = vweird.f32 %v3884
        %vm3892 = vmor %vm3890, %vm3891
        %v3893 = vsel %vm3892, %v3884, %v3889
        %v3894 = vmul.f32 %v3843, %v3873
        %v3895 = vmul.f32 %v3844, %v3883
        %v3896 = vmul.f32 %v3845, %v3893
        %v3897 = vperm.slane %v3829, 0
        %v3898 = vmul.f32 %v3894, %v3897
        %v3899 = vmul.f32 %v3895, %v3897
        %v3900 = vmul.f32 %v3896, %v3897
        %v3901 = vperm.slane %v3830, 0
        %v3902 = vadd.f32 %v3898, %v3901
        %v3903 = vadd.f32 %v3899, %v3901
        %v3904 = vadd.f32 %v3900, %v3901
        %v3905 = vld [vmem:[%s5] sm:$0xf]
        %v3906 = vld [vmem:[%s5 + $0x4] sm:$0xf]
        %v3907 = vld [vmem:[%s5 + $0x8] sm:$0xf]
        %v3908 = vld [vmem:[%s5 + $0xc] sm:$0xf]
        %v3909 = vld [vmem:[%s8 + $0x3] sm:$0x1]
        %v3910 = vpack.c.bf16 %v3903, %v3902
        %v3911 = vpack.c.bf16 %v3904, %v3904
        %v3912 = vperm.slane %v3909, 0
        %v3917 = vunpack.c.l.b16 %v3905
        %v3918 = vunpack.c.l.b16 %v3906
        %v3919 = vunpack.c.l.b16 %v3907
        %v3920 = vunpack.c.l.b16 %v3908
        %v3921 = vpack.c.b16 %v3918, %v3917
        %v3922 = vpack.c.b16 %v3920, %v3919
        %v3926 = vsel %vm507, %v3910, 0
        %v3929 = vsel %vm507, %v3911, 0
        %3931 = vmatpush.bf16.msra.mxu0 0
        %3932 = vmatpush.bf16.msra.mxu0 0
        %3933 = vmatpush.bf16.msra.mxu0 0
        %3934 = vmatpush.bf16.msra.mxu0 0
        %3935 = vmatpush.bf16.msra.mxu0 0
        %3936 = vmatpush.bf16.msra.mxu0 0
        %3937 = vmatpush.bf16.msra.mxu0 %v3922
        %3938 = vmatpush.bf16.msra.mxu0 %v3921
        %3939 = vmatmul.bf16.gmra.mxu0 %v3926
        %v3940 = vpop.f32.mrf.mxu0
        %v3941 = vadd.f32 %v3912, %v3940
        %v3942 = vpop.f32.mrf.mxu0
        %v3943 = vadd.f32 %v3912, %v3942
        %3944 = vmatmul.bf16.gmra.mxu0 %v3929
        %v3945 = vpop.f32.mrf.mxu0
        %v3946 = vadd.f32 %v3912, %v3945
        %v3947 = vpop.f32.mrf.mxu0
        %3948 = vdwg.mxu0
        %v3949 = vmax.f32 %v3941, 0.0
        %v3950 = vmax.f32 %v3943, 0.0
        %v3951 = vmax.f32 %v3946, 0.0
        %v3952 = vld [vmem:[%s6] sm:$0xf]
        %v3953 = vld [vmem:[%s6 + $0x4] sm:$0xf]
        %v3954 = vld [vmem:[%s6 + $0x8] sm:$0xf]
        %v3955 = vld [vmem:[%s6 + $0xc] sm:$0xf]
        %v3956 = vld [vmem:[%s6 + $0x10] sm:$0xf]
        %v3957 = vld [vmem:[%s6 + $0x14] sm:$0xf]
        %v3958 = vld [vmem:[%s6 + $0x18] sm:$0xf]
        %v3959 = vld [vmem:[%s6 + $0x1c] sm:$0xf]
        %v3960 = vld [vmem:[%s8 + $0x4] sm:$0x1]
        %v3961 = vpack.c.bf16 %v3950, %v3949
        %v3962 = vpack.c.bf16 %v3951, %v3951
        %v3963 = vperm.slane %v3960, 0
        %v3972 = vunpack.c.l.b16 %v3952
        %v3973 = vunpack.c.l.b16 %v3953
        %v3974 = vunpack.c.l.b16 %v3954
        %v3975 = vunpack.c.l.b16 %v3955
        %v3976 = vunpack.c.l.b16 %v3956
        %v3977 = vunpack.c.l.b16 %v3957
        %v3978 = vunpack.c.l.b16 %v3958
        %v3979 = vunpack.c.l.b16 %v3959
        %v3980 = vpack.c.b16 %v3973, %v3972
        %v3981 = vpack.c.b16 %v3975, %v3974
        %v3982 = vpack.c.b16 %v3977, %v3976
        %v3983 = vpack.c.b16 %v3979, %v3978
        %v3989 = vsel %vm1284, %v3961, 0
        %v3992 = vsel %vm1284, %v3962, 0
        %3994 = vmatpush.bf16.msra.mxu0 0
        %3995 = vmatpush.bf16.msra.mxu0 0
        %3996 = vmatpush.bf16.msra.mxu0 0
        %3997 = vmatpush.bf16.msra.mxu0 0
        %3998 = vmatpush.bf16.msra.mxu0 %v3983
        %3999 = vmatpush.bf16.msra.mxu0 %v3982
        %4000 = vmatpush.bf16.msra.mxu0 %v3981
        %4001 = vmatpush.bf16.msra.mxu0 %v3980
        %4002 = vmatmul.bf16.gmra.mxu0 %v3989
        %v4003 = vpop.f32.mrf.mxu0
        %v4004 = vadd.f32 %v3963, %v4003
        %v4005 = vpop.f32.mrf.mxu0
        %v4006 = vadd.f32 %v3963, %v4005
        %4007 = vmatmul.bf16.gmra.mxu0 %v3992
        %v4008 = vpop.f32.mrf.mxu0
        %v4009 = vadd.f32 %v3963, %v4008
        %v4010 = vpop.f32.mrf.mxu0
        %4011 = vdwg.mxu0
        %v4012 = vadd.f32 %v3902, %v4004
        %v4013 = vadd.f32 %v3903, %v4006
        %v4014 = vadd.f32 %v3904, %v4009
        %v4015 = vld [vmem:[%s8 + $0x7] sm:$0x1]
        %v4016 = vld [vmem:[%s8 + $0x8] sm:$0x1]
        %v4017 = vsel %vm507, %v4012, 0.0
        %4018 = vadd.xlane.f32.xlu0 %v4017
        %v4019 = vpop.xlane.xlu0 %4018
        %v4020 = vsel %vm507, %v4013, 0.0
        %4021 = vadd.xlane.f32.xlu0 %v4020
        %v4022 = vpop.xlane.xlu0 %4021
        %v4023 = vsel %vm1125, %v4014, 0.0
        %4024 = vadd.xlane.f32.xlu0 %v4023
        %v4025 = vpop.xlane.xlu0 %4024
        %v4026 = vmul.f32 %v4019, %v1135
        %v4027 = vmul.f32 %v4022, %v1135
        %v4028 = vmul.f32 %v4025, %v1135
        %v4029 = vsub.f32 %v4012, %v4026
        %v4030 = vsub.f32 %v4013, %v4027
        %v4031 = vsub.f32 %v4014, %v4028
        %v4032 = vmul.f32 %v4029, %v4029
        %v4033 = vmul.f32 %v4030, %v4030
        %v4034 = vmul.f32 %v4031, %v4031
        %v4035 = vsel %vm507, %v4032, 0.0
        %4036 = vadd.xlane.f32.xlu0 %v4035
        %v4037 = vpop.xlane.xlu0 %4036
        %v4038 = vsel %vm507, %v4033, 0.0
        %4039 = vadd.xlane.f32.xlu0 %v4038
        %v4040 = vpop.xlane.xlu0 %4039
        %v4041 = vsel %vm1125, %v4034, 0.0
        %4042 = vadd.xlane.f32.xlu0 %v4041
        %v4043 = vpop.xlane.xlu0 %4042
        %v4044 = vmul.f32 %v4037, %v1135
        %v4045 = vmul.f32 %v4040, %v1135
        %v4046 = vmul.f32 %v4043, %v1135
        %v4047 = vadd.f32 %v4044, 1e-05
        %v4048 = vadd.f32 %v4045, 1e-05
        %v4049 = vadd.f32 %v4046, 1e-05
        %v4050 = vrsqrt.pop %v4047
        %v4051 = vmul.f32 %v4050, %v4047
        %v4052 = vmul.f32 %v4051, %v4050
        %v4053 = vmul.f32 0.5, %v4052
        %v4054 = vsub.f32 1.5, %v4053
        %v4055 = vmul.f32 %v4050, %v4054
        %vm4056 = vweird.f32 %v4047
        %vm4057 = vweird.f32 %v4050
        %vm4058 = vmor %vm4056, %vm4057
        %v4059 = vsel %vm4058, %v4050, %v4055
        %v4060 = vrsqrt.pop %v4048
        %v4061 = vmul.f32 %v4060, %v4048
        %v4062 = vmul.f32 %v4061, %v4060
        %v4063 = vmul.f32 0.5, %v4062
        %v4064 = vsub.f32 1.5, %v4063
        %v4065 = vmul.f32 %v4060, %v4064
        %vm4066 = vweird.f32 %v4048
        %vm4067 = vweird.f32 %v4060
        %vm4068 = vmor %vm4066, %vm4067
        %v4069 = vsel %vm4068, %v4060, %v4065
        %v4070 = vrsqrt.pop %v4049
        %v4071 = vmul.f32 %v4070, %v4049
        %v4072 = vmul.f32 %v4071, %v4070
        %v4073 = vmul.f32 0.5, %v4072
        %v4074 = vsub.f32 1.5, %v4073
        %v4075 = vmul.f32 %v4070, %v4074
        %vm4076 = vweird.f32 %v4049
        %vm4077 = vweird.f32 %v4070
        %vm4078 = vmor %vm4076, %vm4077
        %v4079 = vsel %vm4078, %v4070, %v4075
        %v4080 = vmul.f32 %v4029, %v4059
        %v4081 = vmul.f32 %v4030, %v4069
        %v4082 = vmul.f32 %v4031, %v4079
        %v4083 = vperm.slane %v4015, 0
        %v4084 = vmul.f32 %v4080, %v4083
        %v4085 = vmul.f32 %v4081, %v4083
        %v4086 = vmul.f32 %v4082, %v4083
        %v4087 = vperm.slane %v4016, 0
        %v4088 = vadd.f32 %v4084, %v4087
        %v4089 = vadd.f32 %v4085, %v4087
        %v4090 = vadd.f32 %v4086, %v4087
        %s4091 = scalar_lea.vmem %s419, 36 [#allocation3]
        %v4092 = vld [vmem:[%s4091] sm:$0xf]
        %v4093 = vld [vmem:[%s4091 + $0x4] sm:$0xf]
        %v4094 = vld [vmem:[%s4091 + $0x8] sm:$0x1]
        %v4095 = vld [vmem:[%s1392] sm:$0xf]
        %v4096 = vld [vmem:[%s1392 + $0x4] sm:$0xf]
        %v4097 = vld [vmem:[%s1392 + $0x8] sm:$0xf]
        %v4098 = vld [vmem:[%s1392 + $0xc] sm:$0xf]
        %v4099 = vld [vmem:[%s8 + $0x9] sm:$0x1]
        %v4100 = vperm.slane %v4099, 0
        %v4104 = vunpack.c.l.b16 %v4092
        %v4105 = vunpack.c.l.b16 %v4093
        %v4106 = vunpack.c.l.b16 %v4094
        %v4107 = vpack.c.b16 %v4105, %v4104
        %v4108 = vpack.c.b16 %v4106, %v4106
        %v4113 = vunpack.c.l.b16 %v4095
        %v4114 = vunpack.c.l.b16 %v4096
        %v4115 = vunpack.c.l.b16 %v4097
        %v4116 = vunpack.c.l.b16 %v4098
        %v4117 = vpack.c.b16 %v4114, %v4113
        %v4118 = vpack.c.b16 %v4116, %v4115
        %v4122 = vsel %vm507, %v4107, 0
        %v4125 = vsel %vm507, %v4108, 0
        %4127 = vmatpush.bf16.msra.mxu0 0
        %4128 = vmatpush.bf16.msra.mxu0 0
        %4129 = vmatpush.bf16.msra.mxu0 0
        %4130 = vmatpush.bf16.msra.mxu0 0
        %4131 = vmatpush.bf16.msra.mxu0 0
        %4132 = vmatpush.bf16.msra.mxu0 0
        %4133 = vmatpush.bf16.msra.mxu0 %v4118
        %4134 = vmatpush.bf16.msra.mxu0 %v4117
        %4135 = vmatmul.bf16.gmra.mxu0 %v4122
        %v4136 = vpop.f32.mrf.mxu0
        %v4137 = vadd.f32 %v4100, %v4136
        %v4138 = vpop.f32.mrf.mxu0
        %v4139 = vadd.f32 %v4100, %v4138
        %4140 = vmatmul.bf16.gmra.mxu0 %v4125
        %v4141 = vpop.f32.mrf.mxu0
        %v4142 = vadd.f32 %v4100, %v4141
        %v4143 = vpop.f32.mrf.mxu0
        %4144 = vdwg.mxu0
        %v4145 = vadd.f32 %v4088, %v4137
        %v4146 = vadd.f32 %v4089, %v4139
        %v4147 = vadd.f32 %v4090, %v4142
        %v4148 = vld [vmem:[%s1446] sm:$0xf]
        %v4149 = vld [vmem:[%s1446 + $0x4] sm:$0xf]
        %v4150 = vld [vmem:[%s1446 + $0x8] sm:$0xf]
        %v4151 = vld [vmem:[%s1446 + $0xc] sm:$0xf]
        %v4152 = vld [vmem:[%s8 + $0xa] sm:$0x1]
        %v4153 = vpack.c.bf16 %v4146, %v4145
        %v4154 = vpack.c.bf16 %v4147, %v4147
        %v4155 = vperm.slane %v4152, 0
        %v4160 = vunpack.c.l.b16 %v4148
        %v4161 = vunpack.c.l.b16 %v4149
        %v4162 = vunpack.c.l.b16 %v4150
        %v4163 = vunpack.c.l.b16 %v4151
        %v4164 = vpack.c.b16 %v4161, %v4160
        %v4165 = vpack.c.b16 %v4163, %v4162
        %v4169 = vsel %vm507, %v4153, 0
        %v4172 = vsel %vm507, %v4154, 0
        %4174 = vmatpush.bf16.msra.mxu0 0
        %4175 = vmatpush.bf16.msra.mxu0 0
        %4176 = vmatpush.bf16.msra.mxu0 0
        %4177 = vmatpush.bf16.msra.mxu0 0
        %4178 = vmatpush.bf16.msra.mxu0 0
        %4179 = vmatpush.bf16.msra.mxu0 0
        %4180 = vmatpush.bf16.msra.mxu0 %v4165
        %4181 = vmatpush.bf16.msra.mxu0 %v4164
        %4182 = vmatmul.bf16.gmra.mxu0 %v4169
        %v4183 = vpop.f32.mrf.mxu0
        %v4184 = vadd.f32 %v4155, %v4183
        %v4185 = vpop.f32.mrf.mxu0
        %v4186 = vadd.f32 %v4155, %v4185
        %4187 = vmatmul.bf16.gmra.mxu0 %v4172
        %v4188 = vpop.f32.mrf.mxu0
        %v4189 = vadd.f32 %v4155, %v4188
        %v4190 = vpop.f32.mrf.mxu0
        %4191 = vdwg.mxu0
        %v4192 = vpack.c.bf16 %v4186, %v4184
        %v4193 = vpack.c.bf16 %v4189, %v4189
        %4196 = vrot.lane.b32.xlu0 %v4192, 96
        %v4197 = vpop.permute.xlu0 %4196
        %4198 = vrot.lane.b32.xlu0 %v4193, 96
        %v4199 = vpop.permute.xlu0 %4198
        %v4201 = vsel %vm594, %v4192, 0
        %v4204 = vsel %vm594, %v4193, 0
        %v4207 = vsel %vm594, %v4197, 0
        %v4210 = vsel %vm594, %v4199, 0
        %4212 = vmatpush.bf16.xpose.msra.mxu0 0
        %4213 = vmatpush.bf16.xpose.msra.mxu0 0
        %4214 = vmatpush.bf16.xpose.msra.mxu0 0
        %4215 = vmatpush.bf16.xpose.msra.mxu0 0
        %4216 = vmatpush.bf16.xpose.msra.mxu0 0
        %4217 = vmatpush.bf16.xpose.msra.mxu0 0
        %4218 = vmatpush.bf16.xpose.msra.mxu0 %v4210
        %4219 = vmatpush.bf16.xpose.msra.mxu0 %v4207
        %4220 = vmatmul.bf16.gmra.mxu0 %v4201
        %v4221 = vpop.f32.mrf.mxu0
        %v4222 = vadd.f32 0.0, %v4221
        %v4223 = vpop.f32.mrf.mxu0
        %v4224 = vadd.f32 0.0, %v4223
        %4225 = vmatmul.bf16.gmra.mxu0 %v4204
        %v4226 = vpop.f32.mrf.mxu0
        %v4227 = vadd.f32 0.0, %v4226
        %v4228 = vpop.f32.mrf.mxu0
        %4229 = vdwg.mxu0
        %v4230 = vsel %vm625, %v4222, -inf
        %4231 = vmax.xlane.f32.xlu0 %v4230
        %v4232 = vpop.xlane.xlu0 %4231
        %v4233 = vsel %vm625, %v4224, -inf
        %4234 = vmax.xlane.f32.xlu0 %v4233
        %v4235 = vpop.xlane.xlu0 %4234
        %v4236 = vsel %vm632, %v4227, -inf
        %4237 = vmax.xlane.f32.xlu0 %v4236
        %v4238 = vpop.xlane.xlu0 %4237
        %v4239 = vsub.f32 %v4222, %v4232
        %v4240 = vsub.f32 %v4224, %v4235
        %v4241 = vsub.f32 %v4227, %v4238
        %v4242 = vmul.f32 %v4239, 1.442695
        %v4243 = vpow.pop %v4242
        %v4244 = vmul.f32 %v4240, 1.442695
        %v4245 = vpow.pop %v4244
        %v4246 = vmul.f32 %v4241, 1.442695
        %v4247 = vpow.pop %v4246
        %v4248 = vsel %vm625, %v4243, 0.0
        %4249 = vadd.xlane.f32.xlu0 %v4248
        %v4250 = vpop.xlane.xlu0 %4249
        %v4251 = vsel %vm625, %v4245, 0.0
        %4252 = vadd.xlane.f32.xlu0 %v4251
        %v4253 = vpop.xlane.xlu0 %4252
        %v4254 = vsel %vm632, %v4247, 0.0
        %4255 = vadd.xlane.f32.xlu0 %v4254
        %v4256 = vpop.xlane.xlu0 %4255
        %v4257 = vrcp.pop %v4250
        %v4258 = vrcp.pop %v4253
        %v4259 = vrcp.pop %v4256
        %v4260 = vmul.f32 %v4243, %v4257
        %v4261 = vmul.f32 %v4245, %v4258
        %v4262 = vmul.f32 %v4247, %v4259
        %v4263 = vpack.c.bf16 %v4261, %v4260
        %v4264 = vpack.c.bf16 %v4262, %v4262
        %4265 = vrot.lane.b32.xlu0 %v4192, 64
        %v4266 = vpop.permute.xlu0 %4265
        %4267 = vrot.lane.b32.xlu0 %v4193, 64
        %v4268 = vpop.permute.xlu0 %4267
        %v4271 = vsel %vm625, %v4263, 0
        %v4274 = vsel %vm625, %v4264, 0
        %v4277 = vand.u32 %v4268, %v675
        %4279 = vmatpush.bf16.msra.mxu0 0
        %4280 = vmatpush.bf16.msra.mxu0 0
        %4281 = vmatpush.bf16.msra.mxu0 0
        %4282 = vmatpush.bf16.msra.mxu0 0
        %4283 = vmatpush.bf16.msra.mxu0 0
        %4284 = vmatpush.bf16.msra.mxu0 0
        %4285 = vmatpush.bf16.msra.mxu0 %v4277
        %4286 = vmatpush.bf16.msra.mxu0 %v4266
        %4287 = vmatmul.bf16.gmra.mxu0 %v4271
        %v4288 = vpop.f32.mrf.mxu0
        %v4289 = vadd.f32 0.0, %v4288
        %v4290 = vpop.f32.mrf.mxu0
        %v4291 = vadd.f32 0.0, %v4290
        %4292 = vmatmul.bf16.gmra.mxu0 %v4274
        %v4293 = vpop.f32.mrf.mxu0
        %v4294 = vadd.f32 0.0, %v4293
        %v4295 = vpop.f32.mrf.mxu0
        %4296 = vdwg.mxu0
        %4297 = vst.msk [vmem:[#allocation2] sm:$0xff] %vm594, %v4289
        %4298 = vst.msk [vmem:[#allocation2 + $0x8] sm:$0xff] %vm594, %v4291
        %4299 = vst.msk [vmem:[#allocation2 + $0x10] sm:$0x1] %vm699, %v4294
        %4300 = vrot.lane.b32.xlu0 %v4192, 120
        %v4301 = vpop.permute.xlu0 %4300
        %4302 = vrot.lane.b32.xlu0 %v4193, 120
        %v4303 = vpop.permute.xlu0 %4302
        %4304 = vrot.lane.b32.xlu0 %v4192, 88
        %v4305 = vpop.permute.xlu0 %4304
        %4306 = vrot.lane.b32.xlu0 %v4193, 88
        %v4307 = vpop.permute.xlu0 %4306
        %v4309 = vsel %vm594, %v4301, 0
        %v4312 = vsel %vm594, %v4303, 0
        %v4315 = vsel %vm594, %v4305, 0
        %v4318 = vsel %vm594, %v4307, 0
        %4320 = vmatpush.bf16.xpose.msra.mxu0 0
        %4321 = vmatpush.bf16.xpose.msra.mxu0 0
        %4322 = vmatpush.bf16.xpose.msra.mxu0 0
        %4323 = vmatpush.bf16.xpose.msra.mxu0 0
        %4324 = vmatpush.bf16.xpose.msra.mxu0 0
        %4325 = vmatpush.bf16.xpose.msra.mxu0 0
        %4326 = vmatpush.bf16.xpose.msra.mxu0 %v4318
        %4327 = vmatpush.bf16.xpose.msra.mxu0 %v4315
        %4328 = vmatmul.bf16.gmra.mxu0 %v4309
        %v4329 = vpop.f32.mrf.mxu0
        %v4330 = vadd.f32 0.0, %v4329
        %v4331 = vpop.f32.mrf.mxu0
        %v4332 = vadd.f32 0.0, %v4331
        %4333 = vmatmul.bf16.gmra.mxu0 %v4312
        %v4334 = vpop.f32.mrf.mxu0
        %v4335 = vadd.f32 0.0, %v4334
        %v4336 = vpop.f32.mrf.mxu0
        %4337 = vdwg.mxu0
        %v4338 = vsel %vm625, %v4330, -inf
        %4339 = vmax.xlane.f32.xlu0 %v4338
        %v4340 = vpop.xlane.xlu0 %4339
        %v4341 = vsel %vm625, %v4332, -inf
        %4342 = vmax.xlane.f32.xlu0 %v4341
        %v4343 = vpop.xlane.xlu0 %4342
        %v4344 = vsel %vm632, %v4335, -inf
        %4345 = vmax.xlane.f32.xlu0 %v4344
        %v4346 = vpop.xlane.xlu0 %4345
        %v4347 = vsub.f32 %v4330, %v4340
        %v4348 = vsub.f32 %v4332, %v4343
        %v4349 = vsub.f32 %v4335, %v4346
        %v4350 = vmul.f32 %v4347, 1.442695
        %v4351 = vpow.pop %v4350
        %v4352 = vmul.f32 %v4348, 1.442695
        %v4353 = vpow.pop %v4352
        %v4354 = vmul.f32 %v4349, 1.442695
        %v4355 = vpow.pop %v4354
        %v4356 = vsel %vm625, %v4351, 0.0
        %4357 = vadd.xlane.f32.xlu0 %v4356
        %v4358 = vpop.xlane.xlu0 %4357
        %v4359 = vsel %vm625, %v4353, 0.0
        %4360 = vadd.xlane.f32.xlu0 %v4359
        %v4361 = vpop.xlane.xlu0 %4360
        %v4362 = vsel %vm632, %v4355, 0.0
        %4363 = vadd.xlane.f32.xlu0 %v4362
        %v4364 = vpop.xlane.xlu0 %4363
        %v4365 = vrcp.pop %v4358
        %v4366 = vrcp.pop %v4361
        %v4367 = vrcp.pop %v4364
        %v4368 = vmul.f32 %v4351, %v4365
        %v4369 = vmul.f32 %v4353, %v4366
        %v4370 = vmul.f32 %v4355, %v4367
        %v4371 = vpack.c.bf16 %v4369, %v4368
        %v4372 = vpack.c.bf16 %v4370, %v4370
        %4373 = vrot.lane.b32.xlu0 %v4192, 56
        %v4374 = vpop.permute.xlu0 %4373
        %4375 = vrot.lane.b32.xlu0 %v4193, 56
        %v4376 = vpop.permute.xlu0 %4375
        %v4379 = vsel %vm625, %v4371, 0
        %v4382 = vsel %vm625, %v4372, 0
        %v4385 = vand.u32 %v4376, %v675
        %4387 = vmatpush.bf16.msra.mxu0 0
        %4388 = vmatpush.bf16.msra.mxu0 0
        %4389 = vmatpush.bf16.msra.mxu0 0
        %4390 = vmatpush.bf16.msra.mxu0 0
        %4391 = vmatpush.bf16.msra.mxu0 0
        %4392 = vmatpush.bf16.msra.mxu0 0
        %4393 = vmatpush.bf16.msra.mxu0 %v4385
        %4394 = vmatpush.bf16.msra.mxu0 %v4374
        %4395 = vmatmul.bf16.gmra.mxu0 %v4379
        %v4396 = vpop.f32.mrf.mxu0
        %v4397 = vadd.f32 0.0, %v4396
        %v4398 = vpop.f32.mrf.mxu0
        %v4399 = vadd.f32 0.0, %v4398
        %4400 = vmatmul.bf16.gmra.mxu0 %v4382
        %v4401 = vpop.f32.mrf.mxu0
        %v4402 = vadd.f32 0.0, %v4401
        %v4403 = vpop.f32.mrf.mxu0
        %4404 = vdwg.mxu0
        %4408 = vrot.lane.b32.xlu0 %v4397, 8
        %v4409 = vpop.permute.xlu0 %4408
        %4410 = vrot.lane.b32.xlu0 %v4399, 8
        %v4411 = vpop.permute.xlu0 %4410
        %4412 = vrot.lane.b32.xlu0 %v4402, 8
        %v4413 = vpop.permute.xlu0 %4412
        %4417 = vst.msk [vmem:[#allocation2] sm:$0xff] %vm818, %v4409
        %4418 = vst.msk [vmem:[#allocation2 + $0x8] sm:$0xff] %vm818, %v4411
        %4419 = vst.msk [vmem:[#allocation2 + $0x10] sm:$0x1] %vm821, %v4413
        %4420 = vrot.lane.b32.xlu0 %v4192, 112
        %v4421 = vpop.permute.xlu0 %4420
        %4422 = vrot.lane.b32.xlu0 %v4193, 112
        %v4423 = vpop.permute.xlu0 %4422
        %4424 = vrot.lane.b32.xlu0 %v4192, 80
        %v4425 = vpop.permute.xlu0 %4424
        %4426 = vrot.lane.b32.xlu0 %v4193, 80
        %v4427 = vpop.permute.xlu0 %4426
        %v4429 = vsel %vm594, %v4421, 0
        %v4432 = vsel %vm594, %v4423, 0
        %v4435 = vsel %vm594, %v4425, 0
        %v4438 = vsel %vm594, %v4427, 0
        %4440 = vmatpush.bf16.xpose.msra.mxu0 0
        %4441 = vmatpush.bf16.xpose.msra.mxu0 0
        %4442 = vmatpush.bf16.xpose.msra.mxu0 0
        %4443 = vmatpush.bf16.xpose.msra.mxu0 0
        %4444 = vmatpush.bf16.xpose.msra.mxu0 0
        %4445 = vmatpush.bf16.xpose.msra.mxu0 0
        %4446 = vmatpush.bf16.xpose.msra.mxu0 %v4438
        %4447 = vmatpush.bf16.xpose.msra.mxu0 %v4435
        %4448 = vmatmul.bf16.gmra.mxu0 %v4429
        %v4449 = vpop.f32.mrf.mxu0
        %v4450 = vadd.f32 0.0, %v4449
        %v4451 = vpop.f32.mrf.mxu0
        %v4452 = vadd.f32 0.0, %v4451
        %4453 = vmatmul.bf16.gmra.mxu0 %v4432
        %v4454 = vpop.f32.mrf.mxu0
        %v4455 = vadd.f32 0.0, %v4454
        %v4456 = vpop.f32.mrf.mxu0
        %4457 = vdwg.mxu0
        %v4458 = vsel %vm625, %v4450, -inf
        %4459 = vmax.xlane.f32.xlu0 %v4458
        %v4460 = vpop.xlane.xlu0 %4459
        %v4461 = vsel %vm625, %v4452, -inf
        %4462 = vmax.xlane.f32.xlu0 %v4461
        %v4463 = vpop.xlane.xlu0 %4462
        %v4464 = vsel %vm632, %v4455, -inf
        %4465 = vmax.xlane.f32.xlu0 %v4464
        %v4466 = vpop.xlane.xlu0 %4465
        %v4467 = vsub.f32 %v4450, %v4460
        %v4468 = vsub.f32 %v4452, %v4463
        %v4469 = vsub.f32 %v4455, %v4466
        %v4470 = vmul.f32 %v4467, 1.442695
        %v4471 = vpow.pop %v4470
        %v4472 = vmul.f32 %v4468, 1.442695
        %v4473 = vpow.pop %v4472
        %v4474 = vmul.f32 %v4469, 1.442695
        %v4475 = vpow.pop %v4474
        %v4476 = vsel %vm625, %v4471, 0.0
        %4477 = vadd.xlane.f32.xlu0 %v4476
        %v4478 = vpop.xlane.xlu0 %4477
        %v4479 = vsel %vm625, %v4473, 0.0
        %4480 = vadd.xlane.f32.xlu0 %v4479
        %v4481 = vpop.xlane.xlu0 %4480
        %v4482 = vsel %vm632, %v4475, 0.0
        %4483 = vadd.xlane.f32.xlu0 %v4482
        %v4484 = vpop.xlane.xlu0 %4483
        %v4485 = vrcp.pop %v4478
        %v4486 = vrcp.pop %v4481
        %v4487 = vrcp.pop %v4484
        %v4488 = vmul.f32 %v4471, %v4485
        %v4489 = vmul.f32 %v4473, %v4486
        %v4490 = vmul.f32 %v4475, %v4487
        %v4491 = vpack.c.bf16 %v4489, %v4488
        %v4492 = vpack.c.bf16 %v4490, %v4490
        %4493 = vrot.lane.b32.xlu0 %v4192, 48
        %v4494 = vpop.permute.xlu0 %4493
        %4495 = vrot.lane.b32.xlu0 %v4193, 48
        %v4496 = vpop.permute.xlu0 %4495
        %v4499 = vsel %vm625, %v4491, 0
        %v4502 = vsel %vm625, %v4492, 0
        %v4505 = vand.u32 %v4496, %v675
        %4507 = vmatpush.bf16.msra.mxu0 0
        %4508 = vmatpush.bf16.msra.mxu0 0
        %4509 = vmatpush.bf16.msra.mxu0 0
        %4510 = vmatpush.bf16.msra.mxu0 0
        %4511 = vmatpush.bf16.msra.mxu0 0
        %4512 = vmatpush.bf16.msra.mxu0 0
        %4513 = vmatpush.bf16.msra.mxu0 %v4505
        %4514 = vmatpush.bf16.msra.mxu0 %v4494
        %4515 = vmatmul.bf16.gmra.mxu0 %v4499
        %v4516 = vpop.f32.mrf.mxu0
        %v4517 = vadd.f32 0.0, %v4516
        %v4518 = vpop.f32.mrf.mxu0
        %v4519 = vadd.f32 0.0, %v4518
        %4520 = vmatmul.bf16.gmra.mxu0 %v4502
        %v4521 = vpop.f32.mrf.mxu0
        %v4522 = vadd.f32 0.0, %v4521
        %v4523 = vpop.f32.mrf.mxu0
        %4524 = vdwg.mxu0
        %4528 = vrot.lane.b32.xlu0 %v4517, 16
        %v4529 = vpop.permute.xlu0 %4528
        %4530 = vrot.lane.b32.xlu0 %v4519, 16
        %v4531 = vpop.permute.xlu0 %4530
        %4532 = vrot.lane.b32.xlu0 %v4522, 16
        %v4533 = vpop.permute.xlu0 %4532
        %4537 = vst.msk [vmem:[#allocation2] sm:$0xff] %vm940, %v4529
        %4538 = vst.msk [vmem:[#allocation2 + $0x8] sm:$0xff] %vm940, %v4531
        %4539 = vst.msk [vmem:[#allocation2 + $0x10] sm:$0x1] %vm943, %v4533
        %4540 = vrot.lane.b32.xlu0 %v4192, 104
        %v4541 = vpop.permute.xlu0 %4540
        %4542 = vrot.lane.b32.xlu0 %v4193, 104
        %v4543 = vpop.permute.xlu0 %4542
        %4544 = vrot.lane.b32.xlu0 %v4192, 72
        %v4545 = vpop.permute.xlu0 %4544
        %4546 = vrot.lane.b32.xlu0 %v4193, 72
        %v4547 = vpop.permute.xlu0 %4546
        %v4549 = vsel %vm594, %v4541, 0
        %v4552 = vsel %vm594, %v4543, 0
        %v4555 = vsel %vm594, %v4545, 0
        %v4558 = vsel %vm594, %v4547, 0
        %4560 = vmatpush.bf16.xpose.msra.mxu0 0
        %4561 = vmatpush.bf16.xpose.msra.mxu0 0
        %4562 = vmatpush.bf16.xpose.msra.mxu0 0
        %4563 = vmatpush.bf16.xpose.msra.mxu0 0
        %4564 = vmatpush.bf16.xpose.msra.mxu0 0
        %4565 = vmatpush.bf16.xpose.msra.mxu0 0
        %4566 = vmatpush.bf16.xpose.msra.mxu0 %v4558
        %4567 = vmatpush.bf16.xpose.msra.mxu0 %v4555
        %4568 = vmatmul.bf16.gmra.mxu0 %v4549
        %v4569 = vpop.f32.mrf.mxu0
        %v4570 = vadd.f32 0.0, %v4569
        %v4571 = vpop.f32.mrf.mxu0
        %v4572 = vadd.f32 0.0, %v4571
        %4573 = vmatmul.bf16.gmra.mxu0 %v4552
        %v4574 = vpop.f32.mrf.mxu0
        %v4575 = vadd.f32 0.0, %v4574
        %v4576 = vpop.f32.mrf.mxu0
        %4577 = vdwg.mxu0
        %v4578 = vsel %vm625, %v4570, -inf
        %4579 = vmax.xlane.f32.xlu0 %v4578
        %v4580 = vpop.xlane.xlu0 %4579
        %v4581 = vsel %vm625, %v4572, -inf
        %4582 = vmax.xlane.f32.xlu0 %v4581
        %v4583 = vpop.xlane.xlu0 %4582
        %v4584 = vsel %vm632, %v4575, -inf
        %4585 = vmax.xlane.f32.xlu0 %v4584
        %v4586 = vpop.xlane.xlu0 %4585
        %v4587 = vsub.f32 %v4570, %v4580
        %v4588 = vsub.f32 %v4572, %v4583
        %v4589 = vsub.f32 %v4575, %v4586
        %v4590 = vmul.f32 %v4587, 1.442695
        %v4591 = vpow.pop %v4590
        %v4592 = vmul.f32 %v4588, 1.442695
        %v4593 = vpow.pop %v4592
        %v4594 = vmul.f32 %v4589, 1.442695
        %v4595 = vpow.pop %v4594
        %v4596 = vsel %vm625, %v4591, 0.0
        %4597 = vadd.xlane.f32.xlu0 %v4596
        %v4598 = vpop.xlane.xlu0 %4597
        %v4599 = vsel %vm625, %v4593, 0.0
        %4600 = vadd.xlane.f32.xlu0 %v4599
        %v4601 = vpop.xlane.xlu0 %4600
        %v4602 = vsel %vm632, %v4595, 0.0
        %4603 = vadd.xlane.f32.xlu0 %v4602
        %v4604 = vpop.xlane.xlu0 %4603
        %v4605 = vrcp.pop %v4598
        %v4606 = vrcp.pop %v4601
        %v4607 = vrcp.pop %v4604
        %v4608 = vmul.f32 %v4591, %v4605
        %v4609 = vmul.f32 %v4593, %v4606
        %v4610 = vmul.f32 %v4595, %v4607
        %v4611 = vpack.c.bf16 %v4609, %v4608
        %v4612 = vpack.c.bf16 %v4610, %v4610
        %4613 = vrot.lane.b32.xlu0 %v4192, 40
        %v4614 = vpop.permute.xlu0 %4613
        %4615 = vrot.lane.b32.xlu0 %v4193, 40
        %v4616 = vpop.permute.xlu0 %4615
        %v4619 = vsel %vm625, %v4611, 0
        %v4622 = vsel %vm625, %v4612, 0
        %v4625 = vand.u32 %v4616, %v675
        %4627 = vmatpush.bf16.msra.mxu0 0
        %4628 = vmatpush.bf16.msra.mxu0 0
        %4629 = vmatpush.bf16.msra.mxu0 0
        %4630 = vmatpush.bf16.msra.mxu0 0
        %4631 = vmatpush.bf16.msra.mxu0 0
        %4632 = vmatpush.bf16.msra.mxu0 0
        %4633 = vmatpush.bf16.msra.mxu0 %v4625
        %4634 = vmatpush.bf16.msra.mxu0 %v4614
        %4635 = vmatmul.bf16.gmra.mxu0 %v4619
        %v4636 = vpop.f32.mrf.mxu0
        %v4637 = vadd.f32 0.0, %v4636
        %v4638 = vpop.f32.mrf.mxu0
        %v4639 = vadd.f32 0.0, %v4638
        %4640 = vmatmul.bf16.gmra.mxu0 %v4622
        %v4641 = vpop.f32.mrf.mxu0
        %v4642 = vadd.f32 0.0, %v4641
        %v4643 = vpop.f32.mrf.mxu0
        %4644 = vdwg.mxu0
        %4648 = vrot.lane.b32.xlu0 %v4637, 24
        %v4649 = vpop.permute.xlu0 %4648
        %4650 = vrot.lane.b32.xlu0 %v4639, 24
        %v4651 = vpop.permute.xlu0 %4650
        %4652 = vrot.lane.b32.xlu0 %v4642, 24
        %v4653 = vpop.permute.xlu0 %4652
        %4657 = vst.msk [vmem:[#allocation2] sm:$0xff] %vm1062, %v4649
        %4658 = vst.msk [vmem:[#allocation2 + $0x8] sm:$0xff] %vm1062, %v4651
        %4659 = vst.msk [vmem:[#allocation2 + $0x10] sm:$0x1] %vm1065, %v4653
        %v4660 = vld [vmem:[#allocation2] sm:$0xff]
        %v4661 = vld [vmem:[#allocation2 + $0x8] sm:$0xff]
        %v4662 = vld [vmem:[#allocation2 + $0x10] sm:$0x1]
        %v4663 = vld [vmem:[%s1962] sm:$0xf]
        %v4664 = vld [vmem:[%s1962 + $0x4] sm:$0xf]
        %v4665 = vld [vmem:[%s1962 + $0x8] sm:$0xf]
        %v4666 = vld [vmem:[%s1962 + $0xc] sm:$0xf]
        %v4667 = vld [vmem:[%s8 + $0xb] sm:$0x1]
        %v4668 = vpack.c.bf16 %v4661, %v4660
        %v4669 = vpack.c.bf16 %v4662, %v4662
        %v4670 = vperm.slane %v4667, 0
        %v4675 = vunpack.c.l.b16 %v4663
        %v4676 = vunpack.c.l.b16 %v4664
        %v4677 = vunpack.c.l.b16 %v4665
        %v4678 = vunpack.c.l.b16 %v4666
        %v4679 = vpack.c.b16 %v4676, %v4675
        %v4680 = vpack.c.b16 %v4678, %v4677
        %v4684 = vsel %vm507, %v4668, 0
        %v4687 = vsel %vm507, %v4669, 0
        %4689 = vmatpush.bf16.msra.mxu0 0
        %4690 = vmatpush.bf16.msra.mxu0 0
        %4691 = vmatpush.bf16.msra.mxu0 0
        %4692 = vmatpush.bf16.msra.mxu0 0
        %4693 = vmatpush.bf16.msra.mxu0 0
        %4694 = vmatpush.bf16.msra.mxu0 0
        %4695 = vmatpush.bf16.msra.mxu0 %v4680
        %4696 = vmatpush.bf16.msra.mxu0 %v4679
        %4697 = vmatmul.bf16.gmra.mxu0 %v4684
        %v4698 = vpop.f32.mrf.mxu0
        %v4699 = vadd.f32 %v4670, %v4698
        %v4700 = vpop.f32.mrf.mxu0
        %v4701 = vadd.f32 %v4670, %v4700
        %4702 = vmatmul.bf16.gmra.mxu0 %v4687
        %v4703 = vpop.f32.mrf.mxu0
        %v4704 = vadd.f32 %v4670, %v4703
        %v4705 = vpop.f32.mrf.mxu0
        %4706 = vdwg.mxu0
        %v4707 = vadd.f32 %v4145, %v4699
        %v4708 = vadd.f32 %v4146, %v4701
        %v4709 = vadd.f32 %v4147, %v4704
        %v4710 = vld [vmem:[%s8 + $0xe] sm:$0x1]
        %v4711 = vld [vmem:[%s8 + $0xf] sm:$0x1]
        %v4712 = vsel %vm507, %v4707, 0.0
        %4713 = vadd.xlane.f32.xlu0 %v4712
        %v4714 = vpop.xlane.xlu0 %4713
        %v4715 = vsel %vm507, %v4708, 0.0
        %4716 = vadd.xlane.f32.xlu0 %v4715
        %v4717 = vpop.xlane.xlu0 %4716
        %v4718 = vsel %vm1125, %v4709, 0.0
        %4719 = vadd.xlane.f32.xlu0 %v4718
        %v4720 = vpop.xlane.xlu0 %4719
        %v4721 = vmul.f32 %v4714, %v1135
        %v4722 = vmul.f32 %v4717, %v1135
        %v4723 = vmul.f32 %v4720, %v1135
        %v4724 = vsub.f32 %v4707, %v4721
        %v4725 = vsub.f32 %v4708, %v4722
        %v4726 = vsub.f32 %v4709, %v4723
        %v4727 = vmul.f32 %v4724, %v4724
        %v4728 = vmul.f32 %v4725, %v4725
        %v4729 = vmul.f32 %v4726, %v4726
        %v4730 = vsel %vm507, %v4727, 0.0
        %4731 = vadd.xlane.f32.xlu0 %v4730
        %v4732 = vpop.xlane.xlu0 %4731
        %v4733 = vsel %vm507, %v4728, 0.0
        %4734 = vadd.xlane.f32.xlu0 %v4733
        %v4735 = vpop.xlane.xlu0 %4734
        %v4736 = vsel %vm1125, %v4729, 0.0
        %4737 = vadd.xlane.f32.xlu0 %v4736
        %v4738 = vpop.xlane.xlu0 %4737
        %v4739 = vmul.f32 %v4732, %v1135
        %v4740 = vmul.f32 %v4735, %v1135
        %v4741 = vmul.f32 %v4738, %v1135
        %v4742 = vadd.f32 %v4739, 1e-05
        %v4743 = vadd.f32 %v4740, 1e-05
        %v4744 = vadd.f32 %v4741, 1e-05
        %v4745 = vrsqrt.pop %v4742
        %v4746 = vmul.f32 %v4745, %v4742
        %v4747 = vmul.f32 %v4746, %v4745
        %v4748 = vmul.f32 0.5, %v4747
        %v4749 = vsub.f32 1.5, %v4748
        %v4750 = vmul.f32 %v4745, %v4749
        %vm4751 = vweird.f32 %v4742
        %vm4752 = vweird.f32 %v4745
        %vm4753 = vmor %vm4751, %vm4752
        %v4754 = vsel %vm4753, %v4745, %v4750
        %v4755 = vrsqrt.pop %v4743
        %v4756 = vmul.f32 %v4755, %v4743
        %v4757 = vmul.f32 %v4756, %v4755
        %v4758 = vmul.f32 0.5, %v4757
        %v4759 = vsub.f32 1.5, %v4758
        %v4760 = vmul.f32 %v4755, %v4759
        %vm4761 = vweird.f32 %v4743
        %vm4762 = vweird.f32 %v4755
        %vm4763 = vmor %vm4761, %vm4762
        %v4764 = vsel %vm4763, %v4755, %v4760
        %v4765 = vrsqrt.pop %v4744
        %v4766 = vmul.f32 %v4765, %v4744
        %v4767 = vmul.f32 %v4766, %v4765
        %v4768 = vmul.f32 0.5, %v4767
        %v4769 = vsub.f32 1.5, %v4768
        %v4770 = vmul.f32 %v4765, %v4769
        %vm4771 = vweird.f32 %v4744
        %vm4772 = vweird.f32 %v4765
        %vm4773 = vmor %vm4771, %vm4772
        %v4774 = vsel %vm4773, %v4765, %v4770
        %v4775 = vmul.f32 %v4724, %v4754
        %v4776 = vmul.f32 %v4725, %v4764
        %v4777 = vmul.f32 %v4726, %v4774
        %v4778 = vperm.slane %v4710, 0
        %v4779 = vmul.f32 %v4775, %v4778
        %v4780 = vmul.f32 %v4776, %v4778
        %v4781 = vmul.f32 %v4777, %v4778
        %v4782 = vperm.slane %v4711, 0
        %v4783 = vadd.f32 %v4779, %v4782
        %v4784 = vadd.f32 %v4780, %v4782
        %v4785 = vadd.f32 %v4781, %v4782
        %v4786 = vld [vmem:[%s2086] sm:$0xf]
        %v4787 = vld [vmem:[%s2086 + $0x4] sm:$0xf]
        %v4788 = vld [vmem:[%s2086 + $0x8] sm:$0xf]
        %v4789 = vld [vmem:[%s2086 + $0xc] sm:$0xf]
        %v4790 = vld [vmem:[%s8 + $0xc] sm:$0x1]
        %v4791 = vpack.c.bf16 %v4784, %v4783
        %v4792 = vpack.c.bf16 %v4785, %v4785
        %v4793 = vperm.slane %v4790, 0
        %v4798 = vunpack.c.l.b16 %v4786
        %v4799 = vunpack.c.l.b16 %v4787
        %v4800 = vunpack.c.l.b16 %v4788
        %v4801 = vunpack.c.l.b16 %v4789
        %v4802 = vpack.c.b16 %v4799, %v4798
        %v4803 = vpack.c.b16 %v4801, %v4800
        %v4807 = vsel %vm507, %v4791, 0
        %v4810 = vsel %vm507, %v4792, 0
        %4812 = vmatpush.bf16.msra.mxu0 0
        %4813 = vmatpush.bf16.msra.mxu0 0
        %4814 = vmatpush.bf16.msra.mxu0 0
        %4815 = vmatpush.bf16.msra.mxu0 0
        %4816 = vmatpush.bf16.msra.mxu0 0
        %4817 = vmatpush.bf16.msra.mxu0 0
        %4818 = vmatpush.bf16.msra.mxu0 %v4803
        %4819 = vmatpush.bf16.msra.mxu0 %v4802
        %4820 = vmatmul.bf16.gmra.mxu0 %v4807
        %v4821 = vpop.f32.mrf.mxu0
        %v4822 = vadd.f32 %v4793, %v4821
        %v4823 = vpop.f32.mrf.mxu0
        %v4824 = vadd.f32 %v4793, %v4823
        %4825 = vmatmul.bf16.gmra.mxu0 %v4810
        %v4826 = vpop.f32.mrf.mxu0
        %v4827 = vadd.f32 %v4793, %v4826
        %v4828 = vpop.f32.mrf.mxu0
        %4829 = vdwg.mxu0
        %v4830 = vmax.f32 %v4822, 0.0
        %v4831 = vmax.f32 %v4824, 0.0
        %v4832 = vmax.f32 %v4827, 0.0
        %v4833 = vld [vmem:[%s2134] sm:$0xf]
        %v4834 = vld [vmem:[%s2134 + $0x4] sm:$0xf]
        %v4835 = vld [vmem:[%s2134 + $0x8] sm:$0xf]
        %v4836 = vld [vmem:[%s2134 + $0xc] sm:$0xf]
        %v4837 = vld [vmem:[%s2134 + $0x10] sm:$0xf]
        %v4838 = vld [vmem:[%s2134 + $0x14] sm:$0xf]
        %v4839 = vld [vmem:[%s2134 + $0x18] sm:$0xf]
        %v4840 = vld [vmem:[%s2134 + $0x1c] sm:$0xf]
        %v4841 = vld [vmem:[%s8 + $0xd] sm:$0x1]
        %v4842 = vpack.c.bf16 %v4831, %v4830
        %v4843 = vpack.c.bf16 %v4832, %v4832
        %v4844 = vperm.slane %v4841, 0
        %v4853 = vunpack.c.l.b16 %v4833
        %v4854 = vunpack.c.l.b16 %v4834
        %v4855 = vunpack.c.l.b16 %v4835
        %v4856 = vunpack.c.l.b16 %v4836
        %v4857 = vunpack.c.l.b16 %v4837
        %v4858 = vunpack.c.l.b16 %v4838
        %v4859 = vunpack.c.l.b16 %v4839
        %v4860 = vunpack.c.l.b16 %v4840
        %v4861 = vpack.c.b16 %v4854, %v4853
        %v4862 = vpack.c.b16 %v4856, %v4855
        %v4863 = vpack.c.b16 %v4858, %v4857
        %v4864 = vpack.c.b16 %v4860, %v4859
        %v4870 = vsel %vm1284, %v4842, 0
        %v4873 = vsel %vm1284, %v4843, 0
        %4875 = vmatpush.bf16.msra.mxu0 0
        %4876 = vmatpush.bf16.msra.mxu0 0
        %4877 = vmatpush.bf16.msra.mxu0 0
        %4878 = vmatpush.bf16.msra.mxu0 0
        %4879 = vmatpush.bf16.msra.mxu0 %v4864
        %4880 = vmatpush.bf16.msra.mxu0 %v4863
        %4881 = vmatpush.bf16.msra.mxu0 %v4862
        %4882 = vmatpush.bf16.msra.mxu0 %v4861
        %4883 = vmatmul.bf16.gmra.mxu0 %v4870
        %v4884 = vpop.f32.mrf.mxu0
        %v4885 = vadd.f32 %v4844, %v4884
        %v4886 = vpop.f32.mrf.mxu0
        %v4887 = vadd.f32 %v4844, %v4886
        %4888 = vmatmul.bf16.gmra.mxu0 %v4873
        %v4889 = vpop.f32.mrf.mxu0
        %v4890 = vadd.f32 %v4844, %v4889
        %v4891 = vpop.f32.mrf.mxu0
        %4892 = vdwg.mxu0
        %v4893 = vadd.f32 %v4783, %v4885
        %v4894 = vadd.f32 %v4784, %v4887
        %v4895 = vadd.f32 %v4785, %v4890
        %v4896 = vld [vmem:[%s8 + $0x10] sm:$0x1]
        %v4897 = vld [vmem:[%s8 + $0x11] sm:$0x1]
        %v4898 = vsel %vm507, %v4893, 0.0
        %4899 = vadd.xlane.f32.xlu0 %v4898
        %v4900 = vpop.xlane.xlu0 %4899
        %v4901 = vsel %vm507, %v4894, 0.0
        %4902 = vadd.xlane.f32.xlu0 %v4901
        %v4903 = vpop.xlane.xlu0 %4902
        %v4904 = vsel %vm1125, %v4895, 0.0
        %4905 = vadd.xlane.f32.xlu0 %v4904
        %v4906 = vpop.xlane.xlu0 %4905
        %v4907 = vmul.f32 %v4900, %v1135
        %v4908 = vmul.f32 %v4903, %v1135
        %v4909 = vmul.f32 %v4906, %v1135
        %v4910 = vsub.f32 %v4893, %v4907
        %v4911 = vsub.f32 %v4894, %v4908
        %v4912 = vsub.f32 %v4895, %v4909
        %v4913 = vmul.f32 %v4910, %v4910
        %v4914 = vmul.f32 %v4911, %v4911
        %v4915 = vmul.f32 %v4912, %v4912
        %v4916 = vsel %vm507, %v4913, 0.0
        %4917 = vadd.xlane.f32.xlu0 %v4916
        %v4918 = vpop.xlane.xlu0 %4917
        %v4919 = vsel %vm507, %v4914, 0.0
        %4920 = vadd.xlane.f32.xlu0 %v4919
        %v4921 = vpop.xlane.xlu0 %4920
        %v4922 = vsel %vm1125, %v4915, 0.0
        %4923 = vadd.xlane.f32.xlu0 %v4922
        %v4924 = vpop.xlane.xlu0 %4923
        %v4925 = vmul.f32 %v4918, %v1135
        %v4926 = vmul.f32 %v4921, %v1135
        %v4927 = vmul.f32 %v4924, %v1135
        %v4928 = vadd.f32 %v4925, 1e-05
        %v4929 = vadd.f32 %v4926, 1e-05
        %v4930 = vadd.f32 %v4927, 1e-05
        %v4931 = vrsqrt.pop %v4928
        %v4932 = vmul.f32 %v4931, %v4928
        %v4933 = vmul.f32 %v4932, %v4931
        %v4934 = vmul.f32 0.5, %v4933
        %v4935 = vsub.f32 1.5, %v4934
        %v4936 = vmul.f32 %v4931, %v4935
        %vm4937 = vweird.f32 %v4928
        %vm4938 = vweird.f32 %v4931
        %vm4939 = vmor %vm4937, %vm4938
        %v4940 = vsel %vm4939, %v4931, %v4936
        %v4941 = vrsqrt.pop %v4929
        %v4942 = vmul.f32 %v4941, %v4929
        %v4943 = vmul.f32 %v4942, %v4941
        %v4944 = vmul.f32 0.5, %v4943
        %v4945 = vsub.f32 1.5, %v4944
        %v4946 = vmul.f32 %v4941, %v4945
        %vm4947 = vweird.f32 %v4929
        %vm4948 = vweird.f32 %v4941
        %vm4949 = vmor %vm4947, %vm4948
        %v4950 = vsel %vm4949, %v4941, %v4946
        %v4951 = vrsqrt.pop %v4930
        %v4952 = vmul.f32 %v4951, %v4930
        %v4953 = vmul.f32 %v4952, %v4951
        %v4954 = vmul.f32 0.5, %v4953
        %v4955 = vsub.f32 1.5, %v4954
        %v4956 = vmul.f32 %v4951, %v4955
        %vm4957 = vweird.f32 %v4930
        %vm4958 = vweird.f32 %v4951
        %vm4959 = vmor %vm4957, %vm4958
        %v4960 = vsel %vm4959, %v4951, %v4956
        %v4961 = vmul.f32 %v4910, %v4940
        %v4962 = vmul.f32 %v4911, %v4950
        %v4963 = vmul.f32 %v4912, %v4960
        %v4964 = vperm.slane %v4896, 0
        %v4965 = vmul.f32 %v4961, %v4964
        %v4966 = vmul.f32 %v4962, %v4964
        %v4967 = vmul.f32 %v4963, %v4964
        %v4968 = vperm.slane %v4897, 0
        %v4969 = vadd.f32 %v4965, %v4968
        %v4970 = vadd.f32 %v4966, %v4968
        %v4971 = vadd.f32 %v4967, %v4968
        %s4972 = scalar_lea.vmem %s419, 60 [#allocation3]
        %v4973 = vld [vmem:[%s4972] sm:$0xf]
        %v4974 = vld [vmem:[%s4972 + $0x4] sm:$0xf]
        %v4975 = vld [vmem:[%s4972 + $0x8] sm:$0x1]
        %v4976 = vld [vmem:[%s2278] sm:$0xf]
        %v4977 = vld [vmem:[%s2278 + $0x4] sm:$0xf]
        %v4978 = vld [vmem:[%s2278 + $0x8] sm:$0xf]
        %v4979 = vld [vmem:[%s2278 + $0xc] sm:$0xf]
        %v4980 = vld [vmem:[%s8 + $0x12] sm:$0x1]
        %v4981 = vperm.slane %v4980, 0
        %v4985 = vunpack.c.l.b16 %v4973
        %v4986 = vunpack.c.l.b16 %v4974
        %v4987 = vunpack.c.l.b16 %v4975
        %v4988 = vpack.c.b16 %v4986, %v4985
        %v4989 = vpack.c.b16 %v4987, %v4987
        %v4994 = vunpack.c.l.b16 %v4976
        %v4995 = vunpack.c.l.b16 %v4977
        %v4996 = vunpack.c.l.b16 %v4978
        %v4997 = vunpack.c.l.b16 %v4979
        %v4998 = vpack.c.b16 %v4995, %v4994
        %v4999 = vpack.c.b16 %v4997, %v4996
        %v5003 = vsel %vm507, %v4988, 0
        %v5006 = vsel %vm507, %v4989, 0
        %5008 = vmatpush.bf16.msra.mxu0 0
        %5009 = vmatpush.bf16.msra.mxu0 0
        %5010 = vmatpush.bf16.msra.mxu0 0
        %5011 = vmatpush.bf16.msra.mxu0 0
        %5012 = vmatpush.bf16.msra.mxu0 0
        %5013 = vmatpush.bf16.msra.mxu0 0
        %5014 = vmatpush.bf16.msra.mxu0 %v4999
        %5015 = vmatpush.bf16.msra.mxu0 %v4998
        %5016 = vmatmul.bf16.gmra.mxu0 %v5003
        %v5017 = vpop.f32.mrf.mxu0
        %v5018 = vadd.f32 %v4981, %v5017
        %v5019 = vpop.f32.mrf.mxu0
        %v5020 = vadd.f32 %v4981, %v5019
        %5021 = vmatmul.bf16.gmra.mxu0 %v5006
        %v5022 = vpop.f32.mrf.mxu0
        %v5023 = vadd.f32 %v4981, %v5022
        %v5024 = vpop.f32.mrf.mxu0
        %5025 = vdwg.mxu0
        %v5026 = vadd.f32 %v4969, %v5018
        %v5027 = vadd.f32 %v4970, %v5020
        %v5028 = vadd.f32 %v4971, %v5023
        %v5029 = vld [vmem:[%s2332] sm:$0xf]
        %v5030 = vld [vmem:[%s2332 + $0x4] sm:$0xf]
        %v5031 = vld [vmem:[%s2332 + $0x8] sm:$0xf]
        %v5032 = vld [vmem:[%s2332 + $0xc] sm:$0xf]
        %v5033 = vld [vmem:[%s8 + $0x13] sm:$0x1]
        %v5034 = vpack.c.bf16 %v5027, %v5026
        %v5035 = vpack.c.bf16 %v5028, %v5028
        %v5036 = vperm.slane %v5033, 0
        %v5041 = vunpack.c.l.b16 %v5029
        %v5042 = vunpack.c.l.b16 %v5030
        %v5043 = vunpack.c.l.b16 %v5031
        %v5044 = vunpack.c.l.b16 %v5032
        %v5045 = vpack.c.b16 %v5042, %v5041
        %v5046 = vpack.c.b16 %v5044, %v5043
        %v5050 = vsel %vm507, %v5034, 0
        %v5053 = vsel %vm507, %v5035, 0
        %5055 = vmatpush.bf16.msra.mxu0 0
        %5056 = vmatpush.bf16.msra.mxu0 0
        %5057 = vmatpush.bf16.msra.mxu0 0
        %5058 = vmatpush.bf16.msra.mxu0 0
        %5059 = vmatpush.bf16.msra.mxu0 0
        %5060 = vmatpush.bf16.msra.mxu0 0
        %5061 = vmatpush.bf16.msra.mxu0 %v5046
        %5062 = vmatpush.bf16.msra.mxu0 %v5045
        %5063 = vmatmul.bf16.gmra.mxu0 %v5050
        %v5064 = vpop.f32.mrf.mxu0
        %v5065 = vadd.f32 %v5036, %v5064
        %v5066 = vpop.f32.mrf.mxu0
        %v5067 = vadd.f32 %v5036, %v5066
        %5068 = vmatmul.bf16.gmra.mxu0 %v5053
        %v5069 = vpop.f32.mrf.mxu0
        %v5070 = vadd.f32 %v5036, %v5069
        %v5071 = vpop.f32.mrf.mxu0
        %5072 = vdwg.mxu0
        %v5073 = vpack.c.bf16 %v5067, %v5065
        %v5074 = vpack.c.bf16 %v5070, %v5070
        %5077 = vrot.lane.b32.xlu0 %v5073, 96
        %v5078 = vpop.permute.xlu0 %5077
        %5079 = vrot.lane.b32.xlu0 %v5074, 96
        %v5080 = vpop.permute.xlu0 %5079
        %v5082 = vsel %vm594, %v5073, 0
        %v5085 = vsel %vm594, %v5074, 0
        %v5088 = vsel %vm594, %v5078, 0
        %v5091 = vsel %vm594, %v5080, 0
        %5093 = vmatpush.bf16.xpose.msra.mxu0 0
        %5094 = vmatpush.bf16.xpose.msra.mxu0 0
        %5095 = vmatpush.bf16.xpose.msra.mxu0 0
        %5096 = vmatpush.bf16.xpose.msra.mxu0 0
        %5097 = vmatpush.bf16.xpose.msra.mxu0 0
        %5098 = vmatpush.bf16.xpose.msra.mxu0 0
        %5099 = vmatpush.bf16.xpose.msra.mxu0 %v5091
        %5100 = vmatpush.bf16.xpose.msra.mxu0 %v5088
        %5101 = vmatmul.bf16.gmra.mxu0 %v5082
        %v5102 = vpop.f32.mrf.mxu0
        %v5103 = vadd.f32 0.0, %v5102
        %v5104 = vpop.f32.mrf.mxu0
        %v5105 = vadd.f32 0.0, %v5104
        %5106 = vmatmul.bf16.gmra.mxu0 %v5085
        %v5107 = vpop.f32.mrf.mxu0
        %v5108 = vadd.f32 0.0, %v5107
        %v5109 = vpop.f32.mrf.mxu0
        %5110 = vdwg.mxu0
        %v5111 = vsel %vm625, %v5103, -inf
        %5112 = vmax.xlane.f32.xlu0 %v5111
        %v5113 = vpop.xlane.xlu0 %5112
        %v5114 = vsel %vm625, %v5105, -inf
        %5115 = vmax.xlane.f32.xlu0 %v5114
        %v5116 = vpop.xlane.xlu0 %5115
        %v5117 = vsel %vm632, %v5108, -inf
        %5118 = vmax.xlane.f32.xlu0 %v5117
        %v5119 = vpop.xlane.xlu0 %5118
        %v5120 = vsub.f32 %v5103, %v5113
        %v5121 = vsub.f32 %v5105, %v5116
        %v5122 = vsub.f32 %v5108, %v5119
        %v5123 = vmul.f32 %v5120, 1.442695
        %v5124 = vpow.pop %v5123
        %v5125 = vmul.f32 %v5121, 1.442695
        %v5126 = vpow.pop %v5125
        %v5127 = vmul.f32 %v5122, 1.442695
        %v5128 = vpow.pop %v5127
        %v5129 = vsel %vm625, %v5124, 0.0
        %5130 = vadd.xlane.f32.xlu0 %v5129
        %v5131 = vpop.xlane.xlu0 %5130
        %v5132 = vsel %vm625, %v5126, 0.0
        %5133 = vadd.xlane.f32.xlu0 %v5132
        %v5134 = vpop.xlane.xlu0 %5133
        %v5135 = vsel %vm632, %v5128, 0.0
        %5136 = vadd.xlane.f32.xlu0 %v5135
        %v5137 = vpop.xlane.xlu0 %5136
        %v5138 = vrcp.pop %v5131
        %v5139 = vrcp.pop %v5134
        %v5140 = vrcp.pop %v5137
        %v5141 = vmul.f32 %v5124, %v5138
        %v5142 = vmul.f32 %v5126, %v5139
        %v5143 = vmul.f32 %v5128, %v5140
        %v5144 = vpack.c.bf16 %v5142, %v5141
        %v5145 = vpack.c.bf16 %v5143, %v5143
        %5146 = vrot.lane.b32.xlu0 %v5073, 64
        %v5147 = vpop.permute.xlu0 %5146
        %5148 = vrot.lane.b32.xlu0 %v5074, 64
        %v5149 = vpop.permute.xlu0 %5148
        %v5152 = vsel %vm625, %v5144, 0
        %v5155 = vsel %vm625, %v5145, 0
        %v5158 = vand.u32 %v5149, %v675
        %5160 = vmatpush.bf16.msra.mxu0 0
        %5161 = vmatpush.bf16.msra.mxu0 0
        %5162 = vmatpush.bf16.msra.mxu0 0
        %5163 = vmatpush.bf16.msra.mxu0 0
        %5164 = vmatpush.bf16.msra.mxu0 0
        %5165 = vmatpush.bf16.msra.mxu0 0
        %5166 = vmatpush.bf16.msra.mxu0 %v5158
        %5167 = vmatpush.bf16.msra.mxu0 %v5147
        %5168 = vmatmul.bf16.gmra.mxu0 %v5152
        %v5169 = vpop.f32.mrf.mxu0
        %v5170 = vadd.f32 0.0, %v5169
        %v5171 = vpop.f32.mrf.mxu0
        %v5172 = vadd.f32 0.0, %v5171
        %5173 = vmatmul.bf16.gmra.mxu0 %v5155
        %v5174 = vpop.f32.mrf.mxu0
        %v5175 = vadd.f32 0.0, %v5174
        %v5176 = vpop.f32.mrf.mxu0
        %5177 = vdwg.mxu0
        %5178 = vst.msk [vmem:[#allocation2] sm:$0xff] %vm594, %v5170
        %5179 = vst.msk [vmem:[#allocation2 + $0x8] sm:$0xff] %vm594, %v5172
        %5180 = vst.msk [vmem:[#allocation2 + $0x10] sm:$0x1] %vm699, %v5175
        %5181 = vrot.lane.b32.xlu0 %v5073, 120
        %v5182 = vpop.permute.xlu0 %5181
        %5183 = vrot.lane.b32.xlu0 %v5074, 120
        %v5184 = vpop.permute.xlu0 %5183
        %5185 = vrot.lane.b32.xlu0 %v5073, 88
        %v5186 = vpop.permute.xlu0 %5185
        %5187 = vrot.lane.b32.xlu0 %v5074, 88
        %v5188 = vpop.permute.xlu0 %5187
        %v5190 = vsel %vm594, %v5182, 0
        %v5193 = vsel %vm594, %v5184, 0
        %v5196 = vsel %vm594, %v5186, 0
        %v5199 = vsel %vm594, %v5188, 0
        %5201 = vmatpush.bf16.xpose.msra.mxu0 0
        %5202 = vmatpush.bf16.xpose.msra.mxu0 0
        %5203 = vmatpush.bf16.xpose.msra.mxu0 0
        %5204 = vmatpush.bf16.xpose.msra.mxu0 0
        %5205 = vmatpush.bf16.xpose.msra.mxu0 0
        %5206 = vmatpush.bf16.xpose.msra.mxu0 0
        %5207 = vmatpush.bf16.xpose.msra.mxu0 %v5199
        %5208 = vmatpush.bf16.xpose.msra.mxu0 %v5196
        %5209 = vmatmul.bf16.gmra.mxu0 %v5190
        %v5210 = vpop.f32.mrf.mxu0
        %v5211 = vadd.f32 0.0, %v5210
        %v5212 = vpop.f32.mrf.mxu0
        %v5213 = vadd.f32 0.0, %v5212
        %5214 = vmatmul.bf16.gmra.mxu0 %v5193
        %v5215 = vpop.f32.mrf.mxu0
        %v5216 = vadd.f32 0.0, %v5215
        %v5217 = vpop.f32.mrf.mxu0
        %5218 = vdwg.mxu0
        %v5219 = vsel %vm625, %v5211, -inf
        %5220 = vmax.xlane.f32.xlu0 %v5219
        %v5221 = vpop.xlane.xlu0 %5220
        %v5222 = vsel %vm625, %v5213, -inf
        %5223 = vmax.xlane.f32.xlu0 %v5222
        %v5224 = vpop.xlane.xlu0 %5223
        %v5225 = vsel %vm632, %v5216, -inf
        %5226 = vmax.xlane.f32.xlu0 %v5225
        %v5227 = vpop.xlane.xlu0 %5226
        %v5228 = vsub.f32 %v5211, %v5221
        %v5229 = vsub.f32 %v5213, %v5224
        %v5230 = vsub.f32 %v5216, %v5227
        %v5231 = vmul.f32 %v5228, 1.442695
        %v5232 = vpow.pop %v5231
        %v5233 = vmul.f32 %v5229, 1.442695
        %v5234 = vpow.pop %v5233
        %v5235 = vmul.f32 %v5230, 1.442695
        %v5236 = vpow.pop %v5235
        %v5237 = vsel %vm625, %v5232, 0.0
        %5238 = vadd.xlane.f32.xlu0 %v5237
        %v5239 = vpop.xlane.xlu0 %5238
        %v5240 = vsel %vm625, %v5234, 0.0
        %5241 = vadd.xlane.f32.xlu0 %v5240
        %v5242 = vpop.xlane.xlu0 %5241
        %v5243 = vsel %vm632, %v5236, 0.0
        %5244 = vadd.xlane.f32.xlu0 %v5243
        %v5245 = vpop.xlane.xlu0 %5244
        %v5246 = vrcp.pop %v5239
        %v5247 = vrcp.pop %v5242
        %v5248 = vrcp.pop %v5245
        %v5249 = vmul.f32 %v5232, %v5246
        %v5250 = vmul.f32 %v5234, %v5247
        %v5251 = vmul.f32 %v5236, %v5248
        %v5252 = vpack.c.bf16 %v5250, %v5249
        %v5253 = vpack.c.bf16 %v5251, %v5251
        %5254 = vrot.lane.b32.xlu0 %v5073, 56
        %v5255 = vpop.permute.xlu0 %5254
        %5256 = vrot.lane.b32.xlu0 %v5074, 56
        %v5257 = vpop.permute.xlu0 %5256
        %v5260 = vsel %vm625, %v5252, 0
        %v5263 = vsel %vm625, %v5253, 0
        %v5266 = vand.u32 %v5257, %v675
        %5268 = vmatpush.bf16.msra.mxu0 0
        %5269 = vmatpush.bf16.msra.mxu0 0
        %5270 = vmatpush.bf16.msra.mxu0 0
        %5271 = vmatpush.bf16.msra.mxu0 0
        %5272 = vmatpush.bf16.msra.mxu0 0
        %5273 = vmatpush.bf16.msra.mxu0 0
        %5274 = vmatpush.bf16.msra.mxu0 %v5266
        %5275 = vmatpush.bf16.msra.mxu0 %v5255
        %5276 = vmatmul.bf16.gmra.mxu0 %v5260
        %v5277 = vpop.f32.mrf.mxu0
        %v5278 = vadd.f32 0.0, %v5277
        %v5279 = vpop.f32.mrf.mxu0
        %v5280 = vadd.f32 0.0, %v5279
        %5281 = vmatmul.bf16.gmra.mxu0 %v5263
        %v5282 = vpop.f32.mrf.mxu0
        %v5283 = vadd.f32 0.0, %v5282
        %v5284 = vpop.f32.mrf.mxu0
        %5285 = vdwg.mxu0
        %5289 = vrot.lane.b32.xlu0 %v5278, 8
        %v5290 = vpop.permute.xlu0 %5289
        %5291 = vrot.lane.b32.xlu0 %v5280, 8
        %v5292 = vpop.permute.xlu0 %5291
        %5293 = vrot.lane.b32.xlu0 %v5283, 8
        %v5294 = vpop.permute.xlu0 %5293
        %5298 = vst.msk [vmem:[#allocation2] sm:$0xff] %vm818, %v5290
        %5299 = vst.msk [vmem:[#allocation2 + $0x8] sm:$0xff] %vm818, %v5292
        %5300 = vst.msk [vmem:[#allocation2 + $0x10] sm:$0x1] %vm821, %v5294
        %5301 = vrot.lane.b32.xlu0 %v5073, 112
        %v5302 = vpop.permute.xlu0 %5301
        %5303 = vrot.lane.b32.xlu0 %v5074, 112
        %v5304 = vpop.permute.xlu0 %5303
        %5305 = vrot.lane.b32.xlu0 %v5073, 80
        %v5306 = vpop.permute.xlu0 %5305
        %5307 = vrot.lane.b32.xlu0 %v5074, 80
        %v5308 = vpop.permute.xlu0 %5307
        %v5310 = vsel %vm594, %v5302, 0
        %v5313 = vsel %vm594, %v5304, 0
        %v5316 = vsel %vm594, %v5306, 0
        %v5319 = vsel %vm594, %v5308, 0
        %5321 = vmatpush.bf16.xpose.msra.mxu0 0
        %5322 = vmatpush.bf16.xpose.msra.mxu0 0
        %5323 = vmatpush.bf16.xpose.msra.mxu0 0
        %5324 = vmatpush.bf16.xpose.msra.mxu0 0
        %5325 = vmatpush.bf16.xpose.msra.mxu0 0
        %5326 = vmatpush.bf16.xpose.msra.mxu0 0
        %5327 = vmatpush.bf16.xpose.msra.mxu0 %v5319
        %5328 = vmatpush.bf16.xpose.msra.mxu0 %v5316
        %5329 = vmatmul.bf16.gmra.mxu0 %v5310
        %v5330 = vpop.f32.mrf.mxu0
        %v5331 = vadd.f32 0.0, %v5330
        %v5332 = vpop.f32.mrf.mxu0
        %v5333 = vadd.f32 0.0, %v5332
        %5334 = vmatmul.bf16.gmra.mxu0 %v5313
        %v5335 = vpop.f32.mrf.mxu0
        %v5336 = vadd.f32 0.0, %v5335
        %v5337 = vpop.f32.mrf.mxu0
        %5338 = vdwg.mxu0
        %v5339 = vsel %vm625, %v5331, -inf
        %5340 = vmax.xlane.f32.xlu0 %v5339
        %v5341 = vpop.xlane.xlu0 %5340
        %v5342 = vsel %vm625, %v5333, -inf
        %5343 = vmax.xlane.f32.xlu0 %v5342
        %v5344 = vpop.xlane.xlu0 %5343
        %v5345 = vsel %vm632, %v5336, -inf
        %5346 = vmax.xlane.f32.xlu0 %v5345
        %v5347 = vpop.xlane.xlu0 %5346
        %v5348 = vsub.f32 %v5331, %v5341
        %v5349 = vsub.f32 %v5333, %v5344
        %v5350 = vsub.f32 %v5336, %v5347
        %v5351 = vmul.f32 %v5348, 1.442695
        %v5352 = vpow.pop %v5351
        %v5353 = vmul.f32 %v5349, 1.442695
        %v5354 = vpow.pop %v5353
        %v5355 = vmul.f32 %v5350, 1.442695
        %v5356 = vpow.pop %v5355
        %v5357 = vsel %vm625, %v5352, 0.0
        %5358 = vadd.xlane.f32.xlu0 %v5357
        %v5359 = vpop.xlane.xlu0 %5358
        %v5360 = vsel %vm625, %v5354, 0.0
        %5361 = vadd.xlane.f32.xlu0 %v5360
        %v5362 = vpop.xlane.xlu0 %5361
        %v5363 = vsel %vm632, %v5356, 0.0
        %5364 = vadd.xlane.f32.xlu0 %v5363
        %v5365 = vpop.xlane.xlu0 %5364
        %v5366 = vrcp.pop %v5359
        %v5367 = vrcp.pop %v5362
        %v5368 = vrcp.pop %v5365
        %v5369 = vmul.f32 %v5352, %v5366
        %v5370 = vmul.f32 %v5354, %v5367
        %v5371 = vmul.f32 %v5356, %v5368
        %v5372 = vpack.c.bf16 %v5370, %v5369
        %v5373 = vpack.c.bf16 %v5371, %v5371
        %5374 = vrot.lane.b32.xlu0 %v5073, 48
        %v5375 = vpop.permute.xlu0 %5374
        %5376 = vrot.lane.b32.xlu0 %v5074, 48
        %v5377 = vpop.permute.xlu0 %5376
        %v5380 = vsel %vm625, %v5372, 0
        %v5383 = vsel %vm625, %v5373, 0
        %v5386 = vand.u32 %v5377, %v675
        %5388 = vmatpush.bf16.msra.mxu0 0
        %5389 = vmatpush.bf16.msra.mxu0 0
        %5390 = vmatpush.bf16.msra.mxu0 0
        %5391 = vmatpush.bf16.msra.mxu0 0
        %5392 = vmatpush.bf16.msra.mxu0 0
        %5393 = vmatpush.bf16.msra.mxu0 0
        %5394 = vmatpush.bf16.msra.mxu0 %v5386
        %5395 = vmatpush.bf16.msra.mxu0 %v5375
        %5396 = vmatmul.bf16.gmra.mxu0 %v5380
        %v5397 = vpop.f32.mrf.mxu0
        %v5398 = vadd.f32 0.0, %v5397
        %v5399 = vpop.f32.mrf.mxu0
        %v5400 = vadd.f32 0.0, %v5399
        %5401 = vmatmul.bf16.gmra.mxu0 %v5383
        %v5402 = vpop.f32.mrf.mxu0
        %v5403 = vadd.f32 0.0, %v5402
        %v5404 = vpop.f32.mrf.mxu0
        %5405 = vdwg.mxu0
        %5409 = vrot.lane.b32.xlu0 %v5398, 16
        %v5410 = vpop.permute.xlu0 %5409
        %5411 = vrot.lane.b32.xlu0 %v5400, 16
        %v5412 = vpop.permute.xlu0 %5411
        %5413 = vrot.lane.b32.xlu0 %v5403, 16
        %v5414 = vpop.permute.xlu0 %5413
        %5418 = vst.msk [vmem:[#allocation2] sm:$0xff] %vm940, %v5410
        %5419 = vst.msk [vmem:[#allocation2 + $0x8] sm:$0xff] %vm940, %v5412
        %5420 = vst.msk [vmem:[#allocation2 + $0x10] sm:$0x1] %vm943, %v5414
        %5421 = vrot.lane.b32.xlu0 %v5073, 104
        %v5422 = vpop.permute.xlu0 %5421
        %5423 = vrot.lane.b32.xlu0 %v5074, 104
        %v5424 = vpop.permute.xlu0 %5423
        %5425 = vrot.lane.b32.xlu0 %v5073, 72
        %v5426 = vpop.permute.xlu0 %5425
        %5427 = vrot.lane.b32.xlu0 %v5074, 72
        %v5428 = vpop.permute.xlu0 %5427
        %v5430 = vsel %vm594, %v5422, 0
        %v5433 = vsel %vm594, %v5424, 0
        %v5436 = vsel %vm594, %v5426, 0
        %v5439 = vsel %vm594, %v5428, 0
        %5441 = vmatpush.bf16.xpose.msra.mxu0 0
        %5442 = vmatpush.bf16.xpose.msra.mxu0 0
        %5443 = vmatpush.bf16.xpose.msra.mxu0 0
        %5444 = vmatpush.bf16.xpose.msra.mxu0 0
        %5445 = vmatpush.bf16.xpose.msra.mxu0 0
        %5446 = vmatpush.bf16.xpose.msra.mxu0 0
        %5447 = vmatpush.bf16.xpose.msra.mxu0 %v5439
        %5448 = vmatpush.bf16.xpose.msra.mxu0 %v5436
        %5449 = vmatmul.bf16.gmra.mxu0 %v5430
        %v5450 = vpop.f32.mrf.mxu0
        %v5451 = vadd.f32 0.0, %v5450
        %v5452 = vpop.f32.mrf.mxu0
        %v5453 = vadd.f32 0.0, %v5452
        %5454 = vmatmul.bf16.gmra.mxu0 %v5433
        %v5455 = vpop.f32.mrf.mxu0
        %v5456 = vadd.f32 0.0, %v5455
        %v5457 = vpop.f32.mrf.mxu0
        %5458 = vdwg.mxu0
        %v5459 = vsel %vm625, %v5451, -inf
        %5460 = vmax.xlane.f32.xlu0 %v5459
        %v5461 = vpop.xlane.xlu0 %5460
        %v5462 = vsel %vm625, %v5453, -inf
        %5463 = vmax.xlane.f32.xlu0 %v5462
        %v5464 = vpop.xlane.xlu0 %5463
        %v5465 = vsel %vm632, %v5456, -inf
        %5466 = vmax.xlane.f32.xlu0 %v5465
        %v5467 = vpop.xlane.xlu0 %5466
        %v5468 = vsub.f32 %v5451, %v5461
        %v5469 = vsub.f32 %v5453, %v5464
        %v5470 = vsub.f32 %v5456, %v5467
        %v5471 = vmul.f32 %v5468, 1.442695
        %v5472 = vpow.pop %v5471
        %v5473 = vmul.f32 %v5469, 1.442695
        %v5474 = vpow.pop %v5473
        %v5475 = vmul.f32 %v5470, 1.442695
        %v5476 = vpow.pop %v5475
        %v5477 = vsel %vm625, %v5472, 0.0
        %5478 = vadd.xlane.f32.xlu0 %v5477
        %v5479 = vpop.xlane.xlu0 %5478
        %v5480 = vsel %vm625, %v5474, 0.0
        %5481 = vadd.xlane.f32.xlu0 %v5480
        %v5482 = vpop.xlane.xlu0 %5481
        %v5483 = vsel %vm632, %v5476, 0.0
        %5484 = vadd.xlane.f32.xlu0 %v5483
        %v5485 = vpop.xlane.xlu0 %5484
        %v5486 = vrcp.pop %v5479
        %v5487 = vrcp.pop %v5482
        %v5488 = vrcp.pop %v5485
        %v5489 = vmul.f32 %v5472, %v5486
        %v5490 = vmul.f32 %v5474, %v5487
        %v5491 = vmul.f32 %v5476, %v5488
        %v5492 = vpack.c.bf16 %v5490, %v5489
        %v5493 = vpack.c.bf16 %v5491, %v5491
        %5494 = vrot.lane.b32.xlu0 %v5073, 40
        %v5495 = vpop.permute.xlu0 %5494
        %5496 = vrot.lane.b32.xlu0 %v5074, 40
        %v5497 = vpop.permute.xlu0 %5496
        %v5500 = vsel %vm625, %v5492, 0
        %v5503 = vsel %vm625, %v5493, 0
        %v5506 = vand.u32 %v5497, %v675
        %5508 = vmatpush.bf16.msra.mxu0 0
        %5509 = vmatpush.bf16.msra.mxu0 0
        %5510 = vmatpush.bf16.msra.mxu0 0
        %5511 = vmatpush.bf16.msra.mxu0 0
        %5512 = vmatpush.bf16.msra.mxu0 0
        %5513 = vmatpush.bf16.msra.mxu0 0
        %5514 = vmatpush.bf16.msra.mxu0 %v5506
        %5515 = vmatpush.bf16.msra.mxu0 %v5495
        %5516 = vmatmul.bf16.gmra.mxu0 %v5500
        %v5517 = vpop.f32.mrf.mxu0
        %v5518 = vadd.f32 0.0, %v5517
        %v5519 = vpop.f32.mrf.mxu0
        %v5520 = vadd.f32 0.0, %v5519
        %5521 = vmatmul.bf16.gmra.mxu0 %v5503
        %v5522 = vpop.f32.mrf.mxu0
        %v5523 = vadd.f32 0.0, %v5522
        %v5524 = vpop.f32.mrf.mxu0
        %5525 = vdwg.mxu0
        %5529 = vrot.lane.b32.xlu0 %v5518, 24
        %v5530 = vpop.permute.xlu0 %5529
        %5531 = vrot.lane.b32.xlu0 %v5520, 24
        %v5532 = vpop.permute.xlu0 %5531
        %5533 = vrot.lane.b32.xlu0 %v5523, 24
        %v5534 = vpop.permute.xlu0 %5533
        %5538 = vst.msk [vmem:[#allocation2] sm:$0xff] %vm1062, %v5530
        %5539 = vst.msk [vmem:[#allocation2 + $0x8] sm:$0xff] %vm1062, %v5532
        %5540 = vst.msk [vmem:[#allocation2 + $0x10] sm:$0x1] %vm1065, %v5534
        %v5541 = vld [vmem:[#allocation2] sm:$0xff]
        %v5542 = vld [vmem:[#allocation2 + $0x8] sm:$0xff]
        %v5543 = vld [vmem:[#allocation2 + $0x10] sm:$0x1]
        %v5544 = vld [vmem:[%s2848] sm:$0xf]
        %v5545 = vld [vmem:[%s2848 + $0x4] sm:$0xf]
        %v5546 = vld [vmem:[%s2848 + $0x8] sm:$0xf]
        %v5547 = vld [vmem:[%s2848 + $0xc] sm:$0xf]
        %v5548 = vld [vmem:[%s8 + $0x14] sm:$0x1]
        %v5549 = vpack.c.bf16 %v5542, %v5541
        %v5550 = vpack.c.bf16 %v5543, %v5543
        %v5551 = vperm.slane %v5548, 0
        %v5556 = vunpack.c.l.b16 %v5544
        %v5557 = vunpack.c.l.b16 %v5545
        %v5558 = vunpack.c.l.b16 %v5546
        %v5559 = vunpack.c.l.b16 %v5547
        %v5560 = vpack.c.b16 %v5557, %v5556
        %v5561 = vpack.c.b16 %v5559, %v5558
        %v5565 = vsel %vm507, %v5549, 0
        %v5568 = vsel %vm507, %v5550, 0
        %5570 = vmatpush.bf16.msra.mxu0 0
        %5571 = vmatpush.bf16.msra.mxu0 0
        %5572 = vmatpush.bf16.msra.mxu0 0
        %5573 = vmatpush.bf16.msra.mxu0 0
        %5574 = vmatpush.bf16.msra.mxu0 0
        %5575 = vmatpush.bf16.msra.mxu0 0
        %5576 = vmatpush.bf16.msra.mxu0 %v5561
        %5577 = vmatpush.bf16.msra.mxu0 %v5560
        %5578 = vmatmul.bf16.gmra.mxu0 %v5565
        %v5579 = vpop.f32.mrf.mxu0
        %v5580 = vadd.f32 %v5551, %v5579
        %v5581 = vpop.f32.mrf.mxu0
        %v5582 = vadd.f32 %v5551, %v5581
        %5583 = vmatmul.bf16.gmra.mxu0 %v5568
        %v5584 = vpop.f32.mrf.mxu0
        %v5585 = vadd.f32 %v5551, %v5584
        %v5586 = vpop.f32.mrf.mxu0
        %5587 = vdwg.mxu0
        %v5588 = vadd.f32 %v5026, %v5580
        %v5589 = vadd.f32 %v5027, %v5582
        %v5590 = vadd.f32 %v5028, %v5585
        %v5591 = vld [vmem:[%s8 + $0x17] sm:$0x1]
        %v5592 = vld [vmem:[%s8 + $0x18] sm:$0x1]
        %v5593 = vsel %vm507, %v5588, 0.0
        %5594 = vadd.xlane.f32.xlu0 %v5593
        %v5595 = vpop.xlane.xlu0 %5594
        %v5596 = vsel %vm507, %v5589, 0.0
        %5597 = vadd.xlane.f32.xlu0 %v5596
        %v5598 = vpop.xlane.xlu0 %5597
        %v5599 = vsel %vm1125, %v5590, 0.0
        %5600 = vadd.xlane.f32.xlu0 %v5599
        %v5601 = vpop.xlane.xlu0 %5600
        %v5602 = vmul.f32 %v5595, %v1135
        %v5603 = vmul.f32 %v5598, %v1135
        %v5604 = vmul.f32 %v5601, %v1135
        %v5605 = vsub.f32 %v5588, %v5602
        %v5606 = vsub.f32 %v5589, %v5603
        %v5607 = vsub.f32 %v5590, %v5604
        %v5608 = vmul.f32 %v5605, %v5605
        %v5609 = vmul.f32 %v5606, %v5606
        %v5610 = vmul.f32 %v5607, %v5607
        %v5611 = vsel %vm507, %v5608, 0.0
        %5612 = vadd.xlane.f32.xlu0 %v5611
        %v5613 = vpop.xlane.xlu0 %5612
        %v5614 = vsel %vm507, %v5609, 0.0
        %5615 = vadd.xlane.f32.xlu0 %v5614
        %v5616 = vpop.xlane.xlu0 %5615
        %v5617 = vsel %vm1125, %v5610, 0.0
        %5618 = vadd.xlane.f32.xlu0 %v5617
        %v5619 = vpop.xlane.xlu0 %5618
        %v5620 = vmul.f32 %v5613, %v1135
        %v5621 = vmul.f32 %v5616, %v1135
        %v5622 = vmul.f32 %v5619, %v1135
        %v5623 = vadd.f32 %v5620, 1e-05
        %v5624 = vadd.f32 %v5621, 1e-05
        %v5625 = vadd.f32 %v5622, 1e-05
        %v5626 = vrsqrt.pop %v5623
        %v5627 = vmul.f32 %v5626, %v5623
        %v5628 = vmul.f32 %v5627, %v5626
        %v5629 = vmul.f32 0.5, %v5628
        %v5630 = vsub.f32 1.5, %v5629
        %v5631 = vmul.f32 %v5626, %v5630
        %vm5632 = vweird.f32 %v5623
        %vm5633 = vweird.f32 %v5626
        %vm5634 = vmor %vm5632, %vm5633
        %v5635 = vsel %vm5634, %v5626, %v5631
        %v5636 = vrsqrt.pop %v5624
        %v5637 = vmul.f32 %v5636, %v5624
        %v5638 = vmul.f32 %v5637, %v5636
        %v5639 = vmul.f32 0.5, %v5638
        %v5640 = vsub.f32 1.5, %v5639
        %v5641 = vmul.f32 %v5636, %v5640
        %vm5642 = vweird.f32 %v5624
        %vm5643 = vweird.f32 %v5636
        %vm5644 = vmor %vm5642, %vm5643
        %v5645 = vsel %vm5644, %v5636, %v5641
        %v5646 = vrsqrt.pop %v5625
        %v5647 = vmul.f32 %v5646, %v5625
        %v5648 = vmul.f32 %v5647, %v5646
        %v5649 = vmul.f32 0.5, %v5648
        %v5650 = vsub.f32 1.5, %v5649
        %v5651 = vmul.f32 %v5646, %v5650
        %vm5652 = vweird.f32 %v5625
        %vm5653 = vweird.f32 %v5646
        %vm5654 = vmor %vm5652, %vm5653
        %v5655 = vsel %vm5654, %v5646, %v5651
        %v5656 = vmul.f32 %v5605, %v5635
        %v5657 = vmul.f32 %v5606, %v5645
        %v5658 = vmul.f32 %v5607, %v5655
        %v5659 = vperm.slane %v5591, 0
        %v5660 = vmul.f32 %v5656, %v5659
        %v5661 = vmul.f32 %v5657, %v5659
        %v5662 = vmul.f32 %v5658, %v5659
        %v5663 = vperm.slane %v5592, 0
        %v5664 = vadd.f32 %v5660, %v5663
        %v5665 = vadd.f32 %v5661, %v5663
        %v5666 = vadd.f32 %v5662, %v5663
        %v5667 = vld [vmem:[%s2972] sm:$0xf]
        %v5668 = vld [vmem:[%s2972 + $0x4] sm:$0xf]
        %v5669 = vld [vmem:[%s2972 + $0x8] sm:$0xf]
        %v5670 = vld [vmem:[%s2972 + $0xc] sm:$0xf]
        %v5671 = vld [vmem:[%s8 + $0x15] sm:$0x1]
        %v5672 = vpack.c.bf16 %v5665, %v5664
        %v5673 = vpack.c.bf16 %v5666, %v5666
        %v5674 = vperm.slane %v5671, 0
        %v5679 = vunpack.c.l.b16 %v5667
        %v5680 = vunpack.c.l.b16 %v5668
        %v5681 = vunpack.c.l.b16 %v5669
        %v5682 = vunpack.c.l.b16 %v5670
        %v5683 = vpack.c.b16 %v5680, %v5679
        %v5684 = vpack.c.b16 %v5682, %v5681
        %v5688 = vsel %vm507, %v5672, 0
        %v5691 = vsel %vm507, %v5673, 0
        %5693 = vmatpush.bf16.msra.mxu0 0
        %5694 = vmatpush.bf16.msra.mxu0 0
        %5695 = vmatpush.bf16.msra.mxu0 0
        %5696 = vmatpush.bf16.msra.mxu0 0
        %5697 = vmatpush.bf16.msra.mxu0 0
        %5698 = vmatpush.bf16.msra.mxu0 0
        %5699 = vmatpush.bf16.msra.mxu0 %v5684
        %5700 = vmatpush.bf16.msra.mxu0 %v5683
        %5701 = vmatmul.bf16.gmra.mxu0 %v5688
        %v5702 = vpop.f32.mrf.mxu0
        %v5703 = vadd.f32 %v5674, %v5702
        %v5704 = vpop.f32.mrf.mxu0
        %v5705 = vadd.f32 %v5674, %v5704
        %5706 = vmatmul.bf16.gmra.mxu0 %v5691
        %v5707 = vpop.f32.mrf.mxu0
        %v5708 = vadd.f32 %v5674, %v5707
        %v5709 = vpop.f32.mrf.mxu0
        %5710 = vdwg.mxu0
        %v5711 = vmax.f32 %v5703, 0.0
        %v5712 = vmax.f32 %v5705, 0.0
        %v5713 = vmax.f32 %v5708, 0.0
        %v5714 = vld [vmem:[%s3020] sm:$0xf]
        %v5715 = vld [vmem:[%s3020 + $0x4] sm:$0xf]
        %v5716 = vld [vmem:[%s3020 + $0x8] sm:$0xf]
        %v5717 = vld [vmem:[%s3020 + $0xc] sm:$0xf]
        %v5718 = vld [vmem:[%s3020 + $0x10] sm:$0xf]
        %v5719 = vld [vmem:[%s3020 + $0x14] sm:$0xf]
        %v5720 = vld [vmem:[%s3020 + $0x18] sm:$0xf]
        %v5721 = vld [vmem:[%s3020 + $0x1c] sm:$0xf]
        %v5722 = vld [vmem:[%s8 + $0x16] sm:$0x1]
        %v5723 = vpack.c.bf16 %v5712, %v5711
        %v5724 = vpack.c.bf16 %v5713, %v5713
        %v5725 = vperm.slane %v5722, 0
        %v5734 = vunpack.c.l.b16 %v5714
        %v5735 = vunpack.c.l.b16 %v5715
        %v5736 = vunpack.c.l.b16 %v5716
        %v5737 = vunpack.c.l.b16 %v5717
        %v5738 = vunpack.c.l.b16 %v5718
        %v5739 = vunpack.c.l.b16 %v5719
        %v5740 = vunpack.c.l.b16 %v5720
        %v5741 = vunpack.c.l.b16 %v5721
        %v5742 = vpack.c.b16 %v5735, %v5734
        %v5743 = vpack.c.b16 %v5737, %v5736
        %v5744 = vpack.c.b16 %v5739, %v5738
        %v5745 = vpack.c.b16 %v5741, %v5740
        %v5751 = vsel %vm1284, %v5723, 0
        %v5754 = vsel %vm1284, %v5724, 0
        %5756 = vmatpush.bf16.msra.mxu0 0
        %5757 = vmatpush.bf16.msra.mxu0 0
        %5758 = vmatpush.bf16.msra.mxu0 0
        %5759 = vmatpush.bf16.msra.mxu0 0
        %5760 = vmatpush.bf16.msra.mxu0 %v5745
        %5761 = vmatpush.bf16.msra.mxu0 %v5744
        %5762 = vmatpush.bf16.msra.mxu0 %v5743
        %5763 = vmatpush.bf16.msra.mxu0 %v5742
        %5764 = vmatmul.bf16.gmra.mxu0 %v5751
        %v5765 = vpop.f32.mrf.mxu0
        %v5766 = vadd.f32 %v5725, %v5765
        %v5767 = vpop.f32.mrf.mxu0
        %v5768 = vadd.f32 %v5725, %v5767
        %5769 = vmatmul.bf16.gmra.mxu0 %v5754
        %v5770 = vpop.f32.mrf.mxu0
        %v5771 = vadd.f32 %v5725, %v5770
        %v5772 = vpop.f32.mrf.mxu0
        %5773 = vdwg.mxu0
        %v5774 = vadd.f32 %v5664, %v5766
        %v5775 = vadd.f32 %v5665, %v5768
        %v5776 = vadd.f32 %v5666, %v5771
        %v5777 = vld [vmem:[%s8 + $0x19] sm:$0x1]
        %v5778 = vld [vmem:[%s8 + $0x1a] sm:$0x1]
        %v5779 = vsel %vm507, %v5774, 0.0
        %5780 = vadd.xlane.f32.xlu0 %v5779
        %v5781 = vpop.xlane.xlu0 %5780
        %v5782 = vsel %vm507, %v5775, 0.0
        %5783 = vadd.xlane.f32.xlu0 %v5782
        %v5784 = vpop.xlane.xlu0 %5783
        %v5785 = vsel %vm1125, %v5776, 0.0
        %5786 = vadd.xlane.f32.xlu0 %v5785
        %v5787 = vpop.xlane.xlu0 %5786
        %v5788 = vmul.f32 %v5781, %v1135
        %v5789 = vmul.f32 %v5784, %v1135
        %v5790 = vmul.f32 %v5787, %v1135
        %v5791 = vsub.f32 %v5774, %v5788
        %v5792 = vsub.f32 %v5775, %v5789
        %v5793 = vsub.f32 %v5776, %v5790
        %v5794 = vmul.f32 %v5791, %v5791
        %v5795 = vmul.f32 %v5792, %v5792
        %v5796 = vmul.f32 %v5793, %v5793
        %v5797 = vsel %vm507, %v5794, 0.0
        %5798 = vadd.xlane.f32.xlu0 %v5797
        %v5799 = vpop.xlane.xlu0 %5798
        %v5800 = vsel %vm507, %v5795, 0.0
        %5801 = vadd.xlane.f32.xlu0 %v5800
        %v5802 = vpop.xlane.xlu0 %5801
        %v5803 = vsel %vm1125, %v5796, 0.0
        %5804 = vadd.xlane.f32.xlu0 %v5803
        %v5805 = vpop.xlane.xlu0 %5804
        %v5806 = vmul.f32 %v5799, %v1135
        %v5807 = vmul.f32 %v5802, %v1135
        %v5808 = vmul.f32 %v5805, %v1135
        %v5809 = vadd.f32 %v5806, 1e-05
        %v5810 = vadd.f32 %v5807, 1e-05
        %v5811 = vadd.f32 %v5808, 1e-05
        %v5812 = vrsqrt.pop %v5809
        %v5813 = vmul.f32 %v5812, %v5809
        %v5814 = vmul.f32 %v5813, %v5812
        %v5815 = vmul.f32 0.5, %v5814
        %v5816 = vsub.f32 1.5, %v5815
        %v5817 = vmul.f32 %v5812, %v5816
        %vm5818 = vweird.f32 %v5809
        %vm5819 = vweird.f32 %v5812
        %vm5820 = vmor %vm5818, %vm5819
        %v5821 = vsel %vm5820, %v5812, %v5817
        %v5822 = vrsqrt.pop %v5810
        %v5823 = vmul.f32 %v5822, %v5810
        %v5824 = vmul.f32 %v5823, %v5822
        %v5825 = vmul.f32 0.5, %v5824
        %v5826 = vsub.f32 1.5, %v5825
        %v5827 = vmul.f32 %v5822, %v5826
        %vm5828 = vweird.f32 %v5810
        %vm5829 = vweird.f32 %v5822
        %vm5830 = vmor %vm5828, %vm5829
        %v5831 = vsel %vm5830, %v5822, %v5827
        %v5832 = vrsqrt.pop %v5811
        %v5833 = vmul.f32 %v5832, %v5811
        %v5834 = vmul.f32 %v5833, %v5832
        %v5835 = vmul.f32 0.5, %v5834
        %v5836 = vsub.f32 1.5, %v5835
        %v5837 = vmul.f32 %v5832, %v5836
        %vm5838 = vweird.f32 %v5811
        %vm5839 = vweird.f32 %v5832
        %vm5840 = vmor %vm5838, %vm5839
        %v5841 = vsel %vm5840, %v5832, %v5837
        %v5842 = vmul.f32 %v5791, %v5821
        %v5843 = vmul.f32 %v5792, %v5831
        %v5844 = vmul.f32 %v5793, %v5841
        %v5845 = vperm.slane %v5777, 0
        %v5846 = vmul.f32 %v5842, %v5845
        %v5847 = vmul.f32 %v5843, %v5845
        %v5848 = vmul.f32 %v5844, %v5845
        %v5849 = vperm.slane %v5778, 0
        %v5850 = vadd.f32 %v5846, %v5849
        %v5851 = vadd.f32 %v5847, %v5849
        %v5852 = vadd.f32 %v5848, %v5849
        %v5853 = vpack.c.bf16 %v5851, %v5850
        %v5854 = vpack.c.bf16 %v5852, %v5852
        %v5856 = vsel %vm507, %v5853, 0
        %v5859 = vsel %vm507, %v5854, 0
        %5861 = vmatpush.bf16.msra.mxu0 0
        %5862 = vmatpush.bf16.msra.mxu0 0
        %5863 = vmatpush.bf16.msra.mxu0 0
        %5864 = vmatpush.bf16.msra.mxu0 0
        %5865 = vmatpush.bf16.msra.mxu0 0
        %5866 = vmatpush.bf16.msra.mxu0 0
        %5867 = vmatpush.bf16.msra.mxu0 %v3172
        %5868 = vmatpush.bf16.msra.mxu0 %v3171
        %5869 = vmatmul.bf16.gmra.mxu0 %v5856
        %v5870 = vpop.f32.mrf.mxu0
        %v5871 = vadd.f32 %v3162, %v5870
        %v5872 = vpop.f32.mrf.mxu0
        %v5873 = vadd.f32 %v3162, %v5872
        %5874 = vmatmul.bf16.gmra.mxu0 %v5859
        %v5875 = vpop.f32.mrf.mxu0
        %v5876 = vadd.f32 %v3162, %v5875
        %v5877 = vpop.f32.mrf.mxu0
        %5878 = vdwg.mxu0
        %s5879 = scalar_lea.vmem %s470, 24
        %5880 = vst [vmem:[%s5879] sm:$0xff] %v5871
        %5881 = vst [vmem:[%s5879 + $0x8] sm:$0xff] %v5873
        %5882 = vst [vmem:[%s5879 + $0x10] sm:$0x1] %v5876
        %s5883 = smul.u32 2, %s20
        %p5884 = scmp.lt.s32.totalorder %s5883, 3
        %s5885 = scalar_select %p5884, %s5883, 3
        %s5886 = smul.addr %s5885, 3
        %s5887 = smul.addr %s5886, 8
        %s5888 = scalar_lea.vmem %s9, %s5887
        // Predicated region
        $region98: #{tpu_custom_call.1} parent=92 // pred_check
          %p5889 = pneg %p237
        $region99: #{tpu_custom_call.1} parent=92 // pred_check_branch
          %5891 = sbr.rel (%p5889) target = $region101
        $region100: #{tpu_custom_call.1} parent=92 // pred_region
          %s5892 = smul.u32 2, %s20
        $region101: #{tpu_custom_call.1} parent=92 // pred_fallthru
          _
      $region93: #{tpu_custom_call.1} parent=5 // pred_fallthru
        _
      %p5893 = scmp.le.s32.totalorder 2, %s15
      // Predicated region
      $region102: #{tpu_custom_call.1} parent=5 // pred_check
        %p5894 = pneg %p5893
      $region103: #{tpu_custom_call.1} parent=5 // pred_check_branch
        %5896 = sbr.rel (%p5894) target = $region105
      $region104: #{tpu_custom_call.1} parent=5 // pred_region
        %s5897 = ssub.s32 %s15, 2
        // Predicated region
        $region106: #{tpu_custom_call.1} parent=104 // pred_check
          %p5898 = pneg %p243
        $region107: #{tpu_custom_call.1} parent=104 // pred_check_branch
          %5900 = sbr.rel (%p5898) target = $region109
        $region108: #{tpu_custom_call.1} parent=104 // pred_region
          %s5901 = smul.u32 2, %s21
          %p5902 = scmp.lt.s32.totalorder %s5901, 3
          %s5903 = scalar_select %p5902, %s5901, 3
          %s5904 = smul.addr %s5903, 3
          %s5905 = smul.addr %s5904, 8
          %s5906 = scalar_lea.vmem %s9, %s5905
        $region109: #{tpu_custom_call.1} parent=104 // pred_fallthru
          _
      $region105: #{tpu_custom_call.1} parent=5 // pred_fallthru
        _
    $region6: #{tpu_custom_call.1} parent=1 // loop_footer
      %s19 = sadd.s32 1, %s15
    $region7: #{tpu_custom_call.1} parent=1 // loop_footer_branch
      %14 = sbr.rel target = $region3
    $region8: #{tpu_custom_call.1} parent=1 // loop_exit
      _

</llo_original>
